<compile_context>
chip_gen: v5e
topology: v5e:2x2
jax: 0.10.0
libtpu: 0.0.40
codegen_flags: <defaults>
</compile_context>

<pallas_src>
import functools

import numpy as np
import jax
import jax.numpy as jnp
from jax.experimental import pallas as pl
from jax.experimental.pallas import tpu as pltpu


_TILE_P = 128  # points per grid step (sublane axis of the point tile)


# ----------------------------------------------------------------------------
# Fused kernel: projection -> normalize/clamp -> bilinear grid_sample -> concat
# ----------------------------------------------------------------------------
def _llff_kernel(pts_ref, img_ref, out_ref, *, proj, n_planes, hw,
                 h_img, w_img, h_norm, w_norm):
    # pts_ref : (TILE_P, 3)            VMEM   query points (x, y, z)
    # img_ref : (n_planes*3, h*w)      VMEM   flattened CHW images (lane-dense)
    # out_ref : (TILE_P, 5*n_planes)   VMEM   [feats (3N) | pixels (2N)]
    # proj    : static tuple of N tuples of 12 floats (K @ inv(pose), row-major)
    tile_p = pts_ref.shape[0]
    out_dim = out_ref.shape[1]
    x = pts_ref[:, 0:1]
    y = pts_ref[:, 1:2]
    z = pts_ref[:, 2:3]
    # lane iota over the flattened image; hoisted out of the plane loop
    hw_iota = jax.lax.broadcasted_iota(jnp.int32, (tile_p, hw), 1)

    cols = [None] * out_dim
    for n in range(n_planes):          # N is small and static -> unrolled
        a = proj[n]                    # 12 immediates, no SMEM traffic

        # ps = proj @ [x, y, z, 1]^T   (pure VPU const*vector math)
        psx = a[0] * x + a[1] * y + a[2] * z + a[3]
        psy = a[4] * x + a[5] * y + a[6] * z + a[7]
        psz = a[8] * x + a[9] * y + a[10] * z + a[11]

        # normalized grid coords in [-1, 1] (these are also outputs)
        gx = jnp.clip(psx / psz / w_norm, 0.0, 1.0) * 2.0 - 1.0
        gy = jnp.clip(psy / psz / h_norm, 0.0, 1.0) * 2.0 - 1.0

        # grid_sample unnormalization, align_corners=False
        ix = ((gx + 1.0) * w_img - 1.0) * 0.5
        iy = ((gy + 1.0) * h_img - 1.0) * 0.5
        x0f = jnp.floor(ix)
        y0f = jnp.floor(iy)
        wx1 = ix - x0f
        wx0 = 1.0 - wx1
        wy1 = iy - y0f
        wy0 = 1.0 - wy1
        x0 = x0f.astype(jnp.int32)
        x1 = x0 + 1
        y0 = y0f.astype(jnp.int32)
        y1 = y0 + 1

        # Bilinear sampling with padding_mode='zeros' as a masked one-hot
        # weight map over the flattened image (lane-dense over H*W). Exact f32.
        samp = jnp.zeros((tile_p, hw), jnp.float32)
        corners = ((y0, x0, wy0 * wx0), (y0, x1, wy0 * wx1),
                   (y1, x0, wy1 * wx0), (y1, x1, wy1 * wx1))
        for yi, xi, wgt in corners:
            valid = (xi >= 0) & (xi < w_img) & (yi >= 0) & (yi < h_img)
            wv = jnp.where(valid, wgt, 0.0)        # (TILE_P, 1)
            idx = yi * w_img + xi                  # (TILE_P, 1) int32
            samp = samp + jnp.where(hw_iota == idx, wv, 0.0)

        # feats[:, 3n + c] = sum_hw samp * image[n, c]  (VPU mul + lane reduce)
        for c in range(3):
            row = img_ref[3 * n + c:3 * n + c + 1, :]          # (1, hw)
            cols[3 * n + c] = jnp.sum(samp * row, axis=1, keepdims=True)

        # pixels block: columns [3N + 2n, 3N + 2n + 1] = (gx, gy)
        cols[3 * n_planes + 2 * n] = gx
        cols[3 * n_planes + 2 * n + 1] = gy

    # Assemble the whole (TILE_P, 5N) block in registers, single store.
    col_iota = jax.lax.broadcasted_iota(jnp.int32, (tile_p, out_dim), 1)
    out = jnp.zeros((tile_p, out_dim), jnp.float32)
    for j, col in enumerate(cols):
        out = jnp.where(col_iota == j, col, out)
    out_ref[...] = out


def llff_image_planes_forward(points, images_flat, *, proj, n_planes,
                              h_img, w_img, h_norm, w_norm):
    # points: (P, 3) or (1, P, 3) float32
    if points.ndim == 3 and points.shape[0] == 1:
        points = points[0]
    points = points.astype(jnp.float32)
    p = points.shape[0]
    p_pad = pl.cdiv(p, _TILE_P) * _TILE_P
    if p_pad != p:
        points = jnp.pad(points, ((0, p_pad - p), (0, 0)))

    hw = h_img * w_img
    out_dim = 5 * n_planes
    kern = functools.partial(
        _llff_kernel, proj=proj, n_planes=n_planes, hw=hw,
        h_img=h_img, w_img=w_img, h_norm=float(h_norm), w_norm=float(w_norm))
    out = pl.pallas_call(
        kern,
        out_shape=jax.ShapeDtypeStruct((p_pad, out_dim), jnp.float32),
        grid=(p_pad // _TILE_P,),
        in_specs=[
            pl.BlockSpec((_TILE_P, 3), lambda i: (i, 0)),
            pl.BlockSpec((3 * n_planes, hw), lambda i: (0, 0)),  # const block
        ],
        out_specs=pl.BlockSpec((_TILE_P, out_dim), lambda i: (i, 0)),
        compiler_params=pltpu.CompilerParams(
            dimension_semantics=("parallel",)),
    )(points, images_flat)
    return out[:p]


# ----------------------------------------------------------------------------
# Module wrapper (mirrors LLFFImagePlanes.__init__ host-side preprocessing)
# ----------------------------------------------------------------------------
class LLFFImagePlanesPallas:
    def __init__(self, hwf, poses, images, count):
        h, w, focal = hwf
        n = int(min(count, poses.shape[0]))
        flip = np.diag([-1.0, 1.0, 1.0, 1.0]).astype(np.float32)
        k_mat = np.array([[focal, 0.0, 0.5 * w],
                          [0.0, focal, 0.5 * h],
                          [0.0, 0.0, 1.0]], np.float32)
        proj = np.zeros((n, 3, 4), np.float32)
        imgs = []
        for i in range(n):
            m = np.concatenate(
                [poses[i].astype(np.float32),
                 np.array([[0.0, 0.0, 0.0, 1.0]], np.float32)], axis=0)
            m = m @ flip
            m = np.linalg.inv(m)[0:3]            # torch.inverse(M)[0:3]
            proj[i] = k_mat @ m                  # K @ pose (constant folded)
            imgs.append(np.transpose(images[i], (2, 0, 1)))   # HWC -> CHW
        imgs = np.stack(imgs).astype(np.float32)              # (N, 3, Hi, Wi)

        self.n_planes = n
        self.h_img, self.w_img = int(imgs.shape[2]), int(imgs.shape[3])
        self.h_norm, self.w_norm = float(h), float(w)
        self.proj = proj
        self.images = imgs
        # Projection coefficients are module constants -> bake as immediates.
        proj_consts = tuple(tuple(float(v) for v in proj[i].reshape(-1))
                            for i in range(n))
        self.images_flat = jnp.asarray(
            imgs.reshape(n * 3, self.h_img * self.w_img))
        self._fwd = jax.jit(functools.partial(
            llff_image_planes_forward, proj=proj_consts,
            n_planes=self.n_planes, h_img=self.h_img, w_img=self.w_img,
            h_norm=self.h_norm, w_norm=self.w_norm))

    def __call__(self, points):
        return self._fwd(points, self.images_flat)


# ----------------------------------------------------------------------------
# Pure-numpy reference (mirrors PyTorch semantics exactly)
# ----------------------------------------------------------------------------
def reference_forward(points, proj, images, h_img, w_img, h_norm, w_norm):
    points = np.asarray(points, np.float32)
    if points.ndim == 3 and points.shape[0] == 1:
        points = points[0]
    p = points.shape[0]
    n = proj.shape[0]

    pts_h = np.concatenate([points, np.ones((p, 1), np.float32)], axis=1)
    ps = proj @ pts_h.T                                  # (N, 3, P)
    pix = ps[:, 0:2, :] / ps[:, 2:3, :]
    pix[:, 0] /= w_norm
    pix[:, 1] /= h_norm
    pix = np.clip(pix, 0.0, 1.0) * 2.0 - 1.0             # (N, 2, P)
    gx, gy = pix[:, 0, :], pix[:, 1, :]

    feats = np.zeros((n, 3, p), np.float32)
    for i in range(n):
        ix = ((gx[i] + 1.0) * w_img - 1.0) / 2.0
        iy = ((gy[i] + 1.0) * h_img - 1.0) / 2.0
        x0f = np.floor(ix)
        y0f = np.floor(iy)
        wx1 = (ix - x0f).astype(np.float32)
        wx0 = 1.0 - wx1
        wy1 = (iy - y0f).astype(np.float32)
        wy0 = 1.0 - wy1
        x0 = x0f.astype(np.int64)
        x1 = x0 + 1
        y0 = y0f.astype(np.int64)
        y1 = y0 + 1
        for xi, yi, wgt in ((x0, y0, wx0 * wy0), (x1, y0, wx1 * wy0),
                            (x0, y1, wx0 * wy1), (x1, y1, wx1 * wy1)):
            valid = (xi >= 0) & (xi < w_img) & (yi >= 0) & (yi < h_img)
            xc = np.clip(xi, 0, w_img - 1)
            yc = np.clip(yi, 0, h_img - 1)
            vals = images[i][:, yc, xc]                  # (3, P)
            feats[i] += np.where(valid, wgt, np.float32(0.0))[None, :] * vals

    feat_block = np.transpose(feats, (2, 0, 1)).reshape(p, 3 * n)
    pix_block = np.transpose(pix, (2, 0, 1)).reshape(p, 2 * n)
    return np.concatenate([feat_block, pix_block], axis=1)


if __name__ == "__main__":
    key = jax.random.PRNGKey(0)
    k_pts, k_img = jax.random.split(key)

    n_planes = 3
    h = w = 16            # hwf H, W (pixel normalization)
    focal = 20.0
    h_img = w_img = 16    # actual image resolution

    # small synthetic camera-to-world poses [R | t], LLFF style
    def rot_y(t):
        c, s = np.cos(t), np.sin(t)
        return np.array([[c, 0, s], [0, 1, 0], [-s, 0, c]], np.float32)

    def rot_x(t):
        c, s = np.cos(t), np.sin(t)
        return np.array([[1, 0, 0], [0, c, -s], [0, s, c]], np.float32)

    poses = []
    for i in range(n_planes):
        r = rot_y(0.10 * i) @ rot_x(0.05 * i)
        t = np.array([[0.15 * i], [-0.10 * i], [0.05 * i]], np.float32)
        poses.append(np.concatenate([r, t], axis=1))
    poses = np.stack(poses).astype(np.float32)           # (N, 3, 4)

    # synthetic HWC images (like the numpy images the torch module receives)
    images_hwc = np.asarray(
        jax.random.uniform(k_img, (n_planes, h_img, w_img, 3), jnp.float32))

    planes = LLFFImagePlanesPallas((h, w, focal), poses, images_hwc,
                                   count=n_planes)

    # query points: x, y in [-1, 1], z in [2.5, 4] (in front of the cameras)
    p = 200
    pts = jax.random.uniform(k_pts, (p, 3), jnp.float32)
    pts = pts * jnp.array([2.0, 2.0, 1.5], jnp.float32) \
              + jnp.array([-1.0, -1.0, 2.5], jnp.float32)

    out = jax.block_until_ready(planes(pts))
    assert out.shape == (p, 5 * n_planes), out.shape

    ref = reference_forward(points=np.asarray(pts), proj=planes.proj,
                            images=planes.images, h_img=h_img, w_img=w_img,
                            h_norm=float(h), w_norm=float(w))
    np.testing.assert_allclose(np.asarray(out), ref, rtol=1e-3, atol=1e-3)

    print("KERNEL_OK")
</pallas_src>

<mosaic_0001>
module attributes {stable_mosaic.version = 11 : i64} {
  func.func @_llff_kernel(%arg0: i32, %arg1: memref<128x3xf32, #tpu.memory_space<vmem>>, %arg2: memref<9x256xf32, #tpu.memory_space<vmem>>, %arg3: memref<128x15xf32, #tpu.memory_space<vmem>>) attributes {dimension_semantics = [#tpu.dimension_semantics<parallel>], iteration_bounds = array<i64: 2>, scalar_prefetch = 0 : i64, scratch_operands = 0 : i64, tpu.core_type = #tpu.core_type<tc>, window_params = [{transform_indices = @transform_0, window_bounds = array<i64: 128, 3>}, {pipeline_mode = #tpu.pipeline_mode<synchronous>, transform_indices = @transform_1, window_bounds = array<i64: 9, 256>}, {transform_indices = @transform_2, window_bounds = array<i64: 128, 15>}]} {
    %c0 = arith.constant 0 : index
    %c0_0 = arith.constant 0 : index
    %0 = vector.load %arg1[%c0, %c0_0] : memref<128x3xf32, #tpu.memory_space<vmem>>, vector<128x1xf32>
    %c0_1 = arith.constant 0 : index
    %c1 = arith.constant 1 : index
    %1 = vector.load %arg1[%c0_1, %c1] : memref<128x3xf32, #tpu.memory_space<vmem>>, vector<128x1xf32>
    %c0_2 = arith.constant 0 : index
    %c2 = arith.constant 2 : index
    %2 = vector.load %arg1[%c0_2, %c2] : memref<128x3xf32, #tpu.memory_space<vmem>>, vector<128x1xf32>
    %3 = tpu.iota {dimensions = array<i32: 1>} : vector<128x256xi32>
    %cst = arith.constant -2.000000e+01 : f32
    %4 = vector.broadcast %cst : f32 to vector<128x1xf32>
    %5 = arith.mulf %4, %0 : vector<128x1xf32>
    %cst_3 = arith.constant 0.000000e+00 : f32
    %6 = vector.broadcast %cst_3 : f32 to vector<128x1xf32>
    %7 = arith.mulf %6, %1 : vector<128x1xf32>
    %8 = arith.addf %5, %7 : vector<128x1xf32>
    %cst_4 = arith.constant 8.000000e+00 : f32
    %9 = vector.broadcast %cst_4 : f32 to vector<128x1xf32>
    %10 = arith.mulf %9, %2 : vector<128x1xf32>
    %11 = arith.addf %8, %10 : vector<128x1xf32>
    %cst_5 = arith.constant 0.000000e+00 : f32
    %12 = vector.broadcast %cst_5 : f32 to vector<128x1xf32>
    %13 = arith.addf %11, %12 : vector<128x1xf32>
    %cst_6 = arith.constant 0.000000e+00 : f32
    %14 = vector.broadcast %cst_6 : f32 to vector<128x1xf32>
    %15 = arith.mulf %14, %0 : vector<128x1xf32>
    %cst_7 = arith.constant 2.000000e+01 : f32
    %16 = vector.broadcast %cst_7 : f32 to vector<128x1xf32>
    %17 = arith.mulf %16, %1 : vector<128x1xf32>
    %18 = arith.addf %15, %17 : vector<128x1xf32>
    %cst_8 = arith.constant 8.000000e+00 : f32
    %19 = vector.broadcast %cst_8 : f32 to vector<128x1xf32>
    %20 = arith.mulf %19, %2 : vector<128x1xf32>
    %21 = arith.addf %18, %20 : vector<128x1xf32>
    %cst_9 = arith.constant 0.000000e+00 : f32
    %22 = vector.broadcast %cst_9 : f32 to vector<128x1xf32>
    %23 = arith.addf %21, %22 : vector<128x1xf32>
    %cst_10 = arith.constant 0.000000e+00 : f32
    %24 = vector.broadcast %cst_10 : f32 to vector<128x1xf32>
    %25 = arith.mulf %24, %0 : vector<128x1xf32>
    %cst_11 = arith.constant 0.000000e+00 : f32
    %26 = vector.broadcast %cst_11 : f32 to vector<128x1xf32>
    %27 = arith.mulf %26, %1 : vector<128x1xf32>
    %28 = arith.addf %25, %27 : vector<128x1xf32>
    %cst_12 = arith.constant 1.000000e+00 : f32
    %29 = vector.broadcast %cst_12 : f32 to vector<128x1xf32>
    %30 = arith.mulf %29, %2 : vector<128x1xf32>
    %31 = arith.addf %28, %30 : vector<128x1xf32>
    %cst_13 = arith.constant 0.000000e+00 : f32
    %32 = vector.broadcast %cst_13 : f32 to vector<128x1xf32>
    %33 = arith.addf %31, %32 : vector<128x1xf32>
    %34 = arith.divf %13, %33 : vector<128x1xf32>
    %cst_14 = arith.constant 1.600000e+01 : f32
    %35 = vector.broadcast %cst_14 : f32 to vector<128x1xf32>
    %36 = arith.divf %34, %35 : vector<128x1xf32>
    %cst_15 = arith.constant 0.000000e+00 : f32
    %cst_16 = arith.constant 1.000000e+00 : f32
    %37 = vector.broadcast %cst_15 : f32 to vector<128x1xf32>
    %38 = arith.maximumf %37, %36 : vector<128x1xf32>
    %39 = vector.broadcast %cst_16 : f32 to vector<128x1xf32>
    %40 = arith.minimumf %39, %38 : vector<128x1xf32>
    %cst_17 = arith.constant 2.000000e+00 : f32
    %41 = vector.broadcast %cst_17 : f32 to vector<128x1xf32>
    %42 = arith.mulf %40, %41 : vector<128x1xf32>
    %cst_18 = arith.constant 1.000000e+00 : f32
    %43 = vector.broadcast %cst_18 : f32 to vector<128x1xf32>
    %44 = arith.subf %42, %43 : vector<128x1xf32>
    %45 = arith.divf %23, %33 : vector<128x1xf32>
    %cst_19 = arith.constant 1.600000e+01 : f32
    %46 = vector.broadcast %cst_19 : f32 to vector<128x1xf32>
    %47 = arith.divf %45, %46 : vector<128x1xf32>
    %cst_20 = arith.constant 0.000000e+00 : f32
    %cst_21 = arith.constant 1.000000e+00 : f32
    %48 = vector.broadcast %cst_20 : f32 to vector<128x1xf32>
    %49 = arith.maximumf %48, %47 : vector<128x1xf32>
    %50 = vector.broadcast %cst_21 : f32 to vector<128x1xf32>
    %51 = arith.minimumf %50, %49 : vector<128x1xf32>
    %cst_22 = arith.constant 2.000000e+00 : f32
    %52 = vector.broadcast %cst_22 : f32 to vector<128x1xf32>
    %53 = arith.mulf %51, %52 : vector<128x1xf32>
    %cst_23 = arith.constant 1.000000e+00 : f32
    %54 = vector.broadcast %cst_23 : f32 to vector<128x1xf32>
    %55 = arith.subf %53, %54 : vector<128x1xf32>
    %cst_24 = arith.constant 1.000000e+00 : f32
    %56 = vector.broadcast %cst_24 : f32 to vector<128x1xf32>
    %57 = arith.addf %44, %56 : vector<128x1xf32>
    %cst_25 = arith.constant 1.600000e+01 : f32
    %58 = vector.broadcast %cst_25 : f32 to vector<128x1xf32>
    %59 = arith.mulf %57, %58 : vector<128x1xf32>
    %cst_26 = arith.constant 1.000000e+00 : f32
    %60 = vector.broadcast %cst_26 : f32 to vector<128x1xf32>
    %61 = arith.subf %59, %60 : vector<128x1xf32>
    %cst_27 = arith.constant 5.000000e-01 : f32
    %62 = vector.broadcast %cst_27 : f32 to vector<128x1xf32>
    %63 = arith.mulf %61, %62 : vector<128x1xf32>
    %cst_28 = arith.constant 1.000000e+00 : f32
    %64 = vector.broadcast %cst_28 : f32 to vector<128x1xf32>
    %65 = arith.addf %55, %64 : vector<128x1xf32>
    %cst_29 = arith.constant 1.600000e+01 : f32
    %66 = vector.broadcast %cst_29 : f32 to vector<128x1xf32>
    %67 = arith.mulf %65, %66 : vector<128x1xf32>
    %cst_30 = arith.constant 1.000000e+00 : f32
    %68 = vector.broadcast %cst_30 : f32 to vector<128x1xf32>
    %69 = arith.subf %67, %68 : vector<128x1xf32>
    %cst_31 = arith.constant 5.000000e-01 : f32
    %70 = vector.broadcast %cst_31 : f32 to vector<128x1xf32>
    %71 = arith.mulf %69, %70 : vector<128x1xf32>
    %72 = math.floor %63 : vector<128x1xf32>
    %73 = math.floor %71 : vector<128x1xf32>
    %74 = arith.subf %63, %72 : vector<128x1xf32>
    %cst_32 = arith.constant 1.000000e+00 : f32
    %75 = vector.broadcast %cst_32 : f32 to vector<128x1xf32>
    %76 = arith.subf %75, %74 : vector<128x1xf32>
    %77 = arith.subf %71, %73 : vector<128x1xf32>
    %cst_33 = arith.constant 1.000000e+00 : f32
    %78 = vector.broadcast %cst_33 : f32 to vector<128x1xf32>
    %79 = arith.subf %78, %77 : vector<128x1xf32>
    %80 = arith.fptosi %72 : vector<128x1xf32> to vector<128x1xi32>
    %c1_i32 = arith.constant 1 : i32
    %81 = vector.broadcast %c1_i32 : i32 to vector<128x1xi32>
    %82 = arith.addi %80, %81 : vector<128x1xi32>
    %83 = arith.fptosi %73 : vector<128x1xf32> to vector<128x1xi32>
    %c1_i32_34 = arith.constant 1 : i32
    %84 = vector.broadcast %c1_i32_34 : i32 to vector<128x1xi32>
    %85 = arith.addi %83, %84 : vector<128x1xi32>
    %cst_35 = arith.constant 0.000000e+00 : f32
    %86 = vector.broadcast %cst_35 : f32 to vector<128x256xf32>
    %87 = arith.mulf %79, %76 : vector<128x1xf32>
    %88 = arith.mulf %79, %74 : vector<128x1xf32>
    %89 = arith.mulf %77, %76 : vector<128x1xf32>
    %90 = arith.mulf %77, %74 : vector<128x1xf32>
    %c0_i32 = arith.constant 0 : i32
    %91 = vector.broadcast %c0_i32 : i32 to vector<128x1xi32>
    %92 = arith.cmpi sge, %80, %91 : vector<128x1xi32>
    %c16_i32 = arith.constant 16 : i32
    %93 = vector.broadcast %c16_i32 : i32 to vector<128x1xi32>
    %94 = arith.cmpi slt, %80, %93 : vector<128x1xi32>
    %95 = arith.andi %92, %94 : vector<128x1xi1>
    %c0_i32_36 = arith.constant 0 : i32
    %96 = vector.broadcast %c0_i32_36 : i32 to vector<128x1xi32>
    %97 = arith.cmpi sge, %83, %96 : vector<128x1xi32>
    %98 = arith.andi %95, %97 : vector<128x1xi1>
    %c16_i32_37 = arith.constant 16 : i32
    %99 = vector.broadcast %c16_i32_37 : i32 to vector<128x1xi32>
    %100 = arith.cmpi slt, %83, %99 : vector<128x1xi32>
    %101 = arith.andi %98, %100 : vector<128x1xi1>
    %cst_38 = arith.constant 0.000000e+00 : f32
    %102 = vector.broadcast %cst_38 : f32 to vector<128x1xf32>
    %103 = arith.select %101, %87, %102 : vector<128x1xi1>, vector<128x1xf32>
    %c16_i32_39 = arith.constant 16 : i32
    %104 = vector.broadcast %c16_i32_39 : i32 to vector<128x1xi32>
    %105 = arith.muli %83, %104 : vector<128x1xi32>
    %106 = arith.addi %105, %80 : vector<128x1xi32>
    %107 = vector.broadcast %106 : vector<128x1xi32> to vector<128x256xi32>
    %108 = arith.cmpi eq, %3, %107 : vector<128x256xi32>
    %cst_40 = arith.constant 0.000000e+00 : f32
    %109 = vector.shape_cast %103 : vector<128x1xf32> to vector<128x1xf32>
    %110 = vector.broadcast %109 : vector<128x1xf32> to vector<128x256xf32>
    %111 = vector.broadcast %cst_40 : f32 to vector<128x256xf32>
    %112 = arith.select %108, %110, %111 : vector<128x256xi1>, vector<128x256xf32>
    %113 = arith.addf %86, %112 : vector<128x256xf32>
    %c0_i32_41 = arith.constant 0 : i32
    %114 = vector.broadcast %c0_i32_41 : i32 to vector<128x1xi32>
    %115 = arith.cmpi sge, %82, %114 : vector<128x1xi32>
    %c16_i32_42 = arith.constant 16 : i32
    %116 = vector.broadcast %c16_i32_42 : i32 to vector<128x1xi32>
    %117 = arith.cmpi slt, %82, %116 : vector<128x1xi32>
    %118 = arith.andi %115, %117 : vector<128x1xi1>
    %c0_i32_43 = arith.constant 0 : i32
    %119 = vector.broadcast %c0_i32_43 : i32 to vector<128x1xi32>
    %120 = arith.cmpi sge, %83, %119 : vector<128x1xi32>
    %121 = arith.andi %118, %120 : vector<128x1xi1>
    %c16_i32_44 = arith.constant 16 : i32
    %122 = vector.broadcast %c16_i32_44 : i32 to vector<128x1xi32>
    %123 = arith.cmpi slt, %83, %122 : vector<128x1xi32>
    %124 = arith.andi %121, %123 : vector<128x1xi1>
    %cst_45 = arith.constant 0.000000e+00 : f32
    %125 = vector.broadcast %cst_45 : f32 to vector<128x1xf32>
    %126 = arith.select %124, %88, %125 : vector<128x1xi1>, vector<128x1xf32>
    %c16_i32_46 = arith.constant 16 : i32
    %127 = vector.broadcast %c16_i32_46 : i32 to vector<128x1xi32>
    %128 = arith.muli %83, %127 : vector<128x1xi32>
    %129 = arith.addi %128, %82 : vector<128x1xi32>
    %130 = vector.broadcast %129 : vector<128x1xi32> to vector<128x256xi32>
    %131 = arith.cmpi eq, %3, %130 : vector<128x256xi32>
    %cst_47 = arith.constant 0.000000e+00 : f32
    %132 = vector.shape_cast %126 : vector<128x1xf32> to vector<128x1xf32>
    %133 = vector.broadcast %132 : vector<128x1xf32> to vector<128x256xf32>
    %134 = vector.broadcast %cst_47 : f32 to vector<128x256xf32>
    %135 = arith.select %131, %133, %134 : vector<128x256xi1>, vector<128x256xf32>
    %136 = arith.addf %113, %135 : vector<128x256xf32>
    %c0_i32_48 = arith.constant 0 : i32
    %137 = vector.broadcast %c0_i32_48 : i32 to vector<128x1xi32>
    %138 = arith.cmpi sge, %80, %137 : vector<128x1xi32>
    %c16_i32_49 = arith.constant 16 : i32
    %139 = vector.broadcast %c16_i32_49 : i32 to vector<128x1xi32>
    %140 = arith.cmpi slt, %80, %139 : vector<128x1xi32>
    %141 = arith.andi %138, %140 : vector<128x1xi1>
    %c0_i32_50 = arith.constant 0 : i32
    %142 = vector.broadcast %c0_i32_50 : i32 to vector<128x1xi32>
    %143 = arith.cmpi sge, %85, %142 : vector<128x1xi32>
    %144 = arith.andi %141, %143 : vector<128x1xi1>
    %c16_i32_51 = arith.constant 16 : i32
    %145 = vector.broadcast %c16_i32_51 : i32 to vector<128x1xi32>
    %146 = arith.cmpi slt, %85, %145 : vector<128x1xi32>
    %147 = arith.andi %144, %146 : vector<128x1xi1>
    %cst_52 = arith.constant 0.000000e+00 : f32
    %148 = vector.broadcast %cst_52 : f32 to vector<128x1xf32>
    %149 = arith.select %147, %89, %148 : vector<128x1xi1>, vector<128x1xf32>
    %c16_i32_53 = arith.constant 16 : i32
    %150 = vector.broadcast %c16_i32_53 : i32 to vector<128x1xi32>
    %151 = arith.muli %85, %150 : vector<128x1xi32>
    %152 = arith.addi %151, %80 : vector<128x1xi32>
    %153 = vector.broadcast %152 : vector<128x1xi32> to vector<128x256xi32>
    %154 = arith.cmpi eq, %3, %153 : vector<128x256xi32>
    %cst_54 = arith.constant 0.000000e+00 : f32
    %155 = vector.shape_cast %149 : vector<128x1xf32> to vector<128x1xf32>
    %156 = vector.broadcast %155 : vector<128x1xf32> to vector<128x256xf32>
    %157 = vector.broadcast %cst_54 : f32 to vector<128x256xf32>
    %158 = arith.select %154, %156, %157 : vector<128x256xi1>, vector<128x256xf32>
    %159 = arith.addf %136, %158 : vector<128x256xf32>
    %c0_i32_55 = arith.constant 0 : i32
    %160 = vector.broadcast %c0_i32_55 : i32 to vector<128x1xi32>
    %161 = arith.cmpi sge, %82, %160 : vector<128x1xi32>
    %c16_i32_56 = arith.constant 16 : i32
    %162 = vector.broadcast %c16_i32_56 : i32 to vector<128x1xi32>
    %163 = arith.cmpi slt, %82, %162 : vector<128x1xi32>
    %164 = arith.andi %161, %163 : vector<128x1xi1>
    %c0_i32_57 = arith.constant 0 : i32
    %165 = vector.broadcast %c0_i32_57 : i32 to vector<128x1xi32>
    %166 = arith.cmpi sge, %85, %165 : vector<128x1xi32>
    %167 = arith.andi %164, %166 : vector<128x1xi1>
    %c16_i32_58 = arith.constant 16 : i32
    %168 = vector.broadcast %c16_i32_58 : i32 to vector<128x1xi32>
    %169 = arith.cmpi slt, %85, %168 : vector<128x1xi32>
    %170 = arith.andi %167, %169 : vector<128x1xi1>
    %cst_59 = arith.constant 0.000000e+00 : f32
    %171 = vector.broadcast %cst_59 : f32 to vector<128x1xf32>
    %172 = arith.select %170, %90, %171 : vector<128x1xi1>, vector<128x1xf32>
    %c16_i32_60 = arith.constant 16 : i32
    %173 = vector.broadcast %c16_i32_60 : i32 to vector<128x1xi32>
    %174 = arith.muli %85, %173 : vector<128x1xi32>
    %175 = arith.addi %174, %82 : vector<128x1xi32>
    %176 = vector.broadcast %175 : vector<128x1xi32> to vector<128x256xi32>
    %177 = arith.cmpi eq, %3, %176 : vector<128x256xi32>
    %cst_61 = arith.constant 0.000000e+00 : f32
    %178 = vector.shape_cast %172 : vector<128x1xf32> to vector<128x1xf32>
    %179 = vector.broadcast %178 : vector<128x1xf32> to vector<128x256xf32>
    %180 = vector.broadcast %cst_61 : f32 to vector<128x256xf32>
    %181 = arith.select %177, %179, %180 : vector<128x256xi1>, vector<128x256xf32>
    %182 = arith.addf %159, %181 : vector<128x256xf32>
    %c0_62 = arith.constant 0 : index
    %c0_63 = arith.constant 0 : index
    %183 = vector.load %arg2[%c0_62, %c0_63] : memref<9x256xf32, #tpu.memory_space<vmem>>, vector<1x256xf32>
    %184 = vector.broadcast %183 : vector<1x256xf32> to vector<128x256xf32>
    %185 = arith.mulf %182, %184 : vector<128x256xf32>
    %cst_64 = arith.constant dense<0.000000e+00> : vector<128xf32>
    %186 = vector.multi_reduction <add>, %185, %cst_64 [1] : vector<128x256xf32> to vector<128xf32>
    %187 = vector.shape_cast %186 : vector<128xf32> to vector<128x1xf32>
    %c1_65 = arith.constant 1 : index
    %c0_66 = arith.constant 0 : index
    %188 = vector.load %arg2[%c1_65, %c0_66] : memref<9x256xf32, #tpu.memory_space<vmem>>, vector<1x256xf32>
    %189 = vector.broadcast %188 : vector<1x256xf32> to vector<128x256xf32>
    %190 = arith.mulf %182, %189 : vector<128x256xf32>
    %cst_67 = arith.constant dense<0.000000e+00> : vector<128xf32>
    %191 = vector.multi_reduction <add>, %190, %cst_67 [1] : vector<128x256xf32> to vector<128xf32>
    %192 = vector.shape_cast %191 : vector<128xf32> to vector<128x1xf32>
    %c2_68 = arith.constant 2 : index
    %c0_69 = arith.constant 0 : index
    %193 = vector.load %arg2[%c2_68, %c0_69] : memref<9x256xf32, #tpu.memory_space<vmem>>, vector<1x256xf32>
    %194 = vector.broadcast %193 : vector<1x256xf32> to vector<128x256xf32>
    %195 = arith.mulf %182, %194 : vector<128x256xf32>
    %cst_70 = arith.constant dense<0.000000e+00> : vector<128xf32>
    %196 = vector.multi_reduction <add>, %195, %cst_70 [1] : vector<128x256xf32> to vector<128xf32>
    %197 = vector.shape_cast %196 : vector<128xf32> to vector<128x1xf32>
    %cst_71 = arith.constant -19.1024151 : f32
    %198 = vector.broadcast %cst_71 : f32 to vector<128x1xf32>
    %199 = arith.mulf %198, %0 : vector<128x1xf32>
    %cst_72 = arith.constant -0.399833322 : f32
    %200 = vector.broadcast %cst_72 : f32 to vector<128x1xf32>
    %201 = arith.mulf %200, %1 : vector<128x1xf32>
    %202 = arith.addf %199, %201 : vector<128x1xf32>
    %cst_73 = arith.constant 9.9467535 : f32
    %203 = vector.broadcast %cst_73 : f32 to vector<128x1xf32>
    %204 = arith.mulf %203, %2 : vector<128x1xf32>
    %205 = arith.addf %202, %204 : vector<128x1xf32>
    %cst_74 = arith.constant 2.32804132 : f32
    %206 = vector.broadcast %cst_74 : f32 to vector<128x1xf32>
    %207 = arith.addf %205, %206 : vector<128x1xf32>
    %cst_75 = arith.constant 0.897460997 : f32
    %208 = vector.broadcast %cst_75 : f32 to vector<128x1xf32>
    %209 = arith.mulf %208, %0 : vector<128x1xf32>
    %cst_76 = arith.constant 19.5751724 : f32
    %210 = vector.broadcast %cst_76 : f32 to vector<128x1xf32>
    %211 = arith.mulf %210, %1 : vector<128x1xf32>
    %212 = arith.addf %209, %211 : vector<128x1xf32>
    %cst_77 = arith.constant 8.94467449 : f32
    %213 = vector.broadcast %cst_77 : f32 to vector<128x1xf32>
    %214 = arith.mulf %213, %2 : vector<128x1xf32>
    %215 = arith.addf %212, %214 : vector<128x1xf32>
    %cst_78 = arith.constant 1.37566435 : f32
    %216 = vector.broadcast %cst_78 : f32 to vector<128x1xf32>
    %217 = arith.addf %215, %216 : vector<128x1xf32>
    %cst_79 = arith.constant 0.0997086465 : f32
    %218 = vector.broadcast %cst_79 : f32 to vector<128x1xf32>
    %219 = arith.mulf %218, %0 : vector<128x1xf32>
    %cst_80 = arith.constant -0.0499791652 : f32
    %220 = vector.broadcast %cst_80 : f32 to vector<128x1xf32>
    %221 = arith.mulf %220, %1 : vector<128x1xf32>
    %222 = arith.addf %219, %221 : vector<128x1xf32>
    %cst_81 = arith.constant 0.993760645 : f32
    %223 = vector.broadcast %cst_81 : f32 to vector<128x1xf32>
    %224 = arith.mulf %223, %2 : vector<128x1xf32>
    %225 = arith.addf %222, %224 : vector<128x1xf32>
    %cst_82 = arith.constant -0.0696422458 : f32
    %226 = vector.broadcast %cst_82 : f32 to vector<128x1xf32>
    %227 = arith.addf %225, %226 : vector<128x1xf32>
    %228 = arith.divf %207, %227 : vector<128x1xf32>
    %cst_83 = arith.constant 1.600000e+01 : f32
    %229 = vector.broadcast %cst_83 : f32 to vector<128x1xf32>
    %230 = arith.divf %228, %229 : vector<128x1xf32>
    %cst_84 = arith.constant 0.000000e+00 : f32
    %cst_85 = arith.constant 1.000000e+00 : f32
    %231 = vector.broadcast %cst_84 : f32 to vector<128x1xf32>
    %232 = arith.maximumf %231, %230 : vector<128x1xf32>
    %233 = vector.broadcast %cst_85 : f32 to vector<128x1xf32>
    %234 = arith.minimumf %233, %232 : vector<128x1xf32>
    %cst_86 = arith.constant 2.000000e+00 : f32
    %235 = vector.broadcast %cst_86 : f32 to vector<128x1xf32>
    %236 = arith.mulf %234, %235 : vector<128x1xf32>
    %cst_87 = arith.constant 1.000000e+00 : f32
    %237 = vector.broadcast %cst_87 : f32 to vector<128x1xf32>
    %238 = arith.subf %236, %237 : vector<128x1xf32>
    %239 = arith.divf %217, %227 : vector<128x1xf32>
    %cst_88 = arith.constant 1.600000e+01 : f32
    %240 = vector.broadcast %cst_88 : f32 to vector<128x1xf32>
    %241 = arith.divf %239, %240 : vector<128x1xf32>
    %cst_89 = arith.constant 0.000000e+00 : f32
    %cst_90 = arith.constant 1.000000e+00 : f32
    %242 = vector.broadcast %cst_89 : f32 to vector<128x1xf32>
    %243 = arith.maximumf %242, %241 : vector<128x1xf32>
    %244 = vector.broadcast %cst_90 : f32 to vector<128x1xf32>
    %245 = arith.minimumf %244, %243 : vector<128x1xf32>
    %cst_91 = arith.constant 2.000000e+00 : f32
    %246 = vector.broadcast %cst_91 : f32 to vector<128x1xf32>
    %247 = arith.mulf %245, %246 : vector<128x1xf32>
    %cst_92 = arith.constant 1.000000e+00 : f32
    %248 = vector.broadcast %cst_92 : f32 to vector<128x1xf32>
    %249 = arith.subf %247, %248 : vector<128x1xf32>
    %cst_93 = arith.constant 1.000000e+00 : f32
    %250 = vector.broadcast %cst_93 : f32 to vector<128x1xf32>
    %251 = arith.addf %238, %250 : vector<128x1xf32>
    %cst_94 = arith.constant 1.600000e+01 : f32
    %252 = vector.broadcast %cst_94 : f32 to vector<128x1xf32>
    %253 = arith.mulf %251, %252 : vector<128x1xf32>
    %cst_95 = arith.constant 1.000000e+00 : f32
    %254 = vector.broadcast %cst_95 : f32 to vector<128x1xf32>
    %255 = arith.subf %253, %254 : vector<128x1xf32>
    %cst_96 = arith.constant 5.000000e-01 : f32
    %256 = vector.broadcast %cst_96 : f32 to vector<128x1xf32>
    %257 = arith.mulf %255, %256 : vector<128x1xf32>
    %cst_97 = arith.constant 1.000000e+00 : f32
    %258 = vector.broadcast %cst_97 : f32 to vector<128x1xf32>
    %259 = arith.addf %249, %258 : vector<128x1xf32>
    %cst_98 = arith.constant 1.600000e+01 : f32
    %260 = vector.broadcast %cst_98 : f32 to vector<128x1xf32>
    %261 = arith.mulf %259, %260 : vector<128x1xf32>
    %cst_99 = arith.constant 1.000000e+00 : f32
    %262 = vector.broadcast %cst_99 : f32 to vector<128x1xf32>
    %263 = arith.subf %261, %262 : vector<128x1xf32>
    %cst_100 = arith.constant 5.000000e-01 : f32
    %264 = vector.broadcast %cst_100 : f32 to vector<128x1xf32>
    %265 = arith.mulf %263, %264 : vector<128x1xf32>
    %266 = math.floor %257 : vector<128x1xf32>
    %267 = math.floor %265 : vector<128x1xf32>
    %268 = arith.subf %257, %266 : vector<128x1xf32>
    %cst_101 = arith.constant 1.000000e+00 : f32
    %269 = vector.broadcast %cst_101 : f32 to vector<128x1xf32>
    %270 = arith.subf %269, %268 : vector<128x1xf32>
    %271 = arith.subf %265, %267 : vector<128x1xf32>
    %cst_102 = arith.constant 1.000000e+00 : f32
    %272 = vector.broadcast %cst_102 : f32 to vector<128x1xf32>
    %273 = arith.subf %272, %271 : vector<128x1xf32>
    %274 = arith.fptosi %266 : vector<128x1xf32> to vector<128x1xi32>
    %c1_i32_103 = arith.constant 1 : i32
    %275 = vector.broadcast %c1_i32_103 : i32 to vector<128x1xi32>
    %276 = arith.addi %274, %275 : vector<128x1xi32>
    %277 = arith.fptosi %267 : vector<128x1xf32> to vector<128x1xi32>
    %c1_i32_104 = arith.constant 1 : i32
    %278 = vector.broadcast %c1_i32_104 : i32 to vector<128x1xi32>
    %279 = arith.addi %277, %278 : vector<128x1xi32>
    %cst_105 = arith.constant 0.000000e+00 : f32
    %280 = vector.broadcast %cst_105 : f32 to vector<128x256xf32>
    %281 = arith.mulf %273, %270 : vector<128x1xf32>
    %282 = arith.mulf %273, %268 : vector<128x1xf32>
    %283 = arith.mulf %271, %270 : vector<128x1xf32>
    %284 = arith.mulf %271, %268 : vector<128x1xf32>
    %c0_i32_106 = arith.constant 0 : i32
    %285 = vector.broadcast %c0_i32_106 : i32 to vector<128x1xi32>
    %286 = arith.cmpi sge, %274, %285 : vector<128x1xi32>
    %c16_i32_107 = arith.constant 16 : i32
    %287 = vector.broadcast %c16_i32_107 : i32 to vector<128x1xi32>
    %288 = arith.cmpi slt, %274, %287 : vector<128x1xi32>
    %289 = arith.andi %286, %288 : vector<128x1xi1>
    %c0_i32_108 = arith.constant 0 : i32
    %290 = vector.broadcast %c0_i32_108 : i32 to vector<128x1xi32>
    %291 = arith.cmpi sge, %277, %290 : vector<128x1xi32>
    %292 = arith.andi %289, %291 : vector<128x1xi1>
    %c16_i32_109 = arith.constant 16 : i32
    %293 = vector.broadcast %c16_i32_109 : i32 to vector<128x1xi32>
    %294 = arith.cmpi slt, %277, %293 : vector<128x1xi32>
    %295 = arith.andi %292, %294 : vector<128x1xi1>
    %cst_110 = arith.constant 0.000000e+00 : f32
    %296 = vector.broadcast %cst_110 : f32 to vector<128x1xf32>
    %297 = arith.select %295, %281, %296 : vector<128x1xi1>, vector<128x1xf32>
    %c16_i32_111 = arith.constant 16 : i32
    %298 = vector.broadcast %c16_i32_111 : i32 to vector<128x1xi32>
    %299 = arith.muli %277, %298 : vector<128x1xi32>
    %300 = arith.addi %299, %274 : vector<128x1xi32>
    %301 = vector.broadcast %300 : vector<128x1xi32> to vector<128x256xi32>
    %302 = arith.cmpi eq, %3, %301 : vector<128x256xi32>
    %cst_112 = arith.constant 0.000000e+00 : f32
    %303 = vector.shape_cast %297 : vector<128x1xf32> to vector<128x1xf32>
    %304 = vector.broadcast %303 : vector<128x1xf32> to vector<128x256xf32>
    %305 = vector.broadcast %cst_112 : f32 to vector<128x256xf32>
    %306 = arith.select %302, %304, %305 : vector<128x256xi1>, vector<128x256xf32>
    %307 = arith.addf %280, %306 : vector<128x256xf32>
    %c0_i32_113 = arith.constant 0 : i32
    %308 = vector.broadcast %c0_i32_113 : i32 to vector<128x1xi32>
    %309 = arith.cmpi sge, %276, %308 : vector<128x1xi32>
    %c16_i32_114 = arith.constant 16 : i32
    %310 = vector.broadcast %c16_i32_114 : i32 to vector<128x1xi32>
    %311 = arith.cmpi slt, %276, %310 : vector<128x1xi32>
    %312 = arith.andi %309, %311 : vector<128x1xi1>
    %c0_i32_115 = arith.constant 0 : i32
    %313 = vector.broadcast %c0_i32_115 : i32 to vector<128x1xi32>
    %314 = arith.cmpi sge, %277, %313 : vector<128x1xi32>
    %315 = arith.andi %312, %314 : vector<128x1xi1>
    %c16_i32_116 = arith.constant 16 : i32
    %316 = vector.broadcast %c16_i32_116 : i32 to vector<128x1xi32>
    %317 = arith.cmpi slt, %277, %316 : vector<128x1xi32>
    %318 = arith.andi %315, %317 : vector<128x1xi1>
    %cst_117 = arith.constant 0.000000e+00 : f32
    %319 = vector.broadcast %cst_117 : f32 to vector<128x1xf32>
    %320 = arith.select %318, %282, %319 : vector<128x1xi1>, vector<128x1xf32>
    %c16_i32_118 = arith.constant 16 : i32
    %321 = vector.broadcast %c16_i32_118 : i32 to vector<128x1xi32>
    %322 = arith.muli %277, %321 : vector<128x1xi32>
    %323 = arith.addi %322, %276 : vector<128x1xi32>
    %324 = vector.broadcast %323 : vector<128x1xi32> to vector<128x256xi32>
    %325 = arith.cmpi eq, %3, %324 : vector<128x256xi32>
    %cst_119 = arith.constant 0.000000e+00 : f32
    %326 = vector.shape_cast %320 : vector<128x1xf32> to vector<128x1xf32>
    %327 = vector.broadcast %326 : vector<128x1xf32> to vector<128x256xf32>
    %328 = vector.broadcast %cst_119 : f32 to vector<128x256xf32>
    %329 = arith.select %325, %327, %328 : vector<128x256xi1>, vector<128x256xf32>
    %330 = arith.addf %307, %329 : vector<128x256xf32>
    %c0_i32_120 = arith.constant 0 : i32
    %331 = vector.broadcast %c0_i32_120 : i32 to vector<128x1xi32>
    %332 = arith.cmpi sge, %274, %331 : vector<128x1xi32>
    %c16_i32_121 = arith.constant 16 : i32
    %333 = vector.broadcast %c16_i32_121 : i32 to vector<128x1xi32>
    %334 = arith.cmpi slt, %274, %333 : vector<128x1xi32>
    %335 = arith.andi %332, %334 : vector<128x1xi1>
    %c0_i32_122 = arith.constant 0 : i32
    %336 = vector.broadcast %c0_i32_122 : i32 to vector<128x1xi32>
    %337 = arith.cmpi sge, %279, %336 : vector<128x1xi32>
    %338 = arith.andi %335, %337 : vector<128x1xi1>
    %c16_i32_123 = arith.constant 16 : i32
    %339 = vector.broadcast %c16_i32_123 : i32 to vector<128x1xi32>
    %340 = arith.cmpi slt, %279, %339 : vector<128x1xi32>
    %341 = arith.andi %338, %340 : vector<128x1xi1>
    %cst_124 = arith.constant 0.000000e+00 : f32
    %342 = vector.broadcast %cst_124 : f32 to vector<128x1xf32>
    %343 = arith.select %341, %283, %342 : vector<128x1xi1>, vector<128x1xf32>
    %c16_i32_125 = arith.constant 16 : i32
    %344 = vector.broadcast %c16_i32_125 : i32 to vector<128x1xi32>
    %345 = arith.muli %279, %344 : vector<128x1xi32>
    %346 = arith.addi %345, %274 : vector<128x1xi32>
    %347 = vector.broadcast %346 : vector<128x1xi32> to vector<128x256xi32>
    %348 = arith.cmpi eq, %3, %347 : vector<128x256xi32>
    %cst_126 = arith.constant 0.000000e+00 : f32
    %349 = vector.shape_cast %343 : vector<128x1xf32> to vector<128x1xf32>
    %350 = vector.broadcast %349 : vector<128x1xf32> to vector<128x256xf32>
    %351 = vector.broadcast %cst_126 : f32 to vector<128x256xf32>
    %352 = arith.select %348, %350, %351 : vector<128x256xi1>, vector<128x256xf32>
    %353 = arith.addf %330, %352 : vector<128x256xf32>
    %c0_i32_127 = arith.constant 0 : i32
    %354 = vector.broadcast %c0_i32_127 : i32 to vector<128x1xi32>
    %355 = arith.cmpi sge, %276, %354 : vector<128x1xi32>
    %c16_i32_128 = arith.constant 16 : i32
    %356 = vector.broadcast %c16_i32_128 : i32 to vector<128x1xi32>
    %357 = arith.cmpi slt, %276, %356 : vector<128x1xi32>
    %358 = arith.andi %355, %357 : vector<128x1xi1>
    %c0_i32_129 = arith.constant 0 : i32
    %359 = vector.broadcast %c0_i32_129 : i32 to vector<128x1xi32>
    %360 = arith.cmpi sge, %279, %359 : vector<128x1xi32>
    %361 = arith.andi %358, %360 : vector<128x1xi1>
    %c16_i32_130 = arith.constant 16 : i32
    %362 = vector.broadcast %c16_i32_130 : i32 to vector<128x1xi32>
    %363 = arith.cmpi slt, %279, %362 : vector<128x1xi32>
    %364 = arith.andi %361, %363 : vector<128x1xi1>
    %cst_131 = arith.constant 0.000000e+00 : f32
    %365 = vector.broadcast %cst_131 : f32 to vector<128x1xf32>
    %366 = arith.select %364, %284, %365 : vector<128x1xi1>, vector<128x1xf32>
    %c16_i32_132 = arith.constant 16 : i32
    %367 = vector.broadcast %c16_i32_132 : i32 to vector<128x1xi32>
    %368 = arith.muli %279, %367 : vector<128x1xi32>
    %369 = arith.addi %368, %276 : vector<128x1xi32>
    %370 = vector.broadcast %369 : vector<128x1xi32> to vector<128x256xi32>
    %371 = arith.cmpi eq, %3, %370 : vector<128x256xi32>
    %cst_133 = arith.constant 0.000000e+00 : f32
    %372 = vector.shape_cast %366 : vector<128x1xf32> to vector<128x1xf32>
    %373 = vector.broadcast %372 : vector<128x1xf32> to vector<128x256xf32>
    %374 = vector.broadcast %cst_133 : f32 to vector<128x256xf32>
    %375 = arith.select %371, %373, %374 : vector<128x256xi1>, vector<128x256xf32>
    %376 = arith.addf %353, %375 : vector<128x256xf32>
    %c3 = arith.constant 3 : index
    %c0_134 = arith.constant 0 : index
    %377 = vector.load %arg2[%c3, %c0_134] : memref<9x256xf32, #tpu.memory_space<vmem>>, vector<1x256xf32>
    %378 = vector.broadcast %377 : vector<1x256xf32> to vector<128x256xf32>
    %379 = arith.mulf %376, %378 : vector<128x256xf32>
    %cst_135 = arith.constant dense<0.000000e+00> : vector<128xf32>
    %380 = vector.multi_reduction <add>, %379, %cst_135 [1] : vector<128x256xf32> to vector<128xf32>
    %381 = vector.shape_cast %380 : vector<128xf32> to vector<128x1xf32>
    %c4 = arith.constant 4 : index
    %c0_136 = arith.constant 0 : index
    %382 = vector.load %arg2[%c4, %c0_136] : memref<9x256xf32, #tpu.memory_space<vmem>>, vector<1x256xf32>
    %383 = vector.broadcast %382 : vector<1x256xf32> to vector<128x256xf32>
    %384 = arith.mulf %376, %383 : vector<128x256xf32>
    %cst_137 = arith.constant dense<0.000000e+00> : vector<128xf32>
    %385 = vector.multi_reduction <add>, %384, %cst_137 [1] : vector<128x256xf32> to vector<128xf32>
    %386 = vector.shape_cast %385 : vector<128xf32> to vector<128x1xf32>
    %c5 = arith.constant 5 : index
    %c0_138 = arith.constant 0 : index
    %387 = vector.load %arg2[%c5, %c0_138] : memref<9x256xf32, #tpu.memory_space<vmem>>, vector<1x256xf32>
    %388 = vector.broadcast %387 : vector<1x256xf32> to vector<128x256xf32>
    %389 = arith.mulf %376, %388 : vector<128x256xf32>
    %cst_139 = arith.constant dense<0.000000e+00> : vector<128xf32>
    %390 = vector.multi_reduction <add>, %389, %cst_139 [1] : vector<128x256xf32> to vector<128xf32>
    %391 = vector.shape_cast %390 : vector<128xf32> to vector<128x1xf32>
    %cst_140 = arith.constant -18.0199146 : f32
    %392 = vector.broadcast %cst_140 : f32 to vector<128x1xf32>
    %393 = arith.mulf %392, %0 : vector<128x1xf32>
    %cst_141 = arith.constant -0.798667252 : f32
    %394 = vector.broadcast %cst_141 : f32 to vector<128x1xf32>
    %395 = arith.mulf %394, %1 : vector<128x1xf32>
    %396 = arith.addf %393, %395 : vector<128x1xf32>
    %cst_142 = arith.constant 11.7747488 : f32
    %397 = vector.broadcast %cst_142 : f32 to vector<128x1xf32>
    %398 = arith.mulf %397, %2 : vector<128x1xf32>
    %399 = arith.addf %396, %398 : vector<128x1xf32>
    %cst_143 = arith.constant 4.06876659 : f32
    %400 = vector.broadcast %cst_143 : f32 to vector<128x1xf32>
    %401 = arith.addf %399, %400 : vector<128x1xf32>
    %cst_144 = arith.constant 1.978091 : f32
    %402 = vector.broadcast %cst_144 : f32 to vector<128x1xf32>
    %403 = arith.mulf %402, %0 : vector<128x1xf32>
    %cst_145 = arith.constant 19.1014156 : f32
    %404 = vector.broadcast %cst_145 : f32 to vector<128x1xf32>
    %405 = arith.mulf %404, %1 : vector<128x1xf32>
    %406 = arith.addf %403, %405 : vector<128x1xf32>
    %cst_146 = arith.constant 9.758230e+00 : f32
    %407 = vector.broadcast %cst_146 : f32 to vector<128x1xf32>
    %408 = arith.mulf %407, %2 : vector<128x1xf32>
    %409 = arith.addf %406, %408 : vector<128x1xf32>
    %cst_147 = arith.constant 2.25103283 : f32
    %410 = vector.broadcast %cst_147 : f32 to vector<128x1xf32>
    %411 = arith.addf %409, %410 : vector<128x1xf32>
    %cst_148 = arith.constant 0.197676793 : f32
    %412 = vector.broadcast %cst_148 : f32 to vector<128x1xf32>
    %413 = arith.mulf %412, %0 : vector<128x1xf32>
    %cst_149 = arith.constant -0.0998334065 : f32
    %414 = vector.broadcast %cst_149 : f32 to vector<128x1xf32>
    %415 = arith.mulf %414, %1 : vector<128x1xf32>
    %416 = arith.addf %413, %415 : vector<128x1xf32>
    %cst_150 = arith.constant 0.975170314 : f32
    %417 = vector.broadcast %cst_150 : f32 to vector<128x1xf32>
    %418 = arith.mulf %417, %2 : vector<128x1xf32>
    %419 = arith.addf %416, %418 : vector<128x1xf32>
    %cst_151 = arith.constant -0.176786751 : f32
    %420 = vector.broadcast %cst_151 : f32 to vector<128x1xf32>
    %421 = arith.addf %419, %420 : vector<128x1xf32>
    %422 = arith.divf %401, %421 : vector<128x1xf32>
    %cst_152 = arith.constant 1.600000e+01 : f32
    %423 = vector.broadcast %cst_152 : f32 to vector<128x1xf32>
    %424 = arith.divf %422, %423 : vector<128x1xf32>
    %cst_153 = arith.constant 0.000000e+00 : f32
    %cst_154 = arith.constant 1.000000e+00 : f32
    %425 = vector.broadcast %cst_153 : f32 to vector<128x1xf32>
    %426 = arith.maximumf %425, %424 : vector<128x1xf32>
    %427 = vector.broadcast %cst_154 : f32 to vector<128x1xf32>
    %428 = arith.minimumf %427, %426 : vector<128x1xf32>
    %cst_155 = arith.constant 2.000000e+00 : f32
    %429 = vector.broadcast %cst_155 : f32 to vector<128x1xf32>
    %430 = arith.mulf %428, %429 : vector<128x1xf32>
    %cst_156 = arith.constant 1.000000e+00 : f32
    %431 = vector.broadcast %cst_156 : f32 to vector<128x1xf32>
    %432 = arith.subf %430, %431 : vector<128x1xf32>
    %433 = arith.divf %411, %421 : vector<128x1xf32>
    %cst_157 = arith.constant 1.600000e+01 : f32
    %434 = vector.broadcast %cst_157 : f32 to vector<128x1xf32>
    %435 = arith.divf %433, %434 : vector<128x1xf32>
    %cst_158 = arith.constant 0.000000e+00 : f32
    %cst_159 = arith.constant 1.000000e+00 : f32
    %436 = vector.broadcast %cst_158 : f32 to vector<128x1xf32>
    %437 = arith.maximumf %436, %435 : vector<128x1xf32>
    %438 = vector.broadcast %cst_159 : f32 to vector<128x1xf32>
    %439 = arith.minimumf %438, %437 : vector<128x1xf32>
    %cst_160 = arith.constant 2.000000e+00 : f32
    %440 = vector.broadcast %cst_160 : f32 to vector<128x1xf32>
    %441 = arith.mulf %439, %440 : vector<128x1xf32>
    %cst_161 = arith.constant 1.000000e+00 : f32
    %442 = vector.broadcast %cst_161 : f32 to vector<128x1xf32>
    %443 = arith.subf %441, %442 : vector<128x1xf32>
    %cst_162 = arith.constant 1.000000e+00 : f32
    %444 = vector.broadcast %cst_162 : f32 to vector<128x1xf32>
    %445 = arith.addf %432, %444 : vector<128x1xf32>
    %cst_163 = arith.constant 1.600000e+01 : f32
    %446 = vector.broadcast %cst_163 : f32 to vector<128x1xf32>
    %447 = arith.mulf %445, %446 : vector<128x1xf32>
    %cst_164 = arith.constant 1.000000e+00 : f32
    %448 = vector.broadcast %cst_164 : f32 to vector<128x1xf32>
    %449 = arith.subf %447, %448 : vector<128x1xf32>
    %cst_165 = arith.constant 5.000000e-01 : f32
    %450 = vector.broadcast %cst_165 : f32 to vector<128x1xf32>
    %451 = arith.mulf %449, %450 : vector<128x1xf32>
    %cst_166 = arith.constant 1.000000e+00 : f32
    %452 = vector.broadcast %cst_166 : f32 to vector<128x1xf32>
    %453 = arith.addf %443, %452 : vector<128x1xf32>
    %cst_167 = arith.constant 1.600000e+01 : f32
    %454 = vector.broadcast %cst_167 : f32 to vector<128x1xf32>
    %455 = arith.mulf %453, %454 : vector<128x1xf32>
    %cst_168 = arith.constant 1.000000e+00 : f32
    %456 = vector.broadcast %cst_168 : f32 to vector<128x1xf32>
    %457 = arith.subf %455, %456 : vector<128x1xf32>
    %cst_169 = arith.constant 5.000000e-01 : f32
    %458 = vector.broadcast %cst_169 : f32 to vector<128x1xf32>
    %459 = arith.mulf %457, %458 : vector<128x1xf32>
    %460 = math.floor %451 : vector<128x1xf32>
    %461 = math.floor %459 : vector<128x1xf32>
    %462 = arith.subf %451, %460 : vector<128x1xf32>
    %cst_170 = arith.constant 1.000000e+00 : f32
    %463 = vector.broadcast %cst_170 : f32 to vector<128x1xf32>
    %464 = arith.subf %463, %462 : vector<128x1xf32>
    %465 = arith.subf %459, %461 : vector<128x1xf32>
    %cst_171 = arith.constant 1.000000e+00 : f32
    %466 = vector.broadcast %cst_171 : f32 to vector<128x1xf32>
    %467 = arith.subf %466, %465 : vector<128x1xf32>
    %468 = arith.fptosi %460 : vector<128x1xf32> to vector<128x1xi32>
    %c1_i32_172 = arith.constant 1 : i32
    %469 = vector.broadcast %c1_i32_172 : i32 to vector<128x1xi32>
    %470 = arith.addi %468, %469 : vector<128x1xi32>
    %471 = arith.fptosi %461 : vector<128x1xf32> to vector<128x1xi32>
    %c1_i32_173 = arith.constant 1 : i32
    %472 = vector.broadcast %c1_i32_173 : i32 to vector<128x1xi32>
    %473 = arith.addi %471, %472 : vector<128x1xi32>
    %cst_174 = arith.constant 0.000000e+00 : f32
    %474 = vector.broadcast %cst_174 : f32 to vector<128x256xf32>
    %475 = arith.mulf %467, %464 : vector<128x1xf32>
    %476 = arith.mulf %467, %462 : vector<128x1xf32>
    %477 = arith.mulf %465, %464 : vector<128x1xf32>
    %478 = arith.mulf %465, %462 : vector<128x1xf32>
    %c0_i32_175 = arith.constant 0 : i32
    %479 = vector.broadcast %c0_i32_175 : i32 to vector<128x1xi32>
    %480 = arith.cmpi sge, %468, %479 : vector<128x1xi32>
    %c16_i32_176 = arith.constant 16 : i32
    %481 = vector.broadcast %c16_i32_176 : i32 to vector<128x1xi32>
    %482 = arith.cmpi slt, %468, %481 : vector<128x1xi32>
    %483 = arith.andi %480, %482 : vector<128x1xi1>
    %c0_i32_177 = arith.constant 0 : i32
    %484 = vector.broadcast %c0_i32_177 : i32 to vector<128x1xi32>
    %485 = arith.cmpi sge, %471, %484 : vector<128x1xi32>
    %486 = arith.andi %483, %485 : vector<128x1xi1>
    %c16_i32_178 = arith.constant 16 : i32
    %487 = vector.broadcast %c16_i32_178 : i32 to vector<128x1xi32>
    %488 = arith.cmpi slt, %471, %487 : vector<128x1xi32>
    %489 = arith.andi %486, %488 : vector<128x1xi1>
    %cst_179 = arith.constant 0.000000e+00 : f32
    %490 = vector.broadcast %cst_179 : f32 to vector<128x1xf32>
    %491 = arith.select %489, %475, %490 : vector<128x1xi1>, vector<128x1xf32>
    %c16_i32_180 = arith.constant 16 : i32
    %492 = vector.broadcast %c16_i32_180 : i32 to vector<128x1xi32>
    %493 = arith.muli %471, %492 : vector<128x1xi32>
    %494 = arith.addi %493, %468 : vector<128x1xi32>
    %495 = vector.broadcast %494 : vector<128x1xi32> to vector<128x256xi32>
    %496 = arith.cmpi eq, %3, %495 : vector<128x256xi32>
    %cst_181 = arith.constant 0.000000e+00 : f32
    %497 = vector.shape_cast %491 : vector<128x1xf32> to vector<128x1xf32>
    %498 = vector.broadcast %497 : vector<128x1xf32> to vector<128x256xf32>
    %499 = vector.broadcast %cst_181 : f32 to vector<128x256xf32>
    %500 = arith.select %496, %498, %499 : vector<128x256xi1>, vector<128x256xf32>
    %501 = arith.addf %474, %500 : vector<128x256xf32>
    %c0_i32_182 = arith.constant 0 : i32
    %502 = vector.broadcast %c0_i32_182 : i32 to vector<128x1xi32>
    %503 = arith.cmpi sge, %470, %502 : vector<128x1xi32>
    %c16_i32_183 = arith.constant 16 : i32
    %504 = vector.broadcast %c16_i32_183 : i32 to vector<128x1xi32>
    %505 = arith.cmpi slt, %470, %504 : vector<128x1xi32>
    %506 = arith.andi %503, %505 : vector<128x1xi1>
    %c0_i32_184 = arith.constant 0 : i32
    %507 = vector.broadcast %c0_i32_184 : i32 to vector<128x1xi32>
    %508 = arith.cmpi sge, %471, %507 : vector<128x1xi32>
    %509 = arith.andi %506, %508 : vector<128x1xi1>
    %c16_i32_185 = arith.constant 16 : i32
    %510 = vector.broadcast %c16_i32_185 : i32 to vector<128x1xi32>
    %511 = arith.cmpi slt, %471, %510 : vector<128x1xi32>
    %512 = arith.andi %509, %511 : vector<128x1xi1>
    %cst_186 = arith.constant 0.000000e+00 : f32
    %513 = vector.broadcast %cst_186 : f32 to vector<128x1xf32>
    %514 = arith.select %512, %476, %513 : vector<128x1xi1>, vector<128x1xf32>
    %c16_i32_187 = arith.constant 16 : i32
    %515 = vector.broadcast %c16_i32_187 : i32 to vector<128x1xi32>
    %516 = arith.muli %471, %515 : vector<128x1xi32>
    %517 = arith.addi %516, %470 : vector<128x1xi32>
    %518 = vector.broadcast %517 : vector<128x1xi32> to vector<128x256xi32>
    %519 = arith.cmpi eq, %3, %518 : vector<128x256xi32>
    %cst_188 = arith.constant 0.000000e+00 : f32
    %520 = vector.shape_cast %514 : vector<128x1xf32> to vector<128x1xf32>
    %521 = vector.broadcast %520 : vector<128x1xf32> to vector<128x256xf32>
    %522 = vector.broadcast %cst_188 : f32 to vector<128x256xf32>
    %523 = arith.select %519, %521, %522 : vector<128x256xi1>, vector<128x256xf32>
    %524 = arith.addf %501, %523 : vector<128x256xf32>
    %c0_i32_189 = arith.constant 0 : i32
    %525 = vector.broadcast %c0_i32_189 : i32 to vector<128x1xi32>
    %526 = arith.cmpi sge, %468, %525 : vector<128x1xi32>
    %c16_i32_190 = arith.constant 16 : i32
    %527 = vector.broadcast %c16_i32_190 : i32 to vector<128x1xi32>
    %528 = arith.cmpi slt, %468, %527 : vector<128x1xi32>
    %529 = arith.andi %526, %528 : vector<128x1xi1>
    %c0_i32_191 = arith.constant 0 : i32
    %530 = vector.broadcast %c0_i32_191 : i32 to vector<128x1xi32>
    %531 = arith.cmpi sge, %473, %530 : vector<128x1xi32>
    %532 = arith.andi %529, %531 : vector<128x1xi1>
    %c16_i32_192 = arith.constant 16 : i32
    %533 = vector.broadcast %c16_i32_192 : i32 to vector<128x1xi32>
    %534 = arith.cmpi slt, %473, %533 : vector<128x1xi32>
    %535 = arith.andi %532, %534 : vector<128x1xi1>
    %cst_193 = arith.constant 0.000000e+00 : f32
    %536 = vector.broadcast %cst_193 : f32 to vector<128x1xf32>
    %537 = arith.select %535, %477, %536 : vector<128x1xi1>, vector<128x1xf32>
    %c16_i32_194 = arith.constant 16 : i32
    %538 = vector.broadcast %c16_i32_194 : i32 to vector<128x1xi32>
    %539 = arith.muli %473, %538 : vector<128x1xi32>
    %540 = arith.addi %539, %468 : vector<128x1xi32>
    %541 = vector.broadcast %540 : vector<128x1xi32> to vector<128x256xi32>
    %542 = arith.cmpi eq, %3, %541 : vector<128x256xi32>
    %cst_195 = arith.constant 0.000000e+00 : f32
    %543 = vector.shape_cast %537 : vector<128x1xf32> to vector<128x1xf32>
    %544 = vector.broadcast %543 : vector<128x1xf32> to vector<128x256xf32>
    %545 = vector.broadcast %cst_195 : f32 to vector<128x256xf32>
    %546 = arith.select %542, %544, %545 : vector<128x256xi1>, vector<128x256xf32>
    %547 = arith.addf %524, %546 : vector<128x256xf32>
    %c0_i32_196 = arith.constant 0 : i32
    %548 = vector.broadcast %c0_i32_196 : i32 to vector<128x1xi32>
    %549 = arith.cmpi sge, %470, %548 : vector<128x1xi32>
    %c16_i32_197 = arith.constant 16 : i32
    %550 = vector.broadcast %c16_i32_197 : i32 to vector<128x1xi32>
    %551 = arith.cmpi slt, %470, %550 : vector<128x1xi32>
    %552 = arith.andi %549, %551 : vector<128x1xi1>
    %c0_i32_198 = arith.constant 0 : i32
    %553 = vector.broadcast %c0_i32_198 : i32 to vector<128x1xi32>
    %554 = arith.cmpi sge, %473, %553 : vector<128x1xi32>
    %555 = arith.andi %552, %554 : vector<128x1xi1>
    %c16_i32_199 = arith.constant 16 : i32
    %556 = vector.broadcast %c16_i32_199 : i32 to vector<128x1xi32>
    %557 = arith.cmpi slt, %473, %556 : vector<128x1xi32>
    %558 = arith.andi %555, %557 : vector<128x1xi1>
    %cst_200 = arith.constant 0.000000e+00 : f32
    %559 = vector.broadcast %cst_200 : f32 to vector<128x1xf32>
    %560 = arith.select %558, %478, %559 : vector<128x1xi1>, vector<128x1xf32>
    %c16_i32_201 = arith.constant 16 : i32
    %561 = vector.broadcast %c16_i32_201 : i32 to vector<128x1xi32>
    %562 = arith.muli %473, %561 : vector<128x1xi32>
    %563 = arith.addi %562, %470 : vector<128x1xi32>
    %564 = vector.broadcast %563 : vector<128x1xi32> to vector<128x256xi32>
    %565 = arith.cmpi eq, %3, %564 : vector<128x256xi32>
    %cst_202 = arith.constant 0.000000e+00 : f32
    %566 = vector.shape_cast %560 : vector<128x1xf32> to vector<128x1xf32>
    %567 = vector.broadcast %566 : vector<128x1xf32> to vector<128x256xf32>
    %568 = vector.broadcast %cst_202 : f32 to vector<128x256xf32>
    %569 = arith.select %565, %567, %568 : vector<128x256xi1>, vector<128x256xf32>
    %570 = arith.addf %547, %569 : vector<128x256xf32>
    %c6 = arith.constant 6 : index
    %c0_203 = arith.constant 0 : index
    %571 = vector.load %arg2[%c6, %c0_203] : memref<9x256xf32, #tpu.memory_space<vmem>>, vector<1x256xf32>
    %572 = vector.broadcast %571 : vector<1x256xf32> to vector<128x256xf32>
    %573 = arith.mulf %570, %572 : vector<128x256xf32>
    %cst_204 = arith.constant dense<0.000000e+00> : vector<128xf32>
    %574 = vector.multi_reduction <add>, %573, %cst_204 [1] : vector<128x256xf32> to vector<128xf32>
    %575 = vector.shape_cast %574 : vector<128xf32> to vector<128x1xf32>
    %c7 = arith.constant 7 : index
    %c0_205 = arith.constant 0 : index
    %576 = vector.load %arg2[%c7, %c0_205] : memref<9x256xf32, #tpu.memory_space<vmem>>, vector<1x256xf32>
    %577 = vector.broadcast %576 : vector<1x256xf32> to vector<128x256xf32>
    %578 = arith.mulf %570, %577 : vector<128x256xf32>
    %cst_206 = arith.constant dense<0.000000e+00> : vector<128xf32>
    %579 = vector.multi_reduction <add>, %578, %cst_206 [1] : vector<128x256xf32> to vector<128xf32>
    %580 = vector.shape_cast %579 : vector<128xf32> to vector<128x1xf32>
    %c8 = arith.constant 8 : index
    %c0_207 = arith.constant 0 : index
    %581 = vector.load %arg2[%c8, %c0_207] : memref<9x256xf32, #tpu.memory_space<vmem>>, vector<1x256xf32>
    %582 = vector.broadcast %581 : vector<1x256xf32> to vector<128x256xf32>
    %583 = arith.mulf %570, %582 : vector<128x256xf32>
    %cst_208 = arith.constant dense<0.000000e+00> : vector<128xf32>
    %584 = vector.multi_reduction <add>, %583, %cst_208 [1] : vector<128x256xf32> to vector<128xf32>
    %585 = vector.shape_cast %584 : vector<128xf32> to vector<128x1xf32>
    %586 = tpu.iota {dimensions = array<i32: 1>} : vector<128x15xi32>
    %cst_209 = arith.constant 0.000000e+00 : f32
    %587 = vector.broadcast %cst_209 : f32 to vector<128x15xf32>
    %c0_i32_210 = arith.constant 0 : i32
    %588 = vector.broadcast %c0_i32_210 : i32 to vector<128x15xi32>
    %589 = arith.cmpi eq, %586, %588 : vector<128x15xi32>
    %590 = vector.shape_cast %187 : vector<128x1xf32> to vector<128x1xf32>
    %591 = vector.broadcast %590 : vector<128x1xf32> to vector<128x15xf32>
    %592 = arith.select %589, %591, %587 : vector<128x15xi1>, vector<128x15xf32>
    %c1_i32_211 = arith.constant 1 : i32
    %593 = vector.broadcast %c1_i32_211 : i32 to vector<128x15xi32>
    %594 = arith.cmpi eq, %586, %593 : vector<128x15xi32>
    %595 = vector.shape_cast %192 : vector<128x1xf32> to vector<128x1xf32>
    %596 = vector.broadcast %595 : vector<128x1xf32> to vector<128x15xf32>
    %597 = arith.select %594, %596, %592 : vector<128x15xi1>, vector<128x15xf32>
    %c2_i32 = arith.constant 2 : i32
    %598 = vector.broadcast %c2_i32 : i32 to vector<128x15xi32>
    %599 = arith.cmpi eq, %586, %598 : vector<128x15xi32>
    %600 = vector.shape_cast %197 : vector<128x1xf32> to vector<128x1xf32>
    %601 = vector.broadcast %600 : vector<128x1xf32> to vector<128x15xf32>
    %602 = arith.select %599, %601, %597 : vector<128x15xi1>, vector<128x15xf32>
    %c3_i32 = arith.constant 3 : i32
    %603 = vector.broadcast %c3_i32 : i32 to vector<128x15xi32>
    %604 = arith.cmpi eq, %586, %603 : vector<128x15xi32>
    %605 = vector.shape_cast %381 : vector<128x1xf32> to vector<128x1xf32>
    %606 = vector.broadcast %605 : vector<128x1xf32> to vector<128x15xf32>
    %607 = arith.select %604, %606, %602 : vector<128x15xi1>, vector<128x15xf32>
    %c4_i32 = arith.constant 4 : i32
    %608 = vector.broadcast %c4_i32 : i32 to vector<128x15xi32>
    %609 = arith.cmpi eq, %586, %608 : vector<128x15xi32>
    %610 = vector.shape_cast %386 : vector<128x1xf32> to vector<128x1xf32>
    %611 = vector.broadcast %610 : vector<128x1xf32> to vector<128x15xf32>
    %612 = arith.select %609, %611, %607 : vector<128x15xi1>, vector<128x15xf32>
    %c5_i32 = arith.constant 5 : i32
    %613 = vector.broadcast %c5_i32 : i32 to vector<128x15xi32>
    %614 = arith.cmpi eq, %586, %613 : vector<128x15xi32>
    %615 = vector.shape_cast %391 : vector<128x1xf32> to vector<128x1xf32>
    %616 = vector.broadcast %615 : vector<128x1xf32> to vector<128x15xf32>
    %617 = arith.select %614, %616, %612 : vector<128x15xi1>, vector<128x15xf32>
    %c6_i32 = arith.constant 6 : i32
    %618 = vector.broadcast %c6_i32 : i32 to vector<128x15xi32>
    %619 = arith.cmpi eq, %586, %618 : vector<128x15xi32>
    %620 = vector.shape_cast %575 : vector<128x1xf32> to vector<128x1xf32>
    %621 = vector.broadcast %620 : vector<128x1xf32> to vector<128x15xf32>
    %622 = arith.select %619, %621, %617 : vector<128x15xi1>, vector<128x15xf32>
    %c7_i32 = arith.constant 7 : i32
    %623 = vector.broadcast %c7_i32 : i32 to vector<128x15xi32>
    %624 = arith.cmpi eq, %586, %623 : vector<128x15xi32>
    %625 = vector.shape_cast %580 : vector<128x1xf32> to vector<128x1xf32>
    %626 = vector.broadcast %625 : vector<128x1xf32> to vector<128x15xf32>
    %627 = arith.select %624, %626, %622 : vector<128x15xi1>, vector<128x15xf32>
    %c8_i32 = arith.constant 8 : i32
    %628 = vector.broadcast %c8_i32 : i32 to vector<128x15xi32>
    %629 = arith.cmpi eq, %586, %628 : vector<128x15xi32>
    %630 = vector.shape_cast %585 : vector<128x1xf32> to vector<128x1xf32>
    %631 = vector.broadcast %630 : vector<128x1xf32> to vector<128x15xf32>
    %632 = arith.select %629, %631, %627 : vector<128x15xi1>, vector<128x15xf32>
    %c9_i32 = arith.constant 9 : i32
    %633 = vector.broadcast %c9_i32 : i32 to vector<128x15xi32>
    %634 = arith.cmpi eq, %586, %633 : vector<128x15xi32>
    %635 = vector.shape_cast %44 : vector<128x1xf32> to vector<128x1xf32>
    %636 = vector.broadcast %635 : vector<128x1xf32> to vector<128x15xf32>
    %637 = arith.select %634, %636, %632 : vector<128x15xi1>, vector<128x15xf32>
    %c10_i32 = arith.constant 10 : i32
    %638 = vector.broadcast %c10_i32 : i32 to vector<128x15xi32>
    %639 = arith.cmpi eq, %586, %638 : vector<128x15xi32>
    %640 = vector.shape_cast %55 : vector<128x1xf32> to vector<128x1xf32>
    %641 = vector.broadcast %640 : vector<128x1xf32> to vector<128x15xf32>
    %642 = arith.select %639, %641, %637 : vector<128x15xi1>, vector<128x15xf32>
    %c11_i32 = arith.constant 11 : i32
    %643 = vector.broadcast %c11_i32 : i32 to vector<128x15xi32>
    %644 = arith.cmpi eq, %586, %643 : vector<128x15xi32>
    %645 = vector.shape_cast %238 : vector<128x1xf32> to vector<128x1xf32>
    %646 = vector.broadcast %645 : vector<128x1xf32> to vector<128x15xf32>
    %647 = arith.select %644, %646, %642 : vector<128x15xi1>, vector<128x15xf32>
    %c12_i32 = arith.constant 12 : i32
    %648 = vector.broadcast %c12_i32 : i32 to vector<128x15xi32>
    %649 = arith.cmpi eq, %586, %648 : vector<128x15xi32>
    %650 = vector.shape_cast %249 : vector<128x1xf32> to vector<128x1xf32>
    %651 = vector.broadcast %650 : vector<128x1xf32> to vector<128x15xf32>
    %652 = arith.select %649, %651, %647 : vector<128x15xi1>, vector<128x15xf32>
    %c13_i32 = arith.constant 13 : i32
    %653 = vector.broadcast %c13_i32 : i32 to vector<128x15xi32>
    %654 = arith.cmpi eq, %586, %653 : vector<128x15xi32>
    %655 = vector.shape_cast %432 : vector<128x1xf32> to vector<128x1xf32>
    %656 = vector.broadcast %655 : vector<128x1xf32> to vector<128x15xf32>
    %657 = arith.select %654, %656, %652 : vector<128x15xi1>, vector<128x15xf32>
    %c14_i32 = arith.constant 14 : i32
    %658 = vector.broadcast %c14_i32 : i32 to vector<128x15xi32>
    %659 = arith.cmpi eq, %586, %658 : vector<128x15xi32>
    %660 = vector.shape_cast %443 : vector<128x1xf32> to vector<128x1xf32>
    %661 = vector.broadcast %660 : vector<128x1xf32> to vector<128x15xf32>
    %662 = arith.select %659, %661, %657 : vector<128x15xi1>, vector<128x15xf32>
    %c0_212 = arith.constant 0 : index
    %c0_213 = arith.constant 0 : index
    %663 = vector.load %arg3[%c0_212, %c0_213] : memref<128x15xf32, #tpu.memory_space<vmem>>, vector<128x15xf32>
    tpu.vector_store %arg3[%c0_212, %c0_213], %662 {strides = array<i32>} : memref<128x15xf32, #tpu.memory_space<vmem>>, vector<128x15xf32>,
    return
  }
  func.func @transform_0(%arg0: i32) -> (i32, i32) {
    %c0_i32 = arith.constant 0 : i32
    %c0_i32_0 = arith.constant 0 : i32
    return %arg0, %c0_i32 : i32, i32
  }
  func.func @transform_1(%arg0: i32) -> (i32, i32) {
    %c0_i32 = arith.constant 0 : i32
    %c0_i32_0 = arith.constant 0 : i32
    %c0_i32_1 = arith.constant 0 : i32
    return %c0_i32, %c0_i32_0 : i32, i32
  }
  func.func @transform_2(%arg0: i32) -> (i32, i32) {
    %c0_i32 = arith.constant 0 : i32
    %c0_i32_0 = arith.constant 0 : i32
    return %arg0, %c0_i32 : i32, i32
  }
}

</mosaic_0001>

<llo_original>
// kernel: llff_image_planes_forward.1
$region0: #{llff_image_planes_forward.1}
  #allocation0 [shape = 'u32[]', space=smem, size = 0x4, offset = 0x4, fixed_abs, tag = 'smem constant byte address 0x4 - core index']
  #allocation1 [shape = 'u32[72,128]{1,0:T(1,128)}', space=vmem, size = 0x9000, scoped, tag = 'internal scratch']
  %s0 = inlined_call_operand.vmem [shape: f32[256,3], index: 0, kind: input, shape index: {}]
  %s1 = inlined_call_operand.vmem [shape: f32[9,256], index: 1, kind: input, shape index: {}]
  %s2 = inlined_call_operand.vmem [shape: f32[256,15], index: 2, kind: output, shape index: {}]
  %s3 = sld [smem:[#allocation0]]
  $region41: #{llff_image_planes_forward.1} parent=0
    _
  %s5 = ssub.s32 1, %s3
  %s6 = scalar_select 0, %s5, %s3
  loop: start=0, step=1, limit=4
  $region2: #{llff_image_planes_forward.1} parent=0 // loop_pre_header
    _
  $region3: #{llff_image_planes_forward.1} parent=0 // loop_header
    %s8 = sphi 0, %s12
    %p9 = scmp.ge.s32.totalorder %s8, 4
    %s18 = sphi 0, %s20
    %s21 = sphi 0, %s18
    %s22 = sphi 0, %s21
    %s38 = sphi 0, %s22
    %s42 = sphi 0, %s42
    %s44 = sphi 0, %s42
    %s45 = sphi 0, %s44
    %s59 = sphi 0, %s45
    %s65 = sphi 0, %s67
    %s68 = sphi 0, %s65
    %s69 = sphi 0, %s68
    %s85 = sphi 0, %s69
  $region4: #{llff_image_planes_forward.1} parent=0 // loop_header_branch
    %11 = sbr.rel (%p9) target = $region8
  $region5: #{llff_image_planes_forward.1} parent=0 // loop_body
    %s13 = ssub.s32 %s8, 1
    %s14 = ssub.s32 %s8, 2
    %s15 = sadd.s32 %s8, 1
    %s16 = ssub.s32 %s8, %s15
    %p17 = scmp.eq.s32.totalorder %s16, 0
    %s19 = sadd.s32 %s18, 1
    %s20 = scalar_select %p17, %s18, %s19
    %p23 = pneg %p17
    %p24 = scmp.eq.s32.totalorder %s8, 1
    %p25 = por %p23, %p24
    %p26 = scmp.ne.s32.totalorder %s18, %s21
    %p27 = scmp.eq.s32.totalorder %s8, 0
    %p28 = por %p26, %p27
    %p29 = scmp.ne.s32.totalorder %s18, %s21
    %p30 = scmp.eq.s32.totalorder %s13, 1
    %p31 = por %p29, %p30
    %p32 = scmp.ne.s32.totalorder %s21, %s22
    %p33 = scmp.eq.s32.totalorder %s13, 0
    %p34 = por %p32, %p33
    %p35 = scmp.ne.s32.totalorder %s21, %s22
    %p36 = scmp.eq.s32.totalorder %s14, 1
    %p37 = por %p35, %p36
    %p39 = scmp.ne.s32.totalorder %s22, %s38
    %p40 = scmp.eq.s32.totalorder %s14, 0
    %p41 = por %p39, %p40
    %s43 = sadd.s32 %s42, 1
    %p46 = scmp.eq.s32.totalorder %s8, 1
    %p47 = scmp.ne.s32.totalorder %s42, %s44
    %p48 = scmp.eq.s32.totalorder %s8, 0
    %p49 = por %p47, %p48
    %p50 = scmp.ne.s32.totalorder %s42, %s44
    %p51 = scmp.eq.s32.totalorder %s13, 1
    %p52 = por %p50, %p51
    %p53 = scmp.ne.s32.totalorder %s44, %s45
    %p54 = scmp.eq.s32.totalorder %s13, 0
    %p55 = por %p53, %p54
    %p56 = scmp.ne.s32.totalorder %s44, %s45
    %p57 = scmp.eq.s32.totalorder %s14, 1
    %p58 = por %p56, %p57
    %p60 = scmp.ne.s32.totalorder %s45, %s59
    %p61 = scmp.eq.s32.totalorder %s14, 0
    %p62 = por %p60, %p61
    %s63 = ssub.s32 %s8, %s15
    %p64 = scmp.eq.s32.totalorder %s63, 0
    %s66 = sadd.s32 %s65, 1
    %s67 = scalar_select %p64, %s65, %s66
    %p70 = pneg %p64
    %p71 = scmp.eq.s32.totalorder %s8, 1
    %p72 = por %p70, %p71
    %p73 = scmp.ne.s32.totalorder %s65, %s68
    %p74 = scmp.eq.s32.totalorder %s8, 0
    %p75 = por %p73, %p74
    %p76 = scmp.ne.s32.totalorder %s65, %s68
    %p77 = scmp.eq.s32.totalorder %s13, 1
    %p78 = por %p76, %p77
    %p79 = scmp.ne.s32.totalorder %s68, %s69
    %p80 = scmp.eq.s32.totalorder %s13, 0
    %p81 = por %p79, %p80
    %p82 = scmp.ne.s32.totalorder %s68, %s69
    %p83 = scmp.eq.s32.totalorder %s14, 1
    %p84 = por %p82, %p83
    %p86 = scmp.ne.s32.totalorder %s69, %s85
    %p87 = scmp.eq.s32.totalorder %s14, 0
    %p88 = por %p86, %p87
    %p89 = scmp.le.s32.totalorder 1, %s8
    %p90 = scmp.lt.s32.totalorder %s8, 3
    %p91 = pnand %p89, %p90
    %p92 = pneg %p91
    // Predicated region
    $region9: #{llff_image_planes_forward.1} parent=5 // pred_check
      _
    $region10: #{llff_image_planes_forward.1} parent=5 // pred_check_branch
      %94 = sbr.rel (%p91) target = $region12
    $region11: #{llff_image_planes_forward.1} parent=5 // pred_region
      %s95 = ssub.s32 %s8, 1
      // Predicated region
      $region13: #{llff_image_planes_forward.1} parent=11 // pred_check
        %p96 = pneg %p55
      $region14: #{llff_image_planes_forward.1} parent=11 // pred_check_branch
        %98 = sbr.rel (%p96) target = $region16
      $region15: #{llff_image_planes_forward.1} parent=11 // pred_region
        _
      $region16: #{llff_image_planes_forward.1} parent=11 // pred_fallthru
        _
    $region12: #{llff_image_planes_forward.1} parent=5 // pred_fallthru
      _
    %p99 = scmp.lt.s32.totalorder %s8, 2
    // Predicated region
    $region17: #{llff_image_planes_forward.1} parent=5 // pred_check
      %p100 = pneg %p99
    $region18: #{llff_image_planes_forward.1} parent=5 // pred_check_branch
      %102 = sbr.rel (%p100) target = $region20
    $region19: #{llff_image_planes_forward.1} parent=5 // pred_region
      // Predicated region
      $region21: #{llff_image_planes_forward.1} parent=19 // pred_check
        %p103 = pneg %p28
      $region22: #{llff_image_planes_forward.1} parent=19 // pred_check_branch
        %105 = sbr.rel (%p103) target = $region24
      $region23: #{llff_image_planes_forward.1} parent=19 // pred_region
        %s106 = smul.u32 16, %s8
        %p107 = scmp.lt.s32.totalorder %s106, 31
        %s108 = scalar_select %p107, %s106, 31
        %s109 = smul.addr %s108, 8
        %s110 = scalar_lea.vmem %s0, %s109
        %s111 = smul.u32 16, %s8
      $region24: #{llff_image_planes_forward.1} parent=19 // pred_fallthru
        _
    $region20: #{llff_image_planes_forward.1} parent=5 // pred_fallthru
      _
    %p112 = scmp.le.s32.totalorder 1, %s8
    %p113 = scmp.lt.s32.totalorder %s8, 3
    %p114 = pnand %p112, %p113
    %p115 = pneg %p114
    // Predicated region
    $region25: #{llff_image_planes_forward.1} parent=5 // pred_check
      _
    $region26: #{llff_image_planes_forward.1} parent=5 // pred_check_branch
      %117 = sbr.rel (%p114) target = $region28
    $region27: #{llff_image_planes_forward.1} parent=5 // pred_region
      %s118 = ssub.s32 %s8, 1
      %s119 = smul.u32 16, %s13
      %p120 = scmp.lt.s32.totalorder %s119, 31
      %s121 = scalar_select %p120, %s119, 31
      %s122 = smul.addr %s121, 8
      %s123 = scalar_lea.vmem %s0, %s122
      %p124 = pneg %p34
      %p125 = pneg %p31
      %p126 = pneg %p55
      %p127 = pneg %p52
      %p128 = pneg %p81
      %p129 = pneg %p78
      %s130 = smul.u32 16, %s13
      %p131 = scmp.lt.s32.totalorder %s130, 31
      %s132 = scalar_select %p131, %s130, 31
      %s133 = smul.addr %s132, 8
      %s134 = scalar_lea.vmem %s2, %s133
      %s135 = smul.u32 16, %s13
      %p136 = scmp.lt.s32.totalorder %s135, 31
      %s137 = scalar_select %p136, %s135, 31
      %s138 = smul.addr %s137, 8
      %s139 = scalar_lea.vmem %s0, %s138
      %s140 = smul.u32 16, %s13
      %s141 = smul.u32 16, %s13
      %p142 = scmp.lt.s32.totalorder %s141, 31
      %s143 = scalar_select %p142, %s141, 31
      %s144 = smul.addr %s143, 8
      %s145 = scalar_lea.vmem %s2, %s144
      %s146 = smul.u32 16, %s13
      %v147 = vld [vmem:[%s139] sm:$0xff]
      %v148 = vld [vmem:[%s139 + $0x8] sm:$0xff]
      %v149 = vld [vmem:[%s139 + $0x10] sm:$0xff]
      %v150 = vld [vmem:[%s139 + $0x18] sm:$0xff]
      %v151 = vld [vmem:[%s139 + $0x20] sm:$0xff]
      %v152 = vld [vmem:[%s139 + $0x28] sm:$0xff]
      %v153 = vld [vmem:[%s139 + $0x30] sm:$0xff]
      %v154 = vld [vmem:[%s139 + $0x38] sm:$0xff]
      %v155 = vld [vmem:[%s139 + $0x40] sm:$0xff]
      %v156 = vld [vmem:[%s139 + $0x48] sm:$0xff]
      %v157 = vld [vmem:[%s139 + $0x50] sm:$0xff]
      %v158 = vld [vmem:[%s139 + $0x58] sm:$0xff]
      %v159 = vld [vmem:[%s139 + $0x60] sm:$0xff]
      %v160 = vld [vmem:[%s139 + $0x68] sm:$0xff]
      %v161 = vld [vmem:[%s139 + $0x70] sm:$0xff]
      %v162 = vld [vmem:[%s139 + $0x78] sm:$0xff]
      %v163 = vlaneseq
      %v164 = vand.u32 %v163, 127
      %v165 = vadd.s32 %v164, 128
      %v166 = vmul.f32 %v147, -20.0
      %v167 = vmul.f32 %v148, -20.0
      %v168 = vmul.f32 %v149, -20.0
      %v169 = vmul.f32 %v150, -20.0
      %v170 = vmul.f32 %v151, -20.0
      %v171 = vmul.f32 %v152, -20.0
      %v172 = vmul.f32 %v153, -20.0
      %v173 = vmul.f32 %v154, -20.0
      %v174 = vmul.f32 %v155, -20.0
      %v175 = vmul.f32 %v156, -20.0
      %v176 = vmul.f32 %v157, -20.0
      %v177 = vmul.f32 %v158, -20.0
      %v178 = vmul.f32 %v159, -20.0
      %v179 = vmul.f32 %v160, -20.0
      %v180 = vmul.f32 %v161, -20.0
      %v181 = vmul.f32 %v162, -20.0
      %v182 = vmul.f32 %v147, 0.0
      %v183 = vmul.f32 %v148, 0.0
      %v184 = vmul.f32 %v149, 0.0
      %v185 = vmul.f32 %v150, 0.0
      %v186 = vmul.f32 %v151, 0.0
      %v187 = vmul.f32 %v152, 0.0
      %v188 = vmul.f32 %v153, 0.0
      %v189 = vmul.f32 %v154, 0.0
      %v190 = vmul.f32 %v155, 0.0
      %v191 = vmul.f32 %v156, 0.0
      %v192 = vmul.f32 %v157, 0.0
      %v193 = vmul.f32 %v158, 0.0
      %v194 = vmul.f32 %v159, 0.0
      %v195 = vmul.f32 %v160, 0.0
      %v196 = vmul.f32 %v161, 0.0
      %v197 = vmul.f32 %v162, 0.0
      %214 = vrot.lane.b32.xlu0 %v182, 127
      %v215 = vpop.permute.xlu0 %214
      %216 = vrot.lane.b32.xlu0 %v183, 127
      %v217 = vpop.permute.xlu0 %216
      %218 = vrot.lane.b32.xlu0 %v184, 127
      %v219 = vpop.permute.xlu0 %218
      %220 = vrot.lane.b32.xlu0 %v185, 127
      %v221 = vpop.permute.xlu0 %220
      %222 = vrot.lane.b32.xlu0 %v186, 127
      %v223 = vpop.permute.xlu0 %222
      %224 = vrot.lane.b32.xlu0 %v187, 127
      %v225 = vpop.permute.xlu0 %224
      %226 = vrot.lane.b32.xlu0 %v188, 127
      %v227 = vpop.permute.xlu0 %226
      %228 = vrot.lane.b32.xlu0 %v189, 127
      %v229 = vpop.permute.xlu0 %228
      %230 = vrot.lane.b32.xlu0 %v190, 127
      %v231 = vpop.permute.xlu0 %230
      %232 = vrot.lane.b32.xlu0 %v191, 127
      %v233 = vpop.permute.xlu0 %232
      %234 = vrot.lane.b32.xlu0 %v192, 127
      %v235 = vpop.permute.xlu0 %234
      %236 = vrot.lane.b32.xlu0 %v193, 127
      %v237 = vpop.permute.xlu0 %236
      %238 = vrot.lane.b32.xlu0 %v194, 127
      %v239 = vpop.permute.xlu0 %238
      %240 = vrot.lane.b32.xlu0 %v195, 127
      %v241 = vpop.permute.xlu0 %240
      %242 = vrot.lane.b32.xlu0 %v196, 127
      %v243 = vpop.permute.xlu0 %242
      %244 = vrot.lane.b32.xlu0 %v197, 127
      %v245 = vpop.permute.xlu0 %244
      %v262 = vadd.f32 %v166, %v215
      %v263 = vadd.f32 %v167, %v217
      %v264 = vadd.f32 %v168, %v219
      %v265 = vadd.f32 %v169, %v221
      %v266 = vadd.f32 %v170, %v223
      %v267 = vadd.f32 %v171, %v225
      %v268 = vadd.f32 %v172, %v227
      %v269 = vadd.f32 %v173, %v229
      %v270 = vadd.f32 %v174, %v231
      %v271 = vadd.f32 %v175, %v233
      %v272 = vadd.f32 %v176, %v235
      %v273 = vadd.f32 %v177, %v237
      %v274 = vadd.f32 %v178, %v239
      %v275 = vadd.f32 %v179, %v241
      %v276 = vadd.f32 %v180, %v243
      %v277 = vadd.f32 %v181, %v245
      %v278 = vmul.f32 %v147, 8.0
      %v279 = vmul.f32 %v148, 8.0
      %v280 = vmul.f32 %v149, 8.0
      %v281 = vmul.f32 %v150, 8.0
      %v282 = vmul.f32 %v151, 8.0
      %v283 = vmul.f32 %v152, 8.0
      %v284 = vmul.f32 %v153, 8.0
      %v285 = vmul.f32 %v154, 8.0
      %v286 = vmul.f32 %v155, 8.0
      %v287 = vmul.f32 %v156, 8.0
      %v288 = vmul.f32 %v157, 8.0
      %v289 = vmul.f32 %v158, 8.0
      %v290 = vmul.f32 %v159, 8.0
      %v291 = vmul.f32 %v160, 8.0
      %v292 = vmul.f32 %v161, 8.0
      %v293 = vmul.f32 %v162, 8.0
      %310 = vrot.lane.b32.xlu0 %v278, 126
      %v311 = vpop.permute.xlu0 %310
      %312 = vrot.lane.b32.xlu0 %v279, 126
      %v313 = vpop.permute.xlu0 %312
      %314 = vrot.lane.b32.xlu0 %v280, 126
      %v315 = vpop.permute.xlu0 %314
      %316 = vrot.lane.b32.xlu0 %v281, 126
      %v317 = vpop.permute.xlu0 %316
      %318 = vrot.lane.b32.xlu0 %v282, 126
      %v319 = vpop.permute.xlu0 %318
      %320 = vrot.lane.b32.xlu0 %v283, 126
      %v321 = vpop.permute.xlu0 %320
      %322 = vrot.lane.b32.xlu0 %v284, 126
      %v323 = vpop.permute.xlu0 %322
      %324 = vrot.lane.b32.xlu0 %v285, 126
      %v325 = vpop.permute.xlu0 %324
      %326 = vrot.lane.b32.xlu0 %v286, 126
      %v327 = vpop.permute.xlu0 %326
      %328 = vrot.lane.b32.xlu0 %v287, 126
      %v329 = vpop.permute.xlu0 %328
      %330 = vrot.lane.b32.xlu0 %v288, 126
      %v331 = vpop.permute.xlu0 %330
      %332 = vrot.lane.b32.xlu0 %v289, 126
      %v333 = vpop.permute.xlu0 %332
      %334 = vrot.lane.b32.xlu0 %v290, 126
      %v335 = vpop.permute.xlu0 %334
      %336 = vrot.lane.b32.xlu0 %v291, 126
      %v337 = vpop.permute.xlu0 %336
      %338 = vrot.lane.b32.xlu0 %v292, 126
      %v339 = vpop.permute.xlu0 %338
      %340 = vrot.lane.b32.xlu0 %v293, 126
      %v341 = vpop.permute.xlu0 %340
      %v358 = vadd.f32 %v262, %v311
      %v359 = vadd.f32 %v263, %v313
      %v360 = vadd.f32 %v264, %v315
      %v361 = vadd.f32 %v265, %v317
      %v362 = vadd.f32 %v266, %v319
      %v363 = vadd.f32 %v267, %v321
      %v364 = vadd.f32 %v268, %v323
      %v365 = vadd.f32 %v269, %v325
      %v366 = vadd.f32 %v270, %v327
      %v367 = vadd.f32 %v271, %v329
      %v368 = vadd.f32 %v272, %v331
      %v369 = vadd.f32 %v273, %v333
      %v370 = vadd.f32 %v274, %v335
      %v371 = vadd.f32 %v275, %v337
      %v372 = vadd.f32 %v276, %v339
      %v373 = vadd.f32 %v277, %v341
      %v374 = vadd.f32 %v358, 0.0
      %v375 = vadd.f32 %v359, 0.0
      %v376 = vadd.f32 %v360, 0.0
      %v377 = vadd.f32 %v361, 0.0
      %v378 = vadd.f32 %v362, 0.0
      %v379 = vadd.f32 %v363, 0.0
      %v380 = vadd.f32 %v364, 0.0
      %v381 = vadd.f32 %v365, 0.0
      %v382 = vadd.f32 %v366, 0.0
      %v383 = vadd.f32 %v367, 0.0
      %v384 = vadd.f32 %v368, 0.0
      %v385 = vadd.f32 %v369, 0.0
      %v386 = vadd.f32 %v370, 0.0
      %v387 = vadd.f32 %v371, 0.0
      %v388 = vadd.f32 %v372, 0.0
      %v389 = vadd.f32 %v373, 0.0
      %v390 = vmul.f32 %v147, 20.0
      %v391 = vmul.f32 %v148, 20.0
      %v392 = vmul.f32 %v149, 20.0
      %v393 = vmul.f32 %v150, 20.0
      %v394 = vmul.f32 %v151, 20.0
      %v395 = vmul.f32 %v152, 20.0
      %v396 = vmul.f32 %v153, 20.0
      %v397 = vmul.f32 %v154, 20.0
      %v398 = vmul.f32 %v155, 20.0
      %v399 = vmul.f32 %v156, 20.0
      %v400 = vmul.f32 %v157, 20.0
      %v401 = vmul.f32 %v158, 20.0
      %v402 = vmul.f32 %v159, 20.0
      %v403 = vmul.f32 %v160, 20.0
      %v404 = vmul.f32 %v161, 20.0
      %v405 = vmul.f32 %v162, 20.0
      %422 = vrot.lane.b32.xlu0 %v390, 127
      %v423 = vpop.permute.xlu0 %422
      %424 = vrot.lane.b32.xlu0 %v391, 127
      %v425 = vpop.permute.xlu0 %424
      %426 = vrot.lane.b32.xlu0 %v392, 127
      %v427 = vpop.permute.xlu0 %426
      %428 = vrot.lane.b32.xlu0 %v393, 127
      %v429 = vpop.permute.xlu0 %428
      %430 = vrot.lane.b32.xlu0 %v394, 127
      %v431 = vpop.permute.xlu0 %430
      %432 = vrot.lane.b32.xlu0 %v395, 127
      %v433 = vpop.permute.xlu0 %432
      %434 = vrot.lane.b32.xlu0 %v396, 127
      %v435 = vpop.permute.xlu0 %434
      %436 = vrot.lane.b32.xlu0 %v397, 127
      %v437 = vpop.permute.xlu0 %436
      %438 = vrot.lane.b32.xlu0 %v398, 127
      %v439 = vpop.permute.xlu0 %438
      %440 = vrot.lane.b32.xlu0 %v399, 127
      %v441 = vpop.permute.xlu0 %440
      %442 = vrot.lane.b32.xlu0 %v400, 127
      %v443 = vpop.permute.xlu0 %442
      %444 = vrot.lane.b32.xlu0 %v401, 127
      %v445 = vpop.permute.xlu0 %444
      %446 = vrot.lane.b32.xlu0 %v402, 127
      %v447 = vpop.permute.xlu0 %446
      %448 = vrot.lane.b32.xlu0 %v403, 127
      %v449 = vpop.permute.xlu0 %448
      %450 = vrot.lane.b32.xlu0 %v404, 127
      %v451 = vpop.permute.xlu0 %450
      %452 = vrot.lane.b32.xlu0 %v405, 127
      %v453 = vpop.permute.xlu0 %452
      %v470 = vadd.f32 %v182, %v423
      %v471 = vadd.f32 %v183, %v425
      %v472 = vadd.f32 %v184, %v427
      %v473 = vadd.f32 %v185, %v429
      %v474 = vadd.f32 %v186, %v431
      %v475 = vadd.f32 %v187, %v433
      %v476 = vadd.f32 %v188, %v435
      %v477 = vadd.f32 %v189, %v437
      %v478 = vadd.f32 %v190, %v439
      %v479 = vadd.f32 %v191, %v441
      %v480 = vadd.f32 %v192, %v443
      %v481 = vadd.f32 %v193, %v445
      %v482 = vadd.f32 %v194, %v447
      %v483 = vadd.f32 %v195, %v449
      %v484 = vadd.f32 %v196, %v451
      %v485 = vadd.f32 %v197, %v453
      %v486 = vadd.f32 %v470, %v311
      %v487 = vadd.f32 %v471, %v313
      %v488 = vadd.f32 %v472, %v315
      %v489 = vadd.f32 %v473, %v317
      %v490 = vadd.f32 %v474, %v319
      %v491 = vadd.f32 %v475, %v321
      %v492 = vadd.f32 %v476, %v323
      %v493 = vadd.f32 %v477, %v325
      %v494 = vadd.f32 %v478, %v327
      %v495 = vadd.f32 %v479, %v329
      %v496 = vadd.f32 %v480, %v331
      %v497 = vadd.f32 %v481, %v333
      %v498 = vadd.f32 %v482, %v335
      %v499 = vadd.f32 %v483, %v337
      %v500 = vadd.f32 %v484, %v339
      %v501 = vadd.f32 %v485, %v341
      %v502 = vadd.f32 %v486, 0.0
      %v503 = vadd.f32 %v487, 0.0
      %v504 = vadd.f32 %v488, 0.0
      %v505 = vadd.f32 %v489, 0.0
      %v506 = vadd.f32 %v490, 0.0
      %v507 = vadd.f32 %v491, 0.0
      %v508 = vadd.f32 %v492, 0.0
      %v509 = vadd.f32 %v493, 0.0
      %v510 = vadd.f32 %v494, 0.0
      %v511 = vadd.f32 %v495, 0.0
      %v512 = vadd.f32 %v496, 0.0
      %v513 = vadd.f32 %v497, 0.0
      %v514 = vadd.f32 %v498, 0.0
      %v515 = vadd.f32 %v499, 0.0
      %v516 = vadd.f32 %v500, 0.0
      %v517 = vadd.f32 %v501, 0.0
      %v518 = vadd.f32 %v182, %v215
      %v519 = vadd.f32 %v183, %v217
      %v520 = vadd.f32 %v184, %v219
      %v521 = vadd.f32 %v185, %v221
      %v522 = vadd.f32 %v186, %v223
      %v523 = vadd.f32 %v187, %v225
      %v524 = vadd.f32 %v188, %v227
      %v525 = vadd.f32 %v189, %v229
      %v526 = vadd.f32 %v190, %v231
      %v527 = vadd.f32 %v191, %v233
      %v528 = vadd.f32 %v192, %v235
      %v529 = vadd.f32 %v193, %v237
      %v530 = vadd.f32 %v194, %v239
      %v531 = vadd.f32 %v195, %v241
      %v532 = vadd.f32 %v196, %v243
      %v533 = vadd.f32 %v197, %v245
      %550 = vrot.lane.b32.xlu0 %v147, 126
      %v551 = vpop.permute.xlu0 %550
      %552 = vrot.lane.b32.xlu0 %v148, 126
      %v553 = vpop.permute.xlu0 %552
      %554 = vrot.lane.b32.xlu0 %v149, 126
      %v555 = vpop.permute.xlu0 %554
      %556 = vrot.lane.b32.xlu0 %v150, 126
      %v557 = vpop.permute.xlu0 %556
      %558 = vrot.lane.b32.xlu0 %v151, 126
      %v559 = vpop.permute.xlu0 %558
      %560 = vrot.lane.b32.xlu0 %v152, 126
      %v561 = vpop.permute.xlu0 %560
      %562 = vrot.lane.b32.xlu0 %v153, 126
      %v563 = vpop.permute.xlu0 %562
      %564 = vrot.lane.b32.xlu0 %v154, 126
      %v565 = vpop.permute.xlu0 %564
      %566 = vrot.lane.b32.xlu0 %v155, 126
      %v567 = vpop.permute.xlu0 %566
      %568 = vrot.lane.b32.xlu0 %v156, 126
      %v569 = vpop.permute.xlu0 %568
      %570 = vrot.lane.b32.xlu0 %v157, 126
      %v571 = vpop.permute.xlu0 %570
      %572 = vrot.lane.b32.xlu0 %v158, 126
      %v573 = vpop.permute.xlu0 %572
      %574 = vrot.lane.b32.xlu0 %v159, 126
      %v575 = vpop.permute.xlu0 %574
      %576 = vrot.lane.b32.xlu0 %v160, 126
      %v577 = vpop.permute.xlu0 %576
      %578 = vrot.lane.b32.xlu0 %v161, 126
      %v579 = vpop.permute.xlu0 %578
      %580 = vrot.lane.b32.xlu0 %v162, 126
      %v581 = vpop.permute.xlu0 %580
      %v598 = vadd.f32 %v518, %v551
      %v599 = vadd.f32 %v519, %v553
      %v600 = vadd.f32 %v520, %v555
      %v601 = vadd.f32 %v521, %v557
      %v602 = vadd.f32 %v522, %v559
      %v603 = vadd.f32 %v523, %v561
      %v604 = vadd.f32 %v524, %v563
      %v605 = vadd.f32 %v525, %v565
      %v606 = vadd.f32 %v526, %v567
      %v607 = vadd.f32 %v527, %v569
      %v608 = vadd.f32 %v528, %v571
      %v609 = vadd.f32 %v529, %v573
      %v610 = vadd.f32 %v530, %v575
      %v611 = vadd.f32 %v531, %v577
      %v612 = vadd.f32 %v532, %v579
      %v613 = vadd.f32 %v533, %v581
      %v614 = vadd.f32 %v598, 0.0
      %v615 = vadd.f32 %v599, 0.0
      %v616 = vadd.f32 %v600, 0.0
      %v617 = vadd.f32 %v601, 0.0
      %v618 = vadd.f32 %v602, 0.0
      %v619 = vadd.f32 %v603, 0.0
      %v620 = vadd.f32 %v604, 0.0
      %v621 = vadd.f32 %v605, 0.0
      %v622 = vadd.f32 %v606, 0.0
      %v623 = vadd.f32 %v607, 0.0
      %v624 = vadd.f32 %v608, 0.0
      %v625 = vadd.f32 %v609, 0.0
      %v626 = vadd.f32 %v610, 0.0
      %v627 = vadd.f32 %v611, 0.0
      %v628 = vadd.f32 %v612, 0.0
      %v629 = vadd.f32 %v613, 0.0
      %v630 = vrcp.pop %v614
      %v631 = vmul.f32 %v614, %v630
      %v632 = vsub.f32 1.0, %v631
      %v633 = vmul.f32 %v630, %v632
      %v634 = vadd.f32 %v630, %v633
      %vm635 = vweird.f32 %v614
      %vm636 = vweird.f32 %v630
      %vm637 = vmor %vm635, %vm636
      %v638 = vsel %vm637, %v630, %v634
      %v639 = vand.u32 2147483647, %v614
      %vm640 = vcmp.eq.f32.partialorder %v639, 8.507059e+37
      %v641 = vand.u32 %v614, 2147483648
      %v642 = vor.u32 1.1754944e-38, %v641
      %v643 = vsel %vm640, %v642, %v638
      %v644 = vmul.f32 %v374, %v643
      %v645 = vrcp.pop %v615
      %v646 = vmul.f32 %v615, %v645
      %v647 = vsub.f32 1.0, %v646
      %v648 = vmul.f32 %v645, %v647
      %v649 = vadd.f32 %v645, %v648
      %vm650 = vweird.f32 %v615
      %vm651 = vweird.f32 %v645
      %vm652 = vmor %vm650, %vm651
      %v653 = vsel %vm652, %v645, %v649
      %v654 = vand.u32 2147483647, %v615
      %vm655 = vcmp.eq.f32.partialorder %v654, 8.507059e+37
      %v656 = vand.u32 %v615, 2147483648
      %v657 = vor.u32 1.1754944e-38, %v656
      %v658 = vsel %vm655, %v657, %v653
      %v659 = vmul.f32 %v375, %v658
      %v660 = vrcp.pop %v616
      %v661 = vmul.f32 %v616, %v660
      %v662 = vsub.f32 1.0, %v661
      %v663 = vmul.f32 %v660, %v662
      %v664 = vadd.f32 %v660, %v663
      %vm665 = vweird.f32 %v616
      %vm666 = vweird.f32 %v660
      %vm667 = vmor %vm665, %vm666
      %v668 = vsel %vm667, %v660, %v664
      %v669 = vand.u32 2147483647, %v616
      %vm670 = vcmp.eq.f32.partialorder %v669, 8.507059e+37
      %v671 = vand.u32 %v616, 2147483648
      %v672 = vor.u32 1.1754944e-38, %v671
      %v673 = vsel %vm670, %v672, %v668
      %v674 = vmul.f32 %v376, %v673
      %v675 = vrcp.pop %v617
      %v676 = vmul.f32 %v617, %v675
      %v677 = vsub.f32 1.0, %v676
      %v678 = vmul.f32 %v675, %v677
      %v679 = vadd.f32 %v675, %v678
      %vm680 = vweird.f32 %v617
      %vm681 = vweird.f32 %v675
      %vm682 = vmor %vm680, %vm681
      %v683 = vsel %vm682, %v675, %v679
      %v684 = vand.u32 2147483647, %v617
      %vm685 = vcmp.eq.f32.partialorder %v684, 8.507059e+37
      %v686 = vand.u32 %v617, 2147483648
      %v687 = vor.u32 1.1754944e-38, %v686
      %v688 = vsel %vm685, %v687, %v683
      %v689 = vmul.f32 %v377, %v688
      %v690 = vrcp.pop %v618
      %v691 = vmul.f32 %v618, %v690
      %v692 = vsub.f32 1.0, %v691
      %v693 = vmul.f32 %v690, %v692
      %v694 = vadd.f32 %v690, %v693
      %vm695 = vweird.f32 %v618
      %vm696 = vweird.f32 %v690
      %vm697 = vmor %vm695, %vm696
      %v698 = vsel %vm697, %v690, %v694
      %v699 = vand.u32 2147483647, %v618
      %vm700 = vcmp.eq.f32.partialorder %v699, 8.507059e+37
      %v701 = vand.u32 %v618, 2147483648
      %v702 = vor.u32 1.1754944e-38, %v701
      %v703 = vsel %vm700, %v702, %v698
      %v704 = vmul.f32 %v378, %v703
      %v705 = vrcp.pop %v619
      %v706 = vmul.f32 %v619, %v705
      %v707 = vsub.f32 1.0, %v706
      %v708 = vmul.f32 %v705, %v707
      %v709 = vadd.f32 %v705, %v708
      %vm710 = vweird.f32 %v619
      %vm711 = vweird.f32 %v705
      %vm712 = vmor %vm710, %vm711
      %v713 = vsel %vm712, %v705, %v709
      %v714 = vand.u32 2147483647, %v619
      %vm715 = vcmp.eq.f32.partialorder %v714, 8.507059e+37
      %v716 = vand.u32 %v619, 2147483648
      %v717 = vor.u32 1.1754944e-38, %v716
      %v718 = vsel %vm715, %v717, %v713
      %v719 = vmul.f32 %v379, %v718
      %v720 = vrcp.pop %v620
      %v721 = vmul.f32 %v620, %v720
      %v722 = vsub.f32 1.0, %v721
      %v723 = vmul.f32 %v720, %v722
      %v724 = vadd.f32 %v720, %v723
      %vm725 = vweird.f32 %v620
      %vm726 = vweird.f32 %v720
      %vm727 = vmor %vm725, %vm726
      %v728 = vsel %vm727, %v720, %v724
      %v729 = vand.u32 2147483647, %v620
      %vm730 = vcmp.eq.f32.partialorder %v729, 8.507059e+37
      %v731 = vand.u32 %v620, 2147483648
      %v732 = vor.u32 1.1754944e-38, %v731
      %v733 = vsel %vm730, %v732, %v728
      %v734 = vmul.f32 %v380, %v733
      %v735 = vrcp.pop %v621
      %v736 = vmul.f32 %v621, %v735
      %v737 = vsub.f32 1.0, %v736
      %v738 = vmul.f32 %v735, %v737
      %v739 = vadd.f32 %v735, %v738
      %vm740 = vweird.f32 %v621
      %vm741 = vweird.f32 %v735
      %vm742 = vmor %vm740, %vm741
      %v743 = vsel %vm742, %v735, %v739
      %v744 = vand.u32 2147483647, %v621
      %vm745 = vcmp.eq.f32.partialorder %v744, 8.507059e+37
      %v746 = vand.u32 %v621, 2147483648
      %v747 = vor.u32 1.1754944e-38, %v746
      %v748 = vsel %vm745, %v747, %v743
      %v749 = vmul.f32 %v381, %v748
      %v750 = vrcp.pop %v622
      %v751 = vmul.f32 %v622, %v750
      %v752 = vsub.f32 1.0, %v751
      %v753 = vmul.f32 %v750, %v752
      %v754 = vadd.f32 %v750, %v753
      %vm755 = vweird.f32 %v622
      %vm756 = vweird.f32 %v750
      %vm757 = vmor %vm755, %vm756
      %v758 = vsel %vm757, %v750, %v754
      %v759 = vand.u32 2147483647, %v622
      %vm760 = vcmp.eq.f32.partialorder %v759, 8.507059e+37
      %v761 = vand.u32 %v622, 2147483648
      %v762 = vor.u32 1.1754944e-38, %v761
      %v763 = vsel %vm760, %v762, %v758
      %v764 = vmul.f32 %v382, %v763
      %v765 = vrcp.pop %v623
      %v766 = vmul.f32 %v623, %v765
      %v767 = vsub.f32 1.0, %v766
      %v768 = vmul.f32 %v765, %v767
      %v769 = vadd.f32 %v765, %v768
      %vm770 = vweird.f32 %v623
      %vm771 = vweird.f32 %v765
      %vm772 = vmor %vm770, %vm771
      %v773 = vsel %vm772, %v765, %v769
      %v774 = vand.u32 2147483647, %v623
      %vm775 = vcmp.eq.f32.partialorder %v774, 8.507059e+37
      %v776 = vand.u32 %v623, 2147483648
      %v777 = vor.u32 1.1754944e-38, %v776
      %v778 = vsel %vm775, %v777, %v773
      %v779 = vmul.f32 %v383, %v778
      %v780 = vrcp.pop %v624
      %v781 = vmul.f32 %v624, %v780
      %v782 = vsub.f32 1.0, %v781
      %v783 = vmul.f32 %v780, %v782
      %v784 = vadd.f32 %v780, %v783
      %vm785 = vweird.f32 %v624
      %vm786 = vweird.f32 %v780
      %vm787 = vmor %vm785, %vm786
      %v788 = vsel %vm787, %v780, %v784
      %v789 = vand.u32 2147483647, %v624
      %vm790 = vcmp.eq.f32.partialorder %v789, 8.507059e+37
      %v791 = vand.u32 %v624, 2147483648
      %v792 = vor.u32 1.1754944e-38, %v791
      %v793 = vsel %vm790, %v792, %v788
      %v794 = vmul.f32 %v384, %v793
      %v795 = vrcp.pop %v625
      %v796 = vmul.f32 %v625, %v795
      %v797 = vsub.f32 1.0, %v796
      %v798 = vmul.f32 %v795, %v797
      %v799 = vadd.f32 %v795, %v798
      %vm800 = vweird.f32 %v625
      %vm801 = vweird.f32 %v795
      %vm802 = vmor %vm800, %vm801
      %v803 = vsel %vm802, %v795, %v799
      %v804 = vand.u32 2147483647, %v625
      %vm805 = vcmp.eq.f32.partialorder %v804, 8.507059e+37
      %v806 = vand.u32 %v625, 2147483648
      %v807 = vor.u32 1.1754944e-38, %v806
      %v808 = vsel %vm805, %v807, %v803
      %v809 = vmul.f32 %v385, %v808
      %v810 = vrcp.pop %v626
      %v811 = vmul.f32 %v626, %v810
      %v812 = vsub.f32 1.0, %v811
      %v813 = vmul.f32 %v810, %v812
      %v814 = vadd.f32 %v810, %v813
      %vm815 = vweird.f32 %v626
      %vm816 = vweird.f32 %v810
      %vm817 = vmor %vm815, %vm816
      %v818 = vsel %vm817, %v810, %v814
      %v819 = vand.u32 2147483647, %v626
      %vm820 = vcmp.eq.f32.partialorder %v819, 8.507059e+37
      %v821 = vand.u32 %v626, 2147483648
      %v822 = vor.u32 1.1754944e-38, %v821
      %v823 = vsel %vm820, %v822, %v818
      %v824 = vmul.f32 %v386, %v823
      %v825 = vrcp.pop %v627
      %v826 = vmul.f32 %v627, %v825
      %v827 = vsub.f32 1.0, %v826
      %v828 = vmul.f32 %v825, %v827
      %v829 = vadd.f32 %v825, %v828
      %vm830 = vweird.f32 %v627
      %vm831 = vweird.f32 %v825
      %vm832 = vmor %vm830, %vm831
      %v833 = vsel %vm832, %v825, %v829
      %v834 = vand.u32 2147483647, %v627
      %vm835 = vcmp.eq.f32.partialorder %v834, 8.507059e+37
      %v836 = vand.u32 %v627, 2147483648
      %v837 = vor.u32 1.1754944e-38, %v836
      %v838 = vsel %vm835, %v837, %v833
      %v839 = vmul.f32 %v387, %v838
      %v840 = vrcp.pop %v628
      %v841 = vmul.f32 %v628, %v840
      %v842 = vsub.f32 1.0, %v841
      %v843 = vmul.f32 %v840, %v842
      %v844 = vadd.f32 %v840, %v843
      %vm845 = vweird.f32 %v628
      %vm846 = vweird.f32 %v840
      %vm847 = vmor %vm845, %vm846
      %v848 = vsel %vm847, %v840, %v844
      %v849 = vand.u32 2147483647, %v628
      %vm850 = vcmp.eq.f32.partialorder %v849, 8.507059e+37
      %v851 = vand.u32 %v628, 2147483648
      %v852 = vor.u32 1.1754944e-38, %v851
      %v853 = vsel %vm850, %v852, %v848
      %v854 = vmul.f32 %v388, %v853
      %v855 = vrcp.pop %v629
      %v856 = vmul.f32 %v629, %v855
      %v857 = vsub.f32 1.0, %v856
      %v858 = vmul.f32 %v855, %v857
      %v859 = vadd.f32 %v855, %v858
      %vm860 = vweird.f32 %v629
      %vm861 = vweird.f32 %v855
      %vm862 = vmor %vm860, %vm861
      %v863 = vsel %vm862, %v855, %v859
      %v864 = vand.u32 2147483647, %v629
      %vm865 = vcmp.eq.f32.partialorder %v864, 8.507059e+37
      %v866 = vand.u32 %v629, 2147483648
      %v867 = vor.u32 1.1754944e-38, %v866
      %v868 = vsel %vm865, %v867, %v863
      %v869 = vmul.f32 %v389, %v868
      %v870 = vrcp.pop 16.0
      %v871 = vmul.f32 16.0, %v870
      %v872 = vsub.f32 1.0, %v871
      %v873 = vmul.f32 %v870, %v872
      %v874 = vadd.f32 %v870, %v873
      %vm875 = vweird.f32 %v870
      %v876 = vsel %vm875, %v870, %v874
      %v877 = vmul.f32 %v644, %v876
      %v878 = vmul.f32 %v659, %v876
      %v879 = vmul.f32 %v674, %v876
      %v880 = vmul.f32 %v689, %v876
      %v881 = vmul.f32 %v704, %v876
      %v882 = vmul.f32 %v719, %v876
      %v883 = vmul.f32 %v734, %v876
      %v884 = vmul.f32 %v749, %v876
      %v885 = vmul.f32 %v764, %v876
      %v886 = vmul.f32 %v779, %v876
      %v887 = vmul.f32 %v794, %v876
      %v888 = vmul.f32 %v809, %v876
      %v889 = vmul.f32 %v824, %v876
      %v890 = vmul.f32 %v839, %v876
      %v891 = vmul.f32 %v854, %v876
      %v892 = vmul.f32 %v869, %v876
      %v893 = vmax.f32 %v877, 0.0
      %v894 = vmax.f32 %v878, 0.0
      %v895 = vmax.f32 %v879, 0.0
      %v896 = vmax.f32 %v880, 0.0
      %v897 = vmax.f32 %v881, 0.0
      %v898 = vmax.f32 %v882, 0.0
      %v899 = vmax.f32 %v883, 0.0
      %v900 = vmax.f32 %v884, 0.0
      %v901 = vmax.f32 %v885, 0.0
      %v902 = vmax.f32 %v886, 0.0
      %v903 = vmax.f32 %v887, 0.0
      %v904 = vmax.f32 %v888, 0.0
      %v905 = vmax.f32 %v889, 0.0
      %v906 = vmax.f32 %v890, 0.0
      %v907 = vmax.f32 %v891, 0.0
      %v908 = vmax.f32 %v892, 0.0
      %v909 = vmin.f32 %v893, 1.0
      %v910 = vmin.f32 %v894, 1.0
      %v911 = vmin.f32 %v895, 1.0
      %v912 = vmin.f32 %v896, 1.0
      %v913 = vmin.f32 %v897, 1.0
      %v914 = vmin.f32 %v898, 1.0
      %v915 = vmin.f32 %v899, 1.0
      %v916 = vmin.f32 %v900, 1.0
      %v917 = vmin.f32 %v901, 1.0
      %v918 = vmin.f32 %v902, 1.0
      %v919 = vmin.f32 %v903, 1.0
      %v920 = vmin.f32 %v904, 1.0
      %v921 = vmin.f32 %v905, 1.0
      %v922 = vmin.f32 %v906, 1.0
      %v923 = vmin.f32 %v907, 1.0
      %v924 = vmin.f32 %v908, 1.0
      %v925 = vmul.f32 %v909, 2.0
      %v926 = vmul.f32 %v910, 2.0
      %v927 = vmul.f32 %v911, 2.0
      %v928 = vmul.f32 %v912, 2.0
      %v929 = vmul.f32 %v913, 2.0
      %v930 = vmul.f32 %v914, 2.0
      %v931 = vmul.f32 %v915, 2.0
      %v932 = vmul.f32 %v916, 2.0
      %v933 = vmul.f32 %v917, 2.0
      %v934 = vmul.f32 %v918, 2.0
      %v935 = vmul.f32 %v919, 2.0
      %v936 = vmul.f32 %v920, 2.0
      %v937 = vmul.f32 %v921, 2.0
      %v938 = vmul.f32 %v922, 2.0
      %v939 = vmul.f32 %v923, 2.0
      %v940 = vmul.f32 %v924, 2.0
      %v941 = vsub.f32 %v925, 1.0
      %v942 = vsub.f32 %v926, 1.0
      %v943 = vsub.f32 %v927, 1.0
      %v944 = vsub.f32 %v928, 1.0
      %v945 = vsub.f32 %v929, 1.0
      %v946 = vsub.f32 %v930, 1.0
      %v947 = vsub.f32 %v931, 1.0
      %v948 = vsub.f32 %v932, 1.0
      %v949 = vsub.f32 %v933, 1.0
      %v950 = vsub.f32 %v934, 1.0
      %v951 = vsub.f32 %v935, 1.0
      %v952 = vsub.f32 %v936, 1.0
      %v953 = vsub.f32 %v937, 1.0
      %v954 = vsub.f32 %v938, 1.0
      %v955 = vsub.f32 %v939, 1.0
      %v956 = vsub.f32 %v940, 1.0
      %v957 = vmul.f32 %v502, %v643
      %v958 = vmul.f32 %v503, %v658
      %v959 = vmul.f32 %v504, %v673
      %v960 = vmul.f32 %v505, %v688
      %v961 = vmul.f32 %v506, %v703
      %v962 = vmul.f32 %v507, %v718
      %v963 = vmul.f32 %v508, %v733
      %v964 = vmul.f32 %v509, %v748
      %v965 = vmul.f32 %v510, %v763
      %v966 = vmul.f32 %v511, %v778
      %v967 = vmul.f32 %v512, %v793
      %v968 = vmul.f32 %v513, %v808
      %v969 = vmul.f32 %v514, %v823
      %v970 = vmul.f32 %v515, %v838
      %v971 = vmul.f32 %v516, %v853
      %v972 = vmul.f32 %v517, %v868
      %v973 = vmul.f32 %v957, %v876
      %v974 = vmul.f32 %v958, %v876
      %v975 = vmul.f32 %v959, %v876
      %v976 = vmul.f32 %v960, %v876
      %v977 = vmul.f32 %v961, %v876
      %v978 = vmul.f32 %v962, %v876
      %v979 = vmul.f32 %v963, %v876
      %v980 = vmul.f32 %v964, %v876
      %v981 = vmul.f32 %v965, %v876
      %v982 = vmul.f32 %v966, %v876
      %v983 = vmul.f32 %v967, %v876
      %v984 = vmul.f32 %v968, %v876
      %v985 = vmul.f32 %v969, %v876
      %v986 = vmul.f32 %v970, %v876
      %v987 = vmul.f32 %v971, %v876
      %v988 = vmul.f32 %v972, %v876
      %v989 = vmax.f32 %v973, 0.0
      %v990 = vmax.f32 %v974, 0.0
      %v991 = vmax.f32 %v975, 0.0
      %v992 = vmax.f32 %v976, 0.0
      %v993 = vmax.f32 %v977, 0.0
      %v994 = vmax.f32 %v978, 0.0
      %v995 = vmax.f32 %v979, 0.0
      %v996 = vmax.f32 %v980, 0.0
      %v997 = vmax.f32 %v981, 0.0
      %v998 = vmax.f32 %v982, 0.0
      %v999 = vmax.f32 %v983, 0.0
      %v1000 = vmax.f32 %v984, 0.0
      %v1001 = vmax.f32 %v985, 0.0
      %v1002 = vmax.f32 %v986, 0.0
      %v1003 = vmax.f32 %v987, 0.0
      %v1004 = vmax.f32 %v988, 0.0
      %v1005 = vmin.f32 %v989, 1.0
      %v1006 = vmin.f32 %v990, 1.0
      %v1007 = vmin.f32 %v991, 1.0
      %v1008 = vmin.f32 %v992, 1.0
      %v1009 = vmin.f32 %v993, 1.0
      %v1010 = vmin.f32 %v994, 1.0
      %v1011 = vmin.f32 %v995, 1.0
      %v1012 = vmin.f32 %v996, 1.0
      %v1013 = vmin.f32 %v997, 1.0
      %v1014 = vmin.f32 %v998, 1.0
      %v1015 = vmin.f32 %v999, 1.0
      %v1016 = vmin.f32 %v1000, 1.0
      %v1017 = vmin.f32 %v1001, 1.0
      %v1018 = vmin.f32 %v1002, 1.0
      %v1019 = vmin.f32 %v1003, 1.0
      %v1020 = vmin.f32 %v1004, 1.0
      %v1021 = vmul.f32 %v1005, 2.0
      %v1022 = vmul.f32 %v1006, 2.0
      %v1023 = vmul.f32 %v1007, 2.0
      %v1024 = vmul.f32 %v1008, 2.0
      %v1025 = vmul.f32 %v1009, 2.0
      %v1026 = vmul.f32 %v1010, 2.0
      %v1027 = vmul.f32 %v1011, 2.0
      %v1028 = vmul.f32 %v1012, 2.0
      %v1029 = vmul.f32 %v1013, 2.0
      %v1030 = vmul.f32 %v1014, 2.0
      %v1031 = vmul.f32 %v1015, 2.0
      %v1032 = vmul.f32 %v1016, 2.0
      %v1033 = vmul.f32 %v1017, 2.0
      %v1034 = vmul.f32 %v1018, 2.0
      %v1035 = vmul.f32 %v1019, 2.0
      %v1036 = vmul.f32 %v1020, 2.0
      %v1037 = vsub.f32 %v1021, 1.0
      %v1038 = vsub.f32 %v1022, 1.0
      %v1039 = vsub.f32 %v1023, 1.0
      %v1040 = vsub.f32 %v1024, 1.0
      %v1041 = vsub.f32 %v1025, 1.0
      %v1042 = vsub.f32 %v1026, 1.0
      %v1043 = vsub.f32 %v1027, 1.0
      %v1044 = vsub.f32 %v1028, 1.0
      %v1045 = vsub.f32 %v1029, 1.0
      %v1046 = vsub.f32 %v1030, 1.0
      %v1047 = vsub.f32 %v1031, 1.0
      %v1048 = vsub.f32 %v1032, 1.0
      %v1049 = vsub.f32 %v1033, 1.0
      %v1050 = vsub.f32 %v1034, 1.0
      %v1051 = vsub.f32 %v1035, 1.0
      %v1052 = vsub.f32 %v1036, 1.0
      %v1053 = vadd.f32 %v941, 1.0
      %v1054 = vadd.f32 %v942, 1.0
      %v1055 = vadd.f32 %v943, 1.0
      %v1056 = vadd.f32 %v944, 1.0
      %v1057 = vadd.f32 %v945, 1.0
      %v1058 = vadd.f32 %v946, 1.0
      %v1059 = vadd.f32 %v947, 1.0
      %v1060 = vadd.f32 %v948, 1.0
      %v1061 = vadd.f32 %v949, 1.0
      %v1062 = vadd.f32 %v950, 1.0
      %v1063 = vadd.f32 %v951, 1.0
      %v1064 = vadd.f32 %v952, 1.0
      %v1065 = vadd.f32 %v953, 1.0
      %v1066 = vadd.f32 %v954, 1.0
      %v1067 = vadd.f32 %v955, 1.0
      %v1068 = vadd.f32 %v956, 1.0
      %v1069 = vmul.f32 %v1053, 16.0
      %v1070 = vmul.f32 %v1054, 16.0
      %v1071 = vmul.f32 %v1055, 16.0
      %v1072 = vmul.f32 %v1056, 16.0
      %v1073 = vmul.f32 %v1057, 16.0
      %v1074 = vmul.f32 %v1058, 16.0
      %v1075 = vmul.f32 %v1059, 16.0
      %v1076 = vmul.f32 %v1060, 16.0
      %v1077 = vmul.f32 %v1061, 16.0
      %v1078 = vmul.f32 %v1062, 16.0
      %v1079 = vmul.f32 %v1063, 16.0
      %v1080 = vmul.f32 %v1064, 16.0
      %v1081 = vmul.f32 %v1065, 16.0
      %v1082 = vmul.f32 %v1066, 16.0
      %v1083 = vmul.f32 %v1067, 16.0
      %v1084 = vmul.f32 %v1068, 16.0
      %v1085 = vsub.f32 %v1069, 1.0
      %v1086 = vsub.f32 %v1070, 1.0
      %v1087 = vsub.f32 %v1071, 1.0
      %v1088 = vsub.f32 %v1072, 1.0
      %v1089 = vsub.f32 %v1073, 1.0
      %v1090 = vsub.f32 %v1074, 1.0
      %v1091 = vsub.f32 %v1075, 1.0
      %v1092 = vsub.f32 %v1076, 1.0
      %v1093 = vsub.f32 %v1077, 1.0
      %v1094 = vsub.f32 %v1078, 1.0
      %v1095 = vsub.f32 %v1079, 1.0
      %v1096 = vsub.f32 %v1080, 1.0
      %v1097 = vsub.f32 %v1081, 1.0
      %v1098 = vsub.f32 %v1082, 1.0
      %v1099 = vsub.f32 %v1083, 1.0
      %v1100 = vsub.f32 %v1084, 1.0
      %v1101 = vmul.f32 %v1085, 0.5
      %v1102 = vmul.f32 %v1086, 0.5
      %v1103 = vmul.f32 %v1087, 0.5
      %v1104 = vmul.f32 %v1088, 0.5
      %v1105 = vmul.f32 %v1089, 0.5
      %v1106 = vmul.f32 %v1090, 0.5
      %v1107 = vmul.f32 %v1091, 0.5
      %v1108 = vmul.f32 %v1092, 0.5
      %v1109 = vmul.f32 %v1093, 0.5
      %v1110 = vmul.f32 %v1094, 0.5
      %v1111 = vmul.f32 %v1095, 0.5
      %v1112 = vmul.f32 %v1096, 0.5
      %v1113 = vmul.f32 %v1097, 0.5
      %v1114 = vmul.f32 %v1098, 0.5
      %v1115 = vmul.f32 %v1099, 0.5
      %v1116 = vmul.f32 %v1100, 0.5
      %v1117 = vadd.f32 %v1037, 1.0
      %v1118 = vadd.f32 %v1038, 1.0
      %v1119 = vadd.f32 %v1039, 1.0
      %v1120 = vadd.f32 %v1040, 1.0
      %v1121 = vadd.f32 %v1041, 1.0
      %v1122 = vadd.f32 %v1042, 1.0
      %v1123 = vadd.f32 %v1043, 1.0
      %v1124 = vadd.f32 %v1044, 1.0
      %v1125 = vadd.f32 %v1045, 1.0
      %v1126 = vadd.f32 %v1046, 1.0
      %v1127 = vadd.f32 %v1047, 1.0
      %v1128 = vadd.f32 %v1048, 1.0
      %v1129 = vadd.f32 %v1049, 1.0
      %v1130 = vadd.f32 %v1050, 1.0
      %v1131 = vadd.f32 %v1051, 1.0
      %v1132 = vadd.f32 %v1052, 1.0
      %v1133 = vmul.f32 %v1117, 16.0
      %v1134 = vmul.f32 %v1118, 16.0
      %v1135 = vmul.f32 %v1119, 16.0
      %v1136 = vmul.f32 %v1120, 16.0
      %v1137 = vmul.f32 %v1121, 16.0
      %v1138 = vmul.f32 %v1122, 16.0
      %v1139 = vmul.f32 %v1123, 16.0
      %v1140 = vmul.f32 %v1124, 16.0
      %v1141 = vmul.f32 %v1125, 16.0
      %v1142 = vmul.f32 %v1126, 16.0
      %v1143 = vmul.f32 %v1127, 16.0
      %v1144 = vmul.f32 %v1128, 16.0
      %v1145 = vmul.f32 %v1129, 16.0
      %v1146 = vmul.f32 %v1130, 16.0
      %v1147 = vmul.f32 %v1131, 16.0
      %v1148 = vmul.f32 %v1132, 16.0
      %v1149 = vsub.f32 %v1133, 1.0
      %v1150 = vsub.f32 %v1134, 1.0
      %v1151 = vsub.f32 %v1135, 1.0
      %v1152 = vsub.f32 %v1136, 1.0
      %v1153 = vsub.f32 %v1137, 1.0
      %v1154 = vsub.f32 %v1138, 1.0
      %v1155 = vsub.f32 %v1139, 1.0
      %v1156 = vsub.f32 %v1140, 1.0
      %v1157 = vsub.f32 %v1141, 1.0
      %v1158 = vsub.f32 %v1142, 1.0
      %v1159 = vsub.f32 %v1143, 1.0
      %v1160 = vsub.f32 %v1144, 1.0
      %v1161 = vsub.f32 %v1145, 1.0
      %v1162 = vsub.f32 %v1146, 1.0
      %v1163 = vsub.f32 %v1147, 1.0
      %v1164 = vsub.f32 %v1148, 1.0
      %v1165 = vmul.f32 %v1149, 0.5
      %v1166 = vmul.f32 %v1150, 0.5
      %v1167 = vmul.f32 %v1151, 0.5
      %v1168 = vmul.f32 %v1152, 0.5
      %v1169 = vmul.f32 %v1153, 0.5
      %v1170 = vmul.f32 %v1154, 0.5
      %v1171 = vmul.f32 %v1155, 0.5
      %v1172 = vmul.f32 %v1156, 0.5
      %v1173 = vmul.f32 %v1157, 0.5
      %v1174 = vmul.f32 %v1158, 0.5
      %v1175 = vmul.f32 %v1159, 0.5
      %v1176 = vmul.f32 %v1160, 0.5
      %v1177 = vmul.f32 %v1161, 0.5
      %v1178 = vmul.f32 %v1162, 0.5
      %v1179 = vmul.f32 %v1163, 0.5
      %v1180 = vmul.f32 %v1164, 0.5
      %v1181 = vfloor.f32 %v1101
      %v1182 = vfloor.f32 %v1102
      %v1183 = vfloor.f32 %v1103
      %v1184 = vfloor.f32 %v1104
      %v1185 = vfloor.f32 %v1105
      %v1186 = vfloor.f32 %v1106
      %v1187 = vfloor.f32 %v1107
      %v1188 = vfloor.f32 %v1108
      %v1189 = vfloor.f32 %v1109
      %v1190 = vfloor.f32 %v1110
      %v1191 = vfloor.f32 %v1111
      %v1192 = vfloor.f32 %v1112
      %v1193 = vfloor.f32 %v1113
      %v1194 = vfloor.f32 %v1114
      %v1195 = vfloor.f32 %v1115
      %v1196 = vfloor.f32 %v1116
      %v1197 = vfloor.f32 %v1165
      %v1198 = vfloor.f32 %v1166
      %v1199 = vfloor.f32 %v1167
      %v1200 = vfloor.f32 %v1168
      %v1201 = vfloor.f32 %v1169
      %v1202 = vfloor.f32 %v1170
      %v1203 = vfloor.f32 %v1171
      %v1204 = vfloor.f32 %v1172
      %v1205 = vfloor.f32 %v1173
      %v1206 = vfloor.f32 %v1174
      %v1207 = vfloor.f32 %v1175
      %v1208 = vfloor.f32 %v1176
      %v1209 = vfloor.f32 %v1177
      %v1210 = vfloor.f32 %v1178
      %v1211 = vfloor.f32 %v1179
      %v1212 = vfloor.f32 %v1180
      %v1213 = vsub.f32 %v1101, %v1181
      %v1214 = vsub.f32 %v1102, %v1182
      %v1215 = vsub.f32 %v1103, %v1183
      %v1216 = vsub.f32 %v1104, %v1184
      %v1217 = vsub.f32 %v1105, %v1185
      %v1218 = vsub.f32 %v1106, %v1186
      %v1219 = vsub.f32 %v1107, %v1187
      %v1220 = vsub.f32 %v1108, %v1188
      %v1221 = vsub.f32 %v1109, %v1189
      %v1222 = vsub.f32 %v1110, %v1190
      %v1223 = vsub.f32 %v1111, %v1191
      %v1224 = vsub.f32 %v1112, %v1192
      %v1225 = vsub.f32 %v1113, %v1193
      %v1226 = vsub.f32 %v1114, %v1194
      %v1227 = vsub.f32 %v1115, %v1195
      %v1228 = vsub.f32 %v1116, %v1196
      %v1229 = vsub.f32 1.0, %v1213
      %v1230 = vsub.f32 1.0, %v1214
      %v1231 = vsub.f32 1.0, %v1215
      %v1232 = vsub.f32 1.0, %v1216
      %v1233 = vsub.f32 1.0, %v1217
      %v1234 = vsub.f32 1.0, %v1218
      %v1235 = vsub.f32 1.0, %v1219
      %v1236 = vsub.f32 1.0, %v1220
      %v1237 = vsub.f32 1.0, %v1221
      %v1238 = vsub.f32 1.0, %v1222
      %v1239 = vsub.f32 1.0, %v1223
      %v1240 = vsub.f32 1.0, %v1224
      %v1241 = vsub.f32 1.0, %v1225
      %v1242 = vsub.f32 1.0, %v1226
      %v1243 = vsub.f32 1.0, %v1227
      %v1244 = vsub.f32 1.0, %v1228
      %v1245 = vsub.f32 %v1165, %v1197
      %v1246 = vsub.f32 %v1166, %v1198
      %v1247 = vsub.f32 %v1167, %v1199
      %v1248 = vsub.f32 %v1168, %v1200
      %v1249 = vsub.f32 %v1169, %v1201
      %v1250 = vsub.f32 %v1170, %v1202
      %v1251 = vsub.f32 %v1171, %v1203
      %v1252 = vsub.f32 %v1172, %v1204
      %v1253 = vsub.f32 %v1173, %v1205
      %v1254 = vsub.f32 %v1174, %v1206
      %v1255 = vsub.f32 %v1175, %v1207
      %v1256 = vsub.f32 %v1176, %v1208
      %v1257 = vsub.f32 %v1177, %v1209
      %v1258 = vsub.f32 %v1178, %v1210
      %v1259 = vsub.f32 %v1179, %v1211
      %v1260 = vsub.f32 %v1180, %v1212
      %v1261 = vsub.f32 1.0, %v1245
      %v1262 = vsub.f32 1.0, %v1246
      %v1263 = vsub.f32 1.0, %v1247
      %v1264 = vsub.f32 1.0, %v1248
      %v1265 = vsub.f32 1.0, %v1249
      %v1266 = vsub.f32 1.0, %v1250
      %v1267 = vsub.f32 1.0, %v1251
      %v1268 = vsub.f32 1.0, %v1252
      %v1269 = vsub.f32 1.0, %v1253
      %v1270 = vsub.f32 1.0, %v1254
      %v1271 = vsub.f32 1.0, %v1255
      %v1272 = vsub.f32 1.0, %v1256
      %v1273 = vsub.f32 1.0, %v1257
      %v1274 = vsub.f32 1.0, %v1258
      %v1275 = vsub.f32 1.0, %v1259
      %v1276 = vsub.f32 1.0, %v1260
      %v1277 = vcvt.f32.s32.to.zero.pseudo %v1181
      %v1278 = vcvt.f32.s32.to.zero.pseudo %v1182
      %v1279 = vcvt.f32.s32.to.zero.pseudo %v1183
      %v1280 = vcvt.f32.s32.to.zero.pseudo %v1184
      %v1281 = vcvt.f32.s32.to.zero.pseudo %v1185
      %v1282 = vcvt.f32.s32.to.zero.pseudo %v1186
      %v1283 = vcvt.f32.s32.to.zero.pseudo %v1187
      %v1284 = vcvt.f32.s32.to.zero.pseudo %v1188
      %v1285 = vcvt.f32.s32.to.zero.pseudo %v1189
      %v1286 = vcvt.f32.s32.to.zero.pseudo %v1190
      %v1287 = vcvt.f32.s32.to.zero.pseudo %v1191
      %v1288 = vcvt.f32.s32.to.zero.pseudo %v1192
      %v1289 = vcvt.f32.s32.to.zero.pseudo %v1193
      %v1290 = vcvt.f32.s32.to.zero.pseudo %v1194
      %v1291 = vcvt.f32.s32.to.zero.pseudo %v1195
      %v1292 = vcvt.f32.s32.to.zero.pseudo %v1196
      %v1293 = vadd.s32 %v1277, 1
      %v1294 = vadd.s32 %v1278, 1
      %v1295 = vadd.s32 %v1279, 1
      %v1296 = vadd.s32 %v1280, 1
      %v1297 = vadd.s32 %v1281, 1
      %v1298 = vadd.s32 %v1282, 1
      %v1299 = vadd.s32 %v1283, 1
      %v1300 = vadd.s32 %v1284, 1
      %v1301 = vadd.s32 %v1285, 1
      %v1302 = vadd.s32 %v1286, 1
      %v1303 = vadd.s32 %v1287, 1
      %v1304 = vadd.s32 %v1288, 1
      %v1305 = vadd.s32 %v1289, 1
      %v1306 = vadd.s32 %v1290, 1
      %v1307 = vadd.s32 %v1291, 1
      %v1308 = vadd.s32 %v1292, 1
      %v1309 = vcvt.f32.s32.to.zero.pseudo %v1197
      %v1310 = vcvt.f32.s32.to.zero.pseudo %v1198
      %v1311 = vcvt.f32.s32.to.zero.pseudo %v1199
      %v1312 = vcvt.f32.s32.to.zero.pseudo %v1200
      %v1313 = vcvt.f32.s32.to.zero.pseudo %v1201
      %v1314 = vcvt.f32.s32.to.zero.pseudo %v1202
      %v1315 = vcvt.f32.s32.to.zero.pseudo %v1203
      %v1316 = vcvt.f32.s32.to.zero.pseudo %v1204
      %v1317 = vcvt.f32.s32.to.zero.pseudo %v1205
      %v1318 = vcvt.f32.s32.to.zero.pseudo %v1206
      %v1319 = vcvt.f32.s32.to.zero.pseudo %v1207
      %v1320 = vcvt.f32.s32.to.zero.pseudo %v1208
      %v1321 = vcvt.f32.s32.to.zero.pseudo %v1209
      %v1322 = vcvt.f32.s32.to.zero.pseudo %v1210
      %v1323 = vcvt.f32.s32.to.zero.pseudo %v1211
      %v1324 = vcvt.f32.s32.to.zero.pseudo %v1212
      %v1325 = vadd.s32 %v1309, 1
      %v1326 = vadd.s32 %v1310, 1
      %v1327 = vadd.s32 %v1311, 1
      %v1328 = vadd.s32 %v1312, 1
      %v1329 = vadd.s32 %v1313, 1
      %v1330 = vadd.s32 %v1314, 1
      %v1331 = vadd.s32 %v1315, 1
      %v1332 = vadd.s32 %v1316, 1
      %v1333 = vadd.s32 %v1317, 1
      %v1334 = vadd.s32 %v1318, 1
      %v1335 = vadd.s32 %v1319, 1
      %v1336 = vadd.s32 %v1320, 1
      %v1337 = vadd.s32 %v1321, 1
      %v1338 = vadd.s32 %v1322, 1
      %v1339 = vadd.s32 %v1323, 1
      %v1340 = vadd.s32 %v1324, 1
      %v1341 = vmul.f32 %v1261, %v1229
      %v1342 = vmul.f32 %v1262, %v1230
      %v1343 = vmul.f32 %v1263, %v1231
      %v1344 = vmul.f32 %v1264, %v1232
      %v1345 = vmul.f32 %v1265, %v1233
      %v1346 = vmul.f32 %v1266, %v1234
      %v1347 = vmul.f32 %v1267, %v1235
      %v1348 = vmul.f32 %v1268, %v1236
      %v1349 = vmul.f32 %v1269, %v1237
      %v1350 = vmul.f32 %v1270, %v1238
      %v1351 = vmul.f32 %v1271, %v1239
      %v1352 = vmul.f32 %v1272, %v1240
      %v1353 = vmul.f32 %v1273, %v1241
      %v1354 = vmul.f32 %v1274, %v1242
      %v1355 = vmul.f32 %v1275, %v1243
      %v1356 = vmul.f32 %v1276, %v1244
      %v1357 = vmul.f32 %v1261, %v1213
      %v1358 = vmul.f32 %v1262, %v1214
      %v1359 = vmul.f32 %v1263, %v1215
      %v1360 = vmul.f32 %v1264, %v1216
      %v1361 = vmul.f32 %v1265, %v1217
      %v1362 = vmul.f32 %v1266, %v1218
      %v1363 = vmul.f32 %v1267, %v1219
      %v1364 = vmul.f32 %v1268, %v1220
      %v1365 = vmul.f32 %v1269, %v1221
      %v1366 = vmul.f32 %v1270, %v1222
      %v1367 = vmul.f32 %v1271, %v1223
      %v1368 = vmul.f32 %v1272, %v1224
      %v1369 = vmul.f32 %v1273, %v1225
      %v1370 = vmul.f32 %v1274, %v1226
      %v1371 = vmul.f32 %v1275, %v1227
      %v1372 = vmul.f32 %v1276, %v1228
      %v1373 = vmul.f32 %v1245, %v1229
      %v1374 = vmul.f32 %v1246, %v1230
      %v1375 = vmul.f32 %v1247, %v1231
      %v1376 = vmul.f32 %v1248, %v1232
      %v1377 = vmul.f32 %v1249, %v1233
      %v1378 = vmul.f32 %v1250, %v1234
      %v1379 = vmul.f32 %v1251, %v1235
      %v1380 = vmul.f32 %v1252, %v1236
      %v1381 = vmul.f32 %v1253, %v1237
      %v1382 = vmul.f32 %v1254, %v1238
      %v1383 = vmul.f32 %v1255, %v1239
      %v1384 = vmul.f32 %v1256, %v1240
      %v1385 = vmul.f32 %v1257, %v1241
      %v1386 = vmul.f32 %v1258, %v1242
      %v1387 = vmul.f32 %v1259, %v1243
      %v1388 = vmul.f32 %v1260, %v1244
      %v1389 = vmul.f32 %v1245, %v1213
      %v1390 = vmul.f32 %v1246, %v1214
      %v1391 = vmul.f32 %v1247, %v1215
      %v1392 = vmul.f32 %v1248, %v1216
      %v1393 = vmul.f32 %v1249, %v1217
      %v1394 = vmul.f32 %v1250, %v1218
      %v1395 = vmul.f32 %v1251, %v1219
      %v1396 = vmul.f32 %v1252, %v1220
      %v1397 = vmul.f32 %v1253, %v1221
      %v1398 = vmul.f32 %v1254, %v1222
      %v1399 = vmul.f32 %v1255, %v1223
      %v1400 = vmul.f32 %v1256, %v1224
      %v1401 = vmul.f32 %v1257, %v1225
      %v1402 = vmul.f32 %v1258, %v1226
      %v1403 = vmul.f32 %v1259, %v1227
      %v1404 = vmul.f32 %v1260, %v1228
      %vm1405 = vcmp.ge.s32.totalorder %v1277, 0
      %vm1406 = vcmp.ge.s32.totalorder %v1278, 0
      %vm1407 = vcmp.ge.s32.totalorder %v1279, 0
      %vm1408 = vcmp.ge.s32.totalorder %v1280, 0
      %vm1409 = vcmp.ge.s32.totalorder %v1281, 0
      %vm1410 = vcmp.ge.s32.totalorder %v1282, 0
      %vm1411 = vcmp.ge.s32.totalorder %v1283, 0
      %vm1412 = vcmp.ge.s32.totalorder %v1284, 0
      %vm1413 = vcmp.ge.s32.totalorder %v1285, 0
      %vm1414 = vcmp.ge.s32.totalorder %v1286, 0
      %vm1415 = vcmp.ge.s32.totalorder %v1287, 0
      %vm1416 = vcmp.ge.s32.totalorder %v1288, 0
      %vm1417 = vcmp.ge.s32.totalorder %v1289, 0
      %vm1418 = vcmp.ge.s32.totalorder %v1290, 0
      %vm1419 = vcmp.ge.s32.totalorder %v1291, 0
      %vm1420 = vcmp.ge.s32.totalorder %v1292, 0
      %vm1421 = vcmp.lt.s32.totalorder %v1277, 16
      %vm1422 = vcmp.lt.s32.totalorder %v1278, 16
      %vm1423 = vcmp.lt.s32.totalorder %v1279, 16
      %vm1424 = vcmp.lt.s32.totalorder %v1280, 16
      %vm1425 = vcmp.lt.s32.totalorder %v1281, 16
      %vm1426 = vcmp.lt.s32.totalorder %v1282, 16
      %vm1427 = vcmp.lt.s32.totalorder %v1283, 16
      %vm1428 = vcmp.lt.s32.totalorder %v1284, 16
      %vm1429 = vcmp.lt.s32.totalorder %v1285, 16
      %vm1430 = vcmp.lt.s32.totalorder %v1286, 16
      %vm1431 = vcmp.lt.s32.totalorder %v1287, 16
      %vm1432 = vcmp.lt.s32.totalorder %v1288, 16
      %vm1433 = vcmp.lt.s32.totalorder %v1289, 16
      %vm1434 = vcmp.lt.s32.totalorder %v1290, 16
      %vm1435 = vcmp.lt.s32.totalorder %v1291, 16
      %vm1436 = vcmp.lt.s32.totalorder %v1292, 16
      %vm1437 = vmand %vm1405, %vm1421
      %vm1438 = vmand %vm1406, %vm1422
      %vm1439 = vmand %vm1407, %vm1423
      %vm1440 = vmand %vm1408, %vm1424
      %vm1441 = vmand %vm1409, %vm1425
      %vm1442 = vmand %vm1410, %vm1426
      %vm1443 = vmand %vm1411, %vm1427
      %vm1444 = vmand %vm1412, %vm1428
      %vm1445 = vmand %vm1413, %vm1429
      %vm1446 = vmand %vm1414, %vm1430
      %vm1447 = vmand %vm1415, %vm1431
      %vm1448 = vmand %vm1416, %vm1432
      %vm1449 = vmand %vm1417, %vm1433
      %vm1450 = vmand %vm1418, %vm1434
      %vm1451 = vmand %vm1419, %vm1435
      %vm1452 = vmand %vm1420, %vm1436
      %vm1453 = vcmp.ge.s32.totalorder %v1309, 0
      %vm1454 = vcmp.ge.s32.totalorder %v1310, 0
      %vm1455 = vcmp.ge.s32.totalorder %v1311, 0
      %vm1456 = vcmp.ge.s32.totalorder %v1312, 0
      %vm1457 = vcmp.ge.s32.totalorder %v1313, 0
      %vm1458 = vcmp.ge.s32.totalorder %v1314, 0
      %vm1459 = vcmp.ge.s32.totalorder %v1315, 0
      %vm1460 = vcmp.ge.s32.totalorder %v1316, 0
      %vm1461 = vcmp.ge.s32.totalorder %v1317, 0
      %vm1462 = vcmp.ge.s32.totalorder %v1318, 0
      %vm1463 = vcmp.ge.s32.totalorder %v1319, 0
      %vm1464 = vcmp.ge.s32.totalorder %v1320, 0
      %vm1465 = vcmp.ge.s32.totalorder %v1321, 0
      %vm1466 = vcmp.ge.s32.totalorder %v1322, 0
      %vm1467 = vcmp.ge.s32.totalorder %v1323, 0
      %vm1468 = vcmp.ge.s32.totalorder %v1324, 0
      %vm1469 = vmand %vm1437, %vm1453
      %vm1470 = vmand %vm1438, %vm1454
      %vm1471 = vmand %vm1439, %vm1455
      %vm1472 = vmand %vm1440, %vm1456
      %vm1473 = vmand %vm1441, %vm1457
      %vm1474 = vmand %vm1442, %vm1458
      %vm1475 = vmand %vm1443, %vm1459
      %vm1476 = vmand %vm1444, %vm1460
      %vm1477 = vmand %vm1445, %vm1461
      %vm1478 = vmand %vm1446, %vm1462
      %vm1479 = vmand %vm1447, %vm1463
      %vm1480 = vmand %vm1448, %vm1464
      %vm1481 = vmand %vm1449, %vm1465
      %vm1482 = vmand %vm1450, %vm1466
      %vm1483 = vmand %vm1451, %vm1467
      %vm1484 = vmand %vm1452, %vm1468
      %vm1485 = vcmp.lt.s32.totalorder %v1309, 16
      %vm1486 = vcmp.lt.s32.totalorder %v1310, 16
      %vm1487 = vcmp.lt.s32.totalorder %v1311, 16
      %vm1488 = vcmp.lt.s32.totalorder %v1312, 16
      %vm1489 = vcmp.lt.s32.totalorder %v1313, 16
      %vm1490 = vcmp.lt.s32.totalorder %v1314, 16
      %vm1491 = vcmp.lt.s32.totalorder %v1315, 16
      %vm1492 = vcmp.lt.s32.totalorder %v1316, 16
      %vm1493 = vcmp.lt.s32.totalorder %v1317, 16
      %vm1494 = vcmp.lt.s32.totalorder %v1318, 16
      %vm1495 = vcmp.lt.s32.totalorder %v1319, 16
      %vm1496 = vcmp.lt.s32.totalorder %v1320, 16
      %vm1497 = vcmp.lt.s32.totalorder %v1321, 16
      %vm1498 = vcmp.lt.s32.totalorder %v1322, 16
      %vm1499 = vcmp.lt.s32.totalorder %v1323, 16
      %vm1500 = vcmp.lt.s32.totalorder %v1324, 16
      %vm1501 = vmand %vm1469, %vm1485
      %vm1502 = vmand %vm1470, %vm1486
      %vm1503 = vmand %vm1471, %vm1487
      %vm1504 = vmand %vm1472, %vm1488
      %vm1505 = vmand %vm1473, %vm1489
      %vm1506 = vmand %vm1474, %vm1490
      %vm1507 = vmand %vm1475, %vm1491
      %vm1508 = vmand %vm1476, %vm1492
      %vm1509 = vmand %vm1477, %vm1493
      %vm1510 = vmand %vm1478, %vm1494
      %vm1511 = vmand %vm1479, %vm1495
      %vm1512 = vmand %vm1480, %vm1496
      %vm1513 = vmand %vm1481, %vm1497
      %vm1514 = vmand %vm1482, %vm1498
      %vm1515 = vmand %vm1483, %vm1499
      %vm1516 = vmand %vm1484, %vm1500
      %v1517 = vsel %vm1501, %v1341, 0.0
      %v1518 = vsel %vm1502, %v1342, 0.0
      %v1519 = vsel %vm1503, %v1343, 0.0
      %v1520 = vsel %vm1504, %v1344, 0.0
      %v1521 = vsel %vm1505, %v1345, 0.0
      %v1522 = vsel %vm1506, %v1346, 0.0
      %v1523 = vsel %vm1507, %v1347, 0.0
      %v1524 = vsel %vm1508, %v1348, 0.0
      %v1525 = vsel %vm1509, %v1349, 0.0
      %v1526 = vsel %vm1510, %v1350, 0.0
      %v1527 = vsel %vm1511, %v1351, 0.0
      %v1528 = vsel %vm1512, %v1352, 0.0
      %v1529 = vsel %vm1513, %v1353, 0.0
      %v1530 = vsel %vm1514, %v1354, 0.0
      %v1531 = vsel %vm1515, %v1355, 0.0
      %v1532 = vsel %vm1516, %v1356, 0.0
      %v1533 = vmul.u32 %v1309, 16
      %v1534 = vmul.u32 %v1310, 16
      %v1535 = vmul.u32 %v1311, 16
      %v1536 = vmul.u32 %v1312, 16
      %v1537 = vmul.u32 %v1313, 16
      %v1538 = vmul.u32 %v1314, 16
      %v1539 = vmul.u32 %v1315, 16
      %v1540 = vmul.u32 %v1316, 16
      %v1541 = vmul.u32 %v1317, 16
      %v1542 = vmul.u32 %v1318, 16
      %v1543 = vmul.u32 %v1319, 16
      %v1544 = vmul.u32 %v1320, 16
      %v1545 = vmul.u32 %v1321, 16
      %v1546 = vmul.u32 %v1322, 16
      %v1547 = vmul.u32 %v1323, 16
      %v1548 = vmul.u32 %v1324, 16
      %v1549 = vadd.s32 %v1533, %v1277
      %v1550 = vadd.s32 %v1534, %v1278
      %v1551 = vadd.s32 %v1535, %v1279
      %v1552 = vadd.s32 %v1536, %v1280
      %v1553 = vadd.s32 %v1537, %v1281
      %v1554 = vadd.s32 %v1538, %v1282
      %v1555 = vadd.s32 %v1539, %v1283
      %v1556 = vadd.s32 %v1540, %v1284
      %v1557 = vadd.s32 %v1541, %v1285
      %v1558 = vadd.s32 %v1542, %v1286
      %v1559 = vadd.s32 %v1543, %v1287
      %v1560 = vadd.s32 %v1544, %v1288
      %v1561 = vadd.s32 %v1545, %v1289
      %v1562 = vadd.s32 %v1546, %v1290
      %v1563 = vadd.s32 %v1547, %v1291
      %v1564 = vadd.s32 %v1548, %v1292
      %1565 = vset.pattern.permute.xlu0 0
      %1566 = vperm.xlu0 %1565, %v1549
      %v1567 = vpop.permute.xlu0 %1566
      %1568 = vset.pattern.permute.xlu0 0
      %1569 = vperm.xlu0 %1568, %v1550
      %v1570 = vpop.permute.xlu0 %1569
      %1571 = vset.pattern.permute.xlu0 0
      %1572 = vperm.xlu0 %1571, %v1551
      %v1573 = vpop.permute.xlu0 %1572
      %1574 = vset.pattern.permute.xlu0 0
      %1575 = vperm.xlu0 %1574, %v1552
      %v1576 = vpop.permute.xlu0 %1575
      %1577 = vset.pattern.permute.xlu0 0
      %1578 = vperm.xlu0 %1577, %v1553
      %v1579 = vpop.permute.xlu0 %1578
      %1580 = vset.pattern.permute.xlu0 0
      %1581 = vperm.xlu0 %1580, %v1554
      %v1582 = vpop.permute.xlu0 %1581
      %1583 = vset.pattern.permute.xlu0 0
      %1584 = vperm.xlu0 %1583, %v1555
      %v1585 = vpop.permute.xlu0 %1584
      %1586 = vset.pattern.permute.xlu0 0
      %1587 = vperm.xlu0 %1586, %v1556
      %v1588 = vpop.permute.xlu0 %1587
      %1589 = vset.pattern.permute.xlu0 0
      %1590 = vperm.xlu0 %1589, %v1557
      %v1591 = vpop.permute.xlu0 %1590
      %1592 = vset.pattern.permute.xlu0 0
      %1593 = vperm.xlu0 %1592, %v1558
      %v1594 = vpop.permute.xlu0 %1593
      %1595 = vset.pattern.permute.xlu0 0
      %1596 = vperm.xlu0 %1595, %v1559
      %v1597 = vpop.permute.xlu0 %1596
      %1598 = vset.pattern.permute.xlu0 0
      %1599 = vperm.xlu0 %1598, %v1560
      %v1600 = vpop.permute.xlu0 %1599
      %1601 = vset.pattern.permute.xlu0 0
      %1602 = vperm.xlu0 %1601, %v1561
      %v1603 = vpop.permute.xlu0 %1602
      %1604 = vset.pattern.permute.xlu0 0
      %1605 = vperm.xlu0 %1604, %v1562
      %v1606 = vpop.permute.xlu0 %1605
      %1607 = vset.pattern.permute.xlu0 0
      %1608 = vperm.xlu0 %1607, %v1563
      %v1609 = vpop.permute.xlu0 %1608
      %1610 = vset.pattern.permute.xlu0 0
      %1611 = vperm.xlu0 %1610, %v1564
      %v1612 = vpop.permute.xlu0 %1611
      %vm1613 = vcmp.eq.s32.totalorder %v164, %v1567
      %vm1614 = vcmp.eq.s32.totalorder %v165, %v1567
      %vm1615 = vcmp.eq.s32.totalorder %v164, %v1570
      %vm1616 = vcmp.eq.s32.totalorder %v165, %v1570
      %vm1617 = vcmp.eq.s32.totalorder %v164, %v1573
      %vm1618 = vcmp.eq.s32.totalorder %v165, %v1573
      %vm1619 = vcmp.eq.s32.totalorder %v164, %v1576
      %vm1620 = vcmp.eq.s32.totalorder %v165, %v1576
      %vm1621 = vcmp.eq.s32.totalorder %v164, %v1579
      %vm1622 = vcmp.eq.s32.totalorder %v165, %v1579
      %vm1623 = vcmp.eq.s32.totalorder %v164, %v1582
      %vm1624 = vcmp.eq.s32.totalorder %v165, %v1582
      %vm1625 = vcmp.eq.s32.totalorder %v164, %v1585
      %vm1626 = vcmp.eq.s32.totalorder %v165, %v1585
      %vm1627 = vcmp.eq.s32.totalorder %v164, %v1588
      %vm1628 = vcmp.eq.s32.totalorder %v165, %v1588
      %vm1629 = vcmp.eq.s32.totalorder %v164, %v1591
      %vm1630 = vcmp.eq.s32.totalorder %v165, %v1591
      %vm1631 = vcmp.eq.s32.totalorder %v164, %v1594
      %vm1632 = vcmp.eq.s32.totalorder %v165, %v1594
      %vm1633 = vcmp.eq.s32.totalorder %v164, %v1597
      %vm1634 = vcmp.eq.s32.totalorder %v165, %v1597
      %vm1635 = vcmp.eq.s32.totalorder %v164, %v1600
      %vm1636 = vcmp.eq.s32.totalorder %v165, %v1600
      %vm1637 = vcmp.eq.s32.totalorder %v164, %v1603
      %vm1638 = vcmp.eq.s32.totalorder %v165, %v1603
      %vm1639 = vcmp.eq.s32.totalorder %v164, %v1606
      %vm1640 = vcmp.eq.s32.totalorder %v165, %v1606
      %vm1641 = vcmp.eq.s32.totalorder %v164, %v1609
      %vm1642 = vcmp.eq.s32.totalorder %v165, %v1609
      %vm1643 = vcmp.eq.s32.totalorder %v164, %v1612
      %vm1644 = vcmp.eq.s32.totalorder %v165, %v1612
      %1646 = vset.pattern.permute.xlu0 0
      %1647 = vperm.xlu0 %1646, %v1517
      %v1648 = vpop.permute.xlu0 %1647
      %1651 = vset.pattern.permute.xlu0 0
      %1652 = vperm.xlu0 %1651, %v1518
      %v1653 = vpop.permute.xlu0 %1652
      %1656 = vset.pattern.permute.xlu0 0
      %1657 = vperm.xlu0 %1656, %v1519
      %v1658 = vpop.permute.xlu0 %1657
      %1661 = vset.pattern.permute.xlu0 0
      %1662 = vperm.xlu0 %1661, %v1520
      %v1663 = vpop.permute.xlu0 %1662
      %1666 = vset.pattern.permute.xlu0 0
      %1667 = vperm.xlu0 %1666, %v1521
      %v1668 = vpop.permute.xlu0 %1667
      %1671 = vset.pattern.permute.xlu0 0
      %1672 = vperm.xlu0 %1671, %v1522
      %v1673 = vpop.permute.xlu0 %1672
      %1676 = vset.pattern.permute.xlu0 0
      %1677 = vperm.xlu0 %1676, %v1523
      %v1678 = vpop.permute.xlu0 %1677
      %1681 = vset.pattern.permute.xlu0 0
      %1682 = vperm.xlu0 %1681, %v1524
      %v1683 = vpop.permute.xlu0 %1682
      %1686 = vset.pattern.permute.xlu0 0
      %1687 = vperm.xlu0 %1686, %v1525
      %v1688 = vpop.permute.xlu0 %1687
      %1691 = vset.pattern.permute.xlu0 0
      %1692 = vperm.xlu0 %1691, %v1526
      %v1693 = vpop.permute.xlu0 %1692
      %1696 = vset.pattern.permute.xlu0 0
      %1697 = vperm.xlu0 %1696, %v1527
      %v1698 = vpop.permute.xlu0 %1697
      %1701 = vset.pattern.permute.xlu0 0
      %1702 = vperm.xlu0 %1701, %v1528
      %v1703 = vpop.permute.xlu0 %1702
      %1706 = vset.pattern.permute.xlu0 0
      %1707 = vperm.xlu0 %1706, %v1529
      %v1708 = vpop.permute.xlu0 %1707
      %1711 = vset.pattern.permute.xlu0 0
      %1712 = vperm.xlu0 %1711, %v1530
      %v1713 = vpop.permute.xlu0 %1712
      %1716 = vset.pattern.permute.xlu0 0
      %1717 = vperm.xlu0 %1716, %v1531
      %v1718 = vpop.permute.xlu0 %1717
      %1721 = vset.pattern.permute.xlu0 0
      %1722 = vperm.xlu0 %1721, %v1532
      %v1723 = vpop.permute.xlu0 %1722
      %v1725 = vsel %vm1613, %v1648, 0.0
      %v1726 = vsel %vm1614, %v1648, 0.0
      %v1727 = vsel %vm1615, %v1653, 0.0
      %v1728 = vsel %vm1616, %v1653, 0.0
      %v1729 = vsel %vm1617, %v1658, 0.0
      %v1730 = vsel %vm1618, %v1658, 0.0
      %v1731 = vsel %vm1619, %v1663, 0.0
      %v1732 = vsel %vm1620, %v1663, 0.0
      %v1733 = vsel %vm1621, %v1668, 0.0
      %v1734 = vsel %vm1622, %v1668, 0.0
      %v1735 = vsel %vm1623, %v1673, 0.0
      %v1736 = vsel %vm1624, %v1673, 0.0
      %v1737 = vsel %vm1625, %v1678, 0.0
      %v1738 = vsel %vm1626, %v1678, 0.0
      %v1739 = vsel %vm1627, %v1683, 0.0
      %v1740 = vsel %vm1628, %v1683, 0.0
      %v1741 = vsel %vm1629, %v1688, 0.0
      %v1742 = vsel %vm1630, %v1688, 0.0
      %v1743 = vsel %vm1631, %v1693, 0.0
      %v1744 = vsel %vm1632, %v1693, 0.0
      %v1745 = vsel %vm1633, %v1698, 0.0
      %v1746 = vsel %vm1634, %v1698, 0.0
      %v1747 = vsel %vm1635, %v1703, 0.0
      %v1748 = vsel %vm1636, %v1703, 0.0
      %v1749 = vsel %vm1637, %v1708, 0.0
      %v1750 = vsel %vm1638, %v1708, 0.0
      %v1751 = vsel %vm1639, %v1713, 0.0
      %v1752 = vsel %vm1640, %v1713, 0.0
      %v1753 = vsel %vm1641, %v1718, 0.0
      %v1754 = vsel %vm1642, %v1718, 0.0
      %v1755 = vsel %vm1643, %v1723, 0.0
      %v1756 = vsel %vm1644, %v1723, 0.0
      %v1757 = vadd.f32 %v1725, 0.0
      %v1758 = vadd.f32 %v1726, 0.0
      %v1759 = vadd.f32 %v1727, 0.0
      %v1760 = vadd.f32 %v1728, 0.0
      %v1761 = vadd.f32 %v1729, 0.0
      %v1762 = vadd.f32 %v1730, 0.0
      %v1763 = vadd.f32 %v1731, 0.0
      %v1764 = vadd.f32 %v1732, 0.0
      %v1765 = vadd.f32 %v1733, 0.0
      %v1766 = vadd.f32 %v1734, 0.0
      %v1767 = vadd.f32 %v1735, 0.0
      %v1768 = vadd.f32 %v1736, 0.0
      %v1769 = vadd.f32 %v1737, 0.0
      %v1770 = vadd.f32 %v1738, 0.0
      %v1771 = vadd.f32 %v1739, 0.0
      %v1772 = vadd.f32 %v1740, 0.0
      %v1773 = vadd.f32 %v1741, 0.0
      %v1774 = vadd.f32 %v1742, 0.0
      %v1775 = vadd.f32 %v1743, 0.0
      %v1776 = vadd.f32 %v1744, 0.0
      %v1777 = vadd.f32 %v1745, 0.0
      %v1778 = vadd.f32 %v1746, 0.0
      %v1779 = vadd.f32 %v1747, 0.0
      %v1780 = vadd.f32 %v1748, 0.0
      %v1781 = vadd.f32 %v1749, 0.0
      %v1782 = vadd.f32 %v1750, 0.0
      %v1783 = vadd.f32 %v1751, 0.0
      %v1784 = vadd.f32 %v1752, 0.0
      %v1785 = vadd.f32 %v1753, 0.0
      %v1786 = vadd.f32 %v1754, 0.0
      %v1787 = vadd.f32 %v1755, 0.0
      %v1788 = vadd.f32 %v1756, 0.0
      %vm1789 = vcmp.ge.s32.totalorder %v1293, 0
      %vm1790 = vcmp.ge.s32.totalorder %v1294, 0
      %vm1791 = vcmp.ge.s32.totalorder %v1295, 0
      %vm1792 = vcmp.ge.s32.totalorder %v1296, 0
      %vm1793 = vcmp.ge.s32.totalorder %v1297, 0
      %vm1794 = vcmp.ge.s32.totalorder %v1298, 0
      %vm1795 = vcmp.ge.s32.totalorder %v1299, 0
      %vm1796 = vcmp.ge.s32.totalorder %v1300, 0
      %vm1797 = vcmp.ge.s32.totalorder %v1301, 0
      %vm1798 = vcmp.ge.s32.totalorder %v1302, 0
      %vm1799 = vcmp.ge.s32.totalorder %v1303, 0
      %vm1800 = vcmp.ge.s32.totalorder %v1304, 0
      %vm1801 = vcmp.ge.s32.totalorder %v1305, 0
      %vm1802 = vcmp.ge.s32.totalorder %v1306, 0
      %vm1803 = vcmp.ge.s32.totalorder %v1307, 0
      %vm1804 = vcmp.ge.s32.totalorder %v1308, 0
      %vm1805 = vcmp.lt.s32.totalorder %v1293, 16
      %vm1806 = vcmp.lt.s32.totalorder %v1294, 16
      %vm1807 = vcmp.lt.s32.totalorder %v1295, 16
      %vm1808 = vcmp.lt.s32.totalorder %v1296, 16
      %vm1809 = vcmp.lt.s32.totalorder %v1297, 16
      %vm1810 = vcmp.lt.s32.totalorder %v1298, 16
      %vm1811 = vcmp.lt.s32.totalorder %v1299, 16
      %vm1812 = vcmp.lt.s32.totalorder %v1300, 16
      %vm1813 = vcmp.lt.s32.totalorder %v1301, 16
      %vm1814 = vcmp.lt.s32.totalorder %v1302, 16
      %vm1815 = vcmp.lt.s32.totalorder %v1303, 16
      %vm1816 = vcmp.lt.s32.totalorder %v1304, 16
      %vm1817 = vcmp.lt.s32.totalorder %v1305, 16
      %vm1818 = vcmp.lt.s32.totalorder %v1306, 16
      %vm1819 = vcmp.lt.s32.totalorder %v1307, 16
      %vm1820 = vcmp.lt.s32.totalorder %v1308, 16
      %vm1821 = vmand %vm1789, %vm1805
      %vm1822 = vmand %vm1790, %vm1806
      %vm1823 = vmand %vm1791, %vm1807
      %vm1824 = vmand %vm1792, %vm1808
      %vm1825 = vmand %vm1793, %vm1809
      %vm1826 = vmand %vm1794, %vm1810
      %vm1827 = vmand %vm1795, %vm1811
      %vm1828 = vmand %vm1796, %vm1812
      %vm1829 = vmand %vm1797, %vm1813
      %vm1830 = vmand %vm1798, %vm1814
      %vm1831 = vmand %vm1799, %vm1815
      %vm1832 = vmand %vm1800, %vm1816
      %vm1833 = vmand %vm1801, %vm1817
      %vm1834 = vmand %vm1802, %vm1818
      %vm1835 = vmand %vm1803, %vm1819
      %vm1836 = vmand %vm1804, %vm1820
      %vm1837 = vmand %vm1821, %vm1453
      %vm1838 = vmand %vm1822, %vm1454
      %vm1839 = vmand %vm1823, %vm1455
      %vm1840 = vmand %vm1824, %vm1456
      %vm1841 = vmand %vm1825, %vm1457
      %vm1842 = vmand %vm1826, %vm1458
      %vm1843 = vmand %vm1827, %vm1459
      %vm1844 = vmand %vm1828, %vm1460
      %vm1845 = vmand %vm1829, %vm1461
      %vm1846 = vmand %vm1830, %vm1462
      %vm1847 = vmand %vm1831, %vm1463
      %vm1848 = vmand %vm1832, %vm1464
      %vm1849 = vmand %vm1833, %vm1465
      %vm1850 = vmand %vm1834, %vm1466
      %vm1851 = vmand %vm1835, %vm1467
      %vm1852 = vmand %vm1836, %vm1468
      %vm1853 = vmand %vm1837, %vm1485
      %vm1854 = vmand %vm1838, %vm1486
      %vm1855 = vmand %vm1839, %vm1487
      %vm1856 = vmand %vm1840, %vm1488
      %vm1857 = vmand %vm1841, %vm1489
      %vm1858 = vmand %vm1842, %vm1490
      %vm1859 = vmand %vm1843, %vm1491
      %vm1860 = vmand %vm1844, %vm1492
      %vm1861 = vmand %vm1845, %vm1493
      %vm1862 = vmand %vm1846, %vm1494
      %vm1863 = vmand %vm1847, %vm1495
      %vm1864 = vmand %vm1848, %vm1496
      %vm1865 = vmand %vm1849, %vm1497
      %vm1866 = vmand %vm1850, %vm1498
      %vm1867 = vmand %vm1851, %vm1499
      %vm1868 = vmand %vm1852, %vm1500
      %v1869 = vsel %vm1853, %v1357, 0.0
      %v1870 = vsel %vm1854, %v1358, 0.0
      %v1871 = vsel %vm1855, %v1359, 0.0
      %v1872 = vsel %vm1856, %v1360, 0.0
      %v1873 = vsel %vm1857, %v1361, 0.0
      %v1874 = vsel %vm1858, %v1362, 0.0
      %v1875 = vsel %vm1859, %v1363, 0.0
      %v1876 = vsel %vm1860, %v1364, 0.0
      %v1877 = vsel %vm1861, %v1365, 0.0
      %v1878 = vsel %vm1862, %v1366, 0.0
      %v1879 = vsel %vm1863, %v1367, 0.0
      %v1880 = vsel %vm1864, %v1368, 0.0
      %v1881 = vsel %vm1865, %v1369, 0.0
      %v1882 = vsel %vm1866, %v1370, 0.0
      %v1883 = vsel %vm1867, %v1371, 0.0
      %v1884 = vsel %vm1868, %v1372, 0.0
      %v1885 = vadd.s32 %v1533, %v1293
      %v1886 = vadd.s32 %v1534, %v1294
      %v1887 = vadd.s32 %v1535, %v1295
      %v1888 = vadd.s32 %v1536, %v1296
      %v1889 = vadd.s32 %v1537, %v1297
      %v1890 = vadd.s32 %v1538, %v1298
      %v1891 = vadd.s32 %v1539, %v1299
      %v1892 = vadd.s32 %v1540, %v1300
      %v1893 = vadd.s32 %v1541, %v1301
      %v1894 = vadd.s32 %v1542, %v1302
      %v1895 = vadd.s32 %v1543, %v1303
      %v1896 = vadd.s32 %v1544, %v1304
      %v1897 = vadd.s32 %v1545, %v1305
      %v1898 = vadd.s32 %v1546, %v1306
      %v1899 = vadd.s32 %v1547, %v1307
      %v1900 = vadd.s32 %v1548, %v1308
      %1901 = vset.pattern.permute.xlu0 0
      %1902 = vperm.xlu0 %1901, %v1885
      %v1903 = vpop.permute.xlu0 %1902
      %1904 = vset.pattern.permute.xlu0 0
      %1905 = vperm.xlu0 %1904, %v1886
      %v1906 = vpop.permute.xlu0 %1905
      %1907 = vset.pattern.permute.xlu0 0
      %1908 = vperm.xlu0 %1907, %v1887
      %v1909 = vpop.permute.xlu0 %1908
      %1910 = vset.pattern.permute.xlu0 0
      %1911 = vperm.xlu0 %1910, %v1888
      %v1912 = vpop.permute.xlu0 %1911
      %1913 = vset.pattern.permute.xlu0 0
      %1914 = vperm.xlu0 %1913, %v1889
      %v1915 = vpop.permute.xlu0 %1914
      %1916 = vset.pattern.permute.xlu0 0
      %1917 = vperm.xlu0 %1916, %v1890
      %v1918 = vpop.permute.xlu0 %1917
      %1919 = vset.pattern.permute.xlu0 0
      %1920 = vperm.xlu0 %1919, %v1891
      %v1921 = vpop.permute.xlu0 %1920
      %1922 = vset.pattern.permute.xlu0 0
      %1923 = vperm.xlu0 %1922, %v1892
      %v1924 = vpop.permute.xlu0 %1923
      %1925 = vset.pattern.permute.xlu0 0
      %1926 = vperm.xlu0 %1925, %v1893
      %v1927 = vpop.permute.xlu0 %1926
      %1928 = vset.pattern.permute.xlu0 0
      %1929 = vperm.xlu0 %1928, %v1894
      %v1930 = vpop.permute.xlu0 %1929
      %1931 = vset.pattern.permute.xlu0 0
      %1932 = vperm.xlu0 %1931, %v1895
      %v1933 = vpop.permute.xlu0 %1932
      %1934 = vset.pattern.permute.xlu0 0
      %1935 = vperm.xlu0 %1934, %v1896
      %v1936 = vpop.permute.xlu0 %1935
      %1937 = vset.pattern.permute.xlu0 0
      %1938 = vperm.xlu0 %1937, %v1897
      %v1939 = vpop.permute.xlu0 %1938
      %1940 = vset.pattern.permute.xlu0 0
      %1941 = vperm.xlu0 %1940, %v1898
      %v1942 = vpop.permute.xlu0 %1941
      %1943 = vset.pattern.permute.xlu0 0
      %1944 = vperm.xlu0 %1943, %v1899
      %v1945 = vpop.permute.xlu0 %1944
      %1946 = vset.pattern.permute.xlu0 0
      %1947 = vperm.xlu0 %1946, %v1900
      %v1948 = vpop.permute.xlu0 %1947
      %vm1949 = vcmp.eq.s32.totalorder %v164, %v1903
      %vm1950 = vcmp.eq.s32.totalorder %v165, %v1903
      %vm1951 = vcmp.eq.s32.totalorder %v164, %v1906
      %vm1952 = vcmp.eq.s32.totalorder %v165, %v1906
      %vm1953 = vcmp.eq.s32.totalorder %v164, %v1909
      %vm1954 = vcmp.eq.s32.totalorder %v165, %v1909
      %vm1955 = vcmp.eq.s32.totalorder %v164, %v1912
      %vm1956 = vcmp.eq.s32.totalorder %v165, %v1912
      %vm1957 = vcmp.eq.s32.totalorder %v164, %v1915
      %vm1958 = vcmp.eq.s32.totalorder %v165, %v1915
      %vm1959 = vcmp.eq.s32.totalorder %v164, %v1918
      %vm1960 = vcmp.eq.s32.totalorder %v165, %v1918
      %vm1961 = vcmp.eq.s32.totalorder %v164, %v1921
      %vm1962 = vcmp.eq.s32.totalorder %v165, %v1921
      %vm1963 = vcmp.eq.s32.totalorder %v164, %v1924
      %vm1964 = vcmp.eq.s32.totalorder %v165, %v1924
      %vm1965 = vcmp.eq.s32.totalorder %v164, %v1927
      %vm1966 = vcmp.eq.s32.totalorder %v165, %v1927
      %vm1967 = vcmp.eq.s32.totalorder %v164, %v1930
      %vm1968 = vcmp.eq.s32.totalorder %v165, %v1930
      %vm1969 = vcmp.eq.s32.totalorder %v164, %v1933
      %vm1970 = vcmp.eq.s32.totalorder %v165, %v1933
      %vm1971 = vcmp.eq.s32.totalorder %v164, %v1936
      %vm1972 = vcmp.eq.s32.totalorder %v165, %v1936
      %vm1973 = vcmp.eq.s32.totalorder %v164, %v1939
      %vm1974 = vcmp.eq.s32.totalorder %v165, %v1939
      %vm1975 = vcmp.eq.s32.totalorder %v164, %v1942
      %vm1976 = vcmp.eq.s32.totalorder %v165, %v1942
      %vm1977 = vcmp.eq.s32.totalorder %v164, %v1945
      %vm1978 = vcmp.eq.s32.totalorder %v165, %v1945
      %vm1979 = vcmp.eq.s32.totalorder %v164, %v1948
      %vm1980 = vcmp.eq.s32.totalorder %v165, %v1948
      %1982 = vset.pattern.permute.xlu0 0
      %1983 = vperm.xlu0 %1982, %v1869
      %v1984 = vpop.permute.xlu0 %1983
      %1987 = vset.pattern.permute.xlu0 0
      %1988 = vperm.xlu0 %1987, %v1870
      %v1989 = vpop.permute.xlu0 %1988
      %1992 = vset.pattern.permute.xlu0 0
      %1993 = vperm.xlu0 %1992, %v1871
      %v1994 = vpop.permute.xlu0 %1993
      %1997 = vset.pattern.permute.xlu0 0
      %1998 = vperm.xlu0 %1997, %v1872
      %v1999 = vpop.permute.xlu0 %1998
      %2002 = vset.pattern.permute.xlu0 0
      %2003 = vperm.xlu0 %2002, %v1873
      %v2004 = vpop.permute.xlu0 %2003
      %2007 = vset.pattern.permute.xlu0 0
      %2008 = vperm.xlu0 %2007, %v1874
      %v2009 = vpop.permute.xlu0 %2008
      %2012 = vset.pattern.permute.xlu0 0
      %2013 = vperm.xlu0 %2012, %v1875
      %v2014 = vpop.permute.xlu0 %2013
      %2017 = vset.pattern.permute.xlu0 0
      %2018 = vperm.xlu0 %2017, %v1876
      %v2019 = vpop.permute.xlu0 %2018
      %2022 = vset.pattern.permute.xlu0 0
      %2023 = vperm.xlu0 %2022, %v1877
      %v2024 = vpop.permute.xlu0 %2023
      %2027 = vset.pattern.permute.xlu0 0
      %2028 = vperm.xlu0 %2027, %v1878
      %v2029 = vpop.permute.xlu0 %2028
      %2032 = vset.pattern.permute.xlu0 0
      %2033 = vperm.xlu0 %2032, %v1879
      %v2034 = vpop.permute.xlu0 %2033
      %2037 = vset.pattern.permute.xlu0 0
      %2038 = vperm.xlu0 %2037, %v1880
      %v2039 = vpop.permute.xlu0 %2038
      %2042 = vset.pattern.permute.xlu0 0
      %2043 = vperm.xlu0 %2042, %v1881
      %v2044 = vpop.permute.xlu0 %2043
      %2047 = vset.pattern.permute.xlu0 0
      %2048 = vperm.xlu0 %2047, %v1882
      %v2049 = vpop.permute.xlu0 %2048
      %2052 = vset.pattern.permute.xlu0 0
      %2053 = vperm.xlu0 %2052, %v1883
      %v2054 = vpop.permute.xlu0 %2053
      %2057 = vset.pattern.permute.xlu0 0
      %2058 = vperm.xlu0 %2057, %v1884
      %v2059 = vpop.permute.xlu0 %2058
      %v2061 = vsel %vm1949, %v1984, 0.0
      %v2062 = vsel %vm1950, %v1984, 0.0
      %v2063 = vsel %vm1951, %v1989, 0.0
      %v2064 = vsel %vm1952, %v1989, 0.0
      %v2065 = vsel %vm1953, %v1994, 0.0
      %v2066 = vsel %vm1954, %v1994, 0.0
      %v2067 = vsel %vm1955, %v1999, 0.0
      %v2068 = vsel %vm1956, %v1999, 0.0
      %v2069 = vsel %vm1957, %v2004, 0.0
      %v2070 = vsel %vm1958, %v2004, 0.0
      %v2071 = vsel %vm1959, %v2009, 0.0
      %v2072 = vsel %vm1960, %v2009, 0.0
      %v2073 = vsel %vm1961, %v2014, 0.0
      %v2074 = vsel %vm1962, %v2014, 0.0
      %v2075 = vsel %vm1963, %v2019, 0.0
      %v2076 = vsel %vm1964, %v2019, 0.0
      %v2077 = vsel %vm1965, %v2024, 0.0
      %v2078 = vsel %vm1966, %v2024, 0.0
      %v2079 = vsel %vm1967, %v2029, 0.0
      %v2080 = vsel %vm1968, %v2029, 0.0
      %v2081 = vsel %vm1969, %v2034, 0.0
      %v2082 = vsel %vm1970, %v2034, 0.0
      %v2083 = vsel %vm1971, %v2039, 0.0
      %v2084 = vsel %vm1972, %v2039, 0.0
      %v2085 = vsel %vm1973, %v2044, 0.0
      %v2086 = vsel %vm1974, %v2044, 0.0
      %v2087 = vsel %vm1975, %v2049, 0.0
      %v2088 = vsel %vm1976, %v2049, 0.0
      %v2089 = vsel %vm1977, %v2054, 0.0
      %v2090 = vsel %vm1978, %v2054, 0.0
      %v2091 = vsel %vm1979, %v2059, 0.0
      %v2092 = vsel %vm1980, %v2059, 0.0
      %v2093 = vadd.f32 %v1757, %v2061
      %v2094 = vadd.f32 %v1758, %v2062
      %v2095 = vadd.f32 %v1759, %v2063
      %v2096 = vadd.f32 %v1760, %v2064
      %v2097 = vadd.f32 %v1761, %v2065
      %v2098 = vadd.f32 %v1762, %v2066
      %v2099 = vadd.f32 %v1763, %v2067
      %v2100 = vadd.f32 %v1764, %v2068
      %v2101 = vadd.f32 %v1765, %v2069
      %v2102 = vadd.f32 %v1766, %v2070
      %v2103 = vadd.f32 %v1767, %v2071
      %v2104 = vadd.f32 %v1768, %v2072
      %v2105 = vadd.f32 %v1769, %v2073
      %v2106 = vadd.f32 %v1770, %v2074
      %v2107 = vadd.f32 %v1771, %v2075
      %v2108 = vadd.f32 %v1772, %v2076
      %v2109 = vadd.f32 %v1773, %v2077
      %v2110 = vadd.f32 %v1774, %v2078
      %v2111 = vadd.f32 %v1775, %v2079
      %v2112 = vadd.f32 %v1776, %v2080
      %v2113 = vadd.f32 %v1777, %v2081
      %v2114 = vadd.f32 %v1778, %v2082
      %v2115 = vadd.f32 %v1779, %v2083
      %v2116 = vadd.f32 %v1780, %v2084
      %v2117 = vadd.f32 %v1781, %v2085
      %v2118 = vadd.f32 %v1782, %v2086
      %v2119 = vadd.f32 %v1783, %v2087
      %v2120 = vadd.f32 %v1784, %v2088
      %v2121 = vadd.f32 %v1785, %v2089
      %v2122 = vadd.f32 %v1786, %v2090
      %v2123 = vadd.f32 %v1787, %v2091
      %v2124 = vadd.f32 %v1788, %v2092
      %vm2125 = vcmp.ge.s32.totalorder %v1325, 0
      %vm2126 = vcmp.ge.s32.totalorder %v1326, 0
      %vm2127 = vcmp.ge.s32.totalorder %v1327, 0
      %vm2128 = vcmp.ge.s32.totalorder %v1328, 0
      %vm2129 = vcmp.ge.s32.totalorder %v1329, 0
      %vm2130 = vcmp.ge.s32.totalorder %v1330, 0
      %vm2131 = vcmp.ge.s32.totalorder %v1331, 0
      %vm2132 = vcmp.ge.s32.totalorder %v1332, 0
      %vm2133 = vcmp.ge.s32.totalorder %v1333, 0
      %vm2134 = vcmp.ge.s32.totalorder %v1334, 0
      %vm2135 = vcmp.ge.s32.totalorder %v1335, 0
      %vm2136 = vcmp.ge.s32.totalorder %v1336, 0
      %vm2137 = vcmp.ge.s32.totalorder %v1337, 0
      %vm2138 = vcmp.ge.s32.totalorder %v1338, 0
      %vm2139 = vcmp.ge.s32.totalorder %v1339, 0
      %vm2140 = vcmp.ge.s32.totalorder %v1340, 0
      %vm2141 = vmand %vm1437, %vm2125
      %vm2142 = vmand %vm1438, %vm2126
      %vm2143 = vmand %vm1439, %vm2127
      %vm2144 = vmand %vm1440, %vm2128
      %vm2145 = vmand %vm1441, %vm2129
      %vm2146 = vmand %vm1442, %vm2130
      %vm2147 = vmand %vm1443, %vm2131
      %vm2148 = vmand %vm1444, %vm2132
      %vm2149 = vmand %vm1445, %vm2133
      %vm2150 = vmand %vm1446, %vm2134
      %vm2151 = vmand %vm1447, %vm2135
      %vm2152 = vmand %vm1448, %vm2136
      %vm2153 = vmand %vm1449, %vm2137
      %vm2154 = vmand %vm1450, %vm2138
      %vm2155 = vmand %vm1451, %vm2139
      %vm2156 = vmand %vm1452, %vm2140
      %vm2157 = vcmp.lt.s32.totalorder %v1325, 16
      %vm2158 = vcmp.lt.s32.totalorder %v1326, 16
      %vm2159 = vcmp.lt.s32.totalorder %v1327, 16
      %vm2160 = vcmp.lt.s32.totalorder %v1328, 16
      %vm2161 = vcmp.lt.s32.totalorder %v1329, 16
      %vm2162 = vcmp.lt.s32.totalorder %v1330, 16
      %vm2163 = vcmp.lt.s32.totalorder %v1331, 16
      %vm2164 = vcmp.lt.s32.totalorder %v1332, 16
      %vm2165 = vcmp.lt.s32.totalorder %v1333, 16
      %vm2166 = vcmp.lt.s32.totalorder %v1334, 16
      %vm2167 = vcmp.lt.s32.totalorder %v1335, 16
      %vm2168 = vcmp.lt.s32.totalorder %v1336, 16
      %vm2169 = vcmp.lt.s32.totalorder %v1337, 16
      %vm2170 = vcmp.lt.s32.totalorder %v1338, 16
      %vm2171 = vcmp.lt.s32.totalorder %v1339, 16
      %vm2172 = vcmp.lt.s32.totalorder %v1340, 16
      %vm2173 = vmand %vm2141, %vm2157
      %vm2174 = vmand %vm2142, %vm2158
      %vm2175 = vmand %vm2143, %vm2159
      %vm2176 = vmand %vm2144, %vm2160
      %vm2177 = vmand %vm2145, %vm2161
      %vm2178 = vmand %vm2146, %vm2162
      %vm2179 = vmand %vm2147, %vm2163
      %vm2180 = vmand %vm2148, %vm2164
      %vm2181 = vmand %vm2149, %vm2165
      %vm2182 = vmand %vm2150, %vm2166
      %vm2183 = vmand %vm2151, %vm2167
      %vm2184 = vmand %vm2152, %vm2168
      %vm2185 = vmand %vm2153, %vm2169
      %vm2186 = vmand %vm2154, %vm2170
      %vm2187 = vmand %vm2155, %vm2171
      %vm2188 = vmand %vm2156, %vm2172
      %v2189 = vsel %vm2173, %v1373, 0.0
      %v2190 = vsel %vm2174, %v1374, 0.0
      %v2191 = vsel %vm2175, %v1375, 0.0
      %v2192 = vsel %vm2176, %v1376, 0.0
      %v2193 = vsel %vm2177, %v1377, 0.0
      %v2194 = vsel %vm2178, %v1378, 0.0
      %v2195 = vsel %vm2179, %v1379, 0.0
      %v2196 = vsel %vm2180, %v1380, 0.0
      %v2197 = vsel %vm2181, %v1381, 0.0
      %v2198 = vsel %vm2182, %v1382, 0.0
      %v2199 = vsel %vm2183, %v1383, 0.0
      %v2200 = vsel %vm2184, %v1384, 0.0
      %v2201 = vsel %vm2185, %v1385, 0.0
      %v2202 = vsel %vm2186, %v1386, 0.0
      %v2203 = vsel %vm2187, %v1387, 0.0
      %v2204 = vsel %vm2188, %v1388, 0.0
      %v2205 = vmul.u32 %v1325, 16
      %v2206 = vmul.u32 %v1326, 16
      %v2207 = vmul.u32 %v1327, 16
      %v2208 = vmul.u32 %v1328, 16
      %v2209 = vmul.u32 %v1329, 16
      %v2210 = vmul.u32 %v1330, 16
      %v2211 = vmul.u32 %v1331, 16
      %v2212 = vmul.u32 %v1332, 16
      %v2213 = vmul.u32 %v1333, 16
      %v2214 = vmul.u32 %v1334, 16
      %v2215 = vmul.u32 %v1335, 16
      %v2216 = vmul.u32 %v1336, 16
      %v2217 = vmul.u32 %v1337, 16
      %v2218 = vmul.u32 %v1338, 16
      %v2219 = vmul.u32 %v1339, 16
      %v2220 = vmul.u32 %v1340, 16
      %v2221 = vadd.s32 %v2205, %v1277
      %v2222 = vadd.s32 %v2206, %v1278
      %v2223 = vadd.s32 %v2207, %v1279
      %v2224 = vadd.s32 %v2208, %v1280
      %v2225 = vadd.s32 %v2209, %v1281
      %v2226 = vadd.s32 %v2210, %v1282
      %v2227 = vadd.s32 %v2211, %v1283
      %v2228 = vadd.s32 %v2212, %v1284
      %v2229 = vadd.s32 %v2213, %v1285
      %v2230 = vadd.s32 %v2214, %v1286
      %v2231 = vadd.s32 %v2215, %v1287
      %v2232 = vadd.s32 %v2216, %v1288
      %v2233 = vadd.s32 %v2217, %v1289
      %v2234 = vadd.s32 %v2218, %v1290
      %v2235 = vadd.s32 %v2219, %v1291
      %v2236 = vadd.s32 %v2220, %v1292
      %2237 = vset.pattern.permute.xlu0 0
      %2238 = vperm.xlu0 %2237, %v2221
      %v2239 = vpop.permute.xlu0 %2238
      %2240 = vset.pattern.permute.xlu0 0
      %2241 = vperm.xlu0 %2240, %v2222
      %v2242 = vpop.permute.xlu0 %2241
      %2243 = vset.pattern.permute.xlu0 0
      %2244 = vperm.xlu0 %2243, %v2223
      %v2245 = vpop.permute.xlu0 %2244
      %2246 = vset.pattern.permute.xlu0 0
      %2247 = vperm.xlu0 %2246, %v2224
      %v2248 = vpop.permute.xlu0 %2247
      %2249 = vset.pattern.permute.xlu0 0
      %2250 = vperm.xlu0 %2249, %v2225
      %v2251 = vpop.permute.xlu0 %2250
      %2252 = vset.pattern.permute.xlu0 0
      %2253 = vperm.xlu0 %2252, %v2226
      %v2254 = vpop.permute.xlu0 %2253
      %2255 = vset.pattern.permute.xlu0 0
      %2256 = vperm.xlu0 %2255, %v2227
      %v2257 = vpop.permute.xlu0 %2256
      %2258 = vset.pattern.permute.xlu0 0
      %2259 = vperm.xlu0 %2258, %v2228
      %v2260 = vpop.permute.xlu0 %2259
      %2261 = vset.pattern.permute.xlu0 0
      %2262 = vperm.xlu0 %2261, %v2229
      %v2263 = vpop.permute.xlu0 %2262
      %2264 = vset.pattern.permute.xlu0 0
      %2265 = vperm.xlu0 %2264, %v2230
      %v2266 = vpop.permute.xlu0 %2265
      %2267 = vset.pattern.permute.xlu0 0
      %2268 = vperm.xlu0 %2267, %v2231
      %v2269 = vpop.permute.xlu0 %2268
      %2270 = vset.pattern.permute.xlu0 0
      %2271 = vperm.xlu0 %2270, %v2232
      %v2272 = vpop.permute.xlu0 %2271
      %2273 = vset.pattern.permute.xlu0 0
      %2274 = vperm.xlu0 %2273, %v2233
      %v2275 = vpop.permute.xlu0 %2274
      %2276 = vset.pattern.permute.xlu0 0
      %2277 = vperm.xlu0 %2276, %v2234
      %v2278 = vpop.permute.xlu0 %2277
      %2279 = vset.pattern.permute.xlu0 0
      %2280 = vperm.xlu0 %2279, %v2235
      %v2281 = vpop.permute.xlu0 %2280
      %2282 = vset.pattern.permute.xlu0 0
      %2283 = vperm.xlu0 %2282, %v2236
      %v2284 = vpop.permute.xlu0 %2283
      %vm2285 = vcmp.eq.s32.totalorder %v164, %v2239
      %vm2286 = vcmp.eq.s32.totalorder %v165, %v2239
      %vm2287 = vcmp.eq.s32.totalorder %v164, %v2242
      %vm2288 = vcmp.eq.s32.totalorder %v165, %v2242
      %vm2289 = vcmp.eq.s32.totalorder %v164, %v2245
      %vm2290 = vcmp.eq.s32.totalorder %v165, %v2245
      %vm2291 = vcmp.eq.s32.totalorder %v164, %v2248
      %vm2292 = vcmp.eq.s32.totalorder %v165, %v2248
      %vm2293 = vcmp.eq.s32.totalorder %v164, %v2251
      %vm2294 = vcmp.eq.s32.totalorder %v165, %v2251
      %vm2295 = vcmp.eq.s32.totalorder %v164, %v2254
      %vm2296 = vcmp.eq.s32.totalorder %v165, %v2254
      %vm2297 = vcmp.eq.s32.totalorder %v164, %v2257
      %vm2298 = vcmp.eq.s32.totalorder %v165, %v2257
      %vm2299 = vcmp.eq.s32.totalorder %v164, %v2260
      %vm2300 = vcmp.eq.s32.totalorder %v165, %v2260
      %vm2301 = vcmp.eq.s32.totalorder %v164, %v2263
      %vm2302 = vcmp.eq.s32.totalorder %v165, %v2263
      %vm2303 = vcmp.eq.s32.totalorder %v164, %v2266
      %vm2304 = vcmp.eq.s32.totalorder %v165, %v2266
      %vm2305 = vcmp.eq.s32.totalorder %v164, %v2269
      %vm2306 = vcmp.eq.s32.totalorder %v165, %v2269
      %vm2307 = vcmp.eq.s32.totalorder %v164, %v2272
      %vm2308 = vcmp.eq.s32.totalorder %v165, %v2272
      %vm2309 = vcmp.eq.s32.totalorder %v164, %v2275
      %vm2310 = vcmp.eq.s32.totalorder %v165, %v2275
      %vm2311 = vcmp.eq.s32.totalorder %v164, %v2278
      %vm2312 = vcmp.eq.s32.totalorder %v165, %v2278
      %vm2313 = vcmp.eq.s32.totalorder %v164, %v2281
      %vm2314 = vcmp.eq.s32.totalorder %v165, %v2281
      %vm2315 = vcmp.eq.s32.totalorder %v164, %v2284
      %vm2316 = vcmp.eq.s32.totalorder %v165, %v2284
      %2318 = vset.pattern.permute.xlu0 0
      %2319 = vperm.xlu0 %2318, %v2189
      %v2320 = vpop.permute.xlu0 %2319
      %2323 = vset.pattern.permute.xlu0 0
      %2324 = vperm.xlu0 %2323, %v2190
      %v2325 = vpop.permute.xlu0 %2324
      %2328 = vset.pattern.permute.xlu0 0
      %2329 = vperm.xlu0 %2328, %v2191
      %v2330 = vpop.permute.xlu0 %2329
      %2333 = vset.pattern.permute.xlu0 0
      %2334 = vperm.xlu0 %2333, %v2192
      %v2335 = vpop.permute.xlu0 %2334
      %2338 = vset.pattern.permute.xlu0 0
      %2339 = vperm.xlu0 %2338, %v2193
      %v2340 = vpop.permute.xlu0 %2339
      %2343 = vset.pattern.permute.xlu0 0
      %2344 = vperm.xlu0 %2343, %v2194
      %v2345 = vpop.permute.xlu0 %2344
      %2348 = vset.pattern.permute.xlu0 0
      %2349 = vperm.xlu0 %2348, %v2195
      %v2350 = vpop.permute.xlu0 %2349
      %2353 = vset.pattern.permute.xlu0 0
      %2354 = vperm.xlu0 %2353, %v2196
      %v2355 = vpop.permute.xlu0 %2354
      %2358 = vset.pattern.permute.xlu0 0
      %2359 = vperm.xlu0 %2358, %v2197
      %v2360 = vpop.permute.xlu0 %2359
      %2363 = vset.pattern.permute.xlu0 0
      %2364 = vperm.xlu0 %2363, %v2198
      %v2365 = vpop.permute.xlu0 %2364
      %2368 = vset.pattern.permute.xlu0 0
      %2369 = vperm.xlu0 %2368, %v2199
      %v2370 = vpop.permute.xlu0 %2369
      %2373 = vset.pattern.permute.xlu0 0
      %2374 = vperm.xlu0 %2373, %v2200
      %v2375 = vpop.permute.xlu0 %2374
      %2378 = vset.pattern.permute.xlu0 0
      %2379 = vperm.xlu0 %2378, %v2201
      %v2380 = vpop.permute.xlu0 %2379
      %2383 = vset.pattern.permute.xlu0 0
      %2384 = vperm.xlu0 %2383, %v2202
      %v2385 = vpop.permute.xlu0 %2384
      %2388 = vset.pattern.permute.xlu0 0
      %2389 = vperm.xlu0 %2388, %v2203
      %v2390 = vpop.permute.xlu0 %2389
      %2393 = vset.pattern.permute.xlu0 0
      %2394 = vperm.xlu0 %2393, %v2204
      %v2395 = vpop.permute.xlu0 %2394
      %v2397 = vsel %vm2285, %v2320, 0.0
      %v2398 = vsel %vm2286, %v2320, 0.0
      %v2399 = vsel %vm2287, %v2325, 0.0
      %v2400 = vsel %vm2288, %v2325, 0.0
      %v2401 = vsel %vm2289, %v2330, 0.0
      %v2402 = vsel %vm2290, %v2330, 0.0
      %v2403 = vsel %vm2291, %v2335, 0.0
      %v2404 = vsel %vm2292, %v2335, 0.0
      %v2405 = vsel %vm2293, %v2340, 0.0
      %v2406 = vsel %vm2294, %v2340, 0.0
      %v2407 = vsel %vm2295, %v2345, 0.0
      %v2408 = vsel %vm2296, %v2345, 0.0
      %v2409 = vsel %vm2297, %v2350, 0.0
      %v2410 = vsel %vm2298, %v2350, 0.0
      %v2411 = vsel %vm2299, %v2355, 0.0
      %v2412 = vsel %vm2300, %v2355, 0.0
      %v2413 = vsel %vm2301, %v2360, 0.0
      %v2414 = vsel %vm2302, %v2360, 0.0
      %v2415 = vsel %vm2303, %v2365, 0.0
      %v2416 = vsel %vm2304, %v2365, 0.0
      %v2417 = vsel %vm2305, %v2370, 0.0
      %v2418 = vsel %vm2306, %v2370, 0.0
      %v2419 = vsel %vm2307, %v2375, 0.0
      %v2420 = vsel %vm2308, %v2375, 0.0
      %v2421 = vsel %vm2309, %v2380, 0.0
      %v2422 = vsel %vm2310, %v2380, 0.0
      %v2423 = vsel %vm2311, %v2385, 0.0
      %v2424 = vsel %vm2312, %v2385, 0.0
      %v2425 = vsel %vm2313, %v2390, 0.0
      %v2426 = vsel %vm2314, %v2390, 0.0
      %v2427 = vsel %vm2315, %v2395, 0.0
      %v2428 = vsel %vm2316, %v2395, 0.0
      %v2429 = vadd.f32 %v2093, %v2397
      %v2430 = vadd.f32 %v2094, %v2398
      %v2431 = vadd.f32 %v2095, %v2399
      %v2432 = vadd.f32 %v2096, %v2400
      %v2433 = vadd.f32 %v2097, %v2401
      %v2434 = vadd.f32 %v2098, %v2402
      %v2435 = vadd.f32 %v2099, %v2403
      %v2436 = vadd.f32 %v2100, %v2404
      %v2437 = vadd.f32 %v2101, %v2405
      %v2438 = vadd.f32 %v2102, %v2406
      %v2439 = vadd.f32 %v2103, %v2407
      %v2440 = vadd.f32 %v2104, %v2408
      %v2441 = vadd.f32 %v2105, %v2409
      %v2442 = vadd.f32 %v2106, %v2410
      %v2443 = vadd.f32 %v2107, %v2411
      %v2444 = vadd.f32 %v2108, %v2412
      %v2445 = vadd.f32 %v2109, %v2413
      %v2446 = vadd.f32 %v2110, %v2414
      %v2447 = vadd.f32 %v2111, %v2415
      %v2448 = vadd.f32 %v2112, %v2416
      %v2449 = vadd.f32 %v2113, %v2417
      %v2450 = vadd.f32 %v2114, %v2418
      %v2451 = vadd.f32 %v2115, %v2419
      %v2452 = vadd.f32 %v2116, %v2420
      %v2453 = vadd.f32 %v2117, %v2421
      %v2454 = vadd.f32 %v2118, %v2422
      %v2455 = vadd.f32 %v2119, %v2423
      %v2456 = vadd.f32 %v2120, %v2424
      %v2457 = vadd.f32 %v2121, %v2425
      %v2458 = vadd.f32 %v2122, %v2426
      %v2459 = vadd.f32 %v2123, %v2427
      %v2460 = vadd.f32 %v2124, %v2428
      %vm2461 = vmand %vm1821, %vm2125
      %vm2462 = vmand %vm1822, %vm2126
      %vm2463 = vmand %vm1823, %vm2127
      %vm2464 = vmand %vm1824, %vm2128
      %vm2465 = vmand %vm1825, %vm2129
      %vm2466 = vmand %vm1826, %vm2130
      %vm2467 = vmand %vm1827, %vm2131
      %vm2468 = vmand %vm1828, %vm2132
      %vm2469 = vmand %vm1829, %vm2133
      %vm2470 = vmand %vm1830, %vm2134
      %vm2471 = vmand %vm1831, %vm2135
      %vm2472 = vmand %vm1832, %vm2136
      %vm2473 = vmand %vm1833, %vm2137
      %vm2474 = vmand %vm1834, %vm2138
      %vm2475 = vmand %vm1835, %vm2139
      %vm2476 = vmand %vm1836, %vm2140
      %vm2477 = vmand %vm2461, %vm2157
      %vm2478 = vmand %vm2462, %vm2158
      %vm2479 = vmand %vm2463, %vm2159
      %vm2480 = vmand %vm2464, %vm2160
      %vm2481 = vmand %vm2465, %vm2161
      %vm2482 = vmand %vm2466, %vm2162
      %vm2483 = vmand %vm2467, %vm2163
      %vm2484 = vmand %vm2468, %vm2164
      %vm2485 = vmand %vm2469, %vm2165
      %vm2486 = vmand %vm2470, %vm2166
      %vm2487 = vmand %vm2471, %vm2167
      %vm2488 = vmand %vm2472, %vm2168
      %vm2489 = vmand %vm2473, %vm2169
      %vm2490 = vmand %vm2474, %vm2170
      %vm2491 = vmand %vm2475, %vm2171
      %vm2492 = vmand %vm2476, %vm2172
      %v2493 = vsel %vm2477, %v1389, 0.0
      %v2494 = vsel %vm2478, %v1390, 0.0
      %v2495 = vsel %vm2479, %v1391, 0.0
      %v2496 = vsel %vm2480, %v1392, 0.0
      %v2497 = vsel %vm2481, %v1393, 0.0
      %v2498 = vsel %vm2482, %v1394, 0.0
      %v2499 = vsel %vm2483, %v1395, 0.0
      %v2500 = vsel %vm2484, %v1396, 0.0
      %v2501 = vsel %vm2485, %v1397, 0.0
      %v2502 = vsel %vm2486, %v1398, 0.0
      %v2503 = vsel %vm2487, %v1399, 0.0
      %v2504 = vsel %vm2488, %v1400, 0.0
      %v2505 = vsel %vm2489, %v1401, 0.0
      %v2506 = vsel %vm2490, %v1402, 0.0
      %v2507 = vsel %vm2491, %v1403, 0.0
      %v2508 = vsel %vm2492, %v1404, 0.0
      %v2509 = vadd.s32 %v2205, %v1293
      %v2510 = vadd.s32 %v2206, %v1294
      %v2511 = vadd.s32 %v2207, %v1295
      %v2512 = vadd.s32 %v2208, %v1296
      %v2513 = vadd.s32 %v2209, %v1297
      %v2514 = vadd.s32 %v2210, %v1298
      %v2515 = vadd.s32 %v2211, %v1299
      %v2516 = vadd.s32 %v2212, %v1300
      %v2517 = vadd.s32 %v2213, %v1301
      %v2518 = vadd.s32 %v2214, %v1302
      %v2519 = vadd.s32 %v2215, %v1303
      %v2520 = vadd.s32 %v2216, %v1304
      %v2521 = vadd.s32 %v2217, %v1305
      %v2522 = vadd.s32 %v2218, %v1306
      %v2523 = vadd.s32 %v2219, %v1307
      %v2524 = vadd.s32 %v2220, %v1308
      %2525 = vset.pattern.permute.xlu0 0
      %2526 = vperm.xlu0 %2525, %v2509
      %v2527 = vpop.permute.xlu0 %2526
      %2528 = vset.pattern.permute.xlu0 0
      %2529 = vperm.xlu0 %2528, %v2510
      %v2530 = vpop.permute.xlu0 %2529
      %2531 = vset.pattern.permute.xlu0 0
      %2532 = vperm.xlu0 %2531, %v2511
      %v2533 = vpop.permute.xlu0 %2532
      %2534 = vset.pattern.permute.xlu0 0
      %2535 = vperm.xlu0 %2534, %v2512
      %v2536 = vpop.permute.xlu0 %2535
      %2537 = vset.pattern.permute.xlu0 0
      %2538 = vperm.xlu0 %2537, %v2513
      %v2539 = vpop.permute.xlu0 %2538
      %2540 = vset.pattern.permute.xlu0 0
      %2541 = vperm.xlu0 %2540, %v2514
      %v2542 = vpop.permute.xlu0 %2541
      %2543 = vset.pattern.permute.xlu0 0
      %2544 = vperm.xlu0 %2543, %v2515
      %v2545 = vpop.permute.xlu0 %2544
      %2546 = vset.pattern.permute.xlu0 0
      %2547 = vperm.xlu0 %2546, %v2516
      %v2548 = vpop.permute.xlu0 %2547
      %2549 = vset.pattern.permute.xlu0 0
      %2550 = vperm.xlu0 %2549, %v2517
      %v2551 = vpop.permute.xlu0 %2550
      %2552 = vset.pattern.permute.xlu0 0
      %2553 = vperm.xlu0 %2552, %v2518
      %v2554 = vpop.permute.xlu0 %2553
      %2555 = vset.pattern.permute.xlu0 0
      %2556 = vperm.xlu0 %2555, %v2519
      %v2557 = vpop.permute.xlu0 %2556
      %2558 = vset.pattern.permute.xlu0 0
      %2559 = vperm.xlu0 %2558, %v2520
      %v2560 = vpop.permute.xlu0 %2559
      %2561 = vset.pattern.permute.xlu0 0
      %2562 = vperm.xlu0 %2561, %v2521
      %v2563 = vpop.permute.xlu0 %2562
      %2564 = vset.pattern.permute.xlu0 0
      %2565 = vperm.xlu0 %2564, %v2522
      %v2566 = vpop.permute.xlu0 %2565
      %2567 = vset.pattern.permute.xlu0 0
      %2568 = vperm.xlu0 %2567, %v2523
      %v2569 = vpop.permute.xlu0 %2568
      %2570 = vset.pattern.permute.xlu0 0
      %2571 = vperm.xlu0 %2570, %v2524
      %v2572 = vpop.permute.xlu0 %2571
      %vm2573 = vcmp.eq.s32.totalorder %v164, %v2527
      %vm2574 = vcmp.eq.s32.totalorder %v165, %v2527
      %vm2575 = vcmp.eq.s32.totalorder %v164, %v2530
      %vm2576 = vcmp.eq.s32.totalorder %v165, %v2530
      %vm2577 = vcmp.eq.s32.totalorder %v164, %v2533
      %vm2578 = vcmp.eq.s32.totalorder %v165, %v2533
      %vm2579 = vcmp.eq.s32.totalorder %v164, %v2536
      %vm2580 = vcmp.eq.s32.totalorder %v165, %v2536
      %vm2581 = vcmp.eq.s32.totalorder %v164, %v2539
      %vm2582 = vcmp.eq.s32.totalorder %v165, %v2539
      %vm2583 = vcmp.eq.s32.totalorder %v164, %v2542
      %vm2584 = vcmp.eq.s32.totalorder %v165, %v2542
      %vm2585 = vcmp.eq.s32.totalorder %v164, %v2545
      %vm2586 = vcmp.eq.s32.totalorder %v165, %v2545
      %vm2587 = vcmp.eq.s32.totalorder %v164, %v2548
      %vm2588 = vcmp.eq.s32.totalorder %v165, %v2548
      %vm2589 = vcmp.eq.s32.totalorder %v164, %v2551
      %vm2590 = vcmp.eq.s32.totalorder %v165, %v2551
      %vm2591 = vcmp.eq.s32.totalorder %v164, %v2554
      %vm2592 = vcmp.eq.s32.totalorder %v165, %v2554
      %vm2593 = vcmp.eq.s32.totalorder %v164, %v2557
      %vm2594 = vcmp.eq.s32.totalorder %v165, %v2557
      %vm2595 = vcmp.eq.s32.totalorder %v164, %v2560
      %vm2596 = vcmp.eq.s32.totalorder %v165, %v2560
      %vm2597 = vcmp.eq.s32.totalorder %v164, %v2563
      %vm2598 = vcmp.eq.s32.totalorder %v165, %v2563
      %vm2599 = vcmp.eq.s32.totalorder %v164, %v2566
      %vm2600 = vcmp.eq.s32.totalorder %v165, %v2566
      %vm2601 = vcmp.eq.s32.totalorder %v164, %v2569
      %vm2602 = vcmp.eq.s32.totalorder %v165, %v2569
      %vm2603 = vcmp.eq.s32.totalorder %v164, %v2572
      %vm2604 = vcmp.eq.s32.totalorder %v165, %v2572
      %2606 = vset.pattern.permute.xlu0 0
      %2607 = vperm.xlu0 %2606, %v2493
      %v2608 = vpop.permute.xlu0 %2607
      %2611 = vset.pattern.permute.xlu0 0
      %2612 = vperm.xlu0 %2611, %v2494
      %v2613 = vpop.permute.xlu0 %2612
      %2616 = vset.pattern.permute.xlu0 0
      %2617 = vperm.xlu0 %2616, %v2495
      %v2618 = vpop.permute.xlu0 %2617
      %2621 = vset.pattern.permute.xlu0 0
      %2622 = vperm.xlu0 %2621, %v2496
      %v2623 = vpop.permute.xlu0 %2622
      %2626 = vset.pattern.permute.xlu0 0
      %2627 = vperm.xlu0 %2626, %v2497
      %v2628 = vpop.permute.xlu0 %2627
      %2631 = vset.pattern.permute.xlu0 0
      %2632 = vperm.xlu0 %2631, %v2498
      %v2633 = vpop.permute.xlu0 %2632
      %2636 = vset.pattern.permute.xlu0 0
      %2637 = vperm.xlu0 %2636, %v2499
      %v2638 = vpop.permute.xlu0 %2637
      %2641 = vset.pattern.permute.xlu0 0
      %2642 = vperm.xlu0 %2641, %v2500
      %v2643 = vpop.permute.xlu0 %2642
      %2646 = vset.pattern.permute.xlu0 0
      %2647 = vperm.xlu0 %2646, %v2501
      %v2648 = vpop.permute.xlu0 %2647
      %2651 = vset.pattern.permute.xlu0 0
      %2652 = vperm.xlu0 %2651, %v2502
      %v2653 = vpop.permute.xlu0 %2652
      %2656 = vset.pattern.permute.xlu0 0
      %2657 = vperm.xlu0 %2656, %v2503
      %v2658 = vpop.permute.xlu0 %2657
      %2661 = vset.pattern.permute.xlu0 0
      %2662 = vperm.xlu0 %2661, %v2504
      %v2663 = vpop.permute.xlu0 %2662
      %2666 = vset.pattern.permute.xlu0 0
      %2667 = vperm.xlu0 %2666, %v2505
      %v2668 = vpop.permute.xlu0 %2667
      %2671 = vset.pattern.permute.xlu0 0
      %2672 = vperm.xlu0 %2671, %v2506
      %v2673 = vpop.permute.xlu0 %2672
      %2676 = vset.pattern.permute.xlu0 0
      %2677 = vperm.xlu0 %2676, %v2507
      %v2678 = vpop.permute.xlu0 %2677
      %2681 = vset.pattern.permute.xlu0 0
      %2682 = vperm.xlu0 %2681, %v2508
      %v2683 = vpop.permute.xlu0 %2682
      %v2685 = vsel %vm2573, %v2608, 0.0
      %v2686 = vsel %vm2574, %v2608, 0.0
      %v2687 = vsel %vm2575, %v2613, 0.0
      %v2688 = vsel %vm2576, %v2613, 0.0
      %v2689 = vsel %vm2577, %v2618, 0.0
      %v2690 = vsel %vm2578, %v2618, 0.0
      %v2691 = vsel %vm2579, %v2623, 0.0
      %v2692 = vsel %vm2580, %v2623, 0.0
      %v2693 = vsel %vm2581, %v2628, 0.0
      %v2694 = vsel %vm2582, %v2628, 0.0
      %v2695 = vsel %vm2583, %v2633, 0.0
      %v2696 = vsel %vm2584, %v2633, 0.0
      %v2697 = vsel %vm2585, %v2638, 0.0
      %v2698 = vsel %vm2586, %v2638, 0.0
      %v2699 = vsel %vm2587, %v2643, 0.0
      %v2700 = vsel %vm2588, %v2643, 0.0
      %v2701 = vsel %vm2589, %v2648, 0.0
      %v2702 = vsel %vm2590, %v2648, 0.0
      %v2703 = vsel %vm2591, %v2653, 0.0
      %v2704 = vsel %vm2592, %v2653, 0.0
      %v2705 = vsel %vm2593, %v2658, 0.0
      %v2706 = vsel %vm2594, %v2658, 0.0
      %v2707 = vsel %vm2595, %v2663, 0.0
      %v2708 = vsel %vm2596, %v2663, 0.0
      %v2709 = vsel %vm2597, %v2668, 0.0
      %v2710 = vsel %vm2598, %v2668, 0.0
      %v2711 = vsel %vm2599, %v2673, 0.0
      %v2712 = vsel %vm2600, %v2673, 0.0
      %v2713 = vsel %vm2601, %v2678, 0.0
      %v2714 = vsel %vm2602, %v2678, 0.0
      %v2715 = vsel %vm2603, %v2683, 0.0
      %v2716 = vsel %vm2604, %v2683, 0.0
      %v2717 = vadd.f32 %v2429, %v2685
      %v2718 = vadd.f32 %v2430, %v2686
      %v2719 = vadd.f32 %v2431, %v2687
      %v2720 = vadd.f32 %v2432, %v2688
      %v2721 = vadd.f32 %v2433, %v2689
      %v2722 = vadd.f32 %v2434, %v2690
      %v2723 = vadd.f32 %v2435, %v2691
      %v2724 = vadd.f32 %v2436, %v2692
      %v2725 = vadd.f32 %v2437, %v2693
      %v2726 = vadd.f32 %v2438, %v2694
      %v2727 = vadd.f32 %v2439, %v2695
      %v2728 = vadd.f32 %v2440, %v2696
      %v2729 = vadd.f32 %v2441, %v2697
      %v2730 = vadd.f32 %v2442, %v2698
      %v2731 = vadd.f32 %v2443, %v2699
      %v2732 = vadd.f32 %v2444, %v2700
      %v2733 = vadd.f32 %v2445, %v2701
      %v2734 = vadd.f32 %v2446, %v2702
      %v2735 = vadd.f32 %v2447, %v2703
      %v2736 = vadd.f32 %v2448, %v2704
      %v2737 = vadd.f32 %v2449, %v2705
      %v2738 = vadd.f32 %v2450, %v2706
      %v2739 = vadd.f32 %v2451, %v2707
      %v2740 = vadd.f32 %v2452, %v2708
      %v2741 = vadd.f32 %v2453, %v2709
      %v2742 = vadd.f32 %v2454, %v2710
      %v2743 = vadd.f32 %v2455, %v2711
      %v2744 = vadd.f32 %v2456, %v2712
      %v2745 = vadd.f32 %v2457, %v2713
      %v2746 = vadd.f32 %v2458, %v2714
      %v2747 = vadd.f32 %v2459, %v2715
      %v2748 = vadd.f32 %v2460, %v2716
      %v2749 = vld [vmem:[%s1] ss:$8 sm:$0x3]
      %v2751 = vperm.slane %v2749, 0
      %v2752 = vperm.slane %v2749, 1
      %v2755 = vmul.f32 %v2717, %v2751
      %v2756 = vmul.f32 %v2718, %v2752
      %v2757 = vmul.f32 %v2719, %v2751
      %v2758 = vmul.f32 %v2720, %v2752
      %v2759 = vmul.f32 %v2721, %v2751
      %v2760 = vmul.f32 %v2722, %v2752
      %v2761 = vmul.f32 %v2723, %v2751
      %v2762 = vmul.f32 %v2724, %v2752
      %v2763 = vmul.f32 %v2725, %v2751
      %v2764 = vmul.f32 %v2726, %v2752
      %v2765 = vmul.f32 %v2727, %v2751
      %v2766 = vmul.f32 %v2728, %v2752
      %v2767 = vmul.f32 %v2729, %v2751
      %v2768 = vmul.f32 %v2730, %v2752
      %v2769 = vmul.f32 %v2731, %v2751
      %v2770 = vmul.f32 %v2732, %v2752
      %v2771 = vmul.f32 %v2733, %v2751
      %v2772 = vmul.f32 %v2734, %v2752
      %v2773 = vmul.f32 %v2735, %v2751
      %v2774 = vmul.f32 %v2736, %v2752
      %v2775 = vmul.f32 %v2737, %v2751
      %v2776 = vmul.f32 %v2738, %v2752
      %v2777 = vmul.f32 %v2739, %v2751
      %v2778 = vmul.f32 %v2740, %v2752
      %v2779 = vmul.f32 %v2741, %v2751
      %v2780 = vmul.f32 %v2742, %v2752
      %v2781 = vmul.f32 %v2743, %v2751
      %v2782 = vmul.f32 %v2744, %v2752
      %v2783 = vmul.f32 %v2745, %v2751
      %v2784 = vmul.f32 %v2746, %v2752
      %v2785 = vmul.f32 %v2747, %v2751
      %v2786 = vmul.f32 %v2748, %v2752
      %v2787 = vadd.f32 %v2755, %v2756
      %2788 = vadd.xlane.f32.xlu0 %v2787
      %v2789 = vpop.xlane.xlu0 %2788
      %v2790 = vadd.f32 %v2757, %v2758
      %2791 = vadd.xlane.f32.xlu0 %v2790
      %v2792 = vpop.xlane.xlu0 %2791
      %v2793 = vadd.f32 %v2759, %v2760
      %2794 = vadd.xlane.f32.xlu0 %v2793
      %v2795 = vpop.xlane.xlu0 %2794
      %v2796 = vadd.f32 %v2761, %v2762
      %2797 = vadd.xlane.f32.xlu0 %v2796
      %v2798 = vpop.xlane.xlu0 %2797
      %v2799 = vadd.f32 %v2763, %v2764
      %2800 = vadd.xlane.f32.xlu0 %v2799
      %v2801 = vpop.xlane.xlu0 %2800
      %v2802 = vadd.f32 %v2765, %v2766
      %2803 = vadd.xlane.f32.xlu0 %v2802
      %v2804 = vpop.xlane.xlu0 %2803
      %v2805 = vadd.f32 %v2767, %v2768
      %2806 = vadd.xlane.f32.xlu0 %v2805
      %v2807 = vpop.xlane.xlu0 %2806
      %v2808 = vadd.f32 %v2769, %v2770
      %2809 = vadd.xlane.f32.xlu0 %v2808
      %v2810 = vpop.xlane.xlu0 %2809
      %v2811 = vadd.f32 %v2771, %v2772
      %2812 = vadd.xlane.f32.xlu0 %v2811
      %v2813 = vpop.xlane.xlu0 %2812
      %v2814 = vadd.f32 %v2773, %v2774
      %2815 = vadd.xlane.f32.xlu0 %v2814
      %v2816 = vpop.xlane.xlu0 %2815
      %v2817 = vadd.f32 %v2775, %v2776
      %2818 = vadd.xlane.f32.xlu0 %v2817
      %v2819 = vpop.xlane.xlu0 %2818
      %v2820 = vadd.f32 %v2777, %v2778
      %2821 = vadd.xlane.f32.xlu0 %v2820
      %v2822 = vpop.xlane.xlu0 %2821
      %v2823 = vadd.f32 %v2779, %v2780
      %2824 = vadd.xlane.f32.xlu0 %v2823
      %v2825 = vpop.xlane.xlu0 %2824
      %v2826 = vadd.f32 %v2781, %v2782
      %2827 = vadd.xlane.f32.xlu0 %v2826
      %v2828 = vpop.xlane.xlu0 %2827
      %v2829 = vadd.f32 %v2783, %v2784
      %2830 = vadd.xlane.f32.xlu0 %v2829
      %v2831 = vpop.xlane.xlu0 %2830
      %v2832 = vadd.f32 %v2785, %v2786
      %2833 = vadd.xlane.f32.xlu0 %v2832
      %v2834 = vpop.xlane.xlu0 %2833
      %s2835 = scalar_lea.vmem %s1, 1
      %v2836 = vld [vmem:[%s2835] ss:$8 sm:$0x3]
      %v2838 = vperm.slane %v2836, 0
      %v2839 = vperm.slane %v2836, 1
      %v2842 = vmul.f32 %v2717, %v2838
      %v2843 = vmul.f32 %v2718, %v2839
      %v2844 = vmul.f32 %v2719, %v2838
      %v2845 = vmul.f32 %v2720, %v2839
      %v2846 = vmul.f32 %v2721, %v2838
      %v2847 = vmul.f32 %v2722, %v2839
      %v2848 = vmul.f32 %v2723, %v2838
      %v2849 = vmul.f32 %v2724, %v2839
      %v2850 = vmul.f32 %v2725, %v2838
      %v2851 = vmul.f32 %v2726, %v2839
      %v2852 = vmul.f32 %v2727, %v2838
      %v2853 = vmul.f32 %v2728, %v2839
      %v2854 = vmul.f32 %v2729, %v2838
      %v2855 = vmul.f32 %v2730, %v2839
      %v2856 = vmul.f32 %v2731, %v2838
      %v2857 = vmul.f32 %v2732, %v2839
      %v2858 = vmul.f32 %v2733, %v2838
      %v2859 = vmul.f32 %v2734, %v2839
      %v2860 = vmul.f32 %v2735, %v2838
      %v2861 = vmul.f32 %v2736, %v2839
      %v2862 = vmul.f32 %v2737, %v2838
      %v2863 = vmul.f32 %v2738, %v2839
      %v2864 = vmul.f32 %v2739, %v2838
      %v2865 = vmul.f32 %v2740, %v2839
      %v2866 = vmul.f32 %v2741, %v2838
      %v2867 = vmul.f32 %v2742, %v2839
      %v2868 = vmul.f32 %v2743, %v2838
      %v2869 = vmul.f32 %v2744, %v2839
      %v2870 = vmul.f32 %v2745, %v2838
      %v2871 = vmul.f32 %v2746, %v2839
      %v2872 = vmul.f32 %v2747, %v2838
      %v2873 = vmul.f32 %v2748, %v2839
      %v2874 = vadd.f32 %v2842, %v2843
      %2875 = vadd.xlane.f32.xlu0 %v2874
      %v2876 = vpop.xlane.xlu0 %2875
      %v2877 = vadd.f32 %v2844, %v2845
      %2878 = vadd.xlane.f32.xlu0 %v2877
      %v2879 = vpop.xlane.xlu0 %2878
      %v2880 = vadd.f32 %v2846, %v2847
      %2881 = vadd.xlane.f32.xlu0 %v2880
      %v2882 = vpop.xlane.xlu0 %2881
      %v2883 = vadd.f32 %v2848, %v2849
      %2884 = vadd.xlane.f32.xlu0 %v2883
      %v2885 = vpop.xlane.xlu0 %2884
      %v2886 = vadd.f32 %v2850, %v2851
      %2887 = vadd.xlane.f32.xlu0 %v2886
      %v2888 = vpop.xlane.xlu0 %2887
      %v2889 = vadd.f32 %v2852, %v2853
      %2890 = vadd.xlane.f32.xlu0 %v2889
      %v2891 = vpop.xlane.xlu0 %2890
      %v2892 = vadd.f32 %v2854, %v2855
      %2893 = vadd.xlane.f32.xlu0 %v2892
      %v2894 = vpop.xlane.xlu0 %2893
      %v2895 = vadd.f32 %v2856, %v2857
      %2896 = vadd.xlane.f32.xlu0 %v2895
      %v2897 = vpop.xlane.xlu0 %2896
      %v2898 = vadd.f32 %v2858, %v2859
      %2899 = vadd.xlane.f32.xlu0 %v2898
      %v2900 = vpop.xlane.xlu0 %2899
      %v2901 = vadd.f32 %v2860, %v2861
      %2902 = vadd.xlane.f32.xlu0 %v2901
      %v2903 = vpop.xlane.xlu0 %2902
      %v2904 = vadd.f32 %v2862, %v2863
      %2905 = vadd.xlane.f32.xlu0 %v2904
      %v2906 = vpop.xlane.xlu0 %2905
      %v2907 = vadd.f32 %v2864, %v2865
      %2908 = vadd.xlane.f32.xlu0 %v2907
      %v2909 = vpop.xlane.xlu0 %2908
      %v2910 = vadd.f32 %v2866, %v2867
      %2911 = vadd.xlane.f32.xlu0 %v2910
      %v2912 = vpop.xlane.xlu0 %2911
      %v2913 = vadd.f32 %v2868, %v2869
      %2914 = vadd.xlane.f32.xlu0 %v2913
      %v2915 = vpop.xlane.xlu0 %2914
      %v2916 = vadd.f32 %v2870, %v2871
      %2917 = vadd.xlane.f32.xlu0 %v2916
      %v2918 = vpop.xlane.xlu0 %2917
      %v2919 = vadd.f32 %v2872, %v2873
      %2920 = vadd.xlane.f32.xlu0 %v2919
      %v2921 = vpop.xlane.xlu0 %2920
      %s2922 = scalar_lea.vmem %s1, 2
      %v2923 = vld [vmem:[%s2922] ss:$8 sm:$0x3]
      %v2925 = vperm.slane %v2923, 0
      %v2926 = vperm.slane %v2923, 1
      %v2929 = vmul.f32 %v2717, %v2925
      %v2930 = vmul.f32 %v2718, %v2926
      %v2931 = vmul.f32 %v2719, %v2925
      %v2932 = vmul.f32 %v2720, %v2926
      %v2933 = vmul.f32 %v2721, %v2925
      %v2934 = vmul.f32 %v2722, %v2926
      %v2935 = vmul.f32 %v2723, %v2925
      %v2936 = vmul.f32 %v2724, %v2926
      %v2937 = vmul.f32 %v2725, %v2925
      %v2938 = vmul.f32 %v2726, %v2926
      %v2939 = vmul.f32 %v2727, %v2925
      %v2940 = vmul.f32 %v2728, %v2926
      %v2941 = vmul.f32 %v2729, %v2925
      %v2942 = vmul.f32 %v2730, %v2926
      %v2943 = vmul.f32 %v2731, %v2925
      %v2944 = vmul.f32 %v2732, %v2926
      %v2945 = vmul.f32 %v2733, %v2925
      %v2946 = vmul.f32 %v2734, %v2926
      %v2947 = vmul.f32 %v2735, %v2925
      %v2948 = vmul.f32 %v2736, %v2926
      %v2949 = vmul.f32 %v2737, %v2925
      %v2950 = vmul.f32 %v2738, %v2926
      %v2951 = vmul.f32 %v2739, %v2925
      %v2952 = vmul.f32 %v2740, %v2926
      %v2953 = vmul.f32 %v2741, %v2925
      %v2954 = vmul.f32 %v2742, %v2926
      %v2955 = vmul.f32 %v2743, %v2925
      %v2956 = vmul.f32 %v2744, %v2926
      %v2957 = vmul.f32 %v2745, %v2925
      %v2958 = vmul.f32 %v2746, %v2926
      %v2959 = vmul.f32 %v2747, %v2925
      %v2960 = vmul.f32 %v2748, %v2926
      %v2961 = vadd.f32 %v2929, %v2930
      %2962 = vadd.xlane.f32.xlu0 %v2961
      %v2963 = vpop.xlane.xlu0 %2962
      %v2964 = vadd.f32 %v2931, %v2932
      %2965 = vadd.xlane.f32.xlu0 %v2964
      %v2966 = vpop.xlane.xlu0 %2965
      %v2967 = vadd.f32 %v2933, %v2934
      %2968 = vadd.xlane.f32.xlu0 %v2967
      %v2969 = vpop.xlane.xlu0 %2968
      %v2970 = vadd.f32 %v2935, %v2936
      %2971 = vadd.xlane.f32.xlu0 %v2970
      %v2972 = vpop.xlane.xlu0 %2971
      %v2973 = vadd.f32 %v2937, %v2938
      %2974 = vadd.xlane.f32.xlu0 %v2973
      %v2975 = vpop.xlane.xlu0 %2974
      %v2976 = vadd.f32 %v2939, %v2940
      %2977 = vadd.xlane.f32.xlu0 %v2976
      %v2978 = vpop.xlane.xlu0 %2977
      %v2979 = vadd.f32 %v2941, %v2942
      %2980 = vadd.xlane.f32.xlu0 %v2979
      %v2981 = vpop.xlane.xlu0 %2980
      %v2982 = vadd.f32 %v2943, %v2944
      %2983 = vadd.xlane.f32.xlu0 %v2982
      %v2984 = vpop.xlane.xlu0 %2983
      %v2985 = vadd.f32 %v2945, %v2946
      %2986 = vadd.xlane.f32.xlu0 %v2985
      %v2987 = vpop.xlane.xlu0 %2986
      %v2988 = vadd.f32 %v2947, %v2948
      %2989 = vadd.xlane.f32.xlu0 %v2988
      %v2990 = vpop.xlane.xlu0 %2989
      %v2991 = vadd.f32 %v2949, %v2950
      %2992 = vadd.xlane.f32.xlu0 %v2991
      %v2993 = vpop.xlane.xlu0 %2992
      %v2994 = vadd.f32 %v2951, %v2952
      %2995 = vadd.xlane.f32.xlu0 %v2994
      %v2996 = vpop.xlane.xlu0 %2995
      %v2997 = vadd.f32 %v2953, %v2954
      %2998 = vadd.xlane.f32.xlu0 %v2997
      %v2999 = vpop.xlane.xlu0 %2998
      %v3000 = vadd.f32 %v2955, %v2956
      %3001 = vadd.xlane.f32.xlu0 %v3000
      %v3002 = vpop.xlane.xlu0 %3001
      %v3003 = vadd.f32 %v2957, %v2958
      %3004 = vadd.xlane.f32.xlu0 %v3003
      %v3005 = vpop.xlane.xlu0 %3004
      %v3006 = vadd.f32 %v2959, %v2960
      %3007 = vadd.xlane.f32.xlu0 %v3006
      %v3008 = vpop.xlane.xlu0 %3007
      %v3009 = vmul.f32 %v147, -19.102415
      %v3010 = vmul.f32 %v148, -19.102415
      %v3011 = vmul.f32 %v149, -19.102415
      %v3012 = vmul.f32 %v150, -19.102415
      %v3013 = vmul.f32 %v151, -19.102415
      %v3014 = vmul.f32 %v152, -19.102415
      %v3015 = vmul.f32 %v153, -19.102415
      %v3016 = vmul.f32 %v154, -19.102415
      %v3017 = vmul.f32 %v155, -19.102415
      %v3018 = vmul.f32 %v156, -19.102415
      %v3019 = vmul.f32 %v157, -19.102415
      %v3020 = vmul.f32 %v158, -19.102415
      %v3021 = vmul.f32 %v159, -19.102415
      %v3022 = vmul.f32 %v160, -19.102415
      %v3023 = vmul.f32 %v161, -19.102415
      %v3024 = vmul.f32 %v162, -19.102415
      %v3025 = vmul.f32 %v147, -0.39983332
      %v3026 = vmul.f32 %v148, -0.39983332
      %v3027 = vmul.f32 %v149, -0.39983332
      %v3028 = vmul.f32 %v150, -0.39983332
      %v3029 = vmul.f32 %v151, -0.39983332
      %v3030 = vmul.f32 %v152, -0.39983332
      %v3031 = vmul.f32 %v153, -0.39983332
      %v3032 = vmul.f32 %v154, -0.39983332
      %v3033 = vmul.f32 %v155, -0.39983332
      %v3034 = vmul.f32 %v156, -0.39983332
      %v3035 = vmul.f32 %v157, -0.39983332
      %v3036 = vmul.f32 %v158, -0.39983332
      %v3037 = vmul.f32 %v159, -0.39983332
      %v3038 = vmul.f32 %v160, -0.39983332
      %v3039 = vmul.f32 %v161, -0.39983332
      %v3040 = vmul.f32 %v162, -0.39983332
      %3057 = vrot.lane.b32.xlu0 %v3025, 127
      %v3058 = vpop.permute.xlu0 %3057
      %3059 = vrot.lane.b32.xlu0 %v3026, 127
      %v3060 = vpop.permute.xlu0 %3059
      %3061 = vrot.lane.b32.xlu0 %v3027, 127
      %v3062 = vpop.permute.xlu0 %3061
      %3063 = vrot.lane.b32.xlu0 %v3028, 127
      %v3064 = vpop.permute.xlu0 %3063
      %3065 = vrot.lane.b32.xlu0 %v3029, 127
      %v3066 = vpop.permute.xlu0 %3065
      %3067 = vrot.lane.b32.xlu0 %v3030, 127
      %v3068 = vpop.permute.xlu0 %3067
      %3069 = vrot.lane.b32.xlu0 %v3031, 127
      %v3070 = vpop.permute.xlu0 %3069
      %3071 = vrot.lane.b32.xlu0 %v3032, 127
      %v3072 = vpop.permute.xlu0 %3071
      %3073 = vrot.lane.b32.xlu0 %v3033, 127
      %v3074 = vpop.permute.xlu0 %3073
      %3075 = vrot.lane.b32.xlu0 %v3034, 127
      %v3076 = vpop.permute.xlu0 %3075
      %3077 = vrot.lane.b32.xlu0 %v3035, 127
      %v3078 = vpop.permute.xlu0 %3077
      %3079 = vrot.lane.b32.xlu0 %v3036, 127
      %v3080 = vpop.permute.xlu0 %3079
      %3081 = vrot.lane.b32.xlu0 %v3037, 127
      %v3082 = vpop.permute.xlu0 %3081
      %3083 = vrot.lane.b32.xlu0 %v3038, 127
      %v3084 = vpop.permute.xlu0 %3083
      %3085 = vrot.lane.b32.xlu0 %v3039, 127
      %v3086 = vpop.permute.xlu0 %3085
      %3087 = vrot.lane.b32.xlu0 %v3040, 127
      %v3088 = vpop.permute.xlu0 %3087
      %v3105 = vadd.f32 %v3009, %v3058
      %v3106 = vadd.f32 %v3010, %v3060
      %v3107 = vadd.f32 %v3011, %v3062
      %v3108 = vadd.f32 %v3012, %v3064
      %v3109 = vadd.f32 %v3013, %v3066
      %v3110 = vadd.f32 %v3014, %v3068
      %v3111 = vadd.f32 %v3015, %v3070
      %v3112 = vadd.f32 %v3016, %v3072
      %v3113 = vadd.f32 %v3017, %v3074
      %v3114 = vadd.f32 %v3018, %v3076
      %v3115 = vadd.f32 %v3019, %v3078
      %v3116 = vadd.f32 %v3020, %v3080
      %v3117 = vadd.f32 %v3021, %v3082
      %v3118 = vadd.f32 %v3022, %v3084
      %v3119 = vadd.f32 %v3023, %v3086
      %v3120 = vadd.f32 %v3024, %v3088
      %v3121 = vmul.f32 %v147, 9.9467535
      %v3122 = vmul.f32 %v148, 9.9467535
      %v3123 = vmul.f32 %v149, 9.9467535
      %v3124 = vmul.f32 %v150, 9.9467535
      %v3125 = vmul.f32 %v151, 9.9467535
      %v3126 = vmul.f32 %v152, 9.9467535
      %v3127 = vmul.f32 %v153, 9.9467535
      %v3128 = vmul.f32 %v154, 9.9467535
      %v3129 = vmul.f32 %v155, 9.9467535
      %v3130 = vmul.f32 %v156, 9.9467535
      %v3131 = vmul.f32 %v157, 9.9467535
      %v3132 = vmul.f32 %v158, 9.9467535
      %v3133 = vmul.f32 %v159, 9.9467535
      %v3134 = vmul.f32 %v160, 9.9467535
      %v3135 = vmul.f32 %v161, 9.9467535
      %v3136 = vmul.f32 %v162, 9.9467535
      %3153 = vrot.lane.b32.xlu0 %v3121, 126
      %v3154 = vpop.permute.xlu0 %3153
      %3155 = vrot.lane.b32.xlu0 %v3122, 126
      %v3156 = vpop.permute.xlu0 %3155
      %3157 = vrot.lane.b32.xlu0 %v3123, 126
      %v3158 = vpop.permute.xlu0 %3157
      %3159 = vrot.lane.b32.xlu0 %v3124, 126
      %v3160 = vpop.permute.xlu0 %3159
      %3161 = vrot.lane.b32.xlu0 %v3125, 126
      %v3162 = vpop.permute.xlu0 %3161
      %3163 = vrot.lane.b32.xlu0 %v3126, 126
      %v3164 = vpop.permute.xlu0 %3163
      %3165 = vrot.lane.b32.xlu0 %v3127, 126
      %v3166 = vpop.permute.xlu0 %3165
      %3167 = vrot.lane.b32.xlu0 %v3128, 126
      %v3168 = vpop.permute.xlu0 %3167
      %3169 = vrot.lane.b32.xlu0 %v3129, 126
      %v3170 = vpop.permute.xlu0 %3169
      %3171 = vrot.lane.b32.xlu0 %v3130, 126
      %v3172 = vpop.permute.xlu0 %3171
      %3173 = vrot.lane.b32.xlu0 %v3131, 126
      %v3174 = vpop.permute.xlu0 %3173
      %3175 = vrot.lane.b32.xlu0 %v3132, 126
      %v3176 = vpop.permute.xlu0 %3175
      %3177 = vrot.lane.b32.xlu0 %v3133, 126
      %v3178 = vpop.permute.xlu0 %3177
      %3179 = vrot.lane.b32.xlu0 %v3134, 126
      %v3180 = vpop.permute.xlu0 %3179
      %3181 = vrot.lane.b32.xlu0 %v3135, 126
      %v3182 = vpop.permute.xlu0 %3181
      %3183 = vrot.lane.b32.xlu0 %v3136, 126
      %v3184 = vpop.permute.xlu0 %3183
      %v3201 = vadd.f32 %v3105, %v3154
      %v3202 = vadd.f32 %v3106, %v3156
      %v3203 = vadd.f32 %v3107, %v3158
      %v3204 = vadd.f32 %v3108, %v3160
      %v3205 = vadd.f32 %v3109, %v3162
      %v3206 = vadd.f32 %v3110, %v3164
      %v3207 = vadd.f32 %v3111, %v3166
      %v3208 = vadd.f32 %v3112, %v3168
      %v3209 = vadd.f32 %v3113, %v3170
      %v3210 = vadd.f32 %v3114, %v3172
      %v3211 = vadd.f32 %v3115, %v3174
      %v3212 = vadd.f32 %v3116, %v3176
      %v3213 = vadd.f32 %v3117, %v3178
      %v3214 = vadd.f32 %v3118, %v3180
      %v3215 = vadd.f32 %v3119, %v3182
      %v3216 = vadd.f32 %v3120, %v3184
      %v3217 = vadd.f32 %v3201, 2.3280413
      %v3218 = vadd.f32 %v3202, 2.3280413
      %v3219 = vadd.f32 %v3203, 2.3280413
      %v3220 = vadd.f32 %v3204, 2.3280413
      %v3221 = vadd.f32 %v3205, 2.3280413
      %v3222 = vadd.f32 %v3206, 2.3280413
      %v3223 = vadd.f32 %v3207, 2.3280413
      %v3224 = vadd.f32 %v3208, 2.3280413
      %v3225 = vadd.f32 %v3209, 2.3280413
      %v3226 = vadd.f32 %v3210, 2.3280413
      %v3227 = vadd.f32 %v3211, 2.3280413
      %v3228 = vadd.f32 %v3212, 2.3280413
      %v3229 = vadd.f32 %v3213, 2.3280413
      %v3230 = vadd.f32 %v3214, 2.3280413
      %v3231 = vadd.f32 %v3215, 2.3280413
      %v3232 = vadd.f32 %v3216, 2.3280413
      %v3233 = vmul.f32 %v147, 0.897461
      %v3234 = vmul.f32 %v148, 0.897461
      %v3235 = vmul.f32 %v149, 0.897461
      %v3236 = vmul.f32 %v150, 0.897461
      %v3237 = vmul.f32 %v151, 0.897461
      %v3238 = vmul.f32 %v152, 0.897461
      %v3239 = vmul.f32 %v153, 0.897461
      %v3240 = vmul.f32 %v154, 0.897461
      %v3241 = vmul.f32 %v155, 0.897461
      %v3242 = vmul.f32 %v156, 0.897461
      %v3243 = vmul.f32 %v157, 0.897461
      %v3244 = vmul.f32 %v158, 0.897461
      %v3245 = vmul.f32 %v159, 0.897461
      %v3246 = vmul.f32 %v160, 0.897461
      %v3247 = vmul.f32 %v161, 0.897461
      %v3248 = vmul.f32 %v162, 0.897461
      %v3249 = vmul.f32 %v147, 19.575172
      %v3250 = vmul.f32 %v148, 19.575172
      %v3251 = vmul.f32 %v149, 19.575172
      %v3252 = vmul.f32 %v150, 19.575172
      %v3253 = vmul.f32 %v151, 19.575172
      %v3254 = vmul.f32 %v152, 19.575172
      %v3255 = vmul.f32 %v153, 19.575172
      %v3256 = vmul.f32 %v154, 19.575172
      %v3257 = vmul.f32 %v155, 19.575172
      %v3258 = vmul.f32 %v156, 19.575172
      %v3259 = vmul.f32 %v157, 19.575172
      %v3260 = vmul.f32 %v158, 19.575172
      %v3261 = vmul.f32 %v159, 19.575172
      %v3262 = vmul.f32 %v160, 19.575172
      %v3263 = vmul.f32 %v161, 19.575172
      %v3264 = vmul.f32 %v162, 19.575172
      %3281 = vrot.lane.b32.xlu0 %v3249, 127
      %v3282 = vpop.permute.xlu0 %3281
      %3283 = vrot.lane.b32.xlu0 %v3250, 127
      %v3284 = vpop.permute.xlu0 %3283
      %3285 = vrot.lane.b32.xlu0 %v3251, 127
      %v3286 = vpop.permute.xlu0 %3285
      %3287 = vrot.lane.b32.xlu0 %v3252, 127
      %v3288 = vpop.permute.xlu0 %3287
      %3289 = vrot.lane.b32.xlu0 %v3253, 127
      %v3290 = vpop.permute.xlu0 %3289
      %3291 = vrot.lane.b32.xlu0 %v3254, 127
      %v3292 = vpop.permute.xlu0 %3291
      %3293 = vrot.lane.b32.xlu0 %v3255, 127
      %v3294 = vpop.permute.xlu0 %3293
      %3295 = vrot.lane.b32.xlu0 %v3256, 127
      %v3296 = vpop.permute.xlu0 %3295
      %3297 = vrot.lane.b32.xlu0 %v3257, 127
      %v3298 = vpop.permute.xlu0 %3297
      %3299 = vrot.lane.b32.xlu0 %v3258, 127
      %v3300 = vpop.permute.xlu0 %3299
      %3301 = vrot.lane.b32.xlu0 %v3259, 127
      %v3302 = vpop.permute.xlu0 %3301
      %3303 = vrot.lane.b32.xlu0 %v3260, 127
      %v3304 = vpop.permute.xlu0 %3303
      %3305 = vrot.lane.b32.xlu0 %v3261, 127
      %v3306 = vpop.permute.xlu0 %3305
      %3307 = vrot.lane.b32.xlu0 %v3262, 127
      %v3308 = vpop.permute.xlu0 %3307
      %3309 = vrot.lane.b32.xlu0 %v3263, 127
      %v3310 = vpop.permute.xlu0 %3309
      %3311 = vrot.lane.b32.xlu0 %v3264, 127
      %v3312 = vpop.permute.xlu0 %3311
      %v3329 = vadd.f32 %v3233, %v3282
      %v3330 = vadd.f32 %v3234, %v3284
      %v3331 = vadd.f32 %v3235, %v3286
      %v3332 = vadd.f32 %v3236, %v3288
      %v3333 = vadd.f32 %v3237, %v3290
      %v3334 = vadd.f32 %v3238, %v3292
      %v3335 = vadd.f32 %v3239, %v3294
      %v3336 = vadd.f32 %v3240, %v3296
      %v3337 = vadd.f32 %v3241, %v3298
      %v3338 = vadd.f32 %v3242, %v3300
      %v3339 = vadd.f32 %v3243, %v3302
      %v3340 = vadd.f32 %v3244, %v3304
      %v3341 = vadd.f32 %v3245, %v3306
      %v3342 = vadd.f32 %v3246, %v3308
      %v3343 = vadd.f32 %v3247, %v3310
      %v3344 = vadd.f32 %v3248, %v3312
      %v3345 = vmul.f32 %v147, 8.9446745
      %v3346 = vmul.f32 %v148, 8.9446745
      %v3347 = vmul.f32 %v149, 8.9446745
      %v3348 = vmul.f32 %v150, 8.9446745
      %v3349 = vmul.f32 %v151, 8.9446745
      %v3350 = vmul.f32 %v152, 8.9446745
      %v3351 = vmul.f32 %v153, 8.9446745
      %v3352 = vmul.f32 %v154, 8.9446745
      %v3353 = vmul.f32 %v155, 8.9446745
      %v3354 = vmul.f32 %v156, 8.9446745
      %v3355 = vmul.f32 %v157, 8.9446745
      %v3356 = vmul.f32 %v158, 8.9446745
      %v3357 = vmul.f32 %v159, 8.9446745
      %v3358 = vmul.f32 %v160, 8.9446745
      %v3359 = vmul.f32 %v161, 8.9446745
      %v3360 = vmul.f32 %v162, 8.9446745
      %3377 = vrot.lane.b32.xlu0 %v3345, 126
      %v3378 = vpop.permute.xlu0 %3377
      %3379 = vrot.lane.b32.xlu0 %v3346, 126
      %v3380 = vpop.permute.xlu0 %3379
      %3381 = vrot.lane.b32.xlu0 %v3347, 126
      %v3382 = vpop.permute.xlu0 %3381
      %3383 = vrot.lane.b32.xlu0 %v3348, 126
      %v3384 = vpop.permute.xlu0 %3383
      %3385 = vrot.lane.b32.xlu0 %v3349, 126
      %v3386 = vpop.permute.xlu0 %3385
      %3387 = vrot.lane.b32.xlu0 %v3350, 126
      %v3388 = vpop.permute.xlu0 %3387
      %3389 = vrot.lane.b32.xlu0 %v3351, 126
      %v3390 = vpop.permute.xlu0 %3389
      %3391 = vrot.lane.b32.xlu0 %v3352, 126
      %v3392 = vpop.permute.xlu0 %3391
      %3393 = vrot.lane.b32.xlu0 %v3353, 126
      %v3394 = vpop.permute.xlu0 %3393
      %3395 = vrot.lane.b32.xlu0 %v3354, 126
      %v3396 = vpop.permute.xlu0 %3395
      %3397 = vrot.lane.b32.xlu0 %v3355, 126
      %v3398 = vpop.permute.xlu0 %3397
      %3399 = vrot.lane.b32.xlu0 %v3356, 126
      %v3400 = vpop.permute.xlu0 %3399
      %3401 = vrot.lane.b32.xlu0 %v3357, 126
      %v3402 = vpop.permute.xlu0 %3401
      %3403 = vrot.lane.b32.xlu0 %v3358, 126
      %v3404 = vpop.permute.xlu0 %3403
      %3405 = vrot.lane.b32.xlu0 %v3359, 126
      %v3406 = vpop.permute.xlu0 %3405
      %3407 = vrot.lane.b32.xlu0 %v3360, 126
      %v3408 = vpop.permute.xlu0 %3407
      %v3425 = vadd.f32 %v3329, %v3378
      %v3426 = vadd.f32 %v3330, %v3380
      %v3427 = vadd.f32 %v3331, %v3382
      %v3428 = vadd.f32 %v3332, %v3384
      %v3429 = vadd.f32 %v3333, %v3386
      %v3430 = vadd.f32 %v3334, %v3388
      %v3431 = vadd.f32 %v3335, %v3390
      %v3432 = vadd.f32 %v3336, %v3392
      %v3433 = vadd.f32 %v3337, %v3394
      %v3434 = vadd.f32 %v3338, %v3396
      %v3435 = vadd.f32 %v3339, %v3398
      %v3436 = vadd.f32 %v3340, %v3400
      %v3437 = vadd.f32 %v3341, %v3402
      %v3438 = vadd.f32 %v3342, %v3404
      %v3439 = vadd.f32 %v3343, %v3406
      %v3440 = vadd.f32 %v3344, %v3408
      %v3441 = vadd.f32 %v3425, 1.3756644
      %v3442 = vadd.f32 %v3426, 1.3756644
      %v3443 = vadd.f32 %v3427, 1.3756644
      %v3444 = vadd.f32 %v3428, 1.3756644
      %v3445 = vadd.f32 %v3429, 1.3756644
      %v3446 = vadd.f32 %v3430, 1.3756644
      %v3447 = vadd.f32 %v3431, 1.3756644
      %v3448 = vadd.f32 %v3432, 1.3756644
      %v3449 = vadd.f32 %v3433, 1.3756644
      %v3450 = vadd.f32 %v3434, 1.3756644
      %v3451 = vadd.f32 %v3435, 1.3756644
      %v3452 = vadd.f32 %v3436, 1.3756644
      %v3453 = vadd.f32 %v3437, 1.3756644
      %v3454 = vadd.f32 %v3438, 1.3756644
      %v3455 = vadd.f32 %v3439, 1.3756644
      %v3456 = vadd.f32 %v3440, 1.3756644
      %v3457 = vmul.f32 %v147, 0.09970865
      %v3458 = vmul.f32 %v148, 0.09970865
      %v3459 = vmul.f32 %v149, 0.09970865
      %v3460 = vmul.f32 %v150, 0.09970865
      %v3461 = vmul.f32 %v151, 0.09970865
      %v3462 = vmul.f32 %v152, 0.09970865
      %v3463 = vmul.f32 %v153, 0.09970865
      %v3464 = vmul.f32 %v154, 0.09970865
      %v3465 = vmul.f32 %v155, 0.09970865
      %v3466 = vmul.f32 %v156, 0.09970865
      %v3467 = vmul.f32 %v157, 0.09970865
      %v3468 = vmul.f32 %v158, 0.09970865
      %v3469 = vmul.f32 %v159, 0.09970865
      %v3470 = vmul.f32 %v160, 0.09970865
      %v3471 = vmul.f32 %v161, 0.09970865
      %v3472 = vmul.f32 %v162, 0.09970865
      %v3473 = vmul.f32 %v147, -0.049979165
      %v3474 = vmul.f32 %v148, -0.049979165
      %v3475 = vmul.f32 %v149, -0.049979165
      %v3476 = vmul.f32 %v150, -0.049979165
      %v3477 = vmul.f32 %v151, -0.049979165
      %v3478 = vmul.f32 %v152, -0.049979165
      %v3479 = vmul.f32 %v153, -0.049979165
      %v3480 = vmul.f32 %v154, -0.049979165
      %v3481 = vmul.f32 %v155, -0.049979165
      %v3482 = vmul.f32 %v156, -0.049979165
      %v3483 = vmul.f32 %v157, -0.049979165
      %v3484 = vmul.f32 %v158, -0.049979165
      %v3485 = vmul.f32 %v159, -0.049979165
      %v3486 = vmul.f32 %v160, -0.049979165
      %v3487 = vmul.f32 %v161, -0.049979165
      %v3488 = vmul.f32 %v162, -0.049979165
      %3505 = vrot.lane.b32.xlu0 %v3473, 127
      %v3506 = vpop.permute.xlu0 %3505
      %3507 = vrot.lane.b32.xlu0 %v3474, 127
      %v3508 = vpop.permute.xlu0 %3507
      %3509 = vrot.lane.b32.xlu0 %v3475, 127
      %v3510 = vpop.permute.xlu0 %3509
      %3511 = vrot.lane.b32.xlu0 %v3476, 127
      %v3512 = vpop.permute.xlu0 %3511
      %3513 = vrot.lane.b32.xlu0 %v3477, 127
      %v3514 = vpop.permute.xlu0 %3513
      %3515 = vrot.lane.b32.xlu0 %v3478, 127
      %v3516 = vpop.permute.xlu0 %3515
      %3517 = vrot.lane.b32.xlu0 %v3479, 127
      %v3518 = vpop.permute.xlu0 %3517
      %3519 = vrot.lane.b32.xlu0 %v3480, 127
      %v3520 = vpop.permute.xlu0 %3519
      %3521 = vrot.lane.b32.xlu0 %v3481, 127
      %v3522 = vpop.permute.xlu0 %3521
      %3523 = vrot.lane.b32.xlu0 %v3482, 127
      %v3524 = vpop.permute.xlu0 %3523
      %3525 = vrot.lane.b32.xlu0 %v3483, 127
      %v3526 = vpop.permute.xlu0 %3525
      %3527 = vrot.lane.b32.xlu0 %v3484, 127
      %v3528 = vpop.permute.xlu0 %3527
      %3529 = vrot.lane.b32.xlu0 %v3485, 127
      %v3530 = vpop.permute.xlu0 %3529
      %3531 = vrot.lane.b32.xlu0 %v3486, 127
      %v3532 = vpop.permute.xlu0 %3531
      %3533 = vrot.lane.b32.xlu0 %v3487, 127
      %v3534 = vpop.permute.xlu0 %3533
      %3535 = vrot.lane.b32.xlu0 %v3488, 127
      %v3536 = vpop.permute.xlu0 %3535
      %v3553 = vadd.f32 %v3457, %v3506
      %v3554 = vadd.f32 %v3458, %v3508
      %v3555 = vadd.f32 %v3459, %v3510
      %v3556 = vadd.f32 %v3460, %v3512
      %v3557 = vadd.f32 %v3461, %v3514
      %v3558 = vadd.f32 %v3462, %v3516
      %v3559 = vadd.f32 %v3463, %v3518
      %v3560 = vadd.f32 %v3464, %v3520
      %v3561 = vadd.f32 %v3465, %v3522
      %v3562 = vadd.f32 %v3466, %v3524
      %v3563 = vadd.f32 %v3467, %v3526
      %v3564 = vadd.f32 %v3468, %v3528
      %v3565 = vadd.f32 %v3469, %v3530
      %v3566 = vadd.f32 %v3470, %v3532
      %v3567 = vadd.f32 %v3471, %v3534
      %v3568 = vadd.f32 %v3472, %v3536
      %v3569 = vmul.f32 %v147, 0.99376065
      %v3570 = vmul.f32 %v148, 0.99376065
      %v3571 = vmul.f32 %v149, 0.99376065
      %v3572 = vmul.f32 %v150, 0.99376065
      %v3573 = vmul.f32 %v151, 0.99376065
      %v3574 = vmul.f32 %v152, 0.99376065
      %v3575 = vmul.f32 %v153, 0.99376065
      %v3576 = vmul.f32 %v154, 0.99376065
      %v3577 = vmul.f32 %v155, 0.99376065
      %v3578 = vmul.f32 %v156, 0.99376065
      %v3579 = vmul.f32 %v157, 0.99376065
      %v3580 = vmul.f32 %v158, 0.99376065
      %v3581 = vmul.f32 %v159, 0.99376065
      %v3582 = vmul.f32 %v160, 0.99376065
      %v3583 = vmul.f32 %v161, 0.99376065
      %v3584 = vmul.f32 %v162, 0.99376065
      %3601 = vrot.lane.b32.xlu0 %v3569, 126
      %v3602 = vpop.permute.xlu0 %3601
      %3603 = vrot.lane.b32.xlu0 %v3570, 126
      %v3604 = vpop.permute.xlu0 %3603
      %3605 = vrot.lane.b32.xlu0 %v3571, 126
      %v3606 = vpop.permute.xlu0 %3605
      %3607 = vrot.lane.b32.xlu0 %v3572, 126
      %v3608 = vpop.permute.xlu0 %3607
      %3609 = vrot.lane.b32.xlu0 %v3573, 126
      %v3610 = vpop.permute.xlu0 %3609
      %3611 = vrot.lane.b32.xlu0 %v3574, 126
      %v3612 = vpop.permute.xlu0 %3611
      %3613 = vrot.lane.b32.xlu0 %v3575, 126
      %v3614 = vpop.permute.xlu0 %3613
      %3615 = vrot.lane.b32.xlu0 %v3576, 126
      %v3616 = vpop.permute.xlu0 %3615
      %3617 = vrot.lane.b32.xlu0 %v3577, 126
      %v3618 = vpop.permute.xlu0 %3617
      %3619 = vrot.lane.b32.xlu0 %v3578, 126
      %v3620 = vpop.permute.xlu0 %3619
      %3621 = vrot.lane.b32.xlu0 %v3579, 126
      %v3622 = vpop.permute.xlu0 %3621
      %3623 = vrot.lane.b32.xlu0 %v3580, 126
      %v3624 = vpop.permute.xlu0 %3623
      %3625 = vrot.lane.b32.xlu0 %v3581, 126
      %v3626 = vpop.permute.xlu0 %3625
      %3627 = vrot.lane.b32.xlu0 %v3582, 126
      %v3628 = vpop.permute.xlu0 %3627
      %3629 = vrot.lane.b32.xlu0 %v3583, 126
      %v3630 = vpop.permute.xlu0 %3629
      %3631 = vrot.lane.b32.xlu0 %v3584, 126
      %v3632 = vpop.permute.xlu0 %3631
      %v3649 = vadd.f32 %v3553, %v3602
      %v3650 = vadd.f32 %v3554, %v3604
      %v3651 = vadd.f32 %v3555, %v3606
      %v3652 = vadd.f32 %v3556, %v3608
      %v3653 = vadd.f32 %v3557, %v3610
      %v3654 = vadd.f32 %v3558, %v3612
      %v3655 = vadd.f32 %v3559, %v3614
      %v3656 = vadd.f32 %v3560, %v3616
      %v3657 = vadd.f32 %v3561, %v3618
      %v3658 = vadd.f32 %v3562, %v3620
      %v3659 = vadd.f32 %v3563, %v3622
      %v3660 = vadd.f32 %v3564, %v3624
      %v3661 = vadd.f32 %v3565, %v3626
      %v3662 = vadd.f32 %v3566, %v3628
      %v3663 = vadd.f32 %v3567, %v3630
      %v3664 = vadd.f32 %v3568, %v3632
      %v3665 = vadd.f32 %v3649, -0.069642246
      %v3666 = vadd.f32 %v3650, -0.069642246
      %v3667 = vadd.f32 %v3651, -0.069642246
      %v3668 = vadd.f32 %v3652, -0.069642246
      %v3669 = vadd.f32 %v3653, -0.069642246
      %v3670 = vadd.f32 %v3654, -0.069642246
      %v3671 = vadd.f32 %v3655, -0.069642246
      %v3672 = vadd.f32 %v3656, -0.069642246
      %v3673 = vadd.f32 %v3657, -0.069642246
      %v3674 = vadd.f32 %v3658, -0.069642246
      %v3675 = vadd.f32 %v3659, -0.069642246
      %v3676 = vadd.f32 %v3660, -0.069642246
      %v3677 = vadd.f32 %v3661, -0.069642246
      %v3678 = vadd.f32 %v3662, -0.069642246
      %v3679 = vadd.f32 %v3663, -0.069642246
      %v3680 = vadd.f32 %v3664, -0.069642246
      %v3681 = vrcp.pop %v3665
      %v3682 = vmul.f32 %v3665, %v3681
      %v3683 = vsub.f32 1.0, %v3682
      %v3684 = vmul.f32 %v3681, %v3683
      %v3685 = vadd.f32 %v3681, %v3684
      %vm3686 = vweird.f32 %v3665
      %vm3687 = vweird.f32 %v3681
      %vm3688 = vmor %vm3686, %vm3687
      %v3689 = vsel %vm3688, %v3681, %v3685
      %v3690 = vand.u32 2147483647, %v3665
      %vm3691 = vcmp.eq.f32.partialorder %v3690, 8.507059e+37
      %v3692 = vand.u32 %v3665, 2147483648
      %v3693 = vor.u32 1.1754944e-38, %v3692
      %v3694 = vsel %vm3691, %v3693, %v3689
      %v3695 = vmul.f32 %v3217, %v3694
      %v3696 = vrcp.pop %v3666
      %v3697 = vmul.f32 %v3666, %v3696
      %v3698 = vsub.f32 1.0, %v3697
      %v3699 = vmul.f32 %v3696, %v3698
      %v3700 = vadd.f32 %v3696, %v3699
      %vm3701 = vweird.f32 %v3666
      %vm3702 = vweird.f32 %v3696
      %vm3703 = vmor %vm3701, %vm3702
      %v3704 = vsel %vm3703, %v3696, %v3700
      %v3705 = vand.u32 2147483647, %v3666
      %vm3706 = vcmp.eq.f32.partialorder %v3705, 8.507059e+37
      %v3707 = vand.u32 %v3666, 2147483648
      %v3708 = vor.u32 1.1754944e-38, %v3707
      %v3709 = vsel %vm3706, %v3708, %v3704
      %v3710 = vmul.f32 %v3218, %v3709
      %v3711 = vrcp.pop %v3667
      %v3712 = vmul.f32 %v3667, %v3711
      %v3713 = vsub.f32 1.0, %v3712
      %v3714 = vmul.f32 %v3711, %v3713
      %v3715 = vadd.f32 %v3711, %v3714
      %vm3716 = vweird.f32 %v3667
      %vm3717 = vweird.f32 %v3711
      %vm3718 = vmor %vm3716, %vm3717
      %v3719 = vsel %vm3718, %v3711, %v3715
      %v3720 = vand.u32 2147483647, %v3667
      %vm3721 = vcmp.eq.f32.partialorder %v3720, 8.507059e+37
      %v3722 = vand.u32 %v3667, 2147483648
      %v3723 = vor.u32 1.1754944e-38, %v3722
      %v3724 = vsel %vm3721, %v3723, %v3719
      %v3725 = vmul.f32 %v3219, %v3724
      %v3726 = vrcp.pop %v3668
      %v3727 = vmul.f32 %v3668, %v3726
      %v3728 = vsub.f32 1.0, %v3727
      %v3729 = vmul.f32 %v3726, %v3728
      %v3730 = vadd.f32 %v3726, %v3729
      %vm3731 = vweird.f32 %v3668
      %vm3732 = vweird.f32 %v3726
      %vm3733 = vmor %vm3731, %vm3732
      %v3734 = vsel %vm3733, %v3726, %v3730
      %v3735 = vand.u32 2147483647, %v3668
      %vm3736 = vcmp.eq.f32.partialorder %v3735, 8.507059e+37
      %v3737 = vand.u32 %v3668, 2147483648
      %v3738 = vor.u32 1.1754944e-38, %v3737
      %v3739 = vsel %vm3736, %v3738, %v3734
      %v3740 = vmul.f32 %v3220, %v3739
      %v3741 = vrcp.pop %v3669
      %v3742 = vmul.f32 %v3669, %v3741
      %v3743 = vsub.f32 1.0, %v3742
      %v3744 = vmul.f32 %v3741, %v3743
      %v3745 = vadd.f32 %v3741, %v3744
      %vm3746 = vweird.f32 %v3669
      %vm3747 = vweird.f32 %v3741
      %vm3748 = vmor %vm3746, %vm3747
      %v3749 = vsel %vm3748, %v3741, %v3745
      %v3750 = vand.u32 2147483647, %v3669
      %vm3751 = vcmp.eq.f32.partialorder %v3750, 8.507059e+37
      %v3752 = vand.u32 %v3669, 2147483648
      %v3753 = vor.u32 1.1754944e-38, %v3752
      %v3754 = vsel %vm3751, %v3753, %v3749
      %v3755 = vmul.f32 %v3221, %v3754
      %v3756 = vrcp.pop %v3670
      %v3757 = vmul.f32 %v3670, %v3756
      %v3758 = vsub.f32 1.0, %v3757
      %v3759 = vmul.f32 %v3756, %v3758
      %v3760 = vadd.f32 %v3756, %v3759
      %vm3761 = vweird.f32 %v3670
      %vm3762 = vweird.f32 %v3756
      %vm3763 = vmor %vm3761, %vm3762
      %v3764 = vsel %vm3763, %v3756, %v3760
      %v3765 = vand.u32 2147483647, %v3670
      %vm3766 = vcmp.eq.f32.partialorder %v3765, 8.507059e+37
      %v3767 = vand.u32 %v3670, 2147483648
      %v3768 = vor.u32 1.1754944e-38, %v3767
      %v3769 = vsel %vm3766, %v3768, %v3764
      %v3770 = vmul.f32 %v3222, %v3769
      %v3771 = vrcp.pop %v3671
      %v3772 = vmul.f32 %v3671, %v3771
      %v3773 = vsub.f32 1.0, %v3772
      %v3774 = vmul.f32 %v3771, %v3773
      %v3775 = vadd.f32 %v3771, %v3774
      %vm3776 = vweird.f32 %v3671
      %vm3777 = vweird.f32 %v3771
      %vm3778 = vmor %vm3776, %vm3777
      %v3779 = vsel %vm3778, %v3771, %v3775
      %v3780 = vand.u32 2147483647, %v3671
      %vm3781 = vcmp.eq.f32.partialorder %v3780, 8.507059e+37
      %v3782 = vand.u32 %v3671, 2147483648
      %v3783 = vor.u32 1.1754944e-38, %v3782
      %v3784 = vsel %vm3781, %v3783, %v3779
      %v3785 = vmul.f32 %v3223, %v3784
      %v3786 = vrcp.pop %v3672
      %v3787 = vmul.f32 %v3672, %v3786
      %v3788 = vsub.f32 1.0, %v3787
      %v3789 = vmul.f32 %v3786, %v3788
      %v3790 = vadd.f32 %v3786, %v3789
      %vm3791 = vweird.f32 %v3672
      %vm3792 = vweird.f32 %v3786
      %vm3793 = vmor %vm3791, %vm3792
      %v3794 = vsel %vm3793, %v3786, %v3790
      %v3795 = vand.u32 2147483647, %v3672
      %vm3796 = vcmp.eq.f32.partialorder %v3795, 8.507059e+37
      %v3797 = vand.u32 %v3672, 2147483648
      %v3798 = vor.u32 1.1754944e-38, %v3797
      %v3799 = vsel %vm3796, %v3798, %v3794
      %v3800 = vmul.f32 %v3224, %v3799
      %v3801 = vrcp.pop %v3673
      %v3802 = vmul.f32 %v3673, %v3801
      %v3803 = vsub.f32 1.0, %v3802
      %v3804 = vmul.f32 %v3801, %v3803
      %v3805 = vadd.f32 %v3801, %v3804
      %vm3806 = vweird.f32 %v3673
      %vm3807 = vweird.f32 %v3801
      %vm3808 = vmor %vm3806, %vm3807
      %v3809 = vsel %vm3808, %v3801, %v3805
      %v3810 = vand.u32 2147483647, %v3673
      %vm3811 = vcmp.eq.f32.partialorder %v3810, 8.507059e+37
      %v3812 = vand.u32 %v3673, 2147483648
      %v3813 = vor.u32 1.1754944e-38, %v3812
      %v3814 = vsel %vm3811, %v3813, %v3809
      %v3815 = vmul.f32 %v3225, %v3814
      %v3816 = vrcp.pop %v3674
      %v3817 = vmul.f32 %v3674, %v3816
      %v3818 = vsub.f32 1.0, %v3817
      %v3819 = vmul.f32 %v3816, %v3818
      %v3820 = vadd.f32 %v3816, %v3819
      %vm3821 = vweird.f32 %v3674
      %vm3822 = vweird.f32 %v3816
      %vm3823 = vmor %vm3821, %vm3822
      %v3824 = vsel %vm3823, %v3816, %v3820
      %v3825 = vand.u32 2147483647, %v3674
      %vm3826 = vcmp.eq.f32.partialorder %v3825, 8.507059e+37
      %v3827 = vand.u32 %v3674, 2147483648
      %v3828 = vor.u32 1.1754944e-38, %v3827
      %v3829 = vsel %vm3826, %v3828, %v3824
      %v3830 = vmul.f32 %v3226, %v3829
      %v3831 = vrcp.pop %v3675
      %v3832 = vmul.f32 %v3675, %v3831
      %v3833 = vsub.f32 1.0, %v3832
      %v3834 = vmul.f32 %v3831, %v3833
      %v3835 = vadd.f32 %v3831, %v3834
      %vm3836 = vweird.f32 %v3675
      %vm3837 = vweird.f32 %v3831
      %vm3838 = vmor %vm3836, %vm3837
      %v3839 = vsel %vm3838, %v3831, %v3835
      %v3840 = vand.u32 2147483647, %v3675
      %vm3841 = vcmp.eq.f32.partialorder %v3840, 8.507059e+37
      %v3842 = vand.u32 %v3675, 2147483648
      %v3843 = vor.u32 1.1754944e-38, %v3842
      %v3844 = vsel %vm3841, %v3843, %v3839
      %v3845 = vmul.f32 %v3227, %v3844
      %v3846 = vrcp.pop %v3676
      %v3847 = vmul.f32 %v3676, %v3846
      %v3848 = vsub.f32 1.0, %v3847
      %v3849 = vmul.f32 %v3846, %v3848
      %v3850 = vadd.f32 %v3846, %v3849
      %vm3851 = vweird.f32 %v3676
      %vm3852 = vweird.f32 %v3846
      %vm3853 = vmor %vm3851, %vm3852
      %v3854 = vsel %vm3853, %v3846, %v3850
      %v3855 = vand.u32 2147483647, %v3676
      %vm3856 = vcmp.eq.f32.partialorder %v3855, 8.507059e+37
      %v3857 = vand.u32 %v3676, 2147483648
      %v3858 = vor.u32 1.1754944e-38, %v3857
      %v3859 = vsel %vm3856, %v3858, %v3854
      %v3860 = vmul.f32 %v3228, %v3859
      %v3861 = vrcp.pop %v3677
      %v3862 = vmul.f32 %v3677, %v3861
      %v3863 = vsub.f32 1.0, %v3862
      %v3864 = vmul.f32 %v3861, %v3863
      %v3865 = vadd.f32 %v3861, %v3864
      %vm3866 = vweird.f32 %v3677
      %vm3867 = vweird.f32 %v3861
      %vm3868 = vmor %vm3866, %vm3867
      %v3869 = vsel %vm3868, %v3861, %v3865
      %v3870 = vand.u32 2147483647, %v3677
      %vm3871 = vcmp.eq.f32.partialorder %v3870, 8.507059e+37
      %v3872 = vand.u32 %v3677, 2147483648
      %v3873 = vor.u32 1.1754944e-38, %v3872
      %v3874 = vsel %vm3871, %v3873, %v3869
      %v3875 = vmul.f32 %v3229, %v3874
      %v3876 = vrcp.pop %v3678
      %v3877 = vmul.f32 %v3678, %v3876
      %v3878 = vsub.f32 1.0, %v3877
      %v3879 = vmul.f32 %v3876, %v3878
      %v3880 = vadd.f32 %v3876, %v3879
      %vm3881 = vweird.f32 %v3678
      %vm3882 = vweird.f32 %v3876
      %vm3883 = vmor %vm3881, %vm3882
      %v3884 = vsel %vm3883, %v3876, %v3880
      %v3885 = vand.u32 2147483647, %v3678
      %vm3886 = vcmp.eq.f32.partialorder %v3885, 8.507059e+37
      %v3887 = vand.u32 %v3678, 2147483648
      %v3888 = vor.u32 1.1754944e-38, %v3887
      %v3889 = vsel %vm3886, %v3888, %v3884
      %v3890 = vmul.f32 %v3230, %v3889
      %v3891 = vrcp.pop %v3679
      %v3892 = vmul.f32 %v3679, %v3891
      %v3893 = vsub.f32 1.0, %v3892
      %v3894 = vmul.f32 %v3891, %v3893
      %v3895 = vadd.f32 %v3891, %v3894
      %vm3896 = vweird.f32 %v3679
      %vm3897 = vweird.f32 %v3891
      %vm3898 = vmor %vm3896, %vm3897
      %v3899 = vsel %vm3898, %v3891, %v3895
      %v3900 = vand.u32 2147483647, %v3679
      %vm3901 = vcmp.eq.f32.partialorder %v3900, 8.507059e+37
      %v3902 = vand.u32 %v3679, 2147483648
      %v3903 = vor.u32 1.1754944e-38, %v3902
      %v3904 = vsel %vm3901, %v3903, %v3899
      %v3905 = vmul.f32 %v3231, %v3904
      %v3906 = vrcp.pop %v3680
      %v3907 = vmul.f32 %v3680, %v3906
      %v3908 = vsub.f32 1.0, %v3907
      %v3909 = vmul.f32 %v3906, %v3908
      %v3910 = vadd.f32 %v3906, %v3909
      %vm3911 = vweird.f32 %v3680
      %vm3912 = vweird.f32 %v3906
      %vm3913 = vmor %vm3911, %vm3912
      %v3914 = vsel %vm3913, %v3906, %v3910
      %v3915 = vand.u32 2147483647, %v3680
      %vm3916 = vcmp.eq.f32.partialorder %v3915, 8.507059e+37
      %v3917 = vand.u32 %v3680, 2147483648
      %v3918 = vor.u32 1.1754944e-38, %v3917
      %v3919 = vsel %vm3916, %v3918, %v3914
      %v3920 = vmul.f32 %v3232, %v3919
      %v3921 = vmul.f32 %v3695, %v876
      %v3922 = vmul.f32 %v3710, %v876
      %v3923 = vmul.f32 %v3725, %v876
      %v3924 = vmul.f32 %v3740, %v876
      %v3925 = vmul.f32 %v3755, %v876
      %v3926 = vmul.f32 %v3770, %v876
      %v3927 = vmul.f32 %v3785, %v876
      %v3928 = vmul.f32 %v3800, %v876
      %v3929 = vmul.f32 %v3815, %v876
      %v3930 = vmul.f32 %v3830, %v876
      %v3931 = vmul.f32 %v3845, %v876
      %v3932 = vmul.f32 %v3860, %v876
      %v3933 = vmul.f32 %v3875, %v876
      %v3934 = vmul.f32 %v3890, %v876
      %v3935 = vmul.f32 %v3905, %v876
      %v3936 = vmul.f32 %v3920, %v876
      %v3937 = vmax.f32 %v3921, 0.0
      %v3938 = vmax.f32 %v3922, 0.0
      %v3939 = vmax.f32 %v3923, 0.0
      %v3940 = vmax.f32 %v3924, 0.0
      %v3941 = vmax.f32 %v3925, 0.0
      %v3942 = vmax.f32 %v3926, 0.0
      %v3943 = vmax.f32 %v3927, 0.0
      %v3944 = vmax.f32 %v3928, 0.0
      %v3945 = vmax.f32 %v3929, 0.0
      %v3946 = vmax.f32 %v3930, 0.0
      %v3947 = vmax.f32 %v3931, 0.0
      %v3948 = vmax.f32 %v3932, 0.0
      %v3949 = vmax.f32 %v3933, 0.0
      %v3950 = vmax.f32 %v3934, 0.0
      %v3951 = vmax.f32 %v3935, 0.0
      %v3952 = vmax.f32 %v3936, 0.0
      %v3953 = vmin.f32 %v3937, 1.0
      %v3954 = vmin.f32 %v3938, 1.0
      %v3955 = vmin.f32 %v3939, 1.0
      %v3956 = vmin.f32 %v3940, 1.0
      %v3957 = vmin.f32 %v3941, 1.0
      %v3958 = vmin.f32 %v3942, 1.0
      %v3959 = vmin.f32 %v3943, 1.0
      %v3960 = vmin.f32 %v3944, 1.0
      %v3961 = vmin.f32 %v3945, 1.0
      %v3962 = vmin.f32 %v3946, 1.0
      %v3963 = vmin.f32 %v3947, 1.0
      %v3964 = vmin.f32 %v3948, 1.0
      %v3965 = vmin.f32 %v3949, 1.0
      %v3966 = vmin.f32 %v3950, 1.0
      %v3967 = vmin.f32 %v3951, 1.0
      %v3968 = vmin.f32 %v3952, 1.0
      %v3969 = vmul.f32 %v3953, 2.0
      %v3970 = vmul.f32 %v3954, 2.0
      %v3971 = vmul.f32 %v3955, 2.0
      %v3972 = vmul.f32 %v3956, 2.0
      %v3973 = vmul.f32 %v3957, 2.0
      %v3974 = vmul.f32 %v3958, 2.0
      %v3975 = vmul.f32 %v3959, 2.0
      %v3976 = vmul.f32 %v3960, 2.0
      %v3977 = vmul.f32 %v3961, 2.0
      %v3978 = vmul.f32 %v3962, 2.0
      %v3979 = vmul.f32 %v3963, 2.0
      %v3980 = vmul.f32 %v3964, 2.0
      %v3981 = vmul.f32 %v3965, 2.0
      %v3982 = vmul.f32 %v3966, 2.0
      %v3983 = vmul.f32 %v3967, 2.0
      %v3984 = vmul.f32 %v3968, 2.0
      %v3985 = vsub.f32 %v3969, 1.0
      %v3986 = vsub.f32 %v3970, 1.0
      %v3987 = vsub.f32 %v3971, 1.0
      %v3988 = vsub.f32 %v3972, 1.0
      %v3989 = vsub.f32 %v3973, 1.0
      %v3990 = vsub.f32 %v3974, 1.0
      %v3991 = vsub.f32 %v3975, 1.0
      %v3992 = vsub.f32 %v3976, 1.0
      %v3993 = vsub.f32 %v3977, 1.0
      %v3994 = vsub.f32 %v3978, 1.0
      %v3995 = vsub.f32 %v3979, 1.0
      %v3996 = vsub.f32 %v3980, 1.0
      %v3997 = vsub.f32 %v3981, 1.0
      %v3998 = vsub.f32 %v3982, 1.0
      %v3999 = vsub.f32 %v3983, 1.0
      %v4000 = vsub.f32 %v3984, 1.0
      %v4001 = vmul.f32 %v3441, %v3694
      %v4002 = vmul.f32 %v3442, %v3709
      %v4003 = vmul.f32 %v3443, %v3724
      %v4004 = vmul.f32 %v3444, %v3739
      %v4005 = vmul.f32 %v3445, %v3754
      %v4006 = vmul.f32 %v3446, %v3769
      %v4007 = vmul.f32 %v3447, %v3784
      %v4008 = vmul.f32 %v3448, %v3799
      %v4009 = vmul.f32 %v3449, %v3814
      %v4010 = vmul.f32 %v3450, %v3829
      %v4011 = vmul.f32 %v3451, %v3844
      %v4012 = vmul.f32 %v3452, %v3859
      %v4013 = vmul.f32 %v3453, %v3874
      %v4014 = vmul.f32 %v3454, %v3889
      %v4015 = vmul.f32 %v3455, %v3904
      %v4016 = vmul.f32 %v3456, %v3919
      %v4017 = vmul.f32 %v4001, %v876
      %v4018 = vmul.f32 %v4002, %v876
      %v4019 = vmul.f32 %v4003, %v876
      %v4020 = vmul.f32 %v4004, %v876
      %v4021 = vmul.f32 %v4005, %v876
      %v4022 = vmul.f32 %v4006, %v876
      %v4023 = vmul.f32 %v4007, %v876
      %v4024 = vmul.f32 %v4008, %v876
      %v4025 = vmul.f32 %v4009, %v876
      %v4026 = vmul.f32 %v4010, %v876
      %v4027 = vmul.f32 %v4011, %v876
      %v4028 = vmul.f32 %v4012, %v876
      %v4029 = vmul.f32 %v4013, %v876
      %v4030 = vmul.f32 %v4014, %v876
      %v4031 = vmul.f32 %v4015, %v876
      %v4032 = vmul.f32 %v4016, %v876
      %v4033 = vmax.f32 %v4017, 0.0
      %v4034 = vmax.f32 %v4018, 0.0
      %v4035 = vmax.f32 %v4019, 0.0
      %v4036 = vmax.f32 %v4020, 0.0
      %v4037 = vmax.f32 %v4021, 0.0
      %v4038 = vmax.f32 %v4022, 0.0
      %v4039 = vmax.f32 %v4023, 0.0
      %v4040 = vmax.f32 %v4024, 0.0
      %v4041 = vmax.f32 %v4025, 0.0
      %v4042 = vmax.f32 %v4026, 0.0
      %v4043 = vmax.f32 %v4027, 0.0
      %v4044 = vmax.f32 %v4028, 0.0
      %v4045 = vmax.f32 %v4029, 0.0
      %v4046 = vmax.f32 %v4030, 0.0
      %v4047 = vmax.f32 %v4031, 0.0
      %v4048 = vmax.f32 %v4032, 0.0
      %v4049 = vmin.f32 %v4033, 1.0
      %v4050 = vmin.f32 %v4034, 1.0
      %v4051 = vmin.f32 %v4035, 1.0
      %v4052 = vmin.f32 %v4036, 1.0
      %v4053 = vmin.f32 %v4037, 1.0
      %v4054 = vmin.f32 %v4038, 1.0
      %v4055 = vmin.f32 %v4039, 1.0
      %v4056 = vmin.f32 %v4040, 1.0
      %v4057 = vmin.f32 %v4041, 1.0
      %v4058 = vmin.f32 %v4042, 1.0
      %v4059 = vmin.f32 %v4043, 1.0
      %v4060 = vmin.f32 %v4044, 1.0
      %v4061 = vmin.f32 %v4045, 1.0
      %v4062 = vmin.f32 %v4046, 1.0
      %v4063 = vmin.f32 %v4047, 1.0
      %v4064 = vmin.f32 %v4048, 1.0
      %v4065 = vmul.f32 %v4049, 2.0
      %v4066 = vmul.f32 %v4050, 2.0
      %v4067 = vmul.f32 %v4051, 2.0
      %v4068 = vmul.f32 %v4052, 2.0
      %v4069 = vmul.f32 %v4053, 2.0
      %v4070 = vmul.f32 %v4054, 2.0
      %v4071 = vmul.f32 %v4055, 2.0
      %v4072 = vmul.f32 %v4056, 2.0
      %v4073 = vmul.f32 %v4057, 2.0
      %v4074 = vmul.f32 %v4058, 2.0
      %v4075 = vmul.f32 %v4059, 2.0
      %v4076 = vmul.f32 %v4060, 2.0
      %v4077 = vmul.f32 %v4061, 2.0
      %v4078 = vmul.f32 %v4062, 2.0
      %v4079 = vmul.f32 %v4063, 2.0
      %v4080 = vmul.f32 %v4064, 2.0
      %v4081 = vsub.f32 %v4065, 1.0
      %v4082 = vsub.f32 %v4066, 1.0
      %v4083 = vsub.f32 %v4067, 1.0
      %v4084 = vsub.f32 %v4068, 1.0
      %v4085 = vsub.f32 %v4069, 1.0
      %v4086 = vsub.f32 %v4070, 1.0
      %v4087 = vsub.f32 %v4071, 1.0
      %v4088 = vsub.f32 %v4072, 1.0
      %v4089 = vsub.f32 %v4073, 1.0
      %v4090 = vsub.f32 %v4074, 1.0
      %v4091 = vsub.f32 %v4075, 1.0
      %v4092 = vsub.f32 %v4076, 1.0
      %v4093 = vsub.f32 %v4077, 1.0
      %v4094 = vsub.f32 %v4078, 1.0
      %v4095 = vsub.f32 %v4079, 1.0
      %v4096 = vsub.f32 %v4080, 1.0
      %v4097 = vadd.f32 %v3985, 1.0
      %v4098 = vadd.f32 %v3986, 1.0
      %v4099 = vadd.f32 %v3987, 1.0
      %v4100 = vadd.f32 %v3988, 1.0
      %v4101 = vadd.f32 %v3989, 1.0
      %v4102 = vadd.f32 %v3990, 1.0
      %v4103 = vadd.f32 %v3991, 1.0
      %v4104 = vadd.f32 %v3992, 1.0
      %v4105 = vadd.f32 %v3993, 1.0
      %v4106 = vadd.f32 %v3994, 1.0
      %v4107 = vadd.f32 %v3995, 1.0
      %v4108 = vadd.f32 %v3996, 1.0
      %v4109 = vadd.f32 %v3997, 1.0
      %v4110 = vadd.f32 %v3998, 1.0
      %v4111 = vadd.f32 %v3999, 1.0
      %v4112 = vadd.f32 %v4000, 1.0
      %v4113 = vmul.f32 %v4097, 16.0
      %v4114 = vmul.f32 %v4098, 16.0
      %v4115 = vmul.f32 %v4099, 16.0
      %v4116 = vmul.f32 %v4100, 16.0
      %v4117 = vmul.f32 %v4101, 16.0
      %v4118 = vmul.f32 %v4102, 16.0
      %v4119 = vmul.f32 %v4103, 16.0
      %v4120 = vmul.f32 %v4104, 16.0
      %v4121 = vmul.f32 %v4105, 16.0
      %v4122 = vmul.f32 %v4106, 16.0
      %v4123 = vmul.f32 %v4107, 16.0
      %v4124 = vmul.f32 %v4108, 16.0
      %v4125 = vmul.f32 %v4109, 16.0
      %v4126 = vmul.f32 %v4110, 16.0
      %v4127 = vmul.f32 %v4111, 16.0
      %v4128 = vmul.f32 %v4112, 16.0
      %v4129 = vsub.f32 %v4113, 1.0
      %v4130 = vsub.f32 %v4114, 1.0
      %v4131 = vsub.f32 %v4115, 1.0
      %v4132 = vsub.f32 %v4116, 1.0
      %v4133 = vsub.f32 %v4117, 1.0
      %v4134 = vsub.f32 %v4118, 1.0
      %v4135 = vsub.f32 %v4119, 1.0
      %v4136 = vsub.f32 %v4120, 1.0
      %v4137 = vsub.f32 %v4121, 1.0
      %v4138 = vsub.f32 %v4122, 1.0
      %v4139 = vsub.f32 %v4123, 1.0
      %v4140 = vsub.f32 %v4124, 1.0
      %v4141 = vsub.f32 %v4125, 1.0
      %v4142 = vsub.f32 %v4126, 1.0
      %v4143 = vsub.f32 %v4127, 1.0
      %v4144 = vsub.f32 %v4128, 1.0
      %v4145 = vmul.f32 %v4129, 0.5
      %v4146 = vmul.f32 %v4130, 0.5
      %v4147 = vmul.f32 %v4131, 0.5
      %v4148 = vmul.f32 %v4132, 0.5
      %v4149 = vmul.f32 %v4133, 0.5
      %v4150 = vmul.f32 %v4134, 0.5
      %v4151 = vmul.f32 %v4135, 0.5
      %v4152 = vmul.f32 %v4136, 0.5
      %v4153 = vmul.f32 %v4137, 0.5
      %v4154 = vmul.f32 %v4138, 0.5
      %v4155 = vmul.f32 %v4139, 0.5
      %v4156 = vmul.f32 %v4140, 0.5
      %v4157 = vmul.f32 %v4141, 0.5
      %v4158 = vmul.f32 %v4142, 0.5
      %v4159 = vmul.f32 %v4143, 0.5
      %v4160 = vmul.f32 %v4144, 0.5
      %v4161 = vadd.f32 %v4081, 1.0
      %v4162 = vadd.f32 %v4082, 1.0
      %v4163 = vadd.f32 %v4083, 1.0
      %v4164 = vadd.f32 %v4084, 1.0
      %v4165 = vadd.f32 %v4085, 1.0
      %v4166 = vadd.f32 %v4086, 1.0
      %v4167 = vadd.f32 %v4087, 1.0
      %v4168 = vadd.f32 %v4088, 1.0
      %v4169 = vadd.f32 %v4089, 1.0
      %v4170 = vadd.f32 %v4090, 1.0
      %v4171 = vadd.f32 %v4091, 1.0
      %v4172 = vadd.f32 %v4092, 1.0
      %v4173 = vadd.f32 %v4093, 1.0
      %v4174 = vadd.f32 %v4094, 1.0
      %v4175 = vadd.f32 %v4095, 1.0
      %v4176 = vadd.f32 %v4096, 1.0
      %v4177 = vmul.f32 %v4161, 16.0
      %v4178 = vmul.f32 %v4162, 16.0
      %v4179 = vmul.f32 %v4163, 16.0
      %v4180 = vmul.f32 %v4164, 16.0
      %v4181 = vmul.f32 %v4165, 16.0
      %v4182 = vmul.f32 %v4166, 16.0
      %v4183 = vmul.f32 %v4167, 16.0
      %v4184 = vmul.f32 %v4168, 16.0
      %v4185 = vmul.f32 %v4169, 16.0
      %v4186 = vmul.f32 %v4170, 16.0
      %v4187 = vmul.f32 %v4171, 16.0
      %v4188 = vmul.f32 %v4172, 16.0
      %v4189 = vmul.f32 %v4173, 16.0
      %v4190 = vmul.f32 %v4174, 16.0
      %v4191 = vmul.f32 %v4175, 16.0
      %v4192 = vmul.f32 %v4176, 16.0
      %v4193 = vsub.f32 %v4177, 1.0
      %v4194 = vsub.f32 %v4178, 1.0
      %v4195 = vsub.f32 %v4179, 1.0
      %v4196 = vsub.f32 %v4180, 1.0
      %v4197 = vsub.f32 %v4181, 1.0
      %v4198 = vsub.f32 %v4182, 1.0
      %v4199 = vsub.f32 %v4183, 1.0
      %v4200 = vsub.f32 %v4184, 1.0
      %v4201 = vsub.f32 %v4185, 1.0
      %v4202 = vsub.f32 %v4186, 1.0
      %v4203 = vsub.f32 %v4187, 1.0
      %v4204 = vsub.f32 %v4188, 1.0
      %v4205 = vsub.f32 %v4189, 1.0
      %v4206 = vsub.f32 %v4190, 1.0
      %v4207 = vsub.f32 %v4191, 1.0
      %v4208 = vsub.f32 %v4192, 1.0
      %v4209 = vmul.f32 %v4193, 0.5
      %v4210 = vmul.f32 %v4194, 0.5
      %v4211 = vmul.f32 %v4195, 0.5
      %v4212 = vmul.f32 %v4196, 0.5
      %v4213 = vmul.f32 %v4197, 0.5
      %v4214 = vmul.f32 %v4198, 0.5
      %v4215 = vmul.f32 %v4199, 0.5
      %v4216 = vmul.f32 %v4200, 0.5
      %v4217 = vmul.f32 %v4201, 0.5
      %v4218 = vmul.f32 %v4202, 0.5
      %v4219 = vmul.f32 %v4203, 0.5
      %v4220 = vmul.f32 %v4204, 0.5
      %v4221 = vmul.f32 %v4205, 0.5
      %v4222 = vmul.f32 %v4206, 0.5
      %v4223 = vmul.f32 %v4207, 0.5
      %v4224 = vmul.f32 %v4208, 0.5
      %v4225 = vfloor.f32 %v4145
      %v4226 = vfloor.f32 %v4146
      %v4227 = vfloor.f32 %v4147
      %v4228 = vfloor.f32 %v4148
      %v4229 = vfloor.f32 %v4149
      %v4230 = vfloor.f32 %v4150
      %v4231 = vfloor.f32 %v4151
      %v4232 = vfloor.f32 %v4152
      %v4233 = vfloor.f32 %v4153
      %v4234 = vfloor.f32 %v4154
      %v4235 = vfloor.f32 %v4155
      %v4236 = vfloor.f32 %v4156
      %v4237 = vfloor.f32 %v4157
      %v4238 = vfloor.f32 %v4158
      %v4239 = vfloor.f32 %v4159
      %v4240 = vfloor.f32 %v4160
      %v4241 = vfloor.f32 %v4209
      %v4242 = vfloor.f32 %v4210
      %v4243 = vfloor.f32 %v4211
      %v4244 = vfloor.f32 %v4212
      %v4245 = vfloor.f32 %v4213
      %v4246 = vfloor.f32 %v4214
      %v4247 = vfloor.f32 %v4215
      %v4248 = vfloor.f32 %v4216
      %v4249 = vfloor.f32 %v4217
      %v4250 = vfloor.f32 %v4218
      %v4251 = vfloor.f32 %v4219
      %v4252 = vfloor.f32 %v4220
      %v4253 = vfloor.f32 %v4221
      %v4254 = vfloor.f32 %v4222
      %v4255 = vfloor.f32 %v4223
      %v4256 = vfloor.f32 %v4224
      %v4257 = vsub.f32 %v4145, %v4225
      %v4258 = vsub.f32 %v4146, %v4226
      %v4259 = vsub.f32 %v4147, %v4227
      %v4260 = vsub.f32 %v4148, %v4228
      %v4261 = vsub.f32 %v4149, %v4229
      %v4262 = vsub.f32 %v4150, %v4230
      %v4263 = vsub.f32 %v4151, %v4231
      %v4264 = vsub.f32 %v4152, %v4232
      %v4265 = vsub.f32 %v4153, %v4233
      %v4266 = vsub.f32 %v4154, %v4234
      %v4267 = vsub.f32 %v4155, %v4235
      %v4268 = vsub.f32 %v4156, %v4236
      %v4269 = vsub.f32 %v4157, %v4237
      %v4270 = vsub.f32 %v4158, %v4238
      %v4271 = vsub.f32 %v4159, %v4239
      %v4272 = vsub.f32 %v4160, %v4240
      %v4273 = vsub.f32 1.0, %v4257
      %v4274 = vsub.f32 1.0, %v4258
      %v4275 = vsub.f32 1.0, %v4259
      %v4276 = vsub.f32 1.0, %v4260
      %v4277 = vsub.f32 1.0, %v4261
      %v4278 = vsub.f32 1.0, %v4262
      %v4279 = vsub.f32 1.0, %v4263
      %v4280 = vsub.f32 1.0, %v4264
      %v4281 = vsub.f32 1.0, %v4265
      %v4282 = vsub.f32 1.0, %v4266
      %v4283 = vsub.f32 1.0, %v4267
      %v4284 = vsub.f32 1.0, %v4268
      %v4285 = vsub.f32 1.0, %v4269
      %v4286 = vsub.f32 1.0, %v4270
      %v4287 = vsub.f32 1.0, %v4271
      %v4288 = vsub.f32 1.0, %v4272
      %v4289 = vsub.f32 %v4209, %v4241
      %v4290 = vsub.f32 %v4210, %v4242
      %v4291 = vsub.f32 %v4211, %v4243
      %v4292 = vsub.f32 %v4212, %v4244
      %v4293 = vsub.f32 %v4213, %v4245
      %v4294 = vsub.f32 %v4214, %v4246
      %v4295 = vsub.f32 %v4215, %v4247
      %v4296 = vsub.f32 %v4216, %v4248
      %v4297 = vsub.f32 %v4217, %v4249
      %v4298 = vsub.f32 %v4218, %v4250
      %v4299 = vsub.f32 %v4219, %v4251
      %v4300 = vsub.f32 %v4220, %v4252
      %v4301 = vsub.f32 %v4221, %v4253
      %v4302 = vsub.f32 %v4222, %v4254
      %v4303 = vsub.f32 %v4223, %v4255
      %v4304 = vsub.f32 %v4224, %v4256
      %v4305 = vsub.f32 1.0, %v4289
      %v4306 = vsub.f32 1.0, %v4290
      %v4307 = vsub.f32 1.0, %v4291
      %v4308 = vsub.f32 1.0, %v4292
      %v4309 = vsub.f32 1.0, %v4293
      %v4310 = vsub.f32 1.0, %v4294
      %v4311 = vsub.f32 1.0, %v4295
      %v4312 = vsub.f32 1.0, %v4296
      %v4313 = vsub.f32 1.0, %v4297
      %v4314 = vsub.f32 1.0, %v4298
      %v4315 = vsub.f32 1.0, %v4299
      %v4316 = vsub.f32 1.0, %v4300
      %v4317 = vsub.f32 1.0, %v4301
      %v4318 = vsub.f32 1.0, %v4302
      %v4319 = vsub.f32 1.0, %v4303
      %v4320 = vsub.f32 1.0, %v4304
      %v4321 = vcvt.f32.s32.to.zero.pseudo %v4225
      %v4322 = vcvt.f32.s32.to.zero.pseudo %v4226
      %v4323 = vcvt.f32.s32.to.zero.pseudo %v4227
      %v4324 = vcvt.f32.s32.to.zero.pseudo %v4228
      %v4325 = vcvt.f32.s32.to.zero.pseudo %v4229
      %v4326 = vcvt.f32.s32.to.zero.pseudo %v4230
      %v4327 = vcvt.f32.s32.to.zero.pseudo %v4231
      %v4328 = vcvt.f32.s32.to.zero.pseudo %v4232
      %v4329 = vcvt.f32.s32.to.zero.pseudo %v4233
      %v4330 = vcvt.f32.s32.to.zero.pseudo %v4234
      %v4331 = vcvt.f32.s32.to.zero.pseudo %v4235
      %v4332 = vcvt.f32.s32.to.zero.pseudo %v4236
      %v4333 = vcvt.f32.s32.to.zero.pseudo %v4237
      %v4334 = vcvt.f32.s32.to.zero.pseudo %v4238
      %v4335 = vcvt.f32.s32.to.zero.pseudo %v4239
      %v4336 = vcvt.f32.s32.to.zero.pseudo %v4240
      %v4337 = vadd.s32 %v4321, 1
      %v4338 = vadd.s32 %v4322, 1
      %v4339 = vadd.s32 %v4323, 1
      %v4340 = vadd.s32 %v4324, 1
      %v4341 = vadd.s32 %v4325, 1
      %v4342 = vadd.s32 %v4326, 1
      %v4343 = vadd.s32 %v4327, 1
      %v4344 = vadd.s32 %v4328, 1
      %v4345 = vadd.s32 %v4329, 1
      %v4346 = vadd.s32 %v4330, 1
      %v4347 = vadd.s32 %v4331, 1
      %v4348 = vadd.s32 %v4332, 1
      %v4349 = vadd.s32 %v4333, 1
      %v4350 = vadd.s32 %v4334, 1
      %v4351 = vadd.s32 %v4335, 1
      %v4352 = vadd.s32 %v4336, 1
      %v4353 = vcvt.f32.s32.to.zero.pseudo %v4241
      %v4354 = vcvt.f32.s32.to.zero.pseudo %v4242
      %v4355 = vcvt.f32.s32.to.zero.pseudo %v4243
      %v4356 = vcvt.f32.s32.to.zero.pseudo %v4244
      %v4357 = vcvt.f32.s32.to.zero.pseudo %v4245
      %v4358 = vcvt.f32.s32.to.zero.pseudo %v4246
      %v4359 = vcvt.f32.s32.to.zero.pseudo %v4247
      %v4360 = vcvt.f32.s32.to.zero.pseudo %v4248
      %v4361 = vcvt.f32.s32.to.zero.pseudo %v4249
      %v4362 = vcvt.f32.s32.to.zero.pseudo %v4250
      %v4363 = vcvt.f32.s32.to.zero.pseudo %v4251
      %v4364 = vcvt.f32.s32.to.zero.pseudo %v4252
      %v4365 = vcvt.f32.s32.to.zero.pseudo %v4253
      %v4366 = vcvt.f32.s32.to.zero.pseudo %v4254
      %v4367 = vcvt.f32.s32.to.zero.pseudo %v4255
      %v4368 = vcvt.f32.s32.to.zero.pseudo %v4256
      %v4369 = vadd.s32 %v4353, 1
      %v4370 = vadd.s32 %v4354, 1
      %v4371 = vadd.s32 %v4355, 1
      %v4372 = vadd.s32 %v4356, 1
      %v4373 = vadd.s32 %v4357, 1
      %v4374 = vadd.s32 %v4358, 1
      %v4375 = vadd.s32 %v4359, 1
      %v4376 = vadd.s32 %v4360, 1
      %v4377 = vadd.s32 %v4361, 1
      %v4378 = vadd.s32 %v4362, 1
      %v4379 = vadd.s32 %v4363, 1
      %v4380 = vadd.s32 %v4364, 1
      %v4381 = vadd.s32 %v4365, 1
      %v4382 = vadd.s32 %v4366, 1
      %v4383 = vadd.s32 %v4367, 1
      %v4384 = vadd.s32 %v4368, 1
      %v4385 = vmul.f32 %v4305, %v4273
      %v4386 = vmul.f32 %v4306, %v4274
      %v4387 = vmul.f32 %v4307, %v4275
      %v4388 = vmul.f32 %v4308, %v4276
      %v4389 = vmul.f32 %v4309, %v4277
      %v4390 = vmul.f32 %v4310, %v4278
      %v4391 = vmul.f32 %v4311, %v4279
      %v4392 = vmul.f32 %v4312, %v4280
      %v4393 = vmul.f32 %v4313, %v4281
      %v4394 = vmul.f32 %v4314, %v4282
      %v4395 = vmul.f32 %v4315, %v4283
      %v4396 = vmul.f32 %v4316, %v4284
      %v4397 = vmul.f32 %v4317, %v4285
      %v4398 = vmul.f32 %v4318, %v4286
      %v4399 = vmul.f32 %v4319, %v4287
      %v4400 = vmul.f32 %v4320, %v4288
      %v4401 = vmul.f32 %v4305, %v4257
      %v4402 = vmul.f32 %v4306, %v4258
      %v4403 = vmul.f32 %v4307, %v4259
      %v4404 = vmul.f32 %v4308, %v4260
      %v4405 = vmul.f32 %v4309, %v4261
      %v4406 = vmul.f32 %v4310, %v4262
      %v4407 = vmul.f32 %v4311, %v4263
      %v4408 = vmul.f32 %v4312, %v4264
      %v4409 = vmul.f32 %v4313, %v4265
      %v4410 = vmul.f32 %v4314, %v4266
      %v4411 = vmul.f32 %v4315, %v4267
      %v4412 = vmul.f32 %v4316, %v4268
      %v4413 = vmul.f32 %v4317, %v4269
      %v4414 = vmul.f32 %v4318, %v4270
      %v4415 = vmul.f32 %v4319, %v4271
      %v4416 = vmul.f32 %v4320, %v4272
      %v4417 = vmul.f32 %v4289, %v4273
      %v4418 = vmul.f32 %v4290, %v4274
      %v4419 = vmul.f32 %v4291, %v4275
      %v4420 = vmul.f32 %v4292, %v4276
      %v4421 = vmul.f32 %v4293, %v4277
      %v4422 = vmul.f32 %v4294, %v4278
      %v4423 = vmul.f32 %v4295, %v4279
      %v4424 = vmul.f32 %v4296, %v4280
      %v4425 = vmul.f32 %v4297, %v4281
      %v4426 = vmul.f32 %v4298, %v4282
      %v4427 = vmul.f32 %v4299, %v4283
      %v4428 = vmul.f32 %v4300, %v4284
      %v4429 = vmul.f32 %v4301, %v4285
      %v4430 = vmul.f32 %v4302, %v4286
      %v4431 = vmul.f32 %v4303, %v4287
      %v4432 = vmul.f32 %v4304, %v4288
      %v4433 = vmul.f32 %v4289, %v4257
      %v4434 = vmul.f32 %v4290, %v4258
      %v4435 = vmul.f32 %v4291, %v4259
      %v4436 = vmul.f32 %v4292, %v4260
      %v4437 = vmul.f32 %v4293, %v4261
      %v4438 = vmul.f32 %v4294, %v4262
      %v4439 = vmul.f32 %v4295, %v4263
      %v4440 = vmul.f32 %v4296, %v4264
      %v4441 = vmul.f32 %v4297, %v4265
      %v4442 = vmul.f32 %v4298, %v4266
      %v4443 = vmul.f32 %v4299, %v4267
      %v4444 = vmul.f32 %v4300, %v4268
      %v4445 = vmul.f32 %v4301, %v4269
      %v4446 = vmul.f32 %v4302, %v4270
      %v4447 = vmul.f32 %v4303, %v4271
      %v4448 = vmul.f32 %v4304, %v4272
      %vm4449 = vcmp.ge.s32.totalorder %v4321, 0
      %vm4450 = vcmp.ge.s32.totalorder %v4322, 0
      %vm4451 = vcmp.ge.s32.totalorder %v4323, 0
      %vm4452 = vcmp.ge.s32.totalorder %v4324, 0
      %vm4453 = vcmp.ge.s32.totalorder %v4325, 0
      %vm4454 = vcmp.ge.s32.totalorder %v4326, 0
      %vm4455 = vcmp.ge.s32.totalorder %v4327, 0
      %vm4456 = vcmp.ge.s32.totalorder %v4328, 0
      %vm4457 = vcmp.ge.s32.totalorder %v4329, 0
      %vm4458 = vcmp.ge.s32.totalorder %v4330, 0
      %vm4459 = vcmp.ge.s32.totalorder %v4331, 0
      %vm4460 = vcmp.ge.s32.totalorder %v4332, 0
      %vm4461 = vcmp.ge.s32.totalorder %v4333, 0
      %vm4462 = vcmp.ge.s32.totalorder %v4334, 0
      %vm4463 = vcmp.ge.s32.totalorder %v4335, 0
      %vm4464 = vcmp.ge.s32.totalorder %v4336, 0
      %vm4465 = vcmp.lt.s32.totalorder %v4321, 16
      %vm4466 = vcmp.lt.s32.totalorder %v4322, 16
      %vm4467 = vcmp.lt.s32.totalorder %v4323, 16
      %vm4468 = vcmp.lt.s32.totalorder %v4324, 16
      %vm4469 = vcmp.lt.s32.totalorder %v4325, 16
      %vm4470 = vcmp.lt.s32.totalorder %v4326, 16
      %vm4471 = vcmp.lt.s32.totalorder %v4327, 16
      %vm4472 = vcmp.lt.s32.totalorder %v4328, 16
      %vm4473 = vcmp.lt.s32.totalorder %v4329, 16
      %vm4474 = vcmp.lt.s32.totalorder %v4330, 16
      %vm4475 = vcmp.lt.s32.totalorder %v4331, 16
      %vm4476 = vcmp.lt.s32.totalorder %v4332, 16
      %vm4477 = vcmp.lt.s32.totalorder %v4333, 16
      %vm4478 = vcmp.lt.s32.totalorder %v4334, 16
      %vm4479 = vcmp.lt.s32.totalorder %v4335, 16
      %vm4480 = vcmp.lt.s32.totalorder %v4336, 16
      %vm4481 = vmand %vm4449, %vm4465
      %vm4482 = vmand %vm4450, %vm4466
      %vm4483 = vmand %vm4451, %vm4467
      %vm4484 = vmand %vm4452, %vm4468
      %vm4485 = vmand %vm4453, %vm4469
      %vm4486 = vmand %vm4454, %vm4470
      %vm4487 = vmand %vm4455, %vm4471
      %vm4488 = vmand %vm4456, %vm4472
      %vm4489 = vmand %vm4457, %vm4473
      %vm4490 = vmand %vm4458, %vm4474
      %vm4491 = vmand %vm4459, %vm4475
      %vm4492 = vmand %vm4460, %vm4476
      %vm4493 = vmand %vm4461, %vm4477
      %vm4494 = vmand %vm4462, %vm4478
      %vm4495 = vmand %vm4463, %vm4479
      %vm4496 = vmand %vm4464, %vm4480
      %vm4497 = vcmp.ge.s32.totalorder %v4353, 0
      %vm4498 = vcmp.ge.s32.totalorder %v4354, 0
      %vm4499 = vcmp.ge.s32.totalorder %v4355, 0
      %vm4500 = vcmp.ge.s32.totalorder %v4356, 0
      %vm4501 = vcmp.ge.s32.totalorder %v4357, 0
      %vm4502 = vcmp.ge.s32.totalorder %v4358, 0
      %vm4503 = vcmp.ge.s32.totalorder %v4359, 0
      %vm4504 = vcmp.ge.s32.totalorder %v4360, 0
      %vm4505 = vcmp.ge.s32.totalorder %v4361, 0
      %vm4506 = vcmp.ge.s32.totalorder %v4362, 0
      %vm4507 = vcmp.ge.s32.totalorder %v4363, 0
      %vm4508 = vcmp.ge.s32.totalorder %v4364, 0
      %vm4509 = vcmp.ge.s32.totalorder %v4365, 0
      %vm4510 = vcmp.ge.s32.totalorder %v4366, 0
      %vm4511 = vcmp.ge.s32.totalorder %v4367, 0
      %vm4512 = vcmp.ge.s32.totalorder %v4368, 0
      %vm4513 = vmand %vm4481, %vm4497
      %vm4514 = vmand %vm4482, %vm4498
      %vm4515 = vmand %vm4483, %vm4499
      %vm4516 = vmand %vm4484, %vm4500
      %vm4517 = vmand %vm4485, %vm4501
      %vm4518 = vmand %vm4486, %vm4502
      %vm4519 = vmand %vm4487, %vm4503
      %vm4520 = vmand %vm4488, %vm4504
      %vm4521 = vmand %vm4489, %vm4505
      %vm4522 = vmand %vm4490, %vm4506
      %vm4523 = vmand %vm4491, %vm4507
      %vm4524 = vmand %vm4492, %vm4508
      %vm4525 = vmand %vm4493, %vm4509
      %vm4526 = vmand %vm4494, %vm4510
      %vm4527 = vmand %vm4495, %vm4511
      %vm4528 = vmand %vm4496, %vm4512
      %vm4529 = vcmp.lt.s32.totalorder %v4353, 16
      %vm4530 = vcmp.lt.s32.totalorder %v4354, 16
      %vm4531 = vcmp.lt.s32.totalorder %v4355, 16
      %vm4532 = vcmp.lt.s32.totalorder %v4356, 16
      %vm4533 = vcmp.lt.s32.totalorder %v4357, 16
      %vm4534 = vcmp.lt.s32.totalorder %v4358, 16
      %vm4535 = vcmp.lt.s32.totalorder %v4359, 16
      %vm4536 = vcmp.lt.s32.totalorder %v4360, 16
      %vm4537 = vcmp.lt.s32.totalorder %v4361, 16
      %vm4538 = vcmp.lt.s32.totalorder %v4362, 16
      %vm4539 = vcmp.lt.s32.totalorder %v4363, 16
      %vm4540 = vcmp.lt.s32.totalorder %v4364, 16
      %vm4541 = vcmp.lt.s32.totalorder %v4365, 16
      %vm4542 = vcmp.lt.s32.totalorder %v4366, 16
      %vm4543 = vcmp.lt.s32.totalorder %v4367, 16
      %vm4544 = vcmp.lt.s32.totalorder %v4368, 16
      %vm4545 = vmand %vm4513, %vm4529
      %vm4546 = vmand %vm4514, %vm4530
      %vm4547 = vmand %vm4515, %vm4531
      %vm4548 = vmand %vm4516, %vm4532
      %vm4549 = vmand %vm4517, %vm4533
      %vm4550 = vmand %vm4518, %vm4534
      %vm4551 = vmand %vm4519, %vm4535
      %vm4552 = vmand %vm4520, %vm4536
      %vm4553 = vmand %vm4521, %vm4537
      %vm4554 = vmand %vm4522, %vm4538
      %vm4555 = vmand %vm4523, %vm4539
      %vm4556 = vmand %vm4524, %vm4540
      %vm4557 = vmand %vm4525, %vm4541
      %vm4558 = vmand %vm4526, %vm4542
      %vm4559 = vmand %vm4527, %vm4543
      %vm4560 = vmand %vm4528, %vm4544
      %v4561 = vsel %vm4545, %v4385, 0.0
      %v4562 = vsel %vm4546, %v4386, 0.0
      %v4563 = vsel %vm4547, %v4387, 0.0
      %v4564 = vsel %vm4548, %v4388, 0.0
      %v4565 = vsel %vm4549, %v4389, 0.0
      %v4566 = vsel %vm4550, %v4390, 0.0
      %v4567 = vsel %vm4551, %v4391, 0.0
      %v4568 = vsel %vm4552, %v4392, 0.0
      %v4569 = vsel %vm4553, %v4393, 0.0
      %v4570 = vsel %vm4554, %v4394, 0.0
      %v4571 = vsel %vm4555, %v4395, 0.0
      %v4572 = vsel %vm4556, %v4396, 0.0
      %v4573 = vsel %vm4557, %v4397, 0.0
      %v4574 = vsel %vm4558, %v4398, 0.0
      %v4575 = vsel %vm4559, %v4399, 0.0
      %v4576 = vsel %vm4560, %v4400, 0.0
      %v4577 = vmul.u32 %v4353, 16
      %v4578 = vmul.u32 %v4354, 16
      %v4579 = vmul.u32 %v4355, 16
      %v4580 = vmul.u32 %v4356, 16
      %v4581 = vmul.u32 %v4357, 16
      %v4582 = vmul.u32 %v4358, 16
      %v4583 = vmul.u32 %v4359, 16
      %v4584 = vmul.u32 %v4360, 16
      %v4585 = vmul.u32 %v4361, 16
      %v4586 = vmul.u32 %v4362, 16
      %v4587 = vmul.u32 %v4363, 16
      %v4588 = vmul.u32 %v4364, 16
      %v4589 = vmul.u32 %v4365, 16
      %v4590 = vmul.u32 %v4366, 16
      %v4591 = vmul.u32 %v4367, 16
      %v4592 = vmul.u32 %v4368, 16
      %v4593 = vadd.s32 %v4577, %v4321
      %v4594 = vadd.s32 %v4578, %v4322
      %v4595 = vadd.s32 %v4579, %v4323
      %v4596 = vadd.s32 %v4580, %v4324
      %v4597 = vadd.s32 %v4581, %v4325
      %v4598 = vadd.s32 %v4582, %v4326
      %v4599 = vadd.s32 %v4583, %v4327
      %v4600 = vadd.s32 %v4584, %v4328
      %v4601 = vadd.s32 %v4585, %v4329
      %v4602 = vadd.s32 %v4586, %v4330
      %v4603 = vadd.s32 %v4587, %v4331
      %v4604 = vadd.s32 %v4588, %v4332
      %v4605 = vadd.s32 %v4589, %v4333
      %v4606 = vadd.s32 %v4590, %v4334
      %v4607 = vadd.s32 %v4591, %v4335
      %v4608 = vadd.s32 %v4592, %v4336
      %4609 = vset.pattern.permute.xlu0 0
      %4610 = vperm.xlu0 %4609, %v4593
      %v4611 = vpop.permute.xlu0 %4610
      %4612 = vset.pattern.permute.xlu0 0
      %4613 = vperm.xlu0 %4612, %v4594
      %v4614 = vpop.permute.xlu0 %4613
      %4615 = vset.pattern.permute.xlu0 0
      %4616 = vperm.xlu0 %4615, %v4595
      %v4617 = vpop.permute.xlu0 %4616
      %4618 = vset.pattern.permute.xlu0 0
      %4619 = vperm.xlu0 %4618, %v4596
      %v4620 = vpop.permute.xlu0 %4619
      %4621 = vset.pattern.permute.xlu0 0
      %4622 = vperm.xlu0 %4621, %v4597
      %v4623 = vpop.permute.xlu0 %4622
      %4624 = vset.pattern.permute.xlu0 0
      %4625 = vperm.xlu0 %4624, %v4598
      %v4626 = vpop.permute.xlu0 %4625
      %4627 = vset.pattern.permute.xlu0 0
      %4628 = vperm.xlu0 %4627, %v4599
      %v4629 = vpop.permute.xlu0 %4628
      %4630 = vset.pattern.permute.xlu0 0
      %4631 = vperm.xlu0 %4630, %v4600
      %v4632 = vpop.permute.xlu0 %4631
      %4633 = vset.pattern.permute.xlu0 0
      %4634 = vperm.xlu0 %4633, %v4601
      %v4635 = vpop.permute.xlu0 %4634
      %4636 = vset.pattern.permute.xlu0 0
      %4637 = vperm.xlu0 %4636, %v4602
      %v4638 = vpop.permute.xlu0 %4637
      %4639 = vset.pattern.permute.xlu0 0
      %4640 = vperm.xlu0 %4639, %v4603
      %v4641 = vpop.permute.xlu0 %4640
      %4642 = vset.pattern.permute.xlu0 0
      %4643 = vperm.xlu0 %4642, %v4604
      %v4644 = vpop.permute.xlu0 %4643
      %4645 = vset.pattern.permute.xlu0 0
      %4646 = vperm.xlu0 %4645, %v4605
      %v4647 = vpop.permute.xlu0 %4646
      %4648 = vset.pattern.permute.xlu0 0
      %4649 = vperm.xlu0 %4648, %v4606
      %v4650 = vpop.permute.xlu0 %4649
      %4651 = vset.pattern.permute.xlu0 0
      %4652 = vperm.xlu0 %4651, %v4607
      %v4653 = vpop.permute.xlu0 %4652
      %4654 = vset.pattern.permute.xlu0 0
      %4655 = vperm.xlu0 %4654, %v4608
      %v4656 = vpop.permute.xlu0 %4655
      %vm4657 = vcmp.eq.s32.totalorder %v164, %v4611
      %vm4658 = vcmp.eq.s32.totalorder %v165, %v4611
      %vm4659 = vcmp.eq.s32.totalorder %v164, %v4614
      %vm4660 = vcmp.eq.s32.totalorder %v165, %v4614
      %vm4661 = vcmp.eq.s32.totalorder %v164, %v4617
      %vm4662 = vcmp.eq.s32.totalorder %v165, %v4617
      %vm4663 = vcmp.eq.s32.totalorder %v164, %v4620
      %vm4664 = vcmp.eq.s32.totalorder %v165, %v4620
      %vm4665 = vcmp.eq.s32.totalorder %v164, %v4623
      %vm4666 = vcmp.eq.s32.totalorder %v165, %v4623
      %vm4667 = vcmp.eq.s32.totalorder %v164, %v4626
      %vm4668 = vcmp.eq.s32.totalorder %v165, %v4626
      %vm4669 = vcmp.eq.s32.totalorder %v164, %v4629
      %vm4670 = vcmp.eq.s32.totalorder %v165, %v4629
      %vm4671 = vcmp.eq.s32.totalorder %v164, %v4632
      %vm4672 = vcmp.eq.s32.totalorder %v165, %v4632
      %vm4673 = vcmp.eq.s32.totalorder %v164, %v4635
      %vm4674 = vcmp.eq.s32.totalorder %v165, %v4635
      %vm4675 = vcmp.eq.s32.totalorder %v164, %v4638
      %vm4676 = vcmp.eq.s32.totalorder %v165, %v4638
      %vm4677 = vcmp.eq.s32.totalorder %v164, %v4641
      %vm4678 = vcmp.eq.s32.totalorder %v165, %v4641
      %vm4679 = vcmp.eq.s32.totalorder %v164, %v4644
      %vm4680 = vcmp.eq.s32.totalorder %v165, %v4644
      %vm4681 = vcmp.eq.s32.totalorder %v164, %v4647
      %vm4682 = vcmp.eq.s32.totalorder %v165, %v4647
      %vm4683 = vcmp.eq.s32.totalorder %v164, %v4650
      %vm4684 = vcmp.eq.s32.totalorder %v165, %v4650
      %vm4685 = vcmp.eq.s32.totalorder %v164, %v4653
      %vm4686 = vcmp.eq.s32.totalorder %v165, %v4653
      %vm4687 = vcmp.eq.s32.totalorder %v164, %v4656
      %vm4688 = vcmp.eq.s32.totalorder %v165, %v4656
      %4690 = vset.pattern.permute.xlu0 0
      %4691 = vperm.xlu0 %4690, %v4561
      %v4692 = vpop.permute.xlu0 %4691
      %4695 = vset.pattern.permute.xlu0 0
      %4696 = vperm.xlu0 %4695, %v4562
      %v4697 = vpop.permute.xlu0 %4696
      %4700 = vset.pattern.permute.xlu0 0
      %4701 = vperm.xlu0 %4700, %v4563
      %v4702 = vpop.permute.xlu0 %4701
      %4705 = vset.pattern.permute.xlu0 0
      %4706 = vperm.xlu0 %4705, %v4564
      %v4707 = vpop.permute.xlu0 %4706
      %4710 = vset.pattern.permute.xlu0 0
      %4711 = vperm.xlu0 %4710, %v4565
      %v4712 = vpop.permute.xlu0 %4711
      %4715 = vset.pattern.permute.xlu0 0
      %4716 = vperm.xlu0 %4715, %v4566
      %v4717 = vpop.permute.xlu0 %4716
      %4720 = vset.pattern.permute.xlu0 0
      %4721 = vperm.xlu0 %4720, %v4567
      %v4722 = vpop.permute.xlu0 %4721
      %4725 = vset.pattern.permute.xlu0 0
      %4726 = vperm.xlu0 %4725, %v4568
      %v4727 = vpop.permute.xlu0 %4726
      %4730 = vset.pattern.permute.xlu0 0
      %4731 = vperm.xlu0 %4730, %v4569
      %v4732 = vpop.permute.xlu0 %4731
      %4735 = vset.pattern.permute.xlu0 0
      %4736 = vperm.xlu0 %4735, %v4570
      %v4737 = vpop.permute.xlu0 %4736
      %4740 = vset.pattern.permute.xlu0 0
      %4741 = vperm.xlu0 %4740, %v4571
      %v4742 = vpop.permute.xlu0 %4741
      %4745 = vset.pattern.permute.xlu0 0
      %4746 = vperm.xlu0 %4745, %v4572
      %v4747 = vpop.permute.xlu0 %4746
      %4750 = vset.pattern.permute.xlu0 0
      %4751 = vperm.xlu0 %4750, %v4573
      %v4752 = vpop.permute.xlu0 %4751
      %4755 = vset.pattern.permute.xlu0 0
      %4756 = vperm.xlu0 %4755, %v4574
      %v4757 = vpop.permute.xlu0 %4756
      %4760 = vset.pattern.permute.xlu0 0
      %4761 = vperm.xlu0 %4760, %v4575
      %v4762 = vpop.permute.xlu0 %4761
      %4765 = vset.pattern.permute.xlu0 0
      %4766 = vperm.xlu0 %4765, %v4576
      %v4767 = vpop.permute.xlu0 %4766
      %v4769 = vsel %vm4657, %v4692, 0.0
      %v4770 = vsel %vm4658, %v4692, 0.0
      %v4771 = vsel %vm4659, %v4697, 0.0
      %v4772 = vsel %vm4660, %v4697, 0.0
      %v4773 = vsel %vm4661, %v4702, 0.0
      %v4774 = vsel %vm4662, %v4702, 0.0
      %v4775 = vsel %vm4663, %v4707, 0.0
      %v4776 = vsel %vm4664, %v4707, 0.0
      %v4777 = vsel %vm4665, %v4712, 0.0
      %v4778 = vsel %vm4666, %v4712, 0.0
      %v4779 = vsel %vm4667, %v4717, 0.0
      %v4780 = vsel %vm4668, %v4717, 0.0
      %v4781 = vsel %vm4669, %v4722, 0.0
      %v4782 = vsel %vm4670, %v4722, 0.0
      %v4783 = vsel %vm4671, %v4727, 0.0
      %v4784 = vsel %vm4672, %v4727, 0.0
      %v4785 = vsel %vm4673, %v4732, 0.0
      %v4786 = vsel %vm4674, %v4732, 0.0
      %v4787 = vsel %vm4675, %v4737, 0.0
      %v4788 = vsel %vm4676, %v4737, 0.0
      %v4789 = vsel %vm4677, %v4742, 0.0
      %v4790 = vsel %vm4678, %v4742, 0.0
      %v4791 = vsel %vm4679, %v4747, 0.0
      %v4792 = vsel %vm4680, %v4747, 0.0
      %v4793 = vsel %vm4681, %v4752, 0.0
      %v4794 = vsel %vm4682, %v4752, 0.0
      %v4795 = vsel %vm4683, %v4757, 0.0
      %v4796 = vsel %vm4684, %v4757, 0.0
      %v4797 = vsel %vm4685, %v4762, 0.0
      %v4798 = vsel %vm4686, %v4762, 0.0
      %v4799 = vsel %vm4687, %v4767, 0.0
      %v4800 = vsel %vm4688, %v4767, 0.0
      %v4801 = vadd.f32 %v4769, 0.0
      %v4802 = vadd.f32 %v4770, 0.0
      %v4803 = vadd.f32 %v4771, 0.0
      %v4804 = vadd.f32 %v4772, 0.0
      %v4805 = vadd.f32 %v4773, 0.0
      %v4806 = vadd.f32 %v4774, 0.0
      %v4807 = vadd.f32 %v4775, 0.0
      %v4808 = vadd.f32 %v4776, 0.0
      %v4809 = vadd.f32 %v4777, 0.0
      %v4810 = vadd.f32 %v4778, 0.0
      %v4811 = vadd.f32 %v4779, 0.0
      %v4812 = vadd.f32 %v4780, 0.0
      %v4813 = vadd.f32 %v4781, 0.0
      %v4814 = vadd.f32 %v4782, 0.0
      %v4815 = vadd.f32 %v4783, 0.0
      %v4816 = vadd.f32 %v4784, 0.0
      %v4817 = vadd.f32 %v4785, 0.0
      %v4818 = vadd.f32 %v4786, 0.0
      %v4819 = vadd.f32 %v4787, 0.0
      %v4820 = vadd.f32 %v4788, 0.0
      %v4821 = vadd.f32 %v4789, 0.0
      %v4822 = vadd.f32 %v4790, 0.0
      %v4823 = vadd.f32 %v4791, 0.0
      %v4824 = vadd.f32 %v4792, 0.0
      %v4825 = vadd.f32 %v4793, 0.0
      %v4826 = vadd.f32 %v4794, 0.0
      %v4827 = vadd.f32 %v4795, 0.0
      %v4828 = vadd.f32 %v4796, 0.0
      %v4829 = vadd.f32 %v4797, 0.0
      %v4830 = vadd.f32 %v4798, 0.0
      %v4831 = vadd.f32 %v4799, 0.0
      %v4832 = vadd.f32 %v4800, 0.0
      %vm4833 = vcmp.ge.s32.totalorder %v4337, 0
      %vm4834 = vcmp.ge.s32.totalorder %v4338, 0
      %vm4835 = vcmp.ge.s32.totalorder %v4339, 0
      %vm4836 = vcmp.ge.s32.totalorder %v4340, 0
      %vm4837 = vcmp.ge.s32.totalorder %v4341, 0
      %vm4838 = vcmp.ge.s32.totalorder %v4342, 0
      %vm4839 = vcmp.ge.s32.totalorder %v4343, 0
      %vm4840 = vcmp.ge.s32.totalorder %v4344, 0
      %vm4841 = vcmp.ge.s32.totalorder %v4345, 0
      %vm4842 = vcmp.ge.s32.totalorder %v4346, 0
      %vm4843 = vcmp.ge.s32.totalorder %v4347, 0
      %vm4844 = vcmp.ge.s32.totalorder %v4348, 0
      %vm4845 = vcmp.ge.s32.totalorder %v4349, 0
      %vm4846 = vcmp.ge.s32.totalorder %v4350, 0
      %vm4847 = vcmp.ge.s32.totalorder %v4351, 0
      %vm4848 = vcmp.ge.s32.totalorder %v4352, 0
      %vm4849 = vcmp.lt.s32.totalorder %v4337, 16
      %vm4850 = vcmp.lt.s32.totalorder %v4338, 16
      %vm4851 = vcmp.lt.s32.totalorder %v4339, 16
      %vm4852 = vcmp.lt.s32.totalorder %v4340, 16
      %vm4853 = vcmp.lt.s32.totalorder %v4341, 16
      %vm4854 = vcmp.lt.s32.totalorder %v4342, 16
      %vm4855 = vcmp.lt.s32.totalorder %v4343, 16
      %vm4856 = vcmp.lt.s32.totalorder %v4344, 16
      %vm4857 = vcmp.lt.s32.totalorder %v4345, 16
      %vm4858 = vcmp.lt.s32.totalorder %v4346, 16
      %vm4859 = vcmp.lt.s32.totalorder %v4347, 16
      %vm4860 = vcmp.lt.s32.totalorder %v4348, 16
      %vm4861 = vcmp.lt.s32.totalorder %v4349, 16
      %vm4862 = vcmp.lt.s32.totalorder %v4350, 16
      %vm4863 = vcmp.lt.s32.totalorder %v4351, 16
      %vm4864 = vcmp.lt.s32.totalorder %v4352, 16
      %vm4865 = vmand %vm4833, %vm4849
      %vm4866 = vmand %vm4834, %vm4850
      %vm4867 = vmand %vm4835, %vm4851
      %vm4868 = vmand %vm4836, %vm4852
      %vm4869 = vmand %vm4837, %vm4853
      %vm4870 = vmand %vm4838, %vm4854
      %vm4871 = vmand %vm4839, %vm4855
      %vm4872 = vmand %vm4840, %vm4856
      %vm4873 = vmand %vm4841, %vm4857
      %vm4874 = vmand %vm4842, %vm4858
      %vm4875 = vmand %vm4843, %vm4859
      %vm4876 = vmand %vm4844, %vm4860
      %vm4877 = vmand %vm4845, %vm4861
      %vm4878 = vmand %vm4846, %vm4862
      %vm4879 = vmand %vm4847, %vm4863
      %vm4880 = vmand %vm4848, %vm4864
      %vm4881 = vmand %vm4865, %vm4497
      %vm4882 = vmand %vm4866, %vm4498
      %vm4883 = vmand %vm4867, %vm4499
      %vm4884 = vmand %vm4868, %vm4500
      %vm4885 = vmand %vm4869, %vm4501
      %vm4886 = vmand %vm4870, %vm4502
      %vm4887 = vmand %vm4871, %vm4503
      %vm4888 = vmand %vm4872, %vm4504
      %vm4889 = vmand %vm4873, %vm4505
      %vm4890 = vmand %vm4874, %vm4506
      %vm4891 = vmand %vm4875, %vm4507
      %vm4892 = vmand %vm4876, %vm4508
      %vm4893 = vmand %vm4877, %vm4509
      %vm4894 = vmand %vm4878, %vm4510
      %vm4895 = vmand %vm4879, %vm4511
      %vm4896 = vmand %vm4880, %vm4512
      %vm4897 = vmand %vm4881, %vm4529
      %vm4898 = vmand %vm4882, %vm4530
      %vm4899 = vmand %vm4883, %vm4531
      %vm4900 = vmand %vm4884, %vm4532
      %vm4901 = vmand %vm4885, %vm4533
      %vm4902 = vmand %vm4886, %vm4534
      %vm4903 = vmand %vm4887, %vm4535
      %vm4904 = vmand %vm4888, %vm4536
      %vm4905 = vmand %vm4889, %vm4537
      %vm4906 = vmand %vm4890, %vm4538
      %vm4907 = vmand %vm4891, %vm4539
      %vm4908 = vmand %vm4892, %vm4540
      %vm4909 = vmand %vm4893, %vm4541
      %vm4910 = vmand %vm4894, %vm4542
      %vm4911 = vmand %vm4895, %vm4543
      %vm4912 = vmand %vm4896, %vm4544
      %v4913 = vsel %vm4897, %v4401, 0.0
      %v4914 = vsel %vm4898, %v4402, 0.0
      %v4915 = vsel %vm4899, %v4403, 0.0
      %v4916 = vsel %vm4900, %v4404, 0.0
      %v4917 = vsel %vm4901, %v4405, 0.0
      %v4918 = vsel %vm4902, %v4406, 0.0
      %v4919 = vsel %vm4903, %v4407, 0.0
      %v4920 = vsel %vm4904, %v4408, 0.0
      %v4921 = vsel %vm4905, %v4409, 0.0
      %v4922 = vsel %vm4906, %v4410, 0.0
      %v4923 = vsel %vm4907, %v4411, 0.0
      %v4924 = vsel %vm4908, %v4412, 0.0
      %v4925 = vsel %vm4909, %v4413, 0.0
      %v4926 = vsel %vm4910, %v4414, 0.0
      %v4927 = vsel %vm4911, %v4415, 0.0
      %v4928 = vsel %vm4912, %v4416, 0.0
      %v4929 = vadd.s32 %v4577, %v4337
      %v4930 = vadd.s32 %v4578, %v4338
      %v4931 = vadd.s32 %v4579, %v4339
      %v4932 = vadd.s32 %v4580, %v4340
      %v4933 = vadd.s32 %v4581, %v4341
      %v4934 = vadd.s32 %v4582, %v4342
      %v4935 = vadd.s32 %v4583, %v4343
      %v4936 = vadd.s32 %v4584, %v4344
      %v4937 = vadd.s32 %v4585, %v4345
      %v4938 = vadd.s32 %v4586, %v4346
      %v4939 = vadd.s32 %v4587, %v4347
      %v4940 = vadd.s32 %v4588, %v4348
      %v4941 = vadd.s32 %v4589, %v4349
      %v4942 = vadd.s32 %v4590, %v4350
      %v4943 = vadd.s32 %v4591, %v4351
      %v4944 = vadd.s32 %v4592, %v4352
      %4945 = vset.pattern.permute.xlu0 0
      %4946 = vperm.xlu0 %4945, %v4929
      %v4947 = vpop.permute.xlu0 %4946
      %4948 = vset.pattern.permute.xlu0 0
      %4949 = vperm.xlu0 %4948, %v4930
      %v4950 = vpop.permute.xlu0 %4949
      %4951 = vset.pattern.permute.xlu0 0
      %4952 = vperm.xlu0 %4951, %v4931
      %v4953 = vpop.permute.xlu0 %4952
      %4954 = vset.pattern.permute.xlu0 0
      %4955 = vperm.xlu0 %4954, %v4932
      %v4956 = vpop.permute.xlu0 %4955
      %4957 = vset.pattern.permute.xlu0 0
      %4958 = vperm.xlu0 %4957, %v4933
      %v4959 = vpop.permute.xlu0 %4958
      %4960 = vset.pattern.permute.xlu0 0
      %4961 = vperm.xlu0 %4960, %v4934
      %v4962 = vpop.permute.xlu0 %4961
      %4963 = vset.pattern.permute.xlu0 0
      %4964 = vperm.xlu0 %4963, %v4935
      %v4965 = vpop.permute.xlu0 %4964
      %4966 = vset.pattern.permute.xlu0 0
      %4967 = vperm.xlu0 %4966, %v4936
      %v4968 = vpop.permute.xlu0 %4967
      %4969 = vset.pattern.permute.xlu0 0
      %4970 = vperm.xlu0 %4969, %v4937
      %v4971 = vpop.permute.xlu0 %4970
      %4972 = vset.pattern.permute.xlu0 0
      %4973 = vperm.xlu0 %4972, %v4938
      %v4974 = vpop.permute.xlu0 %4973
      %4975 = vset.pattern.permute.xlu0 0
      %4976 = vperm.xlu0 %4975, %v4939
      %v4977 = vpop.permute.xlu0 %4976
      %4978 = vset.pattern.permute.xlu0 0
      %4979 = vperm.xlu0 %4978, %v4940
      %v4980 = vpop.permute.xlu0 %4979
      %4981 = vset.pattern.permute.xlu0 0
      %4982 = vperm.xlu0 %4981, %v4941
      %v4983 = vpop.permute.xlu0 %4982
      %4984 = vset.pattern.permute.xlu0 0
      %4985 = vperm.xlu0 %4984, %v4942
      %v4986 = vpop.permute.xlu0 %4985
      %4987 = vset.pattern.permute.xlu0 0
      %4988 = vperm.xlu0 %4987, %v4943
      %v4989 = vpop.permute.xlu0 %4988
      %4990 = vset.pattern.permute.xlu0 0
      %4991 = vperm.xlu0 %4990, %v4944
      %v4992 = vpop.permute.xlu0 %4991
      %vm4993 = vcmp.eq.s32.totalorder %v164, %v4947
      %vm4994 = vcmp.eq.s32.totalorder %v165, %v4947
      %vm4995 = vcmp.eq.s32.totalorder %v164, %v4950
      %vm4996 = vcmp.eq.s32.totalorder %v165, %v4950
      %vm4997 = vcmp.eq.s32.totalorder %v164, %v4953
      %vm4998 = vcmp.eq.s32.totalorder %v165, %v4953
      %vm4999 = vcmp.eq.s32.totalorder %v164, %v4956
      %vm5000 = vcmp.eq.s32.totalorder %v165, %v4956
      %vm5001 = vcmp.eq.s32.totalorder %v164, %v4959
      %vm5002 = vcmp.eq.s32.totalorder %v165, %v4959
      %vm5003 = vcmp.eq.s32.totalorder %v164, %v4962
      %vm5004 = vcmp.eq.s32.totalorder %v165, %v4962
      %vm5005 = vcmp.eq.s32.totalorder %v164, %v4965
      %vm5006 = vcmp.eq.s32.totalorder %v165, %v4965
      %vm5007 = vcmp.eq.s32.totalorder %v164, %v4968
      %vm5008 = vcmp.eq.s32.totalorder %v165, %v4968
      %vm5009 = vcmp.eq.s32.totalorder %v164, %v4971
      %vm5010 = vcmp.eq.s32.totalorder %v165, %v4971
      %vm5011 = vcmp.eq.s32.totalorder %v164, %v4974
      %vm5012 = vcmp.eq.s32.totalorder %v165, %v4974
      %vm5013 = vcmp.eq.s32.totalorder %v164, %v4977
      %vm5014 = vcmp.eq.s32.totalorder %v165, %v4977
      %vm5015 = vcmp.eq.s32.totalorder %v164, %v4980
      %vm5016 = vcmp.eq.s32.totalorder %v165, %v4980
      %vm5017 = vcmp.eq.s32.totalorder %v164, %v4983
      %vm5018 = vcmp.eq.s32.totalorder %v165, %v4983
      %vm5019 = vcmp.eq.s32.totalorder %v164, %v4986
      %vm5020 = vcmp.eq.s32.totalorder %v165, %v4986
      %vm5021 = vcmp.eq.s32.totalorder %v164, %v4989
      %vm5022 = vcmp.eq.s32.totalorder %v165, %v4989
      %vm5023 = vcmp.eq.s32.totalorder %v164, %v4992
      %vm5024 = vcmp.eq.s32.totalorder %v165, %v4992
      %5026 = vset.pattern.permute.xlu0 0
      %5027 = vperm.xlu0 %5026, %v4913
      %v5028 = vpop.permute.xlu0 %5027
      %5031 = vset.pattern.permute.xlu0 0
      %5032 = vperm.xlu0 %5031, %v4914
      %v5033 = vpop.permute.xlu0 %5032
      %5036 = vset.pattern.permute.xlu0 0
      %5037 = vperm.xlu0 %5036, %v4915
      %v5038 = vpop.permute.xlu0 %5037
      %5041 = vset.pattern.permute.xlu0 0
      %5042 = vperm.xlu0 %5041, %v4916
      %v5043 = vpop.permute.xlu0 %5042
      %5046 = vset.pattern.permute.xlu0 0
      %5047 = vperm.xlu0 %5046, %v4917
      %v5048 = vpop.permute.xlu0 %5047
      %5051 = vset.pattern.permute.xlu0 0
      %5052 = vperm.xlu0 %5051, %v4918
      %v5053 = vpop.permute.xlu0 %5052
      %5056 = vset.pattern.permute.xlu0 0
      %5057 = vperm.xlu0 %5056, %v4919
      %v5058 = vpop.permute.xlu0 %5057
      %5061 = vset.pattern.permute.xlu0 0
      %5062 = vperm.xlu0 %5061, %v4920
      %v5063 = vpop.permute.xlu0 %5062
      %5066 = vset.pattern.permute.xlu0 0
      %5067 = vperm.xlu0 %5066, %v4921
      %v5068 = vpop.permute.xlu0 %5067
      %5071 = vset.pattern.permute.xlu0 0
      %5072 = vperm.xlu0 %5071, %v4922
      %v5073 = vpop.permute.xlu0 %5072
      %5076 = vset.pattern.permute.xlu0 0
      %5077 = vperm.xlu0 %5076, %v4923
      %v5078 = vpop.permute.xlu0 %5077
      %5081 = vset.pattern.permute.xlu0 0
      %5082 = vperm.xlu0 %5081, %v4924
      %v5083 = vpop.permute.xlu0 %5082
      %5086 = vset.pattern.permute.xlu0 0
      %5087 = vperm.xlu0 %5086, %v4925
      %v5088 = vpop.permute.xlu0 %5087
      %5091 = vset.pattern.permute.xlu0 0
      %5092 = vperm.xlu0 %5091, %v4926
      %v5093 = vpop.permute.xlu0 %5092
      %5096 = vset.pattern.permute.xlu0 0
      %5097 = vperm.xlu0 %5096, %v4927
      %v5098 = vpop.permute.xlu0 %5097
      %5101 = vset.pattern.permute.xlu0 0
      %5102 = vperm.xlu0 %5101, %v4928
      %v5103 = vpop.permute.xlu0 %5102
      %v5105 = vsel %vm4993, %v5028, 0.0
      %v5106 = vsel %vm4994, %v5028, 0.0
      %v5107 = vsel %vm4995, %v5033, 0.0
      %v5108 = vsel %vm4996, %v5033, 0.0
      %v5109 = vsel %vm4997, %v5038, 0.0
      %v5110 = vsel %vm4998, %v5038, 0.0
      %v5111 = vsel %vm4999, %v5043, 0.0
      %v5112 = vsel %vm5000, %v5043, 0.0
      %v5113 = vsel %vm5001, %v5048, 0.0
      %v5114 = vsel %vm5002, %v5048, 0.0
      %v5115 = vsel %vm5003, %v5053, 0.0
      %v5116 = vsel %vm5004, %v5053, 0.0
      %v5117 = vsel %vm5005, %v5058, 0.0
      %v5118 = vsel %vm5006, %v5058, 0.0
      %v5119 = vsel %vm5007, %v5063, 0.0
      %v5120 = vsel %vm5008, %v5063, 0.0
      %v5121 = vsel %vm5009, %v5068, 0.0
      %v5122 = vsel %vm5010, %v5068, 0.0
      %v5123 = vsel %vm5011, %v5073, 0.0
      %v5124 = vsel %vm5012, %v5073, 0.0
      %v5125 = vsel %vm5013, %v5078, 0.0
      %v5126 = vsel %vm5014, %v5078, 0.0
      %v5127 = vsel %vm5015, %v5083, 0.0
      %v5128 = vsel %vm5016, %v5083, 0.0
      %v5129 = vsel %vm5017, %v5088, 0.0
      %v5130 = vsel %vm5018, %v5088, 0.0
      %v5131 = vsel %vm5019, %v5093, 0.0
      %v5132 = vsel %vm5020, %v5093, 0.0
      %v5133 = vsel %vm5021, %v5098, 0.0
      %v5134 = vsel %vm5022, %v5098, 0.0
      %v5135 = vsel %vm5023, %v5103, 0.0
      %v5136 = vsel %vm5024, %v5103, 0.0
      %v5137 = vadd.f32 %v4801, %v5105
      %v5138 = vadd.f32 %v4802, %v5106
      %v5139 = vadd.f32 %v4803, %v5107
      %v5140 = vadd.f32 %v4804, %v5108
      %v5141 = vadd.f32 %v4805, %v5109
      %v5142 = vadd.f32 %v4806, %v5110
      %v5143 = vadd.f32 %v4807, %v5111
      %v5144 = vadd.f32 %v4808, %v5112
      %v5145 = vadd.f32 %v4809, %v5113
      %v5146 = vadd.f32 %v4810, %v5114
      %v5147 = vadd.f32 %v4811, %v5115
      %v5148 = vadd.f32 %v4812, %v5116
      %v5149 = vadd.f32 %v4813, %v5117
      %v5150 = vadd.f32 %v4814, %v5118
      %v5151 = vadd.f32 %v4815, %v5119
      %v5152 = vadd.f32 %v4816, %v5120
      %v5153 = vadd.f32 %v4817, %v5121
      %v5154 = vadd.f32 %v4818, %v5122
      %v5155 = vadd.f32 %v4819, %v5123
      %v5156 = vadd.f32 %v4820, %v5124
      %v5157 = vadd.f32 %v4821, %v5125
      %v5158 = vadd.f32 %v4822, %v5126
      %v5159 = vadd.f32 %v4823, %v5127
      %v5160 = vadd.f32 %v4824, %v5128
      %v5161 = vadd.f32 %v4825, %v5129
      %v5162 = vadd.f32 %v4826, %v5130
      %v5163 = vadd.f32 %v4827, %v5131
      %v5164 = vadd.f32 %v4828, %v5132
      %v5165 = vadd.f32 %v4829, %v5133
      %v5166 = vadd.f32 %v4830, %v5134
      %v5167 = vadd.f32 %v4831, %v5135
      %v5168 = vadd.f32 %v4832, %v5136
      %vm5169 = vcmp.ge.s32.totalorder %v4369, 0
      %vm5170 = vcmp.ge.s32.totalorder %v4370, 0
      %vm5171 = vcmp.ge.s32.totalorder %v4371, 0
      %vm5172 = vcmp.ge.s32.totalorder %v4372, 0
      %vm5173 = vcmp.ge.s32.totalorder %v4373, 0
      %vm5174 = vcmp.ge.s32.totalorder %v4374, 0
      %vm5175 = vcmp.ge.s32.totalorder %v4375, 0
      %vm5176 = vcmp.ge.s32.totalorder %v4376, 0
      %vm5177 = vcmp.ge.s32.totalorder %v4377, 0
      %vm5178 = vcmp.ge.s32.totalorder %v4378, 0
      %vm5179 = vcmp.ge.s32.totalorder %v4379, 0
      %vm5180 = vcmp.ge.s32.totalorder %v4380, 0
      %vm5181 = vcmp.ge.s32.totalorder %v4381, 0
      %vm5182 = vcmp.ge.s32.totalorder %v4382, 0
      %vm5183 = vcmp.ge.s32.totalorder %v4383, 0
      %vm5184 = vcmp.ge.s32.totalorder %v4384, 0
      %vm5185 = vmand %vm4481, %vm5169
      %vm5186 = vmand %vm4482, %vm5170
      %vm5187 = vmand %vm4483, %vm5171
      %vm5188 = vmand %vm4484, %vm5172
      %vm5189 = vmand %vm4485, %vm5173
      %vm5190 = vmand %vm4486, %vm5174
      %vm5191 = vmand %vm4487, %vm5175
      %vm5192 = vmand %vm4488, %vm5176
      %vm5193 = vmand %vm4489, %vm5177
      %vm5194 = vmand %vm4490, %vm5178
      %vm5195 = vmand %vm4491, %vm5179
      %vm5196 = vmand %vm4492, %vm5180
      %vm5197 = vmand %vm4493, %vm5181
      %vm5198 = vmand %vm4494, %vm5182
      %vm5199 = vmand %vm4495, %vm5183
      %vm5200 = vmand %vm4496, %vm5184
      %vm5201 = vcmp.lt.s32.totalorder %v4369, 16
      %vm5202 = vcmp.lt.s32.totalorder %v4370, 16
      %vm5203 = vcmp.lt.s32.totalorder %v4371, 16
      %vm5204 = vcmp.lt.s32.totalorder %v4372, 16
      %vm5205 = vcmp.lt.s32.totalorder %v4373, 16
      %vm5206 = vcmp.lt.s32.totalorder %v4374, 16
      %vm5207 = vcmp.lt.s32.totalorder %v4375, 16
      %vm5208 = vcmp.lt.s32.totalorder %v4376, 16
      %vm5209 = vcmp.lt.s32.totalorder %v4377, 16
      %vm5210 = vcmp.lt.s32.totalorder %v4378, 16
      %vm5211 = vcmp.lt.s32.totalorder %v4379, 16
      %vm5212 = vcmp.lt.s32.totalorder %v4380, 16
      %vm5213 = vcmp.lt.s32.totalorder %v4381, 16
      %vm5214 = vcmp.lt.s32.totalorder %v4382, 16
      %vm5215 = vcmp.lt.s32.totalorder %v4383, 16
      %vm5216 = vcmp.lt.s32.totalorder %v4384, 16
      %vm5217 = vmand %vm5185, %vm5201
      %vm5218 = vmand %vm5186, %vm5202
      %vm5219 = vmand %vm5187, %vm5203
      %vm5220 = vmand %vm5188, %vm5204
      %vm5221 = vmand %vm5189, %vm5205
      %vm5222 = vmand %vm5190, %vm5206
      %vm5223 = vmand %vm5191, %vm5207
      %vm5224 = vmand %vm5192, %vm5208
      %vm5225 = vmand %vm5193, %vm5209
      %vm5226 = vmand %vm5194, %vm5210
      %vm5227 = vmand %vm5195, %vm5211
      %vm5228 = vmand %vm5196, %vm5212
      %vm5229 = vmand %vm5197, %vm5213
      %vm5230 = vmand %vm5198, %vm5214
      %vm5231 = vmand %vm5199, %vm5215
      %vm5232 = vmand %vm5200, %vm5216
      %v5233 = vsel %vm5217, %v4417, 0.0
      %v5234 = vsel %vm5218, %v4418, 0.0
      %v5235 = vsel %vm5219, %v4419, 0.0
      %v5236 = vsel %vm5220, %v4420, 0.0
      %v5237 = vsel %vm5221, %v4421, 0.0
      %v5238 = vsel %vm5222, %v4422, 0.0
      %v5239 = vsel %vm5223, %v4423, 0.0
      %v5240 = vsel %vm5224, %v4424, 0.0
      %v5241 = vsel %vm5225, %v4425, 0.0
      %v5242 = vsel %vm5226, %v4426, 0.0
      %v5243 = vsel %vm5227, %v4427, 0.0
      %v5244 = vsel %vm5228, %v4428, 0.0
      %v5245 = vsel %vm5229, %v4429, 0.0
      %v5246 = vsel %vm5230, %v4430, 0.0
      %v5247 = vsel %vm5231, %v4431, 0.0
      %v5248 = vsel %vm5232, %v4432, 0.0
      %v5249 = vmul.u32 %v4369, 16
      %v5250 = vmul.u32 %v4370, 16
      %v5251 = vmul.u32 %v4371, 16
      %v5252 = vmul.u32 %v4372, 16
      %v5253 = vmul.u32 %v4373, 16
      %v5254 = vmul.u32 %v4374, 16
      %v5255 = vmul.u32 %v4375, 16
      %v5256 = vmul.u32 %v4376, 16
      %v5257 = vmul.u32 %v4377, 16
      %v5258 = vmul.u32 %v4378, 16
      %v5259 = vmul.u32 %v4379, 16
      %v5260 = vmul.u32 %v4380, 16
      %v5261 = vmul.u32 %v4381, 16
      %v5262 = vmul.u32 %v4382, 16
      %v5263 = vmul.u32 %v4383, 16
      %v5264 = vmul.u32 %v4384, 16
      %v5265 = vadd.s32 %v5249, %v4321
      %v5266 = vadd.s32 %v5250, %v4322
      %v5267 = vadd.s32 %v5251, %v4323
      %v5268 = vadd.s32 %v5252, %v4324
      %v5269 = vadd.s32 %v5253, %v4325
      %v5270 = vadd.s32 %v5254, %v4326
      %v5271 = vadd.s32 %v5255, %v4327
      %v5272 = vadd.s32 %v5256, %v4328
      %v5273 = vadd.s32 %v5257, %v4329
      %v5274 = vadd.s32 %v5258, %v4330
      %v5275 = vadd.s32 %v5259, %v4331
      %v5276 = vadd.s32 %v5260, %v4332
      %v5277 = vadd.s32 %v5261, %v4333
      %v5278 = vadd.s32 %v5262, %v4334
      %v5279 = vadd.s32 %v5263, %v4335
      %v5280 = vadd.s32 %v5264, %v4336
      %5281 = vset.pattern.permute.xlu0 0
      %5282 = vperm.xlu0 %5281, %v5265
      %v5283 = vpop.permute.xlu0 %5282
      %5284 = vset.pattern.permute.xlu0 0
      %5285 = vperm.xlu0 %5284, %v5266
      %v5286 = vpop.permute.xlu0 %5285
      %5287 = vset.pattern.permute.xlu0 0
      %5288 = vperm.xlu0 %5287, %v5267
      %v5289 = vpop.permute.xlu0 %5288
      %5290 = vset.pattern.permute.xlu0 0
      %5291 = vperm.xlu0 %5290, %v5268
      %v5292 = vpop.permute.xlu0 %5291
      %5293 = vset.pattern.permute.xlu0 0
      %5294 = vperm.xlu0 %5293, %v5269
      %v5295 = vpop.permute.xlu0 %5294
      %5296 = vset.pattern.permute.xlu0 0
      %5297 = vperm.xlu0 %5296, %v5270
      %v5298 = vpop.permute.xlu0 %5297
      %5299 = vset.pattern.permute.xlu0 0
      %5300 = vperm.xlu0 %5299, %v5271
      %v5301 = vpop.permute.xlu0 %5300
      %5302 = vset.pattern.permute.xlu0 0
      %5303 = vperm.xlu0 %5302, %v5272
      %v5304 = vpop.permute.xlu0 %5303
      %5305 = vset.pattern.permute.xlu0 0
      %5306 = vperm.xlu0 %5305, %v5273
      %v5307 = vpop.permute.xlu0 %5306
      %5308 = vset.pattern.permute.xlu0 0
      %5309 = vperm.xlu0 %5308, %v5274
      %v5310 = vpop.permute.xlu0 %5309
      %5311 = vset.pattern.permute.xlu0 0
      %5312 = vperm.xlu0 %5311, %v5275
      %v5313 = vpop.permute.xlu0 %5312
      %5314 = vset.pattern.permute.xlu0 0
      %5315 = vperm.xlu0 %5314, %v5276
      %v5316 = vpop.permute.xlu0 %5315
      %5317 = vset.pattern.permute.xlu0 0
      %5318 = vperm.xlu0 %5317, %v5277
      %v5319 = vpop.permute.xlu0 %5318
      %5320 = vset.pattern.permute.xlu0 0
      %5321 = vperm.xlu0 %5320, %v5278
      %v5322 = vpop.permute.xlu0 %5321
      %5323 = vset.pattern.permute.xlu0 0
      %5324 = vperm.xlu0 %5323, %v5279
      %v5325 = vpop.permute.xlu0 %5324
      %5326 = vset.pattern.permute.xlu0 0
      %5327 = vperm.xlu0 %5326, %v5280
      %v5328 = vpop.permute.xlu0 %5327
      %vm5329 = vcmp.eq.s32.totalorder %v164, %v5283
      %vm5330 = vcmp.eq.s32.totalorder %v165, %v5283
      %vm5331 = vcmp.eq.s32.totalorder %v164, %v5286
      %vm5332 = vcmp.eq.s32.totalorder %v165, %v5286
      %vm5333 = vcmp.eq.s32.totalorder %v164, %v5289
      %vm5334 = vcmp.eq.s32.totalorder %v165, %v5289
      %vm5335 = vcmp.eq.s32.totalorder %v164, %v5292
      %vm5336 = vcmp.eq.s32.totalorder %v165, %v5292
      %vm5337 = vcmp.eq.s32.totalorder %v164, %v5295
      %vm5338 = vcmp.eq.s32.totalorder %v165, %v5295
      %vm5339 = vcmp.eq.s32.totalorder %v164, %v5298
      %vm5340 = vcmp.eq.s32.totalorder %v165, %v5298
      %vm5341 = vcmp.eq.s32.totalorder %v164, %v5301
      %vm5342 = vcmp.eq.s32.totalorder %v165, %v5301
      %vm5343 = vcmp.eq.s32.totalorder %v164, %v5304
      %vm5344 = vcmp.eq.s32.totalorder %v165, %v5304
      %vm5345 = vcmp.eq.s32.totalorder %v164, %v5307
      %vm5346 = vcmp.eq.s32.totalorder %v165, %v5307
      %vm5347 = vcmp.eq.s32.totalorder %v164, %v5310
      %vm5348 = vcmp.eq.s32.totalorder %v165, %v5310
      %vm5349 = vcmp.eq.s32.totalorder %v164, %v5313
      %vm5350 = vcmp.eq.s32.totalorder %v165, %v5313
      %vm5351 = vcmp.eq.s32.totalorder %v164, %v5316
      %vm5352 = vcmp.eq.s32.totalorder %v165, %v5316
      %vm5353 = vcmp.eq.s32.totalorder %v164, %v5319
      %vm5354 = vcmp.eq.s32.totalorder %v165, %v5319
      %vm5355 = vcmp.eq.s32.totalorder %v164, %v5322
      %vm5356 = vcmp.eq.s32.totalorder %v165, %v5322
      %vm5357 = vcmp.eq.s32.totalorder %v164, %v5325
      %vm5358 = vcmp.eq.s32.totalorder %v165, %v5325
      %vm5359 = vcmp.eq.s32.totalorder %v164, %v5328
      %vm5360 = vcmp.eq.s32.totalorder %v165, %v5328
      %5362 = vset.pattern.permute.xlu0 0
      %5363 = vperm.xlu0 %5362, %v5233
      %v5364 = vpop.permute.xlu0 %5363
      %5367 = vset.pattern.permute.xlu0 0
      %5368 = vperm.xlu0 %5367, %v5234
      %v5369 = vpop.permute.xlu0 %5368
      %5372 = vset.pattern.permute.xlu0 0
      %5373 = vperm.xlu0 %5372, %v5235
      %v5374 = vpop.permute.xlu0 %5373
      %5377 = vset.pattern.permute.xlu0 0
      %5378 = vperm.xlu0 %5377, %v5236
      %v5379 = vpop.permute.xlu0 %5378
      %5382 = vset.pattern.permute.xlu0 0
      %5383 = vperm.xlu0 %5382, %v5237
      %v5384 = vpop.permute.xlu0 %5383
      %5387 = vset.pattern.permute.xlu0 0
      %5388 = vperm.xlu0 %5387, %v5238
      %v5389 = vpop.permute.xlu0 %5388
      %5392 = vset.pattern.permute.xlu0 0
      %5393 = vperm.xlu0 %5392, %v5239
      %v5394 = vpop.permute.xlu0 %5393
      %5397 = vset.pattern.permute.xlu0 0
      %5398 = vperm.xlu0 %5397, %v5240
      %v5399 = vpop.permute.xlu0 %5398
      %5402 = vset.pattern.permute.xlu0 0
      %5403 = vperm.xlu0 %5402, %v5241
      %v5404 = vpop.permute.xlu0 %5403
      %5407 = vset.pattern.permute.xlu0 0
      %5408 = vperm.xlu0 %5407, %v5242
      %v5409 = vpop.permute.xlu0 %5408
      %5412 = vset.pattern.permute.xlu0 0
      %5413 = vperm.xlu0 %5412, %v5243
      %v5414 = vpop.permute.xlu0 %5413
      %5417 = vset.pattern.permute.xlu0 0
      %5418 = vperm.xlu0 %5417, %v5244
      %v5419 = vpop.permute.xlu0 %5418
      %5422 = vset.pattern.permute.xlu0 0
      %5423 = vperm.xlu0 %5422, %v5245
      %v5424 = vpop.permute.xlu0 %5423
      %5427 = vset.pattern.permute.xlu0 0
      %5428 = vperm.xlu0 %5427, %v5246
      %v5429 = vpop.permute.xlu0 %5428
      %5432 = vset.pattern.permute.xlu0 0
      %5433 = vperm.xlu0 %5432, %v5247
      %v5434 = vpop.permute.xlu0 %5433
      %5437 = vset.pattern.permute.xlu0 0
      %5438 = vperm.xlu0 %5437, %v5248
      %v5439 = vpop.permute.xlu0 %5438
      %v5441 = vsel %vm5329, %v5364, 0.0
      %v5442 = vsel %vm5330, %v5364, 0.0
      %v5443 = vsel %vm5331, %v5369, 0.0
      %v5444 = vsel %vm5332, %v5369, 0.0
      %v5445 = vsel %vm5333, %v5374, 0.0
      %v5446 = vsel %vm5334, %v5374, 0.0
      %v5447 = vsel %vm5335, %v5379, 0.0
      %v5448 = vsel %vm5336, %v5379, 0.0
      %v5449 = vsel %vm5337, %v5384, 0.0
      %v5450 = vsel %vm5338, %v5384, 0.0
      %v5451 = vsel %vm5339, %v5389, 0.0
      %v5452 = vsel %vm5340, %v5389, 0.0
      %v5453 = vsel %vm5341, %v5394, 0.0
      %v5454 = vsel %vm5342, %v5394, 0.0
      %v5455 = vsel %vm5343, %v5399, 0.0
      %v5456 = vsel %vm5344, %v5399, 0.0
      %v5457 = vsel %vm5345, %v5404, 0.0
      %v5458 = vsel %vm5346, %v5404, 0.0
      %v5459 = vsel %vm5347, %v5409, 0.0
      %v5460 = vsel %vm5348, %v5409, 0.0
      %v5461 = vsel %vm5349, %v5414, 0.0
      %v5462 = vsel %vm5350, %v5414, 0.0
      %v5463 = vsel %vm5351, %v5419, 0.0
      %v5464 = vsel %vm5352, %v5419, 0.0
      %v5465 = vsel %vm5353, %v5424, 0.0
      %v5466 = vsel %vm5354, %v5424, 0.0
      %v5467 = vsel %vm5355, %v5429, 0.0
      %v5468 = vsel %vm5356, %v5429, 0.0
      %v5469 = vsel %vm5357, %v5434, 0.0
      %v5470 = vsel %vm5358, %v5434, 0.0
      %v5471 = vsel %vm5359, %v5439, 0.0
      %v5472 = vsel %vm5360, %v5439, 0.0
      %v5473 = vadd.f32 %v5137, %v5441
      %v5474 = vadd.f32 %v5138, %v5442
      %v5475 = vadd.f32 %v5139, %v5443
      %v5476 = vadd.f32 %v5140, %v5444
      %v5477 = vadd.f32 %v5141, %v5445
      %v5478 = vadd.f32 %v5142, %v5446
      %v5479 = vadd.f32 %v5143, %v5447
      %v5480 = vadd.f32 %v5144, %v5448
      %v5481 = vadd.f32 %v5145, %v5449
      %v5482 = vadd.f32 %v5146, %v5450
      %v5483 = vadd.f32 %v5147, %v5451
      %v5484 = vadd.f32 %v5148, %v5452
      %v5485 = vadd.f32 %v5149, %v5453
      %v5486 = vadd.f32 %v5150, %v5454
      %v5487 = vadd.f32 %v5151, %v5455
      %v5488 = vadd.f32 %v5152, %v5456
      %v5489 = vadd.f32 %v5153, %v5457
      %v5490 = vadd.f32 %v5154, %v5458
      %v5491 = vadd.f32 %v5155, %v5459
      %v5492 = vadd.f32 %v5156, %v5460
      %v5493 = vadd.f32 %v5157, %v5461
      %v5494 = vadd.f32 %v5158, %v5462
      %v5495 = vadd.f32 %v5159, %v5463
      %v5496 = vadd.f32 %v5160, %v5464
      %v5497 = vadd.f32 %v5161, %v5465
      %v5498 = vadd.f32 %v5162, %v5466
      %v5499 = vadd.f32 %v5163, %v5467
      %v5500 = vadd.f32 %v5164, %v5468
      %v5501 = vadd.f32 %v5165, %v5469
      %v5502 = vadd.f32 %v5166, %v5470
      %v5503 = vadd.f32 %v5167, %v5471
      %v5504 = vadd.f32 %v5168, %v5472
      %vm5505 = vmand %vm4865, %vm5169
      %vm5506 = vmand %vm4866, %vm5170
      %vm5507 = vmand %vm4867, %vm5171
      %vm5508 = vmand %vm4868, %vm5172
      %vm5509 = vmand %vm4869, %vm5173
      %vm5510 = vmand %vm4870, %vm5174
      %vm5511 = vmand %vm4871, %vm5175
      %vm5512 = vmand %vm4872, %vm5176
      %vm5513 = vmand %vm4873, %vm5177
      %vm5514 = vmand %vm4874, %vm5178
      %vm5515 = vmand %vm4875, %vm5179
      %vm5516 = vmand %vm4876, %vm5180
      %vm5517 = vmand %vm4877, %vm5181
      %vm5518 = vmand %vm4878, %vm5182
      %vm5519 = vmand %vm4879, %vm5183
      %vm5520 = vmand %vm4880, %vm5184
      %vm5521 = vmand %vm5505, %vm5201
      %vm5522 = vmand %vm5506, %vm5202
      %vm5523 = vmand %vm5507, %vm5203
      %vm5524 = vmand %vm5508, %vm5204
      %vm5525 = vmand %vm5509, %vm5205
      %vm5526 = vmand %vm5510, %vm5206
      %vm5527 = vmand %vm5511, %vm5207
      %vm5528 = vmand %vm5512, %vm5208
      %vm5529 = vmand %vm5513, %vm5209
      %vm5530 = vmand %vm5514, %vm5210
      %vm5531 = vmand %vm5515, %vm5211
      %vm5532 = vmand %vm5516, %vm5212
      %vm5533 = vmand %vm5517, %vm5213
      %vm5534 = vmand %vm5518, %vm5214
      %vm5535 = vmand %vm5519, %vm5215
      %vm5536 = vmand %vm5520, %vm5216
      %v5537 = vsel %vm5521, %v4433, 0.0
      %v5538 = vsel %vm5522, %v4434, 0.0
      %v5539 = vsel %vm5523, %v4435, 0.0
      %v5540 = vsel %vm5524, %v4436, 0.0
      %v5541 = vsel %vm5525, %v4437, 0.0
      %v5542 = vsel %vm5526, %v4438, 0.0
      %v5543 = vsel %vm5527, %v4439, 0.0
      %v5544 = vsel %vm5528, %v4440, 0.0
      %v5545 = vsel %vm5529, %v4441, 0.0
      %v5546 = vsel %vm5530, %v4442, 0.0
      %v5547 = vsel %vm5531, %v4443, 0.0
      %v5548 = vsel %vm5532, %v4444, 0.0
      %v5549 = vsel %vm5533, %v4445, 0.0
      %v5550 = vsel %vm5534, %v4446, 0.0
      %v5551 = vsel %vm5535, %v4447, 0.0
      %v5552 = vsel %vm5536, %v4448, 0.0
      %v5553 = vadd.s32 %v5249, %v4337
      %v5554 = vadd.s32 %v5250, %v4338
      %v5555 = vadd.s32 %v5251, %v4339
      %v5556 = vadd.s32 %v5252, %v4340
      %v5557 = vadd.s32 %v5253, %v4341
      %v5558 = vadd.s32 %v5254, %v4342
      %v5559 = vadd.s32 %v5255, %v4343
      %v5560 = vadd.s32 %v5256, %v4344
      %v5561 = vadd.s32 %v5257, %v4345
      %v5562 = vadd.s32 %v5258, %v4346
      %v5563 = vadd.s32 %v5259, %v4347
      %v5564 = vadd.s32 %v5260, %v4348
      %v5565 = vadd.s32 %v5261, %v4349
      %v5566 = vadd.s32 %v5262, %v4350
      %v5567 = vadd.s32 %v5263, %v4351
      %v5568 = vadd.s32 %v5264, %v4352
      %5569 = vset.pattern.permute.xlu0 0
      %5570 = vperm.xlu0 %5569, %v5553
      %v5571 = vpop.permute.xlu0 %5570
      %5572 = vset.pattern.permute.xlu0 0
      %5573 = vperm.xlu0 %5572, %v5554
      %v5574 = vpop.permute.xlu0 %5573
      %5575 = vset.pattern.permute.xlu0 0
      %5576 = vperm.xlu0 %5575, %v5555
      %v5577 = vpop.permute.xlu0 %5576
      %5578 = vset.pattern.permute.xlu0 0
      %5579 = vperm.xlu0 %5578, %v5556
      %v5580 = vpop.permute.xlu0 %5579
      %5581 = vset.pattern.permute.xlu0 0
      %5582 = vperm.xlu0 %5581, %v5557
      %v5583 = vpop.permute.xlu0 %5582
      %5584 = vset.pattern.permute.xlu0 0
      %5585 = vperm.xlu0 %5584, %v5558
      %v5586 = vpop.permute.xlu0 %5585
      %5587 = vset.pattern.permute.xlu0 0
      %5588 = vperm.xlu0 %5587, %v5559
      %v5589 = vpop.permute.xlu0 %5588
      %5590 = vset.pattern.permute.xlu0 0
      %5591 = vperm.xlu0 %5590, %v5560
      %v5592 = vpop.permute.xlu0 %5591
      %5593 = vset.pattern.permute.xlu0 0
      %5594 = vperm.xlu0 %5593, %v5561
      %v5595 = vpop.permute.xlu0 %5594
      %5596 = vset.pattern.permute.xlu0 0
      %5597 = vperm.xlu0 %5596, %v5562
      %v5598 = vpop.permute.xlu0 %5597
      %5599 = vset.pattern.permute.xlu0 0
      %5600 = vperm.xlu0 %5599, %v5563
      %v5601 = vpop.permute.xlu0 %5600
      %5602 = vset.pattern.permute.xlu0 0
      %5603 = vperm.xlu0 %5602, %v5564
      %v5604 = vpop.permute.xlu0 %5603
      %5605 = vset.pattern.permute.xlu0 0
      %5606 = vperm.xlu0 %5605, %v5565
      %v5607 = vpop.permute.xlu0 %5606
      %5608 = vset.pattern.permute.xlu0 0
      %5609 = vperm.xlu0 %5608, %v5566
      %v5610 = vpop.permute.xlu0 %5609
      %5611 = vset.pattern.permute.xlu0 0
      %5612 = vperm.xlu0 %5611, %v5567
      %v5613 = vpop.permute.xlu0 %5612
      %5614 = vset.pattern.permute.xlu0 0
      %5615 = vperm.xlu0 %5614, %v5568
      %v5616 = vpop.permute.xlu0 %5615
      %vm5617 = vcmp.eq.s32.totalorder %v164, %v5571
      %vm5618 = vcmp.eq.s32.totalorder %v165, %v5571
      %vm5619 = vcmp.eq.s32.totalorder %v164, %v5574
      %vm5620 = vcmp.eq.s32.totalorder %v165, %v5574
      %vm5621 = vcmp.eq.s32.totalorder %v164, %v5577
      %vm5622 = vcmp.eq.s32.totalorder %v165, %v5577
      %vm5623 = vcmp.eq.s32.totalorder %v164, %v5580
      %vm5624 = vcmp.eq.s32.totalorder %v165, %v5580
      %vm5625 = vcmp.eq.s32.totalorder %v164, %v5583
      %vm5626 = vcmp.eq.s32.totalorder %v165, %v5583
      %vm5627 = vcmp.eq.s32.totalorder %v164, %v5586
      %vm5628 = vcmp.eq.s32.totalorder %v165, %v5586
      %vm5629 = vcmp.eq.s32.totalorder %v164, %v5589
      %vm5630 = vcmp.eq.s32.totalorder %v165, %v5589
      %vm5631 = vcmp.eq.s32.totalorder %v164, %v5592
      %vm5632 = vcmp.eq.s32.totalorder %v165, %v5592
      %vm5633 = vcmp.eq.s32.totalorder %v164, %v5595
      %vm5634 = vcmp.eq.s32.totalorder %v165, %v5595
      %vm5635 = vcmp.eq.s32.totalorder %v164, %v5598
      %vm5636 = vcmp.eq.s32.totalorder %v165, %v5598
      %vm5637 = vcmp.eq.s32.totalorder %v164, %v5601
      %vm5638 = vcmp.eq.s32.totalorder %v165, %v5601
      %vm5639 = vcmp.eq.s32.totalorder %v164, %v5604
      %vm5640 = vcmp.eq.s32.totalorder %v165, %v5604
      %vm5641 = vcmp.eq.s32.totalorder %v164, %v5607
      %vm5642 = vcmp.eq.s32.totalorder %v165, %v5607
      %vm5643 = vcmp.eq.s32.totalorder %v164, %v5610
      %vm5644 = vcmp.eq.s32.totalorder %v165, %v5610
      %vm5645 = vcmp.eq.s32.totalorder %v164, %v5613
      %vm5646 = vcmp.eq.s32.totalorder %v165, %v5613
      %vm5647 = vcmp.eq.s32.totalorder %v164, %v5616
      %vm5648 = vcmp.eq.s32.totalorder %v165, %v5616
      %5650 = vset.pattern.permute.xlu0 0
      %5651 = vperm.xlu0 %5650, %v5537
      %v5652 = vpop.permute.xlu0 %5651
      %5655 = vset.pattern.permute.xlu0 0
      %5656 = vperm.xlu0 %5655, %v5538
      %v5657 = vpop.permute.xlu0 %5656
      %5660 = vset.pattern.permute.xlu0 0
      %5661 = vperm.xlu0 %5660, %v5539
      %v5662 = vpop.permute.xlu0 %5661
      %5665 = vset.pattern.permute.xlu0 0
      %5666 = vperm.xlu0 %5665, %v5540
      %v5667 = vpop.permute.xlu0 %5666
      %5670 = vset.pattern.permute.xlu0 0
      %5671 = vperm.xlu0 %5670, %v5541
      %v5672 = vpop.permute.xlu0 %5671
      %5675 = vset.pattern.permute.xlu0 0
      %5676 = vperm.xlu0 %5675, %v5542
      %v5677 = vpop.permute.xlu0 %5676
      %5680 = vset.pattern.permute.xlu0 0
      %5681 = vperm.xlu0 %5680, %v5543
      %v5682 = vpop.permute.xlu0 %5681
      %5685 = vset.pattern.permute.xlu0 0
      %5686 = vperm.xlu0 %5685, %v5544
      %v5687 = vpop.permute.xlu0 %5686
      %5690 = vset.pattern.permute.xlu0 0
      %5691 = vperm.xlu0 %5690, %v5545
      %v5692 = vpop.permute.xlu0 %5691
      %5695 = vset.pattern.permute.xlu0 0
      %5696 = vperm.xlu0 %5695, %v5546
      %v5697 = vpop.permute.xlu0 %5696
      %5700 = vset.pattern.permute.xlu0 0
      %5701 = vperm.xlu0 %5700, %v5547
      %v5702 = vpop.permute.xlu0 %5701
      %5705 = vset.pattern.permute.xlu0 0
      %5706 = vperm.xlu0 %5705, %v5548
      %v5707 = vpop.permute.xlu0 %5706
      %5710 = vset.pattern.permute.xlu0 0
      %5711 = vperm.xlu0 %5710, %v5549
      %v5712 = vpop.permute.xlu0 %5711
      %5715 = vset.pattern.permute.xlu0 0
      %5716 = vperm.xlu0 %5715, %v5550
      %v5717 = vpop.permute.xlu0 %5716
      %5720 = vset.pattern.permute.xlu0 0
      %5721 = vperm.xlu0 %5720, %v5551
      %v5722 = vpop.permute.xlu0 %5721
      %5725 = vset.pattern.permute.xlu0 0
      %5726 = vperm.xlu0 %5725, %v5552
      %v5727 = vpop.permute.xlu0 %5726
      %v5729 = vsel %vm5617, %v5652, 0.0
      %v5730 = vsel %vm5618, %v5652, 0.0
      %v5731 = vsel %vm5619, %v5657, 0.0
      %v5732 = vsel %vm5620, %v5657, 0.0
      %v5733 = vsel %vm5621, %v5662, 0.0
      %v5734 = vsel %vm5622, %v5662, 0.0
      %v5735 = vsel %vm5623, %v5667, 0.0
      %v5736 = vsel %vm5624, %v5667, 0.0
      %v5737 = vsel %vm5625, %v5672, 0.0
      %v5738 = vsel %vm5626, %v5672, 0.0
      %v5739 = vsel %vm5627, %v5677, 0.0
      %v5740 = vsel %vm5628, %v5677, 0.0
      %v5741 = vsel %vm5629, %v5682, 0.0
      %v5742 = vsel %vm5630, %v5682, 0.0
      %v5743 = vsel %vm5631, %v5687, 0.0
      %v5744 = vsel %vm5632, %v5687, 0.0
      %v5745 = vsel %vm5633, %v5692, 0.0
      %v5746 = vsel %vm5634, %v5692, 0.0
      %v5747 = vsel %vm5635, %v5697, 0.0
      %v5748 = vsel %vm5636, %v5697, 0.0
      %v5749 = vsel %vm5637, %v5702, 0.0
      %v5750 = vsel %vm5638, %v5702, 0.0
      %v5751 = vsel %vm5639, %v5707, 0.0
      %v5752 = vsel %vm5640, %v5707, 0.0
      %v5753 = vsel %vm5641, %v5712, 0.0
      %v5754 = vsel %vm5642, %v5712, 0.0
      %v5755 = vsel %vm5643, %v5717, 0.0
      %v5756 = vsel %vm5644, %v5717, 0.0
      %v5757 = vsel %vm5645, %v5722, 0.0
      %v5758 = vsel %vm5646, %v5722, 0.0
      %v5759 = vsel %vm5647, %v5727, 0.0
      %v5760 = vsel %vm5648, %v5727, 0.0
      %v5761 = vadd.f32 %v5473, %v5729
      %v5762 = vadd.f32 %v5474, %v5730
      %v5763 = vadd.f32 %v5475, %v5731
      %v5764 = vadd.f32 %v5476, %v5732
      %v5765 = vadd.f32 %v5477, %v5733
      %v5766 = vadd.f32 %v5478, %v5734
      %v5767 = vadd.f32 %v5479, %v5735
      %v5768 = vadd.f32 %v5480, %v5736
      %v5769 = vadd.f32 %v5481, %v5737
      %v5770 = vadd.f32 %v5482, %v5738
      %v5771 = vadd.f32 %v5483, %v5739
      %v5772 = vadd.f32 %v5484, %v5740
      %v5773 = vadd.f32 %v5485, %v5741
      %v5774 = vadd.f32 %v5486, %v5742
      %v5775 = vadd.f32 %v5487, %v5743
      %v5776 = vadd.f32 %v5488, %v5744
      %v5777 = vadd.f32 %v5489, %v5745
      %v5778 = vadd.f32 %v5490, %v5746
      %v5779 = vadd.f32 %v5491, %v5747
      %v5780 = vadd.f32 %v5492, %v5748
      %v5781 = vadd.f32 %v5493, %v5749
      %v5782 = vadd.f32 %v5494, %v5750
      %v5783 = vadd.f32 %v5495, %v5751
      %v5784 = vadd.f32 %v5496, %v5752
      %v5785 = vadd.f32 %v5497, %v5753
      %v5786 = vadd.f32 %v5498, %v5754
      %v5787 = vadd.f32 %v5499, %v5755
      %v5788 = vadd.f32 %v5500, %v5756
      %v5789 = vadd.f32 %v5501, %v5757
      %v5790 = vadd.f32 %v5502, %v5758
      %v5791 = vadd.f32 %v5503, %v5759
      %v5792 = vadd.f32 %v5504, %v5760
      %s5793 = scalar_lea.vmem %s1, 3
      %v5794 = vld [vmem:[%s5793] ss:$8 sm:$0x3]
      %v5796 = vperm.slane %v5794, 0
      %v5797 = vperm.slane %v5794, 1
      %v5800 = vmul.f32 %v5761, %v5796
      %v5801 = vmul.f32 %v5762, %v5797
      %v5802 = vmul.f32 %v5763, %v5796
      %v5803 = vmul.f32 %v5764, %v5797
      %v5804 = vmul.f32 %v5765, %v5796
      %v5805 = vmul.f32 %v5766, %v5797
      %v5806 = vmul.f32 %v5767, %v5796
      %v5807 = vmul.f32 %v5768, %v5797
      %v5808 = vmul.f32 %v5769, %v5796
      %v5809 = vmul.f32 %v5770, %v5797
      %v5810 = vmul.f32 %v5771, %v5796
      %v5811 = vmul.f32 %v5772, %v5797
      %v5812 = vmul.f32 %v5773, %v5796
      %v5813 = vmul.f32 %v5774, %v5797
      %v5814 = vmul.f32 %v5775, %v5796
      %v5815 = vmul.f32 %v5776, %v5797
      %v5816 = vmul.f32 %v5777, %v5796
      %v5817 = vmul.f32 %v5778, %v5797
      %v5818 = vmul.f32 %v5779, %v5796
      %v5819 = vmul.f32 %v5780, %v5797
      %v5820 = vmul.f32 %v5781, %v5796
      %v5821 = vmul.f32 %v5782, %v5797
      %v5822 = vmul.f32 %v5783, %v5796
      %v5823 = vmul.f32 %v5784, %v5797
      %v5824 = vmul.f32 %v5785, %v5796
      %v5825 = vmul.f32 %v5786, %v5797
      %v5826 = vmul.f32 %v5787, %v5796
      %v5827 = vmul.f32 %v5788, %v5797
      %v5828 = vmul.f32 %v5789, %v5796
      %v5829 = vmul.f32 %v5790, %v5797
      %v5830 = vmul.f32 %v5791, %v5796
      %v5831 = vmul.f32 %v5792, %v5797
      %v5832 = vadd.f32 %v5800, %v5801
      %5833 = vadd.xlane.f32.xlu0 %v5832
      %v5834 = vpop.xlane.xlu0 %5833
      %v5835 = vadd.f32 %v5802, %v5803
      %5836 = vadd.xlane.f32.xlu0 %v5835
      %v5837 = vpop.xlane.xlu0 %5836
      %v5838 = vadd.f32 %v5804, %v5805
      %5839 = vadd.xlane.f32.xlu0 %v5838
      %v5840 = vpop.xlane.xlu0 %5839
      %v5841 = vadd.f32 %v5806, %v5807
      %5842 = vadd.xlane.f32.xlu0 %v5841
      %v5843 = vpop.xlane.xlu0 %5842
      %v5844 = vadd.f32 %v5808, %v5809
      %5845 = vadd.xlane.f32.xlu0 %v5844
      %v5846 = vpop.xlane.xlu0 %5845
      %v5847 = vadd.f32 %v5810, %v5811
      %5848 = vadd.xlane.f32.xlu0 %v5847
      %v5849 = vpop.xlane.xlu0 %5848
      %v5850 = vadd.f32 %v5812, %v5813
      %5851 = vadd.xlane.f32.xlu0 %v5850
      %v5852 = vpop.xlane.xlu0 %5851
      %v5853 = vadd.f32 %v5814, %v5815
      %5854 = vadd.xlane.f32.xlu0 %v5853
      %v5855 = vpop.xlane.xlu0 %5854
      %v5856 = vadd.f32 %v5816, %v5817
      %5857 = vadd.xlane.f32.xlu0 %v5856
      %v5858 = vpop.xlane.xlu0 %5857
      %v5859 = vadd.f32 %v5818, %v5819
      %5860 = vadd.xlane.f32.xlu0 %v5859
      %v5861 = vpop.xlane.xlu0 %5860
      %v5862 = vadd.f32 %v5820, %v5821
      %5863 = vadd.xlane.f32.xlu0 %v5862
      %v5864 = vpop.xlane.xlu0 %5863
      %v5865 = vadd.f32 %v5822, %v5823
      %5866 = vadd.xlane.f32.xlu0 %v5865
      %v5867 = vpop.xlane.xlu0 %5866
      %v5868 = vadd.f32 %v5824, %v5825
      %5869 = vadd.xlane.f32.xlu0 %v5868
      %v5870 = vpop.xlane.xlu0 %5869
      %v5871 = vadd.f32 %v5826, %v5827
      %5872 = vadd.xlane.f32.xlu0 %v5871
      %v5873 = vpop.xlane.xlu0 %5872
      %v5874 = vadd.f32 %v5828, %v5829
      %5875 = vadd.xlane.f32.xlu0 %v5874
      %v5876 = vpop.xlane.xlu0 %5875
      %v5877 = vadd.f32 %v5830, %v5831
      %5878 = vadd.xlane.f32.xlu0 %v5877
      %v5879 = vpop.xlane.xlu0 %5878
      %s5880 = scalar_lea.vmem %s1, 4
      %v5881 = vld [vmem:[%s5880] ss:$8 sm:$0x3]
      %v5883 = vperm.slane %v5881, 0
      %v5884 = vperm.slane %v5881, 1
      %v5887 = vmul.f32 %v5761, %v5883
      %v5888 = vmul.f32 %v5762, %v5884
      %v5889 = vmul.f32 %v5763, %v5883
      %v5890 = vmul.f32 %v5764, %v5884
      %v5891 = vmul.f32 %v5765, %v5883
      %v5892 = vmul.f32 %v5766, %v5884
      %v5893 = vmul.f32 %v5767, %v5883
      %v5894 = vmul.f32 %v5768, %v5884
      %v5895 = vmul.f32 %v5769, %v5883
      %v5896 = vmul.f32 %v5770, %v5884
      %v5897 = vmul.f32 %v5771, %v5883
      %v5898 = vmul.f32 %v5772, %v5884
      %v5899 = vmul.f32 %v5773, %v5883
      %v5900 = vmul.f32 %v5774, %v5884
      %v5901 = vmul.f32 %v5775, %v5883
      %v5902 = vmul.f32 %v5776, %v5884
      %v5903 = vmul.f32 %v5777, %v5883
      %v5904 = vmul.f32 %v5778, %v5884
      %v5905 = vmul.f32 %v5779, %v5883
      %v5906 = vmul.f32 %v5780, %v5884
      %v5907 = vmul.f32 %v5781, %v5883
      %v5908 = vmul.f32 %v5782, %v5884
      %v5909 = vmul.f32 %v5783, %v5883
      %v5910 = vmul.f32 %v5784, %v5884
      %v5911 = vmul.f32 %v5785, %v5883
      %v5912 = vmul.f32 %v5786, %v5884
      %v5913 = vmul.f32 %v5787, %v5883
      %v5914 = vmul.f32 %v5788, %v5884
      %v5915 = vmul.f32 %v5789, %v5883
      %v5916 = vmul.f32 %v5790, %v5884
      %v5917 = vmul.f32 %v5791, %v5883
      %v5918 = vmul.f32 %v5792, %v5884
      %v5919 = vadd.f32 %v5887, %v5888
      %5920 = vadd.xlane.f32.xlu0 %v5919
      %v5921 = vpop.xlane.xlu0 %5920
      %v5922 = vadd.f32 %v5889, %v5890
      %5923 = vadd.xlane.f32.xlu0 %v5922
      %v5924 = vpop.xlane.xlu0 %5923
      %v5925 = vadd.f32 %v5891, %v5892
      %5926 = vadd.xlane.f32.xlu0 %v5925
      %v5927 = vpop.xlane.xlu0 %5926
      %v5928 = vadd.f32 %v5893, %v5894
      %5929 = vadd.xlane.f32.xlu0 %v5928
      %v5930 = vpop.xlane.xlu0 %5929
      %v5931 = vadd.f32 %v5895, %v5896
      %5932 = vadd.xlane.f32.xlu0 %v5931
      %v5933 = vpop.xlane.xlu0 %5932
      %v5934 = vadd.f32 %v5897, %v5898
      %5935 = vadd.xlane.f32.xlu0 %v5934
      %v5936 = vpop.xlane.xlu0 %5935
      %v5937 = vadd.f32 %v5899, %v5900
      %5938 = vadd.xlane.f32.xlu0 %v5937
      %v5939 = vpop.xlane.xlu0 %5938
      %v5940 = vadd.f32 %v5901, %v5902
      %5941 = vadd.xlane.f32.xlu0 %v5940
      %v5942 = vpop.xlane.xlu0 %5941
      %v5943 = vadd.f32 %v5903, %v5904
      %5944 = vadd.xlane.f32.xlu0 %v5943
      %v5945 = vpop.xlane.xlu0 %5944
      %v5946 = vadd.f32 %v5905, %v5906
      %5947 = vadd.xlane.f32.xlu0 %v5946
      %v5948 = vpop.xlane.xlu0 %5947
      %v5949 = vadd.f32 %v5907, %v5908
      %5950 = vadd.xlane.f32.xlu0 %v5949
      %v5951 = vpop.xlane.xlu0 %5950
      %v5952 = vadd.f32 %v5909, %v5910
      %5953 = vadd.xlane.f32.xlu0 %v5952
      %v5954 = vpop.xlane.xlu0 %5953
      %v5955 = vadd.f32 %v5911, %v5912
      %5956 = vadd.xlane.f32.xlu0 %v5955
      %v5957 = vpop.xlane.xlu0 %5956
      %v5958 = vadd.f32 %v5913, %v5914
      %5959 = vadd.xlane.f32.xlu0 %v5958
      %v5960 = vpop.xlane.xlu0 %5959
      %v5961 = vadd.f32 %v5915, %v5916
      %5962 = vadd.xlane.f32.xlu0 %v5961
      %v5963 = vpop.xlane.xlu0 %5962
      %v5964 = vadd.f32 %v5917, %v5918
      %5965 = vadd.xlane.f32.xlu0 %v5964
      %v5966 = vpop.xlane.xlu0 %5965
      %s5967 = scalar_lea.vmem %s1, 5
      %v5968 = vld [vmem:[%s5967] ss:$8 sm:$0x3]
      %v5970 = vperm.slane %v5968, 0
      %v5971 = vperm.slane %v5968, 1
      %v5974 = vmul.f32 %v5761, %v5970
      %v5975 = vmul.f32 %v5762, %v5971
      %v5976 = vmul.f32 %v5763, %v5970
      %v5977 = vmul.f32 %v5764, %v5971
      %v5978 = vmul.f32 %v5765, %v5970
      %v5979 = vmul.f32 %v5766, %v5971
      %v5980 = vmul.f32 %v5767, %v5970
      %v5981 = vmul.f32 %v5768, %v5971
      %v5982 = vmul.f32 %v5769, %v5970
      %v5983 = vmul.f32 %v5770, %v5971
      %v5984 = vmul.f32 %v5771, %v5970
      %v5985 = vmul.f32 %v5772, %v5971
      %v5986 = vmul.f32 %v5773, %v5970
      %v5987 = vmul.f32 %v5774, %v5971
      %v5988 = vmul.f32 %v5775, %v5970
      %v5989 = vmul.f32 %v5776, %v5971
      %v5990 = vmul.f32 %v5777, %v5970
      %v5991 = vmul.f32 %v5778, %v5971
      %v5992 = vmul.f32 %v5779, %v5970
      %v5993 = vmul.f32 %v5780, %v5971
      %v5994 = vmul.f32 %v5781, %v5970
      %v5995 = vmul.f32 %v5782, %v5971
      %v5996 = vmul.f32 %v5783, %v5970
      %v5997 = vmul.f32 %v5784, %v5971
      %v5998 = vmul.f32 %v5785, %v5970
      %v5999 = vmul.f32 %v5786, %v5971
      %v6000 = vmul.f32 %v5787, %v5970
      %v6001 = vmul.f32 %v5788, %v5971
      %v6002 = vmul.f32 %v5789, %v5970
      %v6003 = vmul.f32 %v5790, %v5971
      %v6004 = vmul.f32 %v5791, %v5970
      %v6005 = vmul.f32 %v5792, %v5971
      %v6006 = vadd.f32 %v5974, %v5975
      %6007 = vadd.xlane.f32.xlu0 %v6006
      %v6008 = vpop.xlane.xlu0 %6007
      %v6009 = vadd.f32 %v5976, %v5977
      %6010 = vadd.xlane.f32.xlu0 %v6009
      %v6011 = vpop.xlane.xlu0 %6010
      %v6012 = vadd.f32 %v5978, %v5979
      %6013 = vadd.xlane.f32.xlu0 %v6012
      %v6014 = vpop.xlane.xlu0 %6013
      %v6015 = vadd.f32 %v5980, %v5981
      %6016 = vadd.xlane.f32.xlu0 %v6015
      %v6017 = vpop.xlane.xlu0 %6016
      %v6018 = vadd.f32 %v5982, %v5983
      %6019 = vadd.xlane.f32.xlu0 %v6018
      %v6020 = vpop.xlane.xlu0 %6019
      %v6021 = vadd.f32 %v5984, %v5985
      %6022 = vadd.xlane.f32.xlu0 %v6021
      %v6023 = vpop.xlane.xlu0 %6022
      %v6024 = vadd.f32 %v5986, %v5987
      %6025 = vadd.xlane.f32.xlu0 %v6024
      %v6026 = vpop.xlane.xlu0 %6025
      %v6027 = vadd.f32 %v5988, %v5989
      %6028 = vadd.xlane.f32.xlu0 %v6027
      %v6029 = vpop.xlane.xlu0 %6028
      %v6030 = vadd.f32 %v5990, %v5991
      %6031 = vadd.xlane.f32.xlu0 %v6030
      %v6032 = vpop.xlane.xlu0 %6031
      %v6033 = vadd.f32 %v5992, %v5993
      %6034 = vadd.xlane.f32.xlu0 %v6033
      %v6035 = vpop.xlane.xlu0 %6034
      %v6036 = vadd.f32 %v5994, %v5995
      %6037 = vadd.xlane.f32.xlu0 %v6036
      %v6038 = vpop.xlane.xlu0 %6037
      %v6039 = vadd.f32 %v5996, %v5997
      %6040 = vadd.xlane.f32.xlu0 %v6039
      %v6041 = vpop.xlane.xlu0 %6040
      %v6042 = vadd.f32 %v5998, %v5999
      %6043 = vadd.xlane.f32.xlu0 %v6042
      %v6044 = vpop.xlane.xlu0 %6043
      %v6045 = vadd.f32 %v6000, %v6001
      %6046 = vadd.xlane.f32.xlu0 %v6045
      %v6047 = vpop.xlane.xlu0 %6046
      %v6048 = vadd.f32 %v6002, %v6003
      %6049 = vadd.xlane.f32.xlu0 %v6048
      %v6050 = vpop.xlane.xlu0 %6049
      %v6051 = vadd.f32 %v6004, %v6005
      %6052 = vadd.xlane.f32.xlu0 %v6051
      %v6053 = vpop.xlane.xlu0 %6052
      %v6054 = vmul.f32 %v147, -18.019915
      %v6055 = vmul.f32 %v148, -18.019915
      %v6056 = vmul.f32 %v149, -18.019915
      %v6057 = vmul.f32 %v150, -18.019915
      %v6058 = vmul.f32 %v151, -18.019915
      %v6059 = vmul.f32 %v152, -18.019915
      %v6060 = vmul.f32 %v153, -18.019915
      %v6061 = vmul.f32 %v154, -18.019915
      %v6062 = vmul.f32 %v155, -18.019915
      %v6063 = vmul.f32 %v156, -18.019915
      %v6064 = vmul.f32 %v157, -18.019915
      %v6065 = vmul.f32 %v158, -18.019915
      %v6066 = vmul.f32 %v159, -18.019915
      %v6067 = vmul.f32 %v160, -18.019915
      %v6068 = vmul.f32 %v161, -18.019915
      %v6069 = vmul.f32 %v162, -18.019915
      %v6070 = vmul.f32 %v147, -0.79866725
      %v6071 = vmul.f32 %v148, -0.79866725
      %v6072 = vmul.f32 %v149, -0.79866725
      %v6073 = vmul.f32 %v150, -0.79866725
      %v6074 = vmul.f32 %v151, -0.79866725
      %v6075 = vmul.f32 %v152, -0.79866725
      %v6076 = vmul.f32 %v153, -0.79866725
      %v6077 = vmul.f32 %v154, -0.79866725
      %v6078 = vmul.f32 %v155, -0.79866725
      %v6079 = vmul.f32 %v156, -0.79866725
      %v6080 = vmul.f32 %v157, -0.79866725
      %v6081 = vmul.f32 %v158, -0.79866725
      %v6082 = vmul.f32 %v159, -0.79866725
      %v6083 = vmul.f32 %v160, -0.79866725
      %v6084 = vmul.f32 %v161, -0.79866725
      %v6085 = vmul.f32 %v162, -0.79866725
      %6102 = vrot.lane.b32.xlu0 %v6070, 127
      %v6103 = vpop.permute.xlu0 %6102
      %6104 = vrot.lane.b32.xlu0 %v6071, 127
      %v6105 = vpop.permute.xlu0 %6104
      %6106 = vrot.lane.b32.xlu0 %v6072, 127
      %v6107 = vpop.permute.xlu0 %6106
      %6108 = vrot.lane.b32.xlu0 %v6073, 127
      %v6109 = vpop.permute.xlu0 %6108
      %6110 = vrot.lane.b32.xlu0 %v6074, 127
      %v6111 = vpop.permute.xlu0 %6110
      %6112 = vrot.lane.b32.xlu0 %v6075, 127
      %v6113 = vpop.permute.xlu0 %6112
      %6114 = vrot.lane.b32.xlu0 %v6076, 127
      %v6115 = vpop.permute.xlu0 %6114
      %6116 = vrot.lane.b32.xlu0 %v6077, 127
      %v6117 = vpop.permute.xlu0 %6116
      %6118 = vrot.lane.b32.xlu0 %v6078, 127
      %v6119 = vpop.permute.xlu0 %6118
      %6120 = vrot.lane.b32.xlu0 %v6079, 127
      %v6121 = vpop.permute.xlu0 %6120
      %6122 = vrot.lane.b32.xlu0 %v6080, 127
      %v6123 = vpop.permute.xlu0 %6122
      %6124 = vrot.lane.b32.xlu0 %v6081, 127
      %v6125 = vpop.permute.xlu0 %6124
      %6126 = vrot.lane.b32.xlu0 %v6082, 127
      %v6127 = vpop.permute.xlu0 %6126
      %6128 = vrot.lane.b32.xlu0 %v6083, 127
      %v6129 = vpop.permute.xlu0 %6128
      %6130 = vrot.lane.b32.xlu0 %v6084, 127
      %v6131 = vpop.permute.xlu0 %6130
      %6132 = vrot.lane.b32.xlu0 %v6085, 127
      %v6133 = vpop.permute.xlu0 %6132
      %v6150 = vadd.f32 %v6054, %v6103
      %v6151 = vadd.f32 %v6055, %v6105
      %v6152 = vadd.f32 %v6056, %v6107
      %v6153 = vadd.f32 %v6057, %v6109
      %v6154 = vadd.f32 %v6058, %v6111
      %v6155 = vadd.f32 %v6059, %v6113
      %v6156 = vadd.f32 %v6060, %v6115
      %v6157 = vadd.f32 %v6061, %v6117
      %v6158 = vadd.f32 %v6062, %v6119
      %v6159 = vadd.f32 %v6063, %v6121
      %v6160 = vadd.f32 %v6064, %v6123
      %v6161 = vadd.f32 %v6065, %v6125
      %v6162 = vadd.f32 %v6066, %v6127
      %v6163 = vadd.f32 %v6067, %v6129
      %v6164 = vadd.f32 %v6068, %v6131
      %v6165 = vadd.f32 %v6069, %v6133
      %v6166 = vmul.f32 %v147, 11.774749
      %v6167 = vmul.f32 %v148, 11.774749
      %v6168 = vmul.f32 %v149, 11.774749
      %v6169 = vmul.f32 %v150, 11.774749
      %v6170 = vmul.f32 %v151, 11.774749
      %v6171 = vmul.f32 %v152, 11.774749
      %v6172 = vmul.f32 %v153, 11.774749
      %v6173 = vmul.f32 %v154, 11.774749
      %v6174 = vmul.f32 %v155, 11.774749
      %v6175 = vmul.f32 %v156, 11.774749
      %v6176 = vmul.f32 %v157, 11.774749
      %v6177 = vmul.f32 %v158, 11.774749
      %v6178 = vmul.f32 %v159, 11.774749
      %v6179 = vmul.f32 %v160, 11.774749
      %v6180 = vmul.f32 %v161, 11.774749
      %v6181 = vmul.f32 %v162, 11.774749
      %6198 = vrot.lane.b32.xlu0 %v6166, 126
      %v6199 = vpop.permute.xlu0 %6198
      %6200 = vrot.lane.b32.xlu0 %v6167, 126
      %v6201 = vpop.permute.xlu0 %6200
      %6202 = vrot.lane.b32.xlu0 %v6168, 126
      %v6203 = vpop.permute.xlu0 %6202
      %6204 = vrot.lane.b32.xlu0 %v6169, 126
      %v6205 = vpop.permute.xlu0 %6204
      %6206 = vrot.lane.b32.xlu0 %v6170, 126
      %v6207 = vpop.permute.xlu0 %6206
      %6208 = vrot.lane.b32.xlu0 %v6171, 126
      %v6209 = vpop.permute.xlu0 %6208
      %6210 = vrot.lane.b32.xlu0 %v6172, 126
      %v6211 = vpop.permute.xlu0 %6210
      %6212 = vrot.lane.b32.xlu0 %v6173, 126
      %v6213 = vpop.permute.xlu0 %6212
      %6214 = vrot.lane.b32.xlu0 %v6174, 126
      %v6215 = vpop.permute.xlu0 %6214
      %6216 = vrot.lane.b32.xlu0 %v6175, 126
      %v6217 = vpop.permute.xlu0 %6216
      %6218 = vrot.lane.b32.xlu0 %v6176, 126
      %v6219 = vpop.permute.xlu0 %6218
      %6220 = vrot.lane.b32.xlu0 %v6177, 126
      %v6221 = vpop.permute.xlu0 %6220
      %6222 = vrot.lane.b32.xlu0 %v6178, 126
      %v6223 = vpop.permute.xlu0 %6222
      %6224 = vrot.lane.b32.xlu0 %v6179, 126
      %v6225 = vpop.permute.xlu0 %6224
      %6226 = vrot.lane.b32.xlu0 %v6180, 126
      %v6227 = vpop.permute.xlu0 %6226
      %6228 = vrot.lane.b32.xlu0 %v6181, 126
      %v6229 = vpop.permute.xlu0 %6228
      %v6246 = vadd.f32 %v6150, %v6199
      %v6247 = vadd.f32 %v6151, %v6201
      %v6248 = vadd.f32 %v6152, %v6203
      %v6249 = vadd.f32 %v6153, %v6205
      %v6250 = vadd.f32 %v6154, %v6207
      %v6251 = vadd.f32 %v6155, %v6209
      %v6252 = vadd.f32 %v6156, %v6211
      %v6253 = vadd.f32 %v6157, %v6213
      %v6254 = vadd.f32 %v6158, %v6215
      %v6255 = vadd.f32 %v6159, %v6217
      %v6256 = vadd.f32 %v6160, %v6219
      %v6257 = vadd.f32 %v6161, %v6221
      %v6258 = vadd.f32 %v6162, %v6223
      %v6259 = vadd.f32 %v6163, %v6225
      %v6260 = vadd.f32 %v6164, %v6227
      %v6261 = vadd.f32 %v6165, %v6229
      %v6262 = vadd.f32 %v6246, 4.0687666
      %v6263 = vadd.f32 %v6247, 4.0687666
      %v6264 = vadd.f32 %v6248, 4.0687666
      %v6265 = vadd.f32 %v6249, 4.0687666
      %v6266 = vadd.f32 %v6250, 4.0687666
      %v6267 = vadd.f32 %v6251, 4.0687666
      %v6268 = vadd.f32 %v6252, 4.0687666
      %v6269 = vadd.f32 %v6253, 4.0687666
      %v6270 = vadd.f32 %v6254, 4.0687666
      %v6271 = vadd.f32 %v6255, 4.0687666
      %v6272 = vadd.f32 %v6256, 4.0687666
      %v6273 = vadd.f32 %v6257, 4.0687666
      %v6274 = vadd.f32 %v6258, 4.0687666
      %v6275 = vadd.f32 %v6259, 4.0687666
      %v6276 = vadd.f32 %v6260, 4.0687666
      %v6277 = vadd.f32 %v6261, 4.0687666
      %v6278 = vmul.f32 %v147, 1.978091
      %v6279 = vmul.f32 %v148, 1.978091
      %v6280 = vmul.f32 %v149, 1.978091
      %v6281 = vmul.f32 %v150, 1.978091
      %v6282 = vmul.f32 %v151, 1.978091
      %v6283 = vmul.f32 %v152, 1.978091
      %v6284 = vmul.f32 %v153, 1.978091
      %v6285 = vmul.f32 %v154, 1.978091
      %v6286 = vmul.f32 %v155, 1.978091
      %v6287 = vmul.f32 %v156, 1.978091
      %v6288 = vmul.f32 %v157, 1.978091
      %v6289 = vmul.f32 %v158, 1.978091
      %v6290 = vmul.f32 %v159, 1.978091
      %v6291 = vmul.f32 %v160, 1.978091
      %v6292 = vmul.f32 %v161, 1.978091
      %v6293 = vmul.f32 %v162, 1.978091
      %v6294 = vmul.f32 %v147, 19.101416
      %v6295 = vmul.f32 %v148, 19.101416
      %v6296 = vmul.f32 %v149, 19.101416
      %v6297 = vmul.f32 %v150, 19.101416
      %v6298 = vmul.f32 %v151, 19.101416
      %v6299 = vmul.f32 %v152, 19.101416
      %v6300 = vmul.f32 %v153, 19.101416
      %v6301 = vmul.f32 %v154, 19.101416
      %v6302 = vmul.f32 %v155, 19.101416
      %v6303 = vmul.f32 %v156, 19.101416
      %v6304 = vmul.f32 %v157, 19.101416
      %v6305 = vmul.f32 %v158, 19.101416
      %v6306 = vmul.f32 %v159, 19.101416
      %v6307 = vmul.f32 %v160, 19.101416
      %v6308 = vmul.f32 %v161, 19.101416
      %v6309 = vmul.f32 %v162, 19.101416
      %6326 = vrot.lane.b32.xlu0 %v6294, 127
      %v6327 = vpop.permute.xlu0 %6326
      %6328 = vrot.lane.b32.xlu0 %v6295, 127
      %v6329 = vpop.permute.xlu0 %6328
      %6330 = vrot.lane.b32.xlu0 %v6296, 127
      %v6331 = vpop.permute.xlu0 %6330
      %6332 = vrot.lane.b32.xlu0 %v6297, 127
      %v6333 = vpop.permute.xlu0 %6332
      %6334 = vrot.lane.b32.xlu0 %v6298, 127
      %v6335 = vpop.permute.xlu0 %6334
      %6336 = vrot.lane.b32.xlu0 %v6299, 127
      %v6337 = vpop.permute.xlu0 %6336
      %6338 = vrot.lane.b32.xlu0 %v6300, 127
      %v6339 = vpop.permute.xlu0 %6338
      %6340 = vrot.lane.b32.xlu0 %v6301, 127
      %v6341 = vpop.permute.xlu0 %6340
      %6342 = vrot.lane.b32.xlu0 %v6302, 127
      %v6343 = vpop.permute.xlu0 %6342
      %6344 = vrot.lane.b32.xlu0 %v6303, 127
      %v6345 = vpop.permute.xlu0 %6344
      %6346 = vrot.lane.b32.xlu0 %v6304, 127
      %v6347 = vpop.permute.xlu0 %6346
      %6348 = vrot.lane.b32.xlu0 %v6305, 127
      %v6349 = vpop.permute.xlu0 %6348
      %6350 = vrot.lane.b32.xlu0 %v6306, 127
      %v6351 = vpop.permute.xlu0 %6350
      %6352 = vrot.lane.b32.xlu0 %v6307, 127
      %v6353 = vpop.permute.xlu0 %6352
      %6354 = vrot.lane.b32.xlu0 %v6308, 127
      %v6355 = vpop.permute.xlu0 %6354
      %6356 = vrot.lane.b32.xlu0 %v6309, 127
      %v6357 = vpop.permute.xlu0 %6356
      %v6374 = vadd.f32 %v6278, %v6327
      %v6375 = vadd.f32 %v6279, %v6329
      %v6376 = vadd.f32 %v6280, %v6331
      %v6377 = vadd.f32 %v6281, %v6333
      %v6378 = vadd.f32 %v6282, %v6335
      %v6379 = vadd.f32 %v6283, %v6337
      %v6380 = vadd.f32 %v6284, %v6339
      %v6381 = vadd.f32 %v6285, %v6341
      %v6382 = vadd.f32 %v6286, %v6343
      %v6383 = vadd.f32 %v6287, %v6345
      %v6384 = vadd.f32 %v6288, %v6347
      %v6385 = vadd.f32 %v6289, %v6349
      %v6386 = vadd.f32 %v6290, %v6351
      %v6387 = vadd.f32 %v6291, %v6353
      %v6388 = vadd.f32 %v6292, %v6355
      %v6389 = vadd.f32 %v6293, %v6357
      %v6390 = vmul.f32 %v147, 9.75823
      %v6391 = vmul.f32 %v148, 9.75823
      %v6392 = vmul.f32 %v149, 9.75823
      %v6393 = vmul.f32 %v150, 9.75823
      %v6394 = vmul.f32 %v151, 9.75823
      %v6395 = vmul.f32 %v152, 9.75823
      %v6396 = vmul.f32 %v153, 9.75823
      %v6397 = vmul.f32 %v154, 9.75823
      %v6398 = vmul.f32 %v155, 9.75823
      %v6399 = vmul.f32 %v156, 9.75823
      %v6400 = vmul.f32 %v157, 9.75823
      %v6401 = vmul.f32 %v158, 9.75823
      %v6402 = vmul.f32 %v159, 9.75823
      %v6403 = vmul.f32 %v160, 9.75823
      %v6404 = vmul.f32 %v161, 9.75823
      %v6405 = vmul.f32 %v162, 9.75823
      %6422 = vrot.lane.b32.xlu0 %v6390, 126
      %v6423 = vpop.permute.xlu0 %6422
      %6424 = vrot.lane.b32.xlu0 %v6391, 126
      %v6425 = vpop.permute.xlu0 %6424
      %6426 = vrot.lane.b32.xlu0 %v6392, 126
      %v6427 = vpop.permute.xlu0 %6426
      %6428 = vrot.lane.b32.xlu0 %v6393, 126
      %v6429 = vpop.permute.xlu0 %6428
      %6430 = vrot.lane.b32.xlu0 %v6394, 126
      %v6431 = vpop.permute.xlu0 %6430
      %6432 = vrot.lane.b32.xlu0 %v6395, 126
      %v6433 = vpop.permute.xlu0 %6432
      %6434 = vrot.lane.b32.xlu0 %v6396, 126
      %v6435 = vpop.permute.xlu0 %6434
      %6436 = vrot.lane.b32.xlu0 %v6397, 126
      %v6437 = vpop.permute.xlu0 %6436
      %6438 = vrot.lane.b32.xlu0 %v6398, 126
      %v6439 = vpop.permute.xlu0 %6438
      %6440 = vrot.lane.b32.xlu0 %v6399, 126
      %v6441 = vpop.permute.xlu0 %6440
      %6442 = vrot.lane.b32.xlu0 %v6400, 126
      %v6443 = vpop.permute.xlu0 %6442
      %6444 = vrot.lane.b32.xlu0 %v6401, 126
      %v6445 = vpop.permute.xlu0 %6444
      %6446 = vrot.lane.b32.xlu0 %v6402, 126
      %v6447 = vpop.permute.xlu0 %6446
      %6448 = vrot.lane.b32.xlu0 %v6403, 126
      %v6449 = vpop.permute.xlu0 %6448
      %6450 = vrot.lane.b32.xlu0 %v6404, 126
      %v6451 = vpop.permute.xlu0 %6450
      %6452 = vrot.lane.b32.xlu0 %v6405, 126
      %v6453 = vpop.permute.xlu0 %6452
      %v6470 = vadd.f32 %v6374, %v6423
      %v6471 = vadd.f32 %v6375, %v6425
      %v6472 = vadd.f32 %v6376, %v6427
      %v6473 = vadd.f32 %v6377, %v6429
      %v6474 = vadd.f32 %v6378, %v6431
      %v6475 = vadd.f32 %v6379, %v6433
      %v6476 = vadd.f32 %v6380, %v6435
      %v6477 = vadd.f32 %v6381, %v6437
      %v6478 = vadd.f32 %v6382, %v6439
      %v6479 = vadd.f32 %v6383, %v6441
      %v6480 = vadd.f32 %v6384, %v6443
      %v6481 = vadd.f32 %v6385, %v6445
      %v6482 = vadd.f32 %v6386, %v6447
      %v6483 = vadd.f32 %v6387, %v6449
      %v6484 = vadd.f32 %v6388, %v6451
      %v6485 = vadd.f32 %v6389, %v6453
      %v6486 = vadd.f32 %v6470, 2.2510328
      %v6487 = vadd.f32 %v6471, 2.2510328
      %v6488 = vadd.f32 %v6472, 2.2510328
      %v6489 = vadd.f32 %v6473, 2.2510328
      %v6490 = vadd.f32 %v6474, 2.2510328
      %v6491 = vadd.f32 %v6475, 2.2510328
      %v6492 = vadd.f32 %v6476, 2.2510328
      %v6493 = vadd.f32 %v6477, 2.2510328
      %v6494 = vadd.f32 %v6478, 2.2510328
      %v6495 = vadd.f32 %v6479, 2.2510328
      %v6496 = vadd.f32 %v6480, 2.2510328
      %v6497 = vadd.f32 %v6481, 2.2510328
      %v6498 = vadd.f32 %v6482, 2.2510328
      %v6499 = vadd.f32 %v6483, 2.2510328
      %v6500 = vadd.f32 %v6484, 2.2510328
      %v6501 = vadd.f32 %v6485, 2.2510328
      %v6502 = vmul.f32 %v147, 0.1976768
      %v6503 = vmul.f32 %v148, 0.1976768
      %v6504 = vmul.f32 %v149, 0.1976768
      %v6505 = vmul.f32 %v150, 0.1976768
      %v6506 = vmul.f32 %v151, 0.1976768
      %v6507 = vmul.f32 %v152, 0.1976768
      %v6508 = vmul.f32 %v153, 0.1976768
      %v6509 = vmul.f32 %v154, 0.1976768
      %v6510 = vmul.f32 %v155, 0.1976768
      %v6511 = vmul.f32 %v156, 0.1976768
      %v6512 = vmul.f32 %v157, 0.1976768
      %v6513 = vmul.f32 %v158, 0.1976768
      %v6514 = vmul.f32 %v159, 0.1976768
      %v6515 = vmul.f32 %v160, 0.1976768
      %v6516 = vmul.f32 %v161, 0.1976768
      %v6517 = vmul.f32 %v162, 0.1976768
      %v6518 = vmul.f32 %v147, -0.09983341
      %v6519 = vmul.f32 %v148, -0.09983341
      %v6520 = vmul.f32 %v149, -0.09983341
      %v6521 = vmul.f32 %v150, -0.09983341
      %v6522 = vmul.f32 %v151, -0.09983341
      %v6523 = vmul.f32 %v152, -0.09983341
      %v6524 = vmul.f32 %v153, -0.09983341
      %v6525 = vmul.f32 %v154, -0.09983341
      %v6526 = vmul.f32 %v155, -0.09983341
      %v6527 = vmul.f32 %v156, -0.09983341
      %v6528 = vmul.f32 %v157, -0.09983341
      %v6529 = vmul.f32 %v158, -0.09983341
      %v6530 = vmul.f32 %v159, -0.09983341
      %v6531 = vmul.f32 %v160, -0.09983341
      %v6532 = vmul.f32 %v161, -0.09983341
      %v6533 = vmul.f32 %v162, -0.09983341
      %6550 = vrot.lane.b32.xlu0 %v6518, 127
      %v6551 = vpop.permute.xlu0 %6550
      %6552 = vrot.lane.b32.xlu0 %v6519, 127
      %v6553 = vpop.permute.xlu0 %6552
      %6554 = vrot.lane.b32.xlu0 %v6520, 127
      %v6555 = vpop.permute.xlu0 %6554
      %6556 = vrot.lane.b32.xlu0 %v6521, 127
      %v6557 = vpop.permute.xlu0 %6556
      %6558 = vrot.lane.b32.xlu0 %v6522, 127
      %v6559 = vpop.permute.xlu0 %6558
      %6560 = vrot.lane.b32.xlu0 %v6523, 127
      %v6561 = vpop.permute.xlu0 %6560
      %6562 = vrot.lane.b32.xlu0 %v6524, 127
      %v6563 = vpop.permute.xlu0 %6562
      %6564 = vrot.lane.b32.xlu0 %v6525, 127
      %v6565 = vpop.permute.xlu0 %6564
      %6566 = vrot.lane.b32.xlu0 %v6526, 127
      %v6567 = vpop.permute.xlu0 %6566
      %6568 = vrot.lane.b32.xlu0 %v6527, 127
      %v6569 = vpop.permute.xlu0 %6568
      %6570 = vrot.lane.b32.xlu0 %v6528, 127
      %v6571 = vpop.permute.xlu0 %6570
      %6572 = vrot.lane.b32.xlu0 %v6529, 127
      %v6573 = vpop.permute.xlu0 %6572
      %6574 = vrot.lane.b32.xlu0 %v6530, 127
      %v6575 = vpop.permute.xlu0 %6574
      %6576 = vrot.lane.b32.xlu0 %v6531, 127
      %v6577 = vpop.permute.xlu0 %6576
      %6578 = vrot.lane.b32.xlu0 %v6532, 127
      %v6579 = vpop.permute.xlu0 %6578
      %6580 = vrot.lane.b32.xlu0 %v6533, 127
      %v6581 = vpop.permute.xlu0 %6580
      %v6598 = vadd.f32 %v6502, %v6551
      %v6599 = vadd.f32 %v6503, %v6553
      %v6600 = vadd.f32 %v6504, %v6555
      %v6601 = vadd.f32 %v6505, %v6557
      %v6602 = vadd.f32 %v6506, %v6559
      %v6603 = vadd.f32 %v6507, %v6561
      %v6604 = vadd.f32 %v6508, %v6563
      %v6605 = vadd.f32 %v6509, %v6565
      %v6606 = vadd.f32 %v6510, %v6567
      %v6607 = vadd.f32 %v6511, %v6569
      %v6608 = vadd.f32 %v6512, %v6571
      %v6609 = vadd.f32 %v6513, %v6573
      %v6610 = vadd.f32 %v6514, %v6575
      %v6611 = vadd.f32 %v6515, %v6577
      %v6612 = vadd.f32 %v6516, %v6579
      %v6613 = vadd.f32 %v6517, %v6581
      %v6614 = vmul.f32 %v147, 0.9751703
      %v6615 = vmul.f32 %v148, 0.9751703
      %v6616 = vmul.f32 %v149, 0.9751703
      %v6617 = vmul.f32 %v150, 0.9751703
      %v6618 = vmul.f32 %v151, 0.9751703
      %v6619 = vmul.f32 %v152, 0.9751703
      %v6620 = vmul.f32 %v153, 0.9751703
      %v6621 = vmul.f32 %v154, 0.9751703
      %v6622 = vmul.f32 %v155, 0.9751703
      %v6623 = vmul.f32 %v156, 0.9751703
      %v6624 = vmul.f32 %v157, 0.9751703
      %v6625 = vmul.f32 %v158, 0.9751703
      %v6626 = vmul.f32 %v159, 0.9751703
      %v6627 = vmul.f32 %v160, 0.9751703
      %v6628 = vmul.f32 %v161, 0.9751703
      %v6629 = vmul.f32 %v162, 0.9751703
      %6646 = vrot.lane.b32.xlu0 %v6614, 126
      %v6647 = vpop.permute.xlu0 %6646
      %6648 = vrot.lane.b32.xlu0 %v6615, 126
      %v6649 = vpop.permute.xlu0 %6648
      %6650 = vrot.lane.b32.xlu0 %v6616, 126
      %v6651 = vpop.permute.xlu0 %6650
      %6652 = vrot.lane.b32.xlu0 %v6617, 126
      %v6653 = vpop.permute.xlu0 %6652
      %6654 = vrot.lane.b32.xlu0 %v6618, 126
      %v6655 = vpop.permute.xlu0 %6654
      %6656 = vrot.lane.b32.xlu0 %v6619, 126
      %v6657 = vpop.permute.xlu0 %6656
      %6658 = vrot.lane.b32.xlu0 %v6620, 126
      %v6659 = vpop.permute.xlu0 %6658
      %6660 = vrot.lane.b32.xlu0 %v6621, 126
      %v6661 = vpop.permute.xlu0 %6660
      %6662 = vrot.lane.b32.xlu0 %v6622, 126
      %v6663 = vpop.permute.xlu0 %6662
      %6664 = vrot.lane.b32.xlu0 %v6623, 126
      %v6665 = vpop.permute.xlu0 %6664
      %6666 = vrot.lane.b32.xlu0 %v6624, 126
      %v6667 = vpop.permute.xlu0 %6666
      %6668 = vrot.lane.b32.xlu0 %v6625, 126
      %v6669 = vpop.permute.xlu0 %6668
      %6670 = vrot.lane.b32.xlu0 %v6626, 126
      %v6671 = vpop.permute.xlu0 %6670
      %6672 = vrot.lane.b32.xlu0 %v6627, 126
      %v6673 = vpop.permute.xlu0 %6672
      %6674 = vrot.lane.b32.xlu0 %v6628, 126
      %v6675 = vpop.permute.xlu0 %6674
      %6676 = vrot.lane.b32.xlu0 %v6629, 126
      %v6677 = vpop.permute.xlu0 %6676
      %v6694 = vadd.f32 %v6598, %v6647
      %v6695 = vadd.f32 %v6599, %v6649
      %v6696 = vadd.f32 %v6600, %v6651
      %v6697 = vadd.f32 %v6601, %v6653
      %v6698 = vadd.f32 %v6602, %v6655
      %v6699 = vadd.f32 %v6603, %v6657
      %v6700 = vadd.f32 %v6604, %v6659
      %v6701 = vadd.f32 %v6605, %v6661
      %v6702 = vadd.f32 %v6606, %v6663
      %v6703 = vadd.f32 %v6607, %v6665
      %v6704 = vadd.f32 %v6608, %v6667
      %v6705 = vadd.f32 %v6609, %v6669
      %v6706 = vadd.f32 %v6610, %v6671
      %v6707 = vadd.f32 %v6611, %v6673
      %v6708 = vadd.f32 %v6612, %v6675
      %v6709 = vadd.f32 %v6613, %v6677
      %v6710 = vadd.f32 %v6694, -0.17678675
      %v6711 = vadd.f32 %v6695, -0.17678675
      %v6712 = vadd.f32 %v6696, -0.17678675
      %v6713 = vadd.f32 %v6697, -0.17678675
      %v6714 = vadd.f32 %v6698, -0.17678675
      %v6715 = vadd.f32 %v6699, -0.17678675
      %v6716 = vadd.f32 %v6700, -0.17678675
      %v6717 = vadd.f32 %v6701, -0.17678675
      %v6718 = vadd.f32 %v6702, -0.17678675
      %v6719 = vadd.f32 %v6703, -0.17678675
      %v6720 = vadd.f32 %v6704, -0.17678675
      %v6721 = vadd.f32 %v6705, -0.17678675
      %v6722 = vadd.f32 %v6706, -0.17678675
      %v6723 = vadd.f32 %v6707, -0.17678675
      %v6724 = vadd.f32 %v6708, -0.17678675
      %v6725 = vadd.f32 %v6709, -0.17678675
      %v6726 = vrcp.pop %v6710
      %v6727 = vmul.f32 %v6710, %v6726
      %v6728 = vsub.f32 1.0, %v6727
      %v6729 = vmul.f32 %v6726, %v6728
      %v6730 = vadd.f32 %v6726, %v6729
      %vm6731 = vweird.f32 %v6710
      %vm6732 = vweird.f32 %v6726
      %vm6733 = vmor %vm6731, %vm6732
      %v6734 = vsel %vm6733, %v6726, %v6730
      %v6735 = vand.u32 2147483647, %v6710
      %vm6736 = vcmp.eq.f32.partialorder %v6735, 8.507059e+37
      %v6737 = vand.u32 %v6710, 2147483648
      %v6738 = vor.u32 1.1754944e-38, %v6737
      %v6739 = vsel %vm6736, %v6738, %v6734
      %v6740 = vmul.f32 %v6262, %v6739
      %v6741 = vrcp.pop %v6711
      %v6742 = vmul.f32 %v6711, %v6741
      %v6743 = vsub.f32 1.0, %v6742
      %v6744 = vmul.f32 %v6741, %v6743
      %v6745 = vadd.f32 %v6741, %v6744
      %vm6746 = vweird.f32 %v6711
      %vm6747 = vweird.f32 %v6741
      %vm6748 = vmor %vm6746, %vm6747
      %v6749 = vsel %vm6748, %v6741, %v6745
      %v6750 = vand.u32 2147483647, %v6711
      %vm6751 = vcmp.eq.f32.partialorder %v6750, 8.507059e+37
      %v6752 = vand.u32 %v6711, 2147483648
      %v6753 = vor.u32 1.1754944e-38, %v6752
      %v6754 = vsel %vm6751, %v6753, %v6749
      %v6755 = vmul.f32 %v6263, %v6754
      %v6756 = vrcp.pop %v6712
      %v6757 = vmul.f32 %v6712, %v6756
      %v6758 = vsub.f32 1.0, %v6757
      %v6759 = vmul.f32 %v6756, %v6758
      %v6760 = vadd.f32 %v6756, %v6759
      %vm6761 = vweird.f32 %v6712
      %vm6762 = vweird.f32 %v6756
      %vm6763 = vmor %vm6761, %vm6762
      %v6764 = vsel %vm6763, %v6756, %v6760
      %v6765 = vand.u32 2147483647, %v6712
      %vm6766 = vcmp.eq.f32.partialorder %v6765, 8.507059e+37
      %v6767 = vand.u32 %v6712, 2147483648
      %v6768 = vor.u32 1.1754944e-38, %v6767
      %v6769 = vsel %vm6766, %v6768, %v6764
      %v6770 = vmul.f32 %v6264, %v6769
      %v6771 = vrcp.pop %v6713
      %v6772 = vmul.f32 %v6713, %v6771
      %v6773 = vsub.f32 1.0, %v6772
      %v6774 = vmul.f32 %v6771, %v6773
      %v6775 = vadd.f32 %v6771, %v6774
      %vm6776 = vweird.f32 %v6713
      %vm6777 = vweird.f32 %v6771
      %vm6778 = vmor %vm6776, %vm6777
      %v6779 = vsel %vm6778, %v6771, %v6775
      %v6780 = vand.u32 2147483647, %v6713
      %vm6781 = vcmp.eq.f32.partialorder %v6780, 8.507059e+37
      %v6782 = vand.u32 %v6713, 2147483648
      %v6783 = vor.u32 1.1754944e-38, %v6782
      %v6784 = vsel %vm6781, %v6783, %v6779
      %v6785 = vmul.f32 %v6265, %v6784
      %v6786 = vrcp.pop %v6714
      %v6787 = vmul.f32 %v6714, %v6786
      %v6788 = vsub.f32 1.0, %v6787
      %v6789 = vmul.f32 %v6786, %v6788
      %v6790 = vadd.f32 %v6786, %v6789
      %vm6791 = vweird.f32 %v6714
      %vm6792 = vweird.f32 %v6786
      %vm6793 = vmor %vm6791, %vm6792
      %v6794 = vsel %vm6793, %v6786, %v6790
      %v6795 = vand.u32 2147483647, %v6714
      %vm6796 = vcmp.eq.f32.partialorder %v6795, 8.507059e+37
      %v6797 = vand.u32 %v6714, 2147483648
      %v6798 = vor.u32 1.1754944e-38, %v6797
      %v6799 = vsel %vm6796, %v6798, %v6794
      %v6800 = vmul.f32 %v6266, %v6799
      %v6801 = vrcp.pop %v6715
      %v6802 = vmul.f32 %v6715, %v6801
      %v6803 = vsub.f32 1.0, %v6802
      %v6804 = vmul.f32 %v6801, %v6803
      %v6805 = vadd.f32 %v6801, %v6804
      %vm6806 = vweird.f32 %v6715
      %vm6807 = vweird.f32 %v6801
      %vm6808 = vmor %vm6806, %vm6807
      %v6809 = vsel %vm6808, %v6801, %v6805
      %v6810 = vand.u32 2147483647, %v6715
      %vm6811 = vcmp.eq.f32.partialorder %v6810, 8.507059e+37
      %v6812 = vand.u32 %v6715, 2147483648
      %v6813 = vor.u32 1.1754944e-38, %v6812
      %v6814 = vsel %vm6811, %v6813, %v6809
      %v6815 = vmul.f32 %v6267, %v6814
      %v6816 = vrcp.pop %v6716
      %v6817 = vmul.f32 %v6716, %v6816
      %v6818 = vsub.f32 1.0, %v6817
      %v6819 = vmul.f32 %v6816, %v6818
      %v6820 = vadd.f32 %v6816, %v6819
      %vm6821 = vweird.f32 %v6716
      %vm6822 = vweird.f32 %v6816
      %vm6823 = vmor %vm6821, %vm6822
      %v6824 = vsel %vm6823, %v6816, %v6820
      %v6825 = vand.u32 2147483647, %v6716
      %vm6826 = vcmp.eq.f32.partialorder %v6825, 8.507059e+37
      %v6827 = vand.u32 %v6716, 2147483648
      %v6828 = vor.u32 1.1754944e-38, %v6827
      %v6829 = vsel %vm6826, %v6828, %v6824
      %v6830 = vmul.f32 %v6268, %v6829
      %v6831 = vrcp.pop %v6717
      %v6832 = vmul.f32 %v6717, %v6831
      %v6833 = vsub.f32 1.0, %v6832
      %v6834 = vmul.f32 %v6831, %v6833
      %v6835 = vadd.f32 %v6831, %v6834
      %vm6836 = vweird.f32 %v6717
      %vm6837 = vweird.f32 %v6831
      %vm6838 = vmor %vm6836, %vm6837
      %v6839 = vsel %vm6838, %v6831, %v6835
      %v6840 = vand.u32 2147483647, %v6717
      %vm6841 = vcmp.eq.f32.partialorder %v6840, 8.507059e+37
      %v6842 = vand.u32 %v6717, 2147483648
      %v6843 = vor.u32 1.1754944e-38, %v6842
      %v6844 = vsel %vm6841, %v6843, %v6839
      %v6845 = vmul.f32 %v6269, %v6844
      %v6846 = vrcp.pop %v6718
      %v6847 = vmul.f32 %v6718, %v6846
      %v6848 = vsub.f32 1.0, %v6847
      %v6849 = vmul.f32 %v6846, %v6848
      %v6850 = vadd.f32 %v6846, %v6849
      %vm6851 = vweird.f32 %v6718
      %vm6852 = vweird.f32 %v6846
      %vm6853 = vmor %vm6851, %vm6852
      %v6854 = vsel %vm6853, %v6846, %v6850
      %v6855 = vand.u32 2147483647, %v6718
      %vm6856 = vcmp.eq.f32.partialorder %v6855, 8.507059e+37
      %v6857 = vand.u32 %v6718, 2147483648
      %v6858 = vor.u32 1.1754944e-38, %v6857
      %v6859 = vsel %vm6856, %v6858, %v6854
      %v6860 = vmul.f32 %v6270, %v6859
      %v6861 = vrcp.pop %v6719
      %v6862 = vmul.f32 %v6719, %v6861
      %v6863 = vsub.f32 1.0, %v6862
      %v6864 = vmul.f32 %v6861, %v6863
      %v6865 = vadd.f32 %v6861, %v6864
      %vm6866 = vweird.f32 %v6719
      %vm6867 = vweird.f32 %v6861
      %vm6868 = vmor %vm6866, %vm6867
      %v6869 = vsel %vm6868, %v6861, %v6865
      %v6870 = vand.u32 2147483647, %v6719
      %vm6871 = vcmp.eq.f32.partialorder %v6870, 8.507059e+37
      %v6872 = vand.u32 %v6719, 2147483648
      %v6873 = vor.u32 1.1754944e-38, %v6872
      %v6874 = vsel %vm6871, %v6873, %v6869
      %v6875 = vmul.f32 %v6271, %v6874
      %v6876 = vrcp.pop %v6720
      %v6877 = vmul.f32 %v6720, %v6876
      %v6878 = vsub.f32 1.0, %v6877
      %v6879 = vmul.f32 %v6876, %v6878
      %v6880 = vadd.f32 %v6876, %v6879
      %vm6881 = vweird.f32 %v6720
      %vm6882 = vweird.f32 %v6876
      %vm6883 = vmor %vm6881, %vm6882
      %v6884 = vsel %vm6883, %v6876, %v6880
      %v6885 = vand.u32 2147483647, %v6720
      %vm6886 = vcmp.eq.f32.partialorder %v6885, 8.507059e+37
      %v6887 = vand.u32 %v6720, 2147483648
      %v6888 = vor.u32 1.1754944e-38, %v6887
      %v6889 = vsel %vm6886, %v6888, %v6884
      %v6890 = vmul.f32 %v6272, %v6889
      %v6891 = vrcp.pop %v6721
      %v6892 = vmul.f32 %v6721, %v6891
      %v6893 = vsub.f32 1.0, %v6892
      %v6894 = vmul.f32 %v6891, %v6893
      %v6895 = vadd.f32 %v6891, %v6894
      %vm6896 = vweird.f32 %v6721
      %vm6897 = vweird.f32 %v6891
      %vm6898 = vmor %vm6896, %vm6897
      %v6899 = vsel %vm6898, %v6891, %v6895
      %v6900 = vand.u32 2147483647, %v6721
      %vm6901 = vcmp.eq.f32.partialorder %v6900, 8.507059e+37
      %v6902 = vand.u32 %v6721, 2147483648
      %v6903 = vor.u32 1.1754944e-38, %v6902
      %v6904 = vsel %vm6901, %v6903, %v6899
      %v6905 = vmul.f32 %v6273, %v6904
      %v6906 = vrcp.pop %v6722
      %v6907 = vmul.f32 %v6722, %v6906
      %v6908 = vsub.f32 1.0, %v6907
      %v6909 = vmul.f32 %v6906, %v6908
      %v6910 = vadd.f32 %v6906, %v6909
      %vm6911 = vweird.f32 %v6722
      %vm6912 = vweird.f32 %v6906
      %vm6913 = vmor %vm6911, %vm6912
      %v6914 = vsel %vm6913, %v6906, %v6910
      %v6915 = vand.u32 2147483647, %v6722
      %vm6916 = vcmp.eq.f32.partialorder %v6915, 8.507059e+37
      %v6917 = vand.u32 %v6722, 2147483648
      %v6918 = vor.u32 1.1754944e-38, %v6917
      %v6919 = vsel %vm6916, %v6918, %v6914
      %v6920 = vmul.f32 %v6274, %v6919
      %v6921 = vrcp.pop %v6723
      %v6922 = vmul.f32 %v6723, %v6921
      %v6923 = vsub.f32 1.0, %v6922
      %v6924 = vmul.f32 %v6921, %v6923
      %v6925 = vadd.f32 %v6921, %v6924
      %vm6926 = vweird.f32 %v6723
      %vm6927 = vweird.f32 %v6921
      %vm6928 = vmor %vm6926, %vm6927
      %v6929 = vsel %vm6928, %v6921, %v6925
      %v6930 = vand.u32 2147483647, %v6723
      %vm6931 = vcmp.eq.f32.partialorder %v6930, 8.507059e+37
      %v6932 = vand.u32 %v6723, 2147483648
      %v6933 = vor.u32 1.1754944e-38, %v6932
      %v6934 = vsel %vm6931, %v6933, %v6929
      %v6935 = vmul.f32 %v6275, %v6934
      %v6936 = vrcp.pop %v6724
      %v6937 = vmul.f32 %v6724, %v6936
      %v6938 = vsub.f32 1.0, %v6937
      %v6939 = vmul.f32 %v6936, %v6938
      %v6940 = vadd.f32 %v6936, %v6939
      %vm6941 = vweird.f32 %v6724
      %vm6942 = vweird.f32 %v6936
      %vm6943 = vmor %vm6941, %vm6942
      %v6944 = vsel %vm6943, %v6936, %v6940
      %v6945 = vand.u32 2147483647, %v6724
      %vm6946 = vcmp.eq.f32.partialorder %v6945, 8.507059e+37
      %v6947 = vand.u32 %v6724, 2147483648
      %v6948 = vor.u32 1.1754944e-38, %v6947
      %v6949 = vsel %vm6946, %v6948, %v6944
      %v6950 = vmul.f32 %v6276, %v6949
      %v6951 = vrcp.pop %v6725
      %v6952 = vmul.f32 %v6725, %v6951
      %v6953 = vsub.f32 1.0, %v6952
      %v6954 = vmul.f32 %v6951, %v6953
      %v6955 = vadd.f32 %v6951, %v6954
      %vm6956 = vweird.f32 %v6725
      %vm6957 = vweird.f32 %v6951
      %vm6958 = vmor %vm6956, %vm6957
      %v6959 = vsel %vm6958, %v6951, %v6955
      %v6960 = vand.u32 2147483647, %v6725
      %vm6961 = vcmp.eq.f32.partialorder %v6960, 8.507059e+37
      %v6962 = vand.u32 %v6725, 2147483648
      %v6963 = vor.u32 1.1754944e-38, %v6962
      %v6964 = vsel %vm6961, %v6963, %v6959
      %v6965 = vmul.f32 %v6277, %v6964
      %v6966 = vmul.f32 %v6740, %v876
      %v6967 = vmul.f32 %v6755, %v876
      %v6968 = vmul.f32 %v6770, %v876
      %v6969 = vmul.f32 %v6785, %v876
      %v6970 = vmul.f32 %v6800, %v876
      %v6971 = vmul.f32 %v6815, %v876
      %v6972 = vmul.f32 %v6830, %v876
      %v6973 = vmul.f32 %v6845, %v876
      %v6974 = vmul.f32 %v6860, %v876
      %v6975 = vmul.f32 %v6875, %v876
      %v6976 = vmul.f32 %v6890, %v876
      %v6977 = vmul.f32 %v6905, %v876
      %v6978 = vmul.f32 %v6920, %v876
      %v6979 = vmul.f32 %v6935, %v876
      %v6980 = vmul.f32 %v6950, %v876
      %v6981 = vmul.f32 %v6965, %v876
      %v6982 = vmax.f32 %v6966, 0.0
      %v6983 = vmax.f32 %v6967, 0.0
      %v6984 = vmax.f32 %v6968, 0.0
      %v6985 = vmax.f32 %v6969, 0.0
      %v6986 = vmax.f32 %v6970, 0.0
      %v6987 = vmax.f32 %v6971, 0.0
      %v6988 = vmax.f32 %v6972, 0.0
      %v6989 = vmax.f32 %v6973, 0.0
      %v6990 = vmax.f32 %v6974, 0.0
      %v6991 = vmax.f32 %v6975, 0.0
      %v6992 = vmax.f32 %v6976, 0.0
      %v6993 = vmax.f32 %v6977, 0.0
      %v6994 = vmax.f32 %v6978, 0.0
      %v6995 = vmax.f32 %v6979, 0.0
      %v6996 = vmax.f32 %v6980, 0.0
      %v6997 = vmax.f32 %v6981, 0.0
      %v6998 = vmin.f32 %v6982, 1.0
      %v6999 = vmin.f32 %v6983, 1.0
      %v7000 = vmin.f32 %v6984, 1.0
      %v7001 = vmin.f32 %v6985, 1.0
      %v7002 = vmin.f32 %v6986, 1.0
      %v7003 = vmin.f32 %v6987, 1.0
      %v7004 = vmin.f32 %v6988, 1.0
      %v7005 = vmin.f32 %v6989, 1.0
      %v7006 = vmin.f32 %v6990, 1.0
      %v7007 = vmin.f32 %v6991, 1.0
      %v7008 = vmin.f32 %v6992, 1.0
      %v7009 = vmin.f32 %v6993, 1.0
      %v7010 = vmin.f32 %v6994, 1.0
      %v7011 = vmin.f32 %v6995, 1.0
      %v7012 = vmin.f32 %v6996, 1.0
      %v7013 = vmin.f32 %v6997, 1.0
      %v7014 = vmul.f32 %v6998, 2.0
      %v7015 = vmul.f32 %v6999, 2.0
      %v7016 = vmul.f32 %v7000, 2.0
      %v7017 = vmul.f32 %v7001, 2.0
      %v7018 = vmul.f32 %v7002, 2.0
      %v7019 = vmul.f32 %v7003, 2.0
      %v7020 = vmul.f32 %v7004, 2.0
      %v7021 = vmul.f32 %v7005, 2.0
      %v7022 = vmul.f32 %v7006, 2.0
      %v7023 = vmul.f32 %v7007, 2.0
      %v7024 = vmul.f32 %v7008, 2.0
      %v7025 = vmul.f32 %v7009, 2.0
      %v7026 = vmul.f32 %v7010, 2.0
      %v7027 = vmul.f32 %v7011, 2.0
      %v7028 = vmul.f32 %v7012, 2.0
      %v7029 = vmul.f32 %v7013, 2.0
      %v7030 = vsub.f32 %v7014, 1.0
      %v7031 = vsub.f32 %v7015, 1.0
      %v7032 = vsub.f32 %v7016, 1.0
      %v7033 = vsub.f32 %v7017, 1.0
      %v7034 = vsub.f32 %v7018, 1.0
      %v7035 = vsub.f32 %v7019, 1.0
      %v7036 = vsub.f32 %v7020, 1.0
      %v7037 = vsub.f32 %v7021, 1.0
      %v7038 = vsub.f32 %v7022, 1.0
      %v7039 = vsub.f32 %v7023, 1.0
      %v7040 = vsub.f32 %v7024, 1.0
      %v7041 = vsub.f32 %v7025, 1.0
      %v7042 = vsub.f32 %v7026, 1.0
      %v7043 = vsub.f32 %v7027, 1.0
      %v7044 = vsub.f32 %v7028, 1.0
      %v7045 = vsub.f32 %v7029, 1.0
      %v7046 = vmul.f32 %v6486, %v6739
      %v7047 = vmul.f32 %v6487, %v6754
      %v7048 = vmul.f32 %v6488, %v6769
      %v7049 = vmul.f32 %v6489, %v6784
      %v7050 = vmul.f32 %v6490, %v6799
      %v7051 = vmul.f32 %v6491, %v6814
      %v7052 = vmul.f32 %v6492, %v6829
      %v7053 = vmul.f32 %v6493, %v6844
      %v7054 = vmul.f32 %v6494, %v6859
      %v7055 = vmul.f32 %v6495, %v6874
      %v7056 = vmul.f32 %v6496, %v6889
      %v7057 = vmul.f32 %v6497, %v6904
      %v7058 = vmul.f32 %v6498, %v6919
      %v7059 = vmul.f32 %v6499, %v6934
      %v7060 = vmul.f32 %v6500, %v6949
      %v7061 = vmul.f32 %v6501, %v6964
      %v7062 = vmul.f32 %v7046, %v876
      %v7063 = vmul.f32 %v7047, %v876
      %v7064 = vmul.f32 %v7048, %v876
      %v7065 = vmul.f32 %v7049, %v876
      %v7066 = vmul.f32 %v7050, %v876
      %v7067 = vmul.f32 %v7051, %v876
      %v7068 = vmul.f32 %v7052, %v876
      %v7069 = vmul.f32 %v7053, %v876
      %v7070 = vmul.f32 %v7054, %v876
      %v7071 = vmul.f32 %v7055, %v876
      %v7072 = vmul.f32 %v7056, %v876
      %v7073 = vmul.f32 %v7057, %v876
      %v7074 = vmul.f32 %v7058, %v876
      %v7075 = vmul.f32 %v7059, %v876
      %v7076 = vmul.f32 %v7060, %v876
      %v7077 = vmul.f32 %v7061, %v876
      %v7078 = vmax.f32 %v7062, 0.0
      %v7079 = vmax.f32 %v7063, 0.0
      %v7080 = vmax.f32 %v7064, 0.0
      %v7081 = vmax.f32 %v7065, 0.0
      %v7082 = vmax.f32 %v7066, 0.0
      %v7083 = vmax.f32 %v7067, 0.0
      %v7084 = vmax.f32 %v7068, 0.0
      %v7085 = vmax.f32 %v7069, 0.0
      %v7086 = vmax.f32 %v7070, 0.0
      %v7087 = vmax.f32 %v7071, 0.0
      %v7088 = vmax.f32 %v7072, 0.0
      %v7089 = vmax.f32 %v7073, 0.0
      %v7090 = vmax.f32 %v7074, 0.0
      %v7091 = vmax.f32 %v7075, 0.0
      %v7092 = vmax.f32 %v7076, 0.0
      %v7093 = vmax.f32 %v7077, 0.0
      %v7094 = vmin.f32 %v7078, 1.0
      %v7095 = vmin.f32 %v7079, 1.0
      %v7096 = vmin.f32 %v7080, 1.0
      %v7097 = vmin.f32 %v7081, 1.0
      %v7098 = vmin.f32 %v7082, 1.0
      %v7099 = vmin.f32 %v7083, 1.0
      %v7100 = vmin.f32 %v7084, 1.0
      %v7101 = vmin.f32 %v7085, 1.0
      %v7102 = vmin.f32 %v7086, 1.0
      %v7103 = vmin.f32 %v7087, 1.0
      %v7104 = vmin.f32 %v7088, 1.0
      %v7105 = vmin.f32 %v7089, 1.0
      %v7106 = vmin.f32 %v7090, 1.0
      %v7107 = vmin.f32 %v7091, 1.0
      %v7108 = vmin.f32 %v7092, 1.0
      %v7109 = vmin.f32 %v7093, 1.0
      %v7110 = vmul.f32 %v7094, 2.0
      %v7111 = vmul.f32 %v7095, 2.0
      %v7112 = vmul.f32 %v7096, 2.0
      %v7113 = vmul.f32 %v7097, 2.0
      %v7114 = vmul.f32 %v7098, 2.0
      %v7115 = vmul.f32 %v7099, 2.0
      %v7116 = vmul.f32 %v7100, 2.0
      %v7117 = vmul.f32 %v7101, 2.0
      %v7118 = vmul.f32 %v7102, 2.0
      %v7119 = vmul.f32 %v7103, 2.0
      %v7120 = vmul.f32 %v7104, 2.0
      %v7121 = vmul.f32 %v7105, 2.0
      %v7122 = vmul.f32 %v7106, 2.0
      %v7123 = vmul.f32 %v7107, 2.0
      %v7124 = vmul.f32 %v7108, 2.0
      %v7125 = vmul.f32 %v7109, 2.0
      %v7126 = vsub.f32 %v7110, 1.0
      %v7127 = vsub.f32 %v7111, 1.0
      %v7128 = vsub.f32 %v7112, 1.0
      %v7129 = vsub.f32 %v7113, 1.0
      %v7130 = vsub.f32 %v7114, 1.0
      %v7131 = vsub.f32 %v7115, 1.0
      %v7132 = vsub.f32 %v7116, 1.0
      %v7133 = vsub.f32 %v7117, 1.0
      %v7134 = vsub.f32 %v7118, 1.0
      %v7135 = vsub.f32 %v7119, 1.0
      %v7136 = vsub.f32 %v7120, 1.0
      %v7137 = vsub.f32 %v7121, 1.0
      %v7138 = vsub.f32 %v7122, 1.0
      %v7139 = vsub.f32 %v7123, 1.0
      %v7140 = vsub.f32 %v7124, 1.0
      %v7141 = vsub.f32 %v7125, 1.0
      %v7142 = vadd.f32 %v7030, 1.0
      %v7143 = vadd.f32 %v7031, 1.0
      %v7144 = vadd.f32 %v7032, 1.0
      %v7145 = vadd.f32 %v7033, 1.0
      %v7146 = vadd.f32 %v7034, 1.0
      %v7147 = vadd.f32 %v7035, 1.0
      %v7148 = vadd.f32 %v7036, 1.0
      %v7149 = vadd.f32 %v7037, 1.0
      %v7150 = vadd.f32 %v7038, 1.0
      %v7151 = vadd.f32 %v7039, 1.0
      %v7152 = vadd.f32 %v7040, 1.0
      %v7153 = vadd.f32 %v7041, 1.0
      %v7154 = vadd.f32 %v7042, 1.0
      %v7155 = vadd.f32 %v7043, 1.0
      %v7156 = vadd.f32 %v7044, 1.0
      %v7157 = vadd.f32 %v7045, 1.0
      %v7158 = vmul.f32 %v7142, 16.0
      %v7159 = vmul.f32 %v7143, 16.0
      %v7160 = vmul.f32 %v7144, 16.0
      %v7161 = vmul.f32 %v7145, 16.0
      %v7162 = vmul.f32 %v7146, 16.0
      %v7163 = vmul.f32 %v7147, 16.0
      %v7164 = vmul.f32 %v7148, 16.0
      %v7165 = vmul.f32 %v7149, 16.0
      %v7166 = vmul.f32 %v7150, 16.0
      %v7167 = vmul.f32 %v7151, 16.0
      %v7168 = vmul.f32 %v7152, 16.0
      %v7169 = vmul.f32 %v7153, 16.0
      %v7170 = vmul.f32 %v7154, 16.0
      %v7171 = vmul.f32 %v7155, 16.0
      %v7172 = vmul.f32 %v7156, 16.0
      %v7173 = vmul.f32 %v7157, 16.0
      %v7174 = vsub.f32 %v7158, 1.0
      %v7175 = vsub.f32 %v7159, 1.0
      %v7176 = vsub.f32 %v7160, 1.0
      %v7177 = vsub.f32 %v7161, 1.0
      %v7178 = vsub.f32 %v7162, 1.0
      %v7179 = vsub.f32 %v7163, 1.0
      %v7180 = vsub.f32 %v7164, 1.0
      %v7181 = vsub.f32 %v7165, 1.0
      %v7182 = vsub.f32 %v7166, 1.0
      %v7183 = vsub.f32 %v7167, 1.0
      %v7184 = vsub.f32 %v7168, 1.0
      %v7185 = vsub.f32 %v7169, 1.0
      %v7186 = vsub.f32 %v7170, 1.0
      %v7187 = vsub.f32 %v7171, 1.0
      %v7188 = vsub.f32 %v7172, 1.0
      %v7189 = vsub.f32 %v7173, 1.0
      %v7190 = vmul.f32 %v7174, 0.5
      %v7191 = vmul.f32 %v7175, 0.5
      %v7192 = vmul.f32 %v7176, 0.5
      %v7193 = vmul.f32 %v7177, 0.5
      %v7194 = vmul.f32 %v7178, 0.5
      %v7195 = vmul.f32 %v7179, 0.5
      %v7196 = vmul.f32 %v7180, 0.5
      %v7197 = vmul.f32 %v7181, 0.5
      %v7198 = vmul.f32 %v7182, 0.5
      %v7199 = vmul.f32 %v7183, 0.5
      %v7200 = vmul.f32 %v7184, 0.5
      %v7201 = vmul.f32 %v7185, 0.5
      %v7202 = vmul.f32 %v7186, 0.5
      %v7203 = vmul.f32 %v7187, 0.5
      %v7204 = vmul.f32 %v7188, 0.5
      %v7205 = vmul.f32 %v7189, 0.5
      %v7206 = vadd.f32 %v7126, 1.0
      %v7207 = vadd.f32 %v7127, 1.0
      %v7208 = vadd.f32 %v7128, 1.0
      %v7209 = vadd.f32 %v7129, 1.0
      %v7210 = vadd.f32 %v7130, 1.0
      %v7211 = vadd.f32 %v7131, 1.0
      %v7212 = vadd.f32 %v7132, 1.0
      %v7213 = vadd.f32 %v7133, 1.0
      %v7214 = vadd.f32 %v7134, 1.0
      %v7215 = vadd.f32 %v7135, 1.0
      %v7216 = vadd.f32 %v7136, 1.0
      %v7217 = vadd.f32 %v7137, 1.0
      %v7218 = vadd.f32 %v7138, 1.0
      %v7219 = vadd.f32 %v7139, 1.0
      %v7220 = vadd.f32 %v7140, 1.0
      %v7221 = vadd.f32 %v7141, 1.0
      %v7222 = vmul.f32 %v7206, 16.0
      %v7223 = vmul.f32 %v7207, 16.0
      %v7224 = vmul.f32 %v7208, 16.0
      %v7225 = vmul.f32 %v7209, 16.0
      %v7226 = vmul.f32 %v7210, 16.0
      %v7227 = vmul.f32 %v7211, 16.0
      %v7228 = vmul.f32 %v7212, 16.0
      %v7229 = vmul.f32 %v7213, 16.0
      %v7230 = vmul.f32 %v7214, 16.0
      %v7231 = vmul.f32 %v7215, 16.0
      %v7232 = vmul.f32 %v7216, 16.0
      %v7233 = vmul.f32 %v7217, 16.0
      %v7234 = vmul.f32 %v7218, 16.0
      %v7235 = vmul.f32 %v7219, 16.0
      %v7236 = vmul.f32 %v7220, 16.0
      %v7237 = vmul.f32 %v7221, 16.0
      %v7238 = vsub.f32 %v7222, 1.0
      %v7239 = vsub.f32 %v7223, 1.0
      %v7240 = vsub.f32 %v7224, 1.0
      %v7241 = vsub.f32 %v7225, 1.0
      %v7242 = vsub.f32 %v7226, 1.0
      %v7243 = vsub.f32 %v7227, 1.0
      %v7244 = vsub.f32 %v7228, 1.0
      %v7245 = vsub.f32 %v7229, 1.0
      %v7246 = vsub.f32 %v7230, 1.0
      %v7247 = vsub.f32 %v7231, 1.0
      %v7248 = vsub.f32 %v7232, 1.0
      %v7249 = vsub.f32 %v7233, 1.0
      %v7250 = vsub.f32 %v7234, 1.0
      %v7251 = vsub.f32 %v7235, 1.0
      %v7252 = vsub.f32 %v7236, 1.0
      %v7253 = vsub.f32 %v7237, 1.0
      %v7254 = vmul.f32 %v7238, 0.5
      %v7255 = vmul.f32 %v7239, 0.5
      %v7256 = vmul.f32 %v7240, 0.5
      %v7257 = vmul.f32 %v7241, 0.5
      %v7258 = vmul.f32 %v7242, 0.5
      %v7259 = vmul.f32 %v7243, 0.5
      %v7260 = vmul.f32 %v7244, 0.5
      %v7261 = vmul.f32 %v7245, 0.5
      %v7262 = vmul.f32 %v7246, 0.5
      %v7263 = vmul.f32 %v7247, 0.5
      %v7264 = vmul.f32 %v7248, 0.5
      %v7265 = vmul.f32 %v7249, 0.5
      %v7266 = vmul.f32 %v7250, 0.5
      %v7267 = vmul.f32 %v7251, 0.5
      %v7268 = vmul.f32 %v7252, 0.5
      %v7269 = vmul.f32 %v7253, 0.5
      %v7270 = vfloor.f32 %v7190
      %v7271 = vfloor.f32 %v7191
      %v7272 = vfloor.f32 %v7192
      %v7273 = vfloor.f32 %v7193
      %v7274 = vfloor.f32 %v7194
      %v7275 = vfloor.f32 %v7195
      %v7276 = vfloor.f32 %v7196
      %v7277 = vfloor.f32 %v7197
      %v7278 = vfloor.f32 %v7198
      %v7279 = vfloor.f32 %v7199
      %v7280 = vfloor.f32 %v7200
      %v7281 = vfloor.f32 %v7201
      %v7282 = vfloor.f32 %v7202
      %v7283 = vfloor.f32 %v7203
      %v7284 = vfloor.f32 %v7204
      %v7285 = vfloor.f32 %v7205
      %v7286 = vfloor.f32 %v7254
      %v7287 = vfloor.f32 %v7255
      %v7288 = vfloor.f32 %v7256
      %v7289 = vfloor.f32 %v7257
      %v7290 = vfloor.f32 %v7258
      %v7291 = vfloor.f32 %v7259
      %v7292 = vfloor.f32 %v7260
      %v7293 = vfloor.f32 %v7261
      %v7294 = vfloor.f32 %v7262
      %v7295 = vfloor.f32 %v7263
      %v7296 = vfloor.f32 %v7264
      %v7297 = vfloor.f32 %v7265
      %v7298 = vfloor.f32 %v7266
      %v7299 = vfloor.f32 %v7267
      %v7300 = vfloor.f32 %v7268
      %v7301 = vfloor.f32 %v7269
      %v7302 = vsub.f32 %v7190, %v7270
      %v7303 = vsub.f32 %v7191, %v7271
      %v7304 = vsub.f32 %v7192, %v7272
      %v7305 = vsub.f32 %v7193, %v7273
      %v7306 = vsub.f32 %v7194, %v7274
      %v7307 = vsub.f32 %v7195, %v7275
      %v7308 = vsub.f32 %v7196, %v7276
      %v7309 = vsub.f32 %v7197, %v7277
      %v7310 = vsub.f32 %v7198, %v7278
      %v7311 = vsub.f32 %v7199, %v7279
      %v7312 = vsub.f32 %v7200, %v7280
      %v7313 = vsub.f32 %v7201, %v7281
      %v7314 = vsub.f32 %v7202, %v7282
      %v7315 = vsub.f32 %v7203, %v7283
      %v7316 = vsub.f32 %v7204, %v7284
      %v7317 = vsub.f32 %v7205, %v7285
      %v7318 = vsub.f32 1.0, %v7302
      %v7319 = vsub.f32 1.0, %v7303
      %v7320 = vsub.f32 1.0, %v7304
      %v7321 = vsub.f32 1.0, %v7305
      %v7322 = vsub.f32 1.0, %v7306
      %v7323 = vsub.f32 1.0, %v7307
      %v7324 = vsub.f32 1.0, %v7308
      %v7325 = vsub.f32 1.0, %v7309
      %v7326 = vsub.f32 1.0, %v7310
      %v7327 = vsub.f32 1.0, %v7311
      %v7328 = vsub.f32 1.0, %v7312
      %v7329 = vsub.f32 1.0, %v7313
      %v7330 = vsub.f32 1.0, %v7314
      %v7331 = vsub.f32 1.0, %v7315
      %v7332 = vsub.f32 1.0, %v7316
      %v7333 = vsub.f32 1.0, %v7317
      %v7334 = vsub.f32 %v7254, %v7286
      %v7335 = vsub.f32 %v7255, %v7287
      %v7336 = vsub.f32 %v7256, %v7288
      %v7337 = vsub.f32 %v7257, %v7289
      %v7338 = vsub.f32 %v7258, %v7290
      %v7339 = vsub.f32 %v7259, %v7291
      %v7340 = vsub.f32 %v7260, %v7292
      %v7341 = vsub.f32 %v7261, %v7293
      %v7342 = vsub.f32 %v7262, %v7294
      %v7343 = vsub.f32 %v7263, %v7295
      %v7344 = vsub.f32 %v7264, %v7296
      %v7345 = vsub.f32 %v7265, %v7297
      %v7346 = vsub.f32 %v7266, %v7298
      %v7347 = vsub.f32 %v7267, %v7299
      %v7348 = vsub.f32 %v7268, %v7300
      %v7349 = vsub.f32 %v7269, %v7301
      %v7350 = vsub.f32 1.0, %v7334
      %v7351 = vsub.f32 1.0, %v7335
      %v7352 = vsub.f32 1.0, %v7336
      %v7353 = vsub.f32 1.0, %v7337
      %v7354 = vsub.f32 1.0, %v7338
      %v7355 = vsub.f32 1.0, %v7339
      %v7356 = vsub.f32 1.0, %v7340
      %v7357 = vsub.f32 1.0, %v7341
      %v7358 = vsub.f32 1.0, %v7342
      %v7359 = vsub.f32 1.0, %v7343
      %v7360 = vsub.f32 1.0, %v7344
      %v7361 = vsub.f32 1.0, %v7345
      %v7362 = vsub.f32 1.0, %v7346
      %v7363 = vsub.f32 1.0, %v7347
      %v7364 = vsub.f32 1.0, %v7348
      %v7365 = vsub.f32 1.0, %v7349
      %v7366 = vcvt.f32.s32.to.zero.pseudo %v7270
      %v7367 = vcvt.f32.s32.to.zero.pseudo %v7271
      %v7368 = vcvt.f32.s32.to.zero.pseudo %v7272
      %v7369 = vcvt.f32.s32.to.zero.pseudo %v7273
      %v7370 = vcvt.f32.s32.to.zero.pseudo %v7274
      %v7371 = vcvt.f32.s32.to.zero.pseudo %v7275
      %v7372 = vcvt.f32.s32.to.zero.pseudo %v7276
      %v7373 = vcvt.f32.s32.to.zero.pseudo %v7277
      %v7374 = vcvt.f32.s32.to.zero.pseudo %v7278
      %v7375 = vcvt.f32.s32.to.zero.pseudo %v7279
      %v7376 = vcvt.f32.s32.to.zero.pseudo %v7280
      %v7377 = vcvt.f32.s32.to.zero.pseudo %v7281
      %v7378 = vcvt.f32.s32.to.zero.pseudo %v7282
      %v7379 = vcvt.f32.s32.to.zero.pseudo %v7283
      %v7380 = vcvt.f32.s32.to.zero.pseudo %v7284
      %v7381 = vcvt.f32.s32.to.zero.pseudo %v7285
      %v7382 = vadd.s32 %v7366, 1
      %v7383 = vadd.s32 %v7367, 1
      %v7384 = vadd.s32 %v7368, 1
      %v7385 = vadd.s32 %v7369, 1
      %v7386 = vadd.s32 %v7370, 1
      %v7387 = vadd.s32 %v7371, 1
      %v7388 = vadd.s32 %v7372, 1
      %v7389 = vadd.s32 %v7373, 1
      %v7390 = vadd.s32 %v7374, 1
      %v7391 = vadd.s32 %v7375, 1
      %v7392 = vadd.s32 %v7376, 1
      %v7393 = vadd.s32 %v7377, 1
      %v7394 = vadd.s32 %v7378, 1
      %v7395 = vadd.s32 %v7379, 1
      %v7396 = vadd.s32 %v7380, 1
      %v7397 = vadd.s32 %v7381, 1
      %v7398 = vcvt.f32.s32.to.zero.pseudo %v7286
      %v7399 = vcvt.f32.s32.to.zero.pseudo %v7287
      %v7400 = vcvt.f32.s32.to.zero.pseudo %v7288
      %v7401 = vcvt.f32.s32.to.zero.pseudo %v7289
      %v7402 = vcvt.f32.s32.to.zero.pseudo %v7290
      %v7403 = vcvt.f32.s32.to.zero.pseudo %v7291
      %v7404 = vcvt.f32.s32.to.zero.pseudo %v7292
      %v7405 = vcvt.f32.s32.to.zero.pseudo %v7293
      %v7406 = vcvt.f32.s32.to.zero.pseudo %v7294
      %v7407 = vcvt.f32.s32.to.zero.pseudo %v7295
      %v7408 = vcvt.f32.s32.to.zero.pseudo %v7296
      %v7409 = vcvt.f32.s32.to.zero.pseudo %v7297
      %v7410 = vcvt.f32.s32.to.zero.pseudo %v7298
      %v7411 = vcvt.f32.s32.to.zero.pseudo %v7299
      %v7412 = vcvt.f32.s32.to.zero.pseudo %v7300
      %v7413 = vcvt.f32.s32.to.zero.pseudo %v7301
      %v7414 = vadd.s32 %v7398, 1
      %v7415 = vadd.s32 %v7399, 1
      %v7416 = vadd.s32 %v7400, 1
      %v7417 = vadd.s32 %v7401, 1
      %v7418 = vadd.s32 %v7402, 1
      %v7419 = vadd.s32 %v7403, 1
      %v7420 = vadd.s32 %v7404, 1
      %v7421 = vadd.s32 %v7405, 1
      %v7422 = vadd.s32 %v7406, 1
      %v7423 = vadd.s32 %v7407, 1
      %v7424 = vadd.s32 %v7408, 1
      %v7425 = vadd.s32 %v7409, 1
      %v7426 = vadd.s32 %v7410, 1
      %v7427 = vadd.s32 %v7411, 1
      %v7428 = vadd.s32 %v7412, 1
      %v7429 = vadd.s32 %v7413, 1
      %v7430 = vmul.f32 %v7350, %v7318
      %v7431 = vmul.f32 %v7351, %v7319
      %v7432 = vmul.f32 %v7352, %v7320
      %v7433 = vmul.f32 %v7353, %v7321
      %v7434 = vmul.f32 %v7354, %v7322
      %v7435 = vmul.f32 %v7355, %v7323
      %v7436 = vmul.f32 %v7356, %v7324
      %v7437 = vmul.f32 %v7357, %v7325
      %v7438 = vmul.f32 %v7358, %v7326
      %v7439 = vmul.f32 %v7359, %v7327
      %v7440 = vmul.f32 %v7360, %v7328
      %v7441 = vmul.f32 %v7361, %v7329
      %v7442 = vmul.f32 %v7362, %v7330
      %v7443 = vmul.f32 %v7363, %v7331
      %v7444 = vmul.f32 %v7364, %v7332
      %v7445 = vmul.f32 %v7365, %v7333
      %v7446 = vmul.f32 %v7350, %v7302
      %v7447 = vmul.f32 %v7351, %v7303
      %v7448 = vmul.f32 %v7352, %v7304
      %v7449 = vmul.f32 %v7353, %v7305
      %v7450 = vmul.f32 %v7354, %v7306
      %v7451 = vmul.f32 %v7355, %v7307
      %v7452 = vmul.f32 %v7356, %v7308
      %v7453 = vmul.f32 %v7357, %v7309
      %v7454 = vmul.f32 %v7358, %v7310
      %v7455 = vmul.f32 %v7359, %v7311
      %v7456 = vmul.f32 %v7360, %v7312
      %v7457 = vmul.f32 %v7361, %v7313
      %v7458 = vmul.f32 %v7362, %v7314
      %v7459 = vmul.f32 %v7363, %v7315
      %v7460 = vmul.f32 %v7364, %v7316
      %v7461 = vmul.f32 %v7365, %v7317
      %v7462 = vmul.f32 %v7334, %v7318
      %v7463 = vmul.f32 %v7335, %v7319
      %v7464 = vmul.f32 %v7336, %v7320
      %v7465 = vmul.f32 %v7337, %v7321
      %v7466 = vmul.f32 %v7338, %v7322
      %v7467 = vmul.f32 %v7339, %v7323
      %v7468 = vmul.f32 %v7340, %v7324
      %v7469 = vmul.f32 %v7341, %v7325
      %v7470 = vmul.f32 %v7342, %v7326
      %v7471 = vmul.f32 %v7343, %v7327
      %v7472 = vmul.f32 %v7344, %v7328
      %v7473 = vmul.f32 %v7345, %v7329
      %v7474 = vmul.f32 %v7346, %v7330
      %v7475 = vmul.f32 %v7347, %v7331
      %v7476 = vmul.f32 %v7348, %v7332
      %v7477 = vmul.f32 %v7349, %v7333
      %v7478 = vmul.f32 %v7334, %v7302
      %v7479 = vmul.f32 %v7335, %v7303
      %v7480 = vmul.f32 %v7336, %v7304
      %v7481 = vmul.f32 %v7337, %v7305
      %v7482 = vmul.f32 %v7338, %v7306
      %v7483 = vmul.f32 %v7339, %v7307
      %v7484 = vmul.f32 %v7340, %v7308
      %v7485 = vmul.f32 %v7341, %v7309
      %v7486 = vmul.f32 %v7342, %v7310
      %v7487 = vmul.f32 %v7343, %v7311
      %v7488 = vmul.f32 %v7344, %v7312
      %v7489 = vmul.f32 %v7345, %v7313
      %v7490 = vmul.f32 %v7346, %v7314
      %v7491 = vmul.f32 %v7347, %v7315
      %v7492 = vmul.f32 %v7348, %v7316
      %v7493 = vmul.f32 %v7349, %v7317
      %vm7494 = vcmp.ge.s32.totalorder %v7366, 0
      %vm7495 = vcmp.ge.s32.totalorder %v7367, 0
      %vm7496 = vcmp.ge.s32.totalorder %v7368, 0
      %vm7497 = vcmp.ge.s32.totalorder %v7369, 0
      %vm7498 = vcmp.ge.s32.totalorder %v7370, 0
      %vm7499 = vcmp.ge.s32.totalorder %v7371, 0
      %vm7500 = vcmp.ge.s32.totalorder %v7372, 0
      %vm7501 = vcmp.ge.s32.totalorder %v7373, 0
      %vm7502 = vcmp.ge.s32.totalorder %v7374, 0
      %vm7503 = vcmp.ge.s32.totalorder %v7375, 0
      %vm7504 = vcmp.ge.s32.totalorder %v7376, 0
      %vm7505 = vcmp.ge.s32.totalorder %v7377, 0
      %vm7506 = vcmp.ge.s32.totalorder %v7378, 0
      %vm7507 = vcmp.ge.s32.totalorder %v7379, 0
      %vm7508 = vcmp.ge.s32.totalorder %v7380, 0
      %vm7509 = vcmp.ge.s32.totalorder %v7381, 0
      %vm7510 = vcmp.lt.s32.totalorder %v7366, 16
      %vm7511 = vcmp.lt.s32.totalorder %v7367, 16
      %vm7512 = vcmp.lt.s32.totalorder %v7368, 16
      %vm7513 = vcmp.lt.s32.totalorder %v7369, 16
      %vm7514 = vcmp.lt.s32.totalorder %v7370, 16
      %vm7515 = vcmp.lt.s32.totalorder %v7371, 16
      %vm7516 = vcmp.lt.s32.totalorder %v7372, 16
      %vm7517 = vcmp.lt.s32.totalorder %v7373, 16
      %vm7518 = vcmp.lt.s32.totalorder %v7374, 16
      %vm7519 = vcmp.lt.s32.totalorder %v7375, 16
      %vm7520 = vcmp.lt.s32.totalorder %v7376, 16
      %vm7521 = vcmp.lt.s32.totalorder %v7377, 16
      %vm7522 = vcmp.lt.s32.totalorder %v7378, 16
      %vm7523 = vcmp.lt.s32.totalorder %v7379, 16
      %vm7524 = vcmp.lt.s32.totalorder %v7380, 16
      %vm7525 = vcmp.lt.s32.totalorder %v7381, 16
      %vm7526 = vmand %vm7494, %vm7510
      %vm7527 = vmand %vm7495, %vm7511
      %vm7528 = vmand %vm7496, %vm7512
      %vm7529 = vmand %vm7497, %vm7513
      %vm7530 = vmand %vm7498, %vm7514
      %vm7531 = vmand %vm7499, %vm7515
      %vm7532 = vmand %vm7500, %vm7516
      %vm7533 = vmand %vm7501, %vm7517
      %vm7534 = vmand %vm7502, %vm7518
      %vm7535 = vmand %vm7503, %vm7519
      %vm7536 = vmand %vm7504, %vm7520
      %vm7537 = vmand %vm7505, %vm7521
      %vm7538 = vmand %vm7506, %vm7522
      %vm7539 = vmand %vm7507, %vm7523
      %vm7540 = vmand %vm7508, %vm7524
      %vm7541 = vmand %vm7509, %vm7525
      %vm7542 = vcmp.ge.s32.totalorder %v7398, 0
      %vm7543 = vcmp.ge.s32.totalorder %v7399, 0
      %vm7544 = vcmp.ge.s32.totalorder %v7400, 0
      %vm7545 = vcmp.ge.s32.totalorder %v7401, 0
      %vm7546 = vcmp.ge.s32.totalorder %v7402, 0
      %vm7547 = vcmp.ge.s32.totalorder %v7403, 0
      %vm7548 = vcmp.ge.s32.totalorder %v7404, 0
      %vm7549 = vcmp.ge.s32.totalorder %v7405, 0
      %vm7550 = vcmp.ge.s32.totalorder %v7406, 0
      %vm7551 = vcmp.ge.s32.totalorder %v7407, 0
      %vm7552 = vcmp.ge.s32.totalorder %v7408, 0
      %vm7553 = vcmp.ge.s32.totalorder %v7409, 0
      %vm7554 = vcmp.ge.s32.totalorder %v7410, 0
      %vm7555 = vcmp.ge.s32.totalorder %v7411, 0
      %vm7556 = vcmp.ge.s32.totalorder %v7412, 0
      %vm7557 = vcmp.ge.s32.totalorder %v7413, 0
      %vm7558 = vmand %vm7526, %vm7542
      %vm7559 = vmand %vm7527, %vm7543
      %vm7560 = vmand %vm7528, %vm7544
      %vm7561 = vmand %vm7529, %vm7545
      %vm7562 = vmand %vm7530, %vm7546
      %vm7563 = vmand %vm7531, %vm7547
      %vm7564 = vmand %vm7532, %vm7548
      %vm7565 = vmand %vm7533, %vm7549
      %vm7566 = vmand %vm7534, %vm7550
      %vm7567 = vmand %vm7535, %vm7551
      %vm7568 = vmand %vm7536, %vm7552
      %vm7569 = vmand %vm7537, %vm7553
      %vm7570 = vmand %vm7538, %vm7554
      %vm7571 = vmand %vm7539, %vm7555
      %vm7572 = vmand %vm7540, %vm7556
      %vm7573 = vmand %vm7541, %vm7557
      %vm7574 = vcmp.lt.s32.totalorder %v7398, 16
      %vm7575 = vcmp.lt.s32.totalorder %v7399, 16
      %vm7576 = vcmp.lt.s32.totalorder %v7400, 16
      %vm7577 = vcmp.lt.s32.totalorder %v7401, 16
      %vm7578 = vcmp.lt.s32.totalorder %v7402, 16
      %vm7579 = vcmp.lt.s32.totalorder %v7403, 16
      %vm7580 = vcmp.lt.s32.totalorder %v7404, 16
      %vm7581 = vcmp.lt.s32.totalorder %v7405, 16
      %vm7582 = vcmp.lt.s32.totalorder %v7406, 16
      %vm7583 = vcmp.lt.s32.totalorder %v7407, 16
      %vm7584 = vcmp.lt.s32.totalorder %v7408, 16
      %vm7585 = vcmp.lt.s32.totalorder %v7409, 16
      %vm7586 = vcmp.lt.s32.totalorder %v7410, 16
      %vm7587 = vcmp.lt.s32.totalorder %v7411, 16
      %vm7588 = vcmp.lt.s32.totalorder %v7412, 16
      %vm7589 = vcmp.lt.s32.totalorder %v7413, 16
      %vm7590 = vmand %vm7558, %vm7574
      %vm7591 = vmand %vm7559, %vm7575
      %vm7592 = vmand %vm7560, %vm7576
      %vm7593 = vmand %vm7561, %vm7577
      %vm7594 = vmand %vm7562, %vm7578
      %vm7595 = vmand %vm7563, %vm7579
      %vm7596 = vmand %vm7564, %vm7580
      %vm7597 = vmand %vm7565, %vm7581
      %vm7598 = vmand %vm7566, %vm7582
      %vm7599 = vmand %vm7567, %vm7583
      %vm7600 = vmand %vm7568, %vm7584
      %vm7601 = vmand %vm7569, %vm7585
      %vm7602 = vmand %vm7570, %vm7586
      %vm7603 = vmand %vm7571, %vm7587
      %vm7604 = vmand %vm7572, %vm7588
      %vm7605 = vmand %vm7573, %vm7589
      %v7606 = vsel %vm7590, %v7430, 0.0
      %v7607 = vsel %vm7591, %v7431, 0.0
      %v7608 = vsel %vm7592, %v7432, 0.0
      %v7609 = vsel %vm7593, %v7433, 0.0
      %v7610 = vsel %vm7594, %v7434, 0.0
      %v7611 = vsel %vm7595, %v7435, 0.0
      %v7612 = vsel %vm7596, %v7436, 0.0
      %v7613 = vsel %vm7597, %v7437, 0.0
      %v7614 = vsel %vm7598, %v7438, 0.0
      %v7615 = vsel %vm7599, %v7439, 0.0
      %v7616 = vsel %vm7600, %v7440, 0.0
      %v7617 = vsel %vm7601, %v7441, 0.0
      %v7618 = vsel %vm7602, %v7442, 0.0
      %v7619 = vsel %vm7603, %v7443, 0.0
      %v7620 = vsel %vm7604, %v7444, 0.0
      %v7621 = vsel %vm7605, %v7445, 0.0
      %v7622 = vmul.u32 %v7398, 16
      %v7623 = vmul.u32 %v7399, 16
      %v7624 = vmul.u32 %v7400, 16
      %v7625 = vmul.u32 %v7401, 16
      %v7626 = vmul.u32 %v7402, 16
      %v7627 = vmul.u32 %v7403, 16
      %v7628 = vmul.u32 %v7404, 16
      %v7629 = vmul.u32 %v7405, 16
      %v7630 = vmul.u32 %v7406, 16
      %v7631 = vmul.u32 %v7407, 16
      %v7632 = vmul.u32 %v7408, 16
      %v7633 = vmul.u32 %v7409, 16
      %v7634 = vmul.u32 %v7410, 16
      %v7635 = vmul.u32 %v7411, 16
      %v7636 = vmul.u32 %v7412, 16
      %v7637 = vmul.u32 %v7413, 16
      %v7638 = vadd.s32 %v7622, %v7366
      %v7639 = vadd.s32 %v7623, %v7367
      %v7640 = vadd.s32 %v7624, %v7368
      %v7641 = vadd.s32 %v7625, %v7369
      %v7642 = vadd.s32 %v7626, %v7370
      %v7643 = vadd.s32 %v7627, %v7371
      %v7644 = vadd.s32 %v7628, %v7372
      %v7645 = vadd.s32 %v7629, %v7373
      %v7646 = vadd.s32 %v7630, %v7374
      %v7647 = vadd.s32 %v7631, %v7375
      %v7648 = vadd.s32 %v7632, %v7376
      %v7649 = vadd.s32 %v7633, %v7377
      %v7650 = vadd.s32 %v7634, %v7378
      %v7651 = vadd.s32 %v7635, %v7379
      %v7652 = vadd.s32 %v7636, %v7380
      %v7653 = vadd.s32 %v7637, %v7381
      %7654 = vset.pattern.permute.xlu0 0
      %7655 = vperm.xlu0 %7654, %v7638
      %v7656 = vpop.permute.xlu0 %7655
      %7657 = vset.pattern.permute.xlu0 0
      %7658 = vperm.xlu0 %7657, %v7639
      %v7659 = vpop.permute.xlu0 %7658
      %7660 = vset.pattern.permute.xlu0 0
      %7661 = vperm.xlu0 %7660, %v7640
      %v7662 = vpop.permute.xlu0 %7661
      %7663 = vset.pattern.permute.xlu0 0
      %7664 = vperm.xlu0 %7663, %v7641
      %v7665 = vpop.permute.xlu0 %7664
      %7666 = vset.pattern.permute.xlu0 0
      %7667 = vperm.xlu0 %7666, %v7642
      %v7668 = vpop.permute.xlu0 %7667
      %7669 = vset.pattern.permute.xlu0 0
      %7670 = vperm.xlu0 %7669, %v7643
      %v7671 = vpop.permute.xlu0 %7670
      %7672 = vset.pattern.permute.xlu0 0
      %7673 = vperm.xlu0 %7672, %v7644
      %v7674 = vpop.permute.xlu0 %7673
      %7675 = vset.pattern.permute.xlu0 0
      %7676 = vperm.xlu0 %7675, %v7645
      %v7677 = vpop.permute.xlu0 %7676
      %7678 = vset.pattern.permute.xlu0 0
      %7679 = vperm.xlu0 %7678, %v7646
      %v7680 = vpop.permute.xlu0 %7679
      %7681 = vset.pattern.permute.xlu0 0
      %7682 = vperm.xlu0 %7681, %v7647
      %v7683 = vpop.permute.xlu0 %7682
      %7684 = vset.pattern.permute.xlu0 0
      %7685 = vperm.xlu0 %7684, %v7648
      %v7686 = vpop.permute.xlu0 %7685
      %7687 = vset.pattern.permute.xlu0 0
      %7688 = vperm.xlu0 %7687, %v7649
      %v7689 = vpop.permute.xlu0 %7688
      %7690 = vset.pattern.permute.xlu0 0
      %7691 = vperm.xlu0 %7690, %v7650
      %v7692 = vpop.permute.xlu0 %7691
      %7693 = vset.pattern.permute.xlu0 0
      %7694 = vperm.xlu0 %7693, %v7651
      %v7695 = vpop.permute.xlu0 %7694
      %7696 = vset.pattern.permute.xlu0 0
      %7697 = vperm.xlu0 %7696, %v7652
      %v7698 = vpop.permute.xlu0 %7697
      %7699 = vset.pattern.permute.xlu0 0
      %7700 = vperm.xlu0 %7699, %v7653
      %v7701 = vpop.permute.xlu0 %7700
      %vm7702 = vcmp.eq.s32.totalorder %v164, %v7656
      %vm7703 = vcmp.eq.s32.totalorder %v165, %v7656
      %vm7704 = vcmp.eq.s32.totalorder %v164, %v7659
      %vm7705 = vcmp.eq.s32.totalorder %v165, %v7659
      %vm7706 = vcmp.eq.s32.totalorder %v164, %v7662
      %vm7707 = vcmp.eq.s32.totalorder %v165, %v7662
      %vm7708 = vcmp.eq.s32.totalorder %v164, %v7665
      %vm7709 = vcmp.eq.s32.totalorder %v165, %v7665
      %vm7710 = vcmp.eq.s32.totalorder %v164, %v7668
      %vm7711 = vcmp.eq.s32.totalorder %v165, %v7668
      %vm7712 = vcmp.eq.s32.totalorder %v164, %v7671
      %vm7713 = vcmp.eq.s32.totalorder %v165, %v7671
      %vm7714 = vcmp.eq.s32.totalorder %v164, %v7674
      %vm7715 = vcmp.eq.s32.totalorder %v165, %v7674
      %vm7716 = vcmp.eq.s32.totalorder %v164, %v7677
      %vm7717 = vcmp.eq.s32.totalorder %v165, %v7677
      %vm7718 = vcmp.eq.s32.totalorder %v164, %v7680
      %vm7719 = vcmp.eq.s32.totalorder %v165, %v7680
      %vm7720 = vcmp.eq.s32.totalorder %v164, %v7683
      %vm7721 = vcmp.eq.s32.totalorder %v165, %v7683
      %vm7722 = vcmp.eq.s32.totalorder %v164, %v7686
      %vm7723 = vcmp.eq.s32.totalorder %v165, %v7686
      %vm7724 = vcmp.eq.s32.totalorder %v164, %v7689
      %vm7725 = vcmp.eq.s32.totalorder %v165, %v7689
      %vm7726 = vcmp.eq.s32.totalorder %v164, %v7692
      %vm7727 = vcmp.eq.s32.totalorder %v165, %v7692
      %vm7728 = vcmp.eq.s32.totalorder %v164, %v7695
      %vm7729 = vcmp.eq.s32.totalorder %v165, %v7695
      %vm7730 = vcmp.eq.s32.totalorder %v164, %v7698
      %vm7731 = vcmp.eq.s32.totalorder %v165, %v7698
      %vm7732 = vcmp.eq.s32.totalorder %v164, %v7701
      %vm7733 = vcmp.eq.s32.totalorder %v165, %v7701
      %7735 = vset.pattern.permute.xlu0 0
      %7736 = vperm.xlu0 %7735, %v7606
      %v7737 = vpop.permute.xlu0 %7736
      %7740 = vset.pattern.permute.xlu0 0
      %7741 = vperm.xlu0 %7740, %v7607
      %v7742 = vpop.permute.xlu0 %7741
      %7745 = vset.pattern.permute.xlu0 0
      %7746 = vperm.xlu0 %7745, %v7608
      %v7747 = vpop.permute.xlu0 %7746
      %7750 = vset.pattern.permute.xlu0 0
      %7751 = vperm.xlu0 %7750, %v7609
      %v7752 = vpop.permute.xlu0 %7751
      %7755 = vset.pattern.permute.xlu0 0
      %7756 = vperm.xlu0 %7755, %v7610
      %v7757 = vpop.permute.xlu0 %7756
      %7760 = vset.pattern.permute.xlu0 0
      %7761 = vperm.xlu0 %7760, %v7611
      %v7762 = vpop.permute.xlu0 %7761
      %7765 = vset.pattern.permute.xlu0 0
      %7766 = vperm.xlu0 %7765, %v7612
      %v7767 = vpop.permute.xlu0 %7766
      %7770 = vset.pattern.permute.xlu0 0
      %7771 = vperm.xlu0 %7770, %v7613
      %v7772 = vpop.permute.xlu0 %7771
      %7775 = vset.pattern.permute.xlu0 0
      %7776 = vperm.xlu0 %7775, %v7614
      %v7777 = vpop.permute.xlu0 %7776
      %7780 = vset.pattern.permute.xlu0 0
      %7781 = vperm.xlu0 %7780, %v7615
      %v7782 = vpop.permute.xlu0 %7781
      %7785 = vset.pattern.permute.xlu0 0
      %7786 = vperm.xlu0 %7785, %v7616
      %v7787 = vpop.permute.xlu0 %7786
      %7790 = vset.pattern.permute.xlu0 0
      %7791 = vperm.xlu0 %7790, %v7617
      %v7792 = vpop.permute.xlu0 %7791
      %7795 = vset.pattern.permute.xlu0 0
      %7796 = vperm.xlu0 %7795, %v7618
      %v7797 = vpop.permute.xlu0 %7796
      %7800 = vset.pattern.permute.xlu0 0
      %7801 = vperm.xlu0 %7800, %v7619
      %v7802 = vpop.permute.xlu0 %7801
      %7805 = vset.pattern.permute.xlu0 0
      %7806 = vperm.xlu0 %7805, %v7620
      %v7807 = vpop.permute.xlu0 %7806
      %7810 = vset.pattern.permute.xlu0 0
      %7811 = vperm.xlu0 %7810, %v7621
      %v7812 = vpop.permute.xlu0 %7811
      %v7814 = vsel %vm7702, %v7737, 0.0
      %v7815 = vsel %vm7703, %v7737, 0.0
      %v7816 = vsel %vm7704, %v7742, 0.0
      %v7817 = vsel %vm7705, %v7742, 0.0
      %v7818 = vsel %vm7706, %v7747, 0.0
      %v7819 = vsel %vm7707, %v7747, 0.0
      %v7820 = vsel %vm7708, %v7752, 0.0
      %v7821 = vsel %vm7709, %v7752, 0.0
      %v7822 = vsel %vm7710, %v7757, 0.0
      %v7823 = vsel %vm7711, %v7757, 0.0
      %v7824 = vsel %vm7712, %v7762, 0.0
      %v7825 = vsel %vm7713, %v7762, 0.0
      %v7826 = vsel %vm7714, %v7767, 0.0
      %v7827 = vsel %vm7715, %v7767, 0.0
      %v7828 = vsel %vm7716, %v7772, 0.0
      %v7829 = vsel %vm7717, %v7772, 0.0
      %v7830 = vsel %vm7718, %v7777, 0.0
      %v7831 = vsel %vm7719, %v7777, 0.0
      %v7832 = vsel %vm7720, %v7782, 0.0
      %v7833 = vsel %vm7721, %v7782, 0.0
      %v7834 = vsel %vm7722, %v7787, 0.0
      %v7835 = vsel %vm7723, %v7787, 0.0
      %v7836 = vsel %vm7724, %v7792, 0.0
      %v7837 = vsel %vm7725, %v7792, 0.0
      %v7838 = vsel %vm7726, %v7797, 0.0
      %v7839 = vsel %vm7727, %v7797, 0.0
      %v7840 = vsel %vm7728, %v7802, 0.0
      %v7841 = vsel %vm7729, %v7802, 0.0
      %v7842 = vsel %vm7730, %v7807, 0.0
      %v7843 = vsel %vm7731, %v7807, 0.0
      %v7844 = vsel %vm7732, %v7812, 0.0
      %v7845 = vsel %vm7733, %v7812, 0.0
      %v7846 = vadd.f32 %v7814, 0.0
      %v7847 = vadd.f32 %v7815, 0.0
      %v7848 = vadd.f32 %v7816, 0.0
      %v7849 = vadd.f32 %v7817, 0.0
      %v7850 = vadd.f32 %v7818, 0.0
      %v7851 = vadd.f32 %v7819, 0.0
      %v7852 = vadd.f32 %v7820, 0.0
      %v7853 = vadd.f32 %v7821, 0.0
      %v7854 = vadd.f32 %v7822, 0.0
      %v7855 = vadd.f32 %v7823, 0.0
      %v7856 = vadd.f32 %v7824, 0.0
      %v7857 = vadd.f32 %v7825, 0.0
      %v7858 = vadd.f32 %v7826, 0.0
      %v7859 = vadd.f32 %v7827, 0.0
      %v7860 = vadd.f32 %v7828, 0.0
      %v7861 = vadd.f32 %v7829, 0.0
      %v7862 = vadd.f32 %v7830, 0.0
      %v7863 = vadd.f32 %v7831, 0.0
      %v7864 = vadd.f32 %v7832, 0.0
      %v7865 = vadd.f32 %v7833, 0.0
      %v7866 = vadd.f32 %v7834, 0.0
      %v7867 = vadd.f32 %v7835, 0.0
      %v7868 = vadd.f32 %v7836, 0.0
      %v7869 = vadd.f32 %v7837, 0.0
      %v7870 = vadd.f32 %v7838, 0.0
      %v7871 = vadd.f32 %v7839, 0.0
      %v7872 = vadd.f32 %v7840, 0.0
      %v7873 = vadd.f32 %v7841, 0.0
      %v7874 = vadd.f32 %v7842, 0.0
      %v7875 = vadd.f32 %v7843, 0.0
      %v7876 = vadd.f32 %v7844, 0.0
      %v7877 = vadd.f32 %v7845, 0.0
      %vm7878 = vcmp.ge.s32.totalorder %v7382, 0
      %vm7879 = vcmp.ge.s32.totalorder %v7383, 0
      %vm7880 = vcmp.ge.s32.totalorder %v7384, 0
      %vm7881 = vcmp.ge.s32.totalorder %v7385, 0
      %vm7882 = vcmp.ge.s32.totalorder %v7386, 0
      %vm7883 = vcmp.ge.s32.totalorder %v7387, 0
      %vm7884 = vcmp.ge.s32.totalorder %v7388, 0
      %vm7885 = vcmp.ge.s32.totalorder %v7389, 0
      %vm7886 = vcmp.ge.s32.totalorder %v7390, 0
      %vm7887 = vcmp.ge.s32.totalorder %v7391, 0
      %vm7888 = vcmp.ge.s32.totalorder %v7392, 0
      %vm7889 = vcmp.ge.s32.totalorder %v7393, 0
      %vm7890 = vcmp.ge.s32.totalorder %v7394, 0
      %vm7891 = vcmp.ge.s32.totalorder %v7395, 0
      %vm7892 = vcmp.ge.s32.totalorder %v7396, 0
      %vm7893 = vcmp.ge.s32.totalorder %v7397, 0
      %vm7894 = vcmp.lt.s32.totalorder %v7382, 16
      %vm7895 = vcmp.lt.s32.totalorder %v7383, 16
      %vm7896 = vcmp.lt.s32.totalorder %v7384, 16
      %vm7897 = vcmp.lt.s32.totalorder %v7385, 16
      %vm7898 = vcmp.lt.s32.totalorder %v7386, 16
      %vm7899 = vcmp.lt.s32.totalorder %v7387, 16
      %vm7900 = vcmp.lt.s32.totalorder %v7388, 16
      %vm7901 = vcmp.lt.s32.totalorder %v7389, 16
      %vm7902 = vcmp.lt.s32.totalorder %v7390, 16
      %vm7903 = vcmp.lt.s32.totalorder %v7391, 16
      %vm7904 = vcmp.lt.s32.totalorder %v7392, 16
      %vm7905 = vcmp.lt.s32.totalorder %v7393, 16
      %vm7906 = vcmp.lt.s32.totalorder %v7394, 16
      %vm7907 = vcmp.lt.s32.totalorder %v7395, 16
      %vm7908 = vcmp.lt.s32.totalorder %v7396, 16
      %vm7909 = vcmp.lt.s32.totalorder %v7397, 16
      %vm7910 = vmand %vm7878, %vm7894
      %vm7911 = vmand %vm7879, %vm7895
      %vm7912 = vmand %vm7880, %vm7896
      %vm7913 = vmand %vm7881, %vm7897
      %vm7914 = vmand %vm7882, %vm7898
      %vm7915 = vmand %vm7883, %vm7899
      %vm7916 = vmand %vm7884, %vm7900
      %vm7917 = vmand %vm7885, %vm7901
      %vm7918 = vmand %vm7886, %vm7902
      %vm7919 = vmand %vm7887, %vm7903
      %vm7920 = vmand %vm7888, %vm7904
      %vm7921 = vmand %vm7889, %vm7905
      %vm7922 = vmand %vm7890, %vm7906
      %vm7923 = vmand %vm7891, %vm7907
      %vm7924 = vmand %vm7892, %vm7908
      %vm7925 = vmand %vm7893, %vm7909
      %vm7926 = vmand %vm7910, %vm7542
      %vm7927 = vmand %vm7911, %vm7543
      %vm7928 = vmand %vm7912, %vm7544
      %vm7929 = vmand %vm7913, %vm7545
      %vm7930 = vmand %vm7914, %vm7546
      %vm7931 = vmand %vm7915, %vm7547
      %vm7932 = vmand %vm7916, %vm7548
      %vm7933 = vmand %vm7917, %vm7549
      %vm7934 = vmand %vm7918, %vm7550
      %vm7935 = vmand %vm7919, %vm7551
      %vm7936 = vmand %vm7920, %vm7552
      %vm7937 = vmand %vm7921, %vm7553
      %vm7938 = vmand %vm7922, %vm7554
      %vm7939 = vmand %vm7923, %vm7555
      %vm7940 = vmand %vm7924, %vm7556
      %vm7941 = vmand %vm7925, %vm7557
      %vm7942 = vmand %vm7926, %vm7574
      %vm7943 = vmand %vm7927, %vm7575
      %vm7944 = vmand %vm7928, %vm7576
      %vm7945 = vmand %vm7929, %vm7577
      %vm7946 = vmand %vm7930, %vm7578
      %vm7947 = vmand %vm7931, %vm7579
      %vm7948 = vmand %vm7932, %vm7580
      %vm7949 = vmand %vm7933, %vm7581
      %vm7950 = vmand %vm7934, %vm7582
      %vm7951 = vmand %vm7935, %vm7583
      %vm7952 = vmand %vm7936, %vm7584
      %vm7953 = vmand %vm7937, %vm7585
      %vm7954 = vmand %vm7938, %vm7586
      %vm7955 = vmand %vm7939, %vm7587
      %vm7956 = vmand %vm7940, %vm7588
      %vm7957 = vmand %vm7941, %vm7589
      %v7958 = vsel %vm7942, %v7446, 0.0
      %v7959 = vsel %vm7943, %v7447, 0.0
      %v7960 = vsel %vm7944, %v7448, 0.0
      %v7961 = vsel %vm7945, %v7449, 0.0
      %v7962 = vsel %vm7946, %v7450, 0.0
      %v7963 = vsel %vm7947, %v7451, 0.0
      %v7964 = vsel %vm7948, %v7452, 0.0
      %v7965 = vsel %vm7949, %v7453, 0.0
      %v7966 = vsel %vm7950, %v7454, 0.0
      %v7967 = vsel %vm7951, %v7455, 0.0
      %v7968 = vsel %vm7952, %v7456, 0.0
      %v7969 = vsel %vm7953, %v7457, 0.0
      %v7970 = vsel %vm7954, %v7458, 0.0
      %v7971 = vsel %vm7955, %v7459, 0.0
      %v7972 = vsel %vm7956, %v7460, 0.0
      %v7973 = vsel %vm7957, %v7461, 0.0
      %v7974 = vadd.s32 %v7622, %v7382
      %v7975 = vadd.s32 %v7623, %v7383
      %v7976 = vadd.s32 %v7624, %v7384
      %v7977 = vadd.s32 %v7625, %v7385
      %v7978 = vadd.s32 %v7626, %v7386
      %v7979 = vadd.s32 %v7627, %v7387
      %v7980 = vadd.s32 %v7628, %v7388
      %v7981 = vadd.s32 %v7629, %v7389
      %v7982 = vadd.s32 %v7630, %v7390
      %v7983 = vadd.s32 %v7631, %v7391
      %v7984 = vadd.s32 %v7632, %v7392
      %v7985 = vadd.s32 %v7633, %v7393
      %v7986 = vadd.s32 %v7634, %v7394
      %v7987 = vadd.s32 %v7635, %v7395
      %v7988 = vadd.s32 %v7636, %v7396
      %v7989 = vadd.s32 %v7637, %v7397
      %7990 = vset.pattern.permute.xlu0 0
      %7991 = vperm.xlu0 %7990, %v7974
      %v7992 = vpop.permute.xlu0 %7991
      %7993 = vset.pattern.permute.xlu0 0
      %7994 = vperm.xlu0 %7993, %v7975
      %v7995 = vpop.permute.xlu0 %7994
      %7996 = vset.pattern.permute.xlu0 0
      %7997 = vperm.xlu0 %7996, %v7976
      %v7998 = vpop.permute.xlu0 %7997
      %7999 = vset.pattern.permute.xlu0 0
      %8000 = vperm.xlu0 %7999, %v7977
      %v8001 = vpop.permute.xlu0 %8000
      %8002 = vset.pattern.permute.xlu0 0
      %8003 = vperm.xlu0 %8002, %v7978
      %v8004 = vpop.permute.xlu0 %8003
      %8005 = vset.pattern.permute.xlu0 0
      %8006 = vperm.xlu0 %8005, %v7979
      %v8007 = vpop.permute.xlu0 %8006
      %8008 = vset.pattern.permute.xlu0 0
      %8009 = vperm.xlu0 %8008, %v7980
      %v8010 = vpop.permute.xlu0 %8009
      %8011 = vset.pattern.permute.xlu0 0
      %8012 = vperm.xlu0 %8011, %v7981
      %v8013 = vpop.permute.xlu0 %8012
      %8014 = vset.pattern.permute.xlu0 0
      %8015 = vperm.xlu0 %8014, %v7982
      %v8016 = vpop.permute.xlu0 %8015
      %8017 = vset.pattern.permute.xlu0 0
      %8018 = vperm.xlu0 %8017, %v7983
      %v8019 = vpop.permute.xlu0 %8018
      %8020 = vset.pattern.permute.xlu0 0
      %8021 = vperm.xlu0 %8020, %v7984
      %v8022 = vpop.permute.xlu0 %8021
      %8023 = vset.pattern.permute.xlu0 0
      %8024 = vperm.xlu0 %8023, %v7985
      %v8025 = vpop.permute.xlu0 %8024
      %8026 = vset.pattern.permute.xlu0 0
      %8027 = vperm.xlu0 %8026, %v7986
      %v8028 = vpop.permute.xlu0 %8027
      %8029 = vset.pattern.permute.xlu0 0
      %8030 = vperm.xlu0 %8029, %v7987
      %v8031 = vpop.permute.xlu0 %8030
      %8032 = vset.pattern.permute.xlu0 0
      %8033 = vperm.xlu0 %8032, %v7988
      %v8034 = vpop.permute.xlu0 %8033
      %8035 = vset.pattern.permute.xlu0 0
      %8036 = vperm.xlu0 %8035, %v7989
      %v8037 = vpop.permute.xlu0 %8036
      %vm8038 = vcmp.eq.s32.totalorder %v164, %v7992
      %vm8039 = vcmp.eq.s32.totalorder %v165, %v7992
      %vm8040 = vcmp.eq.s32.totalorder %v164, %v7995
      %vm8041 = vcmp.eq.s32.totalorder %v165, %v7995
      %vm8042 = vcmp.eq.s32.totalorder %v164, %v7998
      %vm8043 = vcmp.eq.s32.totalorder %v165, %v7998
      %vm8044 = vcmp.eq.s32.totalorder %v164, %v8001
      %vm8045 = vcmp.eq.s32.totalorder %v165, %v8001
      %vm8046 = vcmp.eq.s32.totalorder %v164, %v8004
      %vm8047 = vcmp.eq.s32.totalorder %v165, %v8004
      %vm8048 = vcmp.eq.s32.totalorder %v164, %v8007
      %vm8049 = vcmp.eq.s32.totalorder %v165, %v8007
      %vm8050 = vcmp.eq.s32.totalorder %v164, %v8010
      %vm8051 = vcmp.eq.s32.totalorder %v165, %v8010
      %vm8052 = vcmp.eq.s32.totalorder %v164, %v8013
      %vm8053 = vcmp.eq.s32.totalorder %v165, %v8013
      %vm8054 = vcmp.eq.s32.totalorder %v164, %v8016
      %vm8055 = vcmp.eq.s32.totalorder %v165, %v8016
      %vm8056 = vcmp.eq.s32.totalorder %v164, %v8019
      %vm8057 = vcmp.eq.s32.totalorder %v165, %v8019
      %vm8058 = vcmp.eq.s32.totalorder %v164, %v8022
      %vm8059 = vcmp.eq.s32.totalorder %v165, %v8022
      %vm8060 = vcmp.eq.s32.totalorder %v164, %v8025
      %vm8061 = vcmp.eq.s32.totalorder %v165, %v8025
      %vm8062 = vcmp.eq.s32.totalorder %v164, %v8028
      %vm8063 = vcmp.eq.s32.totalorder %v165, %v8028
      %vm8064 = vcmp.eq.s32.totalorder %v164, %v8031
      %vm8065 = vcmp.eq.s32.totalorder %v165, %v8031
      %vm8066 = vcmp.eq.s32.totalorder %v164, %v8034
      %vm8067 = vcmp.eq.s32.totalorder %v165, %v8034
      %vm8068 = vcmp.eq.s32.totalorder %v164, %v8037
      %vm8069 = vcmp.eq.s32.totalorder %v165, %v8037
      %8071 = vset.pattern.permute.xlu0 0
      %8072 = vperm.xlu0 %8071, %v7958
      %v8073 = vpop.permute.xlu0 %8072
      %8076 = vset.pattern.permute.xlu0 0
      %8077 = vperm.xlu0 %8076, %v7959
      %v8078 = vpop.permute.xlu0 %8077
      %8081 = vset.pattern.permute.xlu0 0
      %8082 = vperm.xlu0 %8081, %v7960
      %v8083 = vpop.permute.xlu0 %8082
      %8086 = vset.pattern.permute.xlu0 0
      %8087 = vperm.xlu0 %8086, %v7961
      %v8088 = vpop.permute.xlu0 %8087
      %8091 = vset.pattern.permute.xlu0 0
      %8092 = vperm.xlu0 %8091, %v7962
      %v8093 = vpop.permute.xlu0 %8092
      %8096 = vset.pattern.permute.xlu0 0
      %8097 = vperm.xlu0 %8096, %v7963
      %v8098 = vpop.permute.xlu0 %8097
      %8101 = vset.pattern.permute.xlu0 0
      %8102 = vperm.xlu0 %8101, %v7964
      %v8103 = vpop.permute.xlu0 %8102
      %8106 = vset.pattern.permute.xlu0 0
      %8107 = vperm.xlu0 %8106, %v7965
      %v8108 = vpop.permute.xlu0 %8107
      %8111 = vset.pattern.permute.xlu0 0
      %8112 = vperm.xlu0 %8111, %v7966
      %v8113 = vpop.permute.xlu0 %8112
      %8116 = vset.pattern.permute.xlu0 0
      %8117 = vperm.xlu0 %8116, %v7967
      %v8118 = vpop.permute.xlu0 %8117
      %8121 = vset.pattern.permute.xlu0 0
      %8122 = vperm.xlu0 %8121, %v7968
      %v8123 = vpop.permute.xlu0 %8122
      %8126 = vset.pattern.permute.xlu0 0
      %8127 = vperm.xlu0 %8126, %v7969
      %v8128 = vpop.permute.xlu0 %8127
      %8131 = vset.pattern.permute.xlu0 0
      %8132 = vperm.xlu0 %8131, %v7970
      %v8133 = vpop.permute.xlu0 %8132
      %8136 = vset.pattern.permute.xlu0 0
      %8137 = vperm.xlu0 %8136, %v7971
      %v8138 = vpop.permute.xlu0 %8137
      %8141 = vset.pattern.permute.xlu0 0
      %8142 = vperm.xlu0 %8141, %v7972
      %v8143 = vpop.permute.xlu0 %8142
      %8146 = vset.pattern.permute.xlu0 0
      %8147 = vperm.xlu0 %8146, %v7973
      %v8148 = vpop.permute.xlu0 %8147
      %v8150 = vsel %vm8038, %v8073, 0.0
      %v8151 = vsel %vm8039, %v8073, 0.0
      %v8152 = vsel %vm8040, %v8078, 0.0
      %v8153 = vsel %vm8041, %v8078, 0.0
      %v8154 = vsel %vm8042, %v8083, 0.0
      %v8155 = vsel %vm8043, %v8083, 0.0
      %v8156 = vsel %vm8044, %v8088, 0.0
      %v8157 = vsel %vm8045, %v8088, 0.0
      %v8158 = vsel %vm8046, %v8093, 0.0
      %v8159 = vsel %vm8047, %v8093, 0.0
      %v8160 = vsel %vm8048, %v8098, 0.0
      %v8161 = vsel %vm8049, %v8098, 0.0
      %v8162 = vsel %vm8050, %v8103, 0.0
      %v8163 = vsel %vm8051, %v8103, 0.0
      %v8164 = vsel %vm8052, %v8108, 0.0
      %v8165 = vsel %vm8053, %v8108, 0.0
      %v8166 = vsel %vm8054, %v8113, 0.0
      %v8167 = vsel %vm8055, %v8113, 0.0
      %v8168 = vsel %vm8056, %v8118, 0.0
      %v8169 = vsel %vm8057, %v8118, 0.0
      %v8170 = vsel %vm8058, %v8123, 0.0
      %v8171 = vsel %vm8059, %v8123, 0.0
      %v8172 = vsel %vm8060, %v8128, 0.0
      %v8173 = vsel %vm8061, %v8128, 0.0
      %v8174 = vsel %vm8062, %v8133, 0.0
      %v8175 = vsel %vm8063, %v8133, 0.0
      %v8176 = vsel %vm8064, %v8138, 0.0
      %v8177 = vsel %vm8065, %v8138, 0.0
      %v8178 = vsel %vm8066, %v8143, 0.0
      %v8179 = vsel %vm8067, %v8143, 0.0
      %v8180 = vsel %vm8068, %v8148, 0.0
      %v8181 = vsel %vm8069, %v8148, 0.0
      %v8182 = vadd.f32 %v7846, %v8150
      %v8183 = vadd.f32 %v7847, %v8151
      %v8184 = vadd.f32 %v7848, %v8152
      %v8185 = vadd.f32 %v7849, %v8153
      %v8186 = vadd.f32 %v7850, %v8154
      %v8187 = vadd.f32 %v7851, %v8155
      %v8188 = vadd.f32 %v7852, %v8156
      %v8189 = vadd.f32 %v7853, %v8157
      %v8190 = vadd.f32 %v7854, %v8158
      %v8191 = vadd.f32 %v7855, %v8159
      %v8192 = vadd.f32 %v7856, %v8160
      %v8193 = vadd.f32 %v7857, %v8161
      %v8194 = vadd.f32 %v7858, %v8162
      %v8195 = vadd.f32 %v7859, %v8163
      %v8196 = vadd.f32 %v7860, %v8164
      %v8197 = vadd.f32 %v7861, %v8165
      %v8198 = vadd.f32 %v7862, %v8166
      %v8199 = vadd.f32 %v7863, %v8167
      %v8200 = vadd.f32 %v7864, %v8168
      %v8201 = vadd.f32 %v7865, %v8169
      %v8202 = vadd.f32 %v7866, %v8170
      %v8203 = vadd.f32 %v7867, %v8171
      %v8204 = vadd.f32 %v7868, %v8172
      %v8205 = vadd.f32 %v7869, %v8173
      %v8206 = vadd.f32 %v7870, %v8174
      %v8207 = vadd.f32 %v7871, %v8175
      %v8208 = vadd.f32 %v7872, %v8176
      %v8209 = vadd.f32 %v7873, %v8177
      %v8210 = vadd.f32 %v7874, %v8178
      %v8211 = vadd.f32 %v7875, %v8179
      %v8212 = vadd.f32 %v7876, %v8180
      %v8213 = vadd.f32 %v7877, %v8181
      %vm8214 = vcmp.ge.s32.totalorder %v7414, 0
      %vm8215 = vcmp.ge.s32.totalorder %v7415, 0
      %vm8216 = vcmp.ge.s32.totalorder %v7416, 0
      %vm8217 = vcmp.ge.s32.totalorder %v7417, 0
      %vm8218 = vcmp.ge.s32.totalorder %v7418, 0
      %vm8219 = vcmp.ge.s32.totalorder %v7419, 0
      %vm8220 = vcmp.ge.s32.totalorder %v7420, 0
      %vm8221 = vcmp.ge.s32.totalorder %v7421, 0
      %vm8222 = vcmp.ge.s32.totalorder %v7422, 0
      %vm8223 = vcmp.ge.s32.totalorder %v7423, 0
      %vm8224 = vcmp.ge.s32.totalorder %v7424, 0
      %vm8225 = vcmp.ge.s32.totalorder %v7425, 0
      %vm8226 = vcmp.ge.s32.totalorder %v7426, 0
      %vm8227 = vcmp.ge.s32.totalorder %v7427, 0
      %vm8228 = vcmp.ge.s32.totalorder %v7428, 0
      %vm8229 = vcmp.ge.s32.totalorder %v7429, 0
      %vm8230 = vmand %vm7526, %vm8214
      %vm8231 = vmand %vm7527, %vm8215
      %vm8232 = vmand %vm7528, %vm8216
      %vm8233 = vmand %vm7529, %vm8217
      %vm8234 = vmand %vm7530, %vm8218
      %vm8235 = vmand %vm7531, %vm8219
      %vm8236 = vmand %vm7532, %vm8220
      %vm8237 = vmand %vm7533, %vm8221
      %vm8238 = vmand %vm7534, %vm8222
      %vm8239 = vmand %vm7535, %vm8223
      %vm8240 = vmand %vm7536, %vm8224
      %vm8241 = vmand %vm7537, %vm8225
      %vm8242 = vmand %vm7538, %vm8226
      %vm8243 = vmand %vm7539, %vm8227
      %vm8244 = vmand %vm7540, %vm8228
      %vm8245 = vmand %vm7541, %vm8229
      %vm8246 = vcmp.lt.s32.totalorder %v7414, 16
      %vm8247 = vcmp.lt.s32.totalorder %v7415, 16
      %vm8248 = vcmp.lt.s32.totalorder %v7416, 16
      %vm8249 = vcmp.lt.s32.totalorder %v7417, 16
      %vm8250 = vcmp.lt.s32.totalorder %v7418, 16
      %vm8251 = vcmp.lt.s32.totalorder %v7419, 16
      %vm8252 = vcmp.lt.s32.totalorder %v7420, 16
      %vm8253 = vcmp.lt.s32.totalorder %v7421, 16
      %vm8254 = vcmp.lt.s32.totalorder %v7422, 16
      %vm8255 = vcmp.lt.s32.totalorder %v7423, 16
      %vm8256 = vcmp.lt.s32.totalorder %v7424, 16
      %vm8257 = vcmp.lt.s32.totalorder %v7425, 16
      %vm8258 = vcmp.lt.s32.totalorder %v7426, 16
      %vm8259 = vcmp.lt.s32.totalorder %v7427, 16
      %vm8260 = vcmp.lt.s32.totalorder %v7428, 16
      %vm8261 = vcmp.lt.s32.totalorder %v7429, 16
      %vm8262 = vmand %vm8230, %vm8246
      %vm8263 = vmand %vm8231, %vm8247
      %vm8264 = vmand %vm8232, %vm8248
      %vm8265 = vmand %vm8233, %vm8249
      %vm8266 = vmand %vm8234, %vm8250
      %vm8267 = vmand %vm8235, %vm8251
      %vm8268 = vmand %vm8236, %vm8252
      %vm8269 = vmand %vm8237, %vm8253
      %vm8270 = vmand %vm8238, %vm8254
      %vm8271 = vmand %vm8239, %vm8255
      %vm8272 = vmand %vm8240, %vm8256
      %vm8273 = vmand %vm8241, %vm8257
      %vm8274 = vmand %vm8242, %vm8258
      %vm8275 = vmand %vm8243, %vm8259
      %vm8276 = vmand %vm8244, %vm8260
      %vm8277 = vmand %vm8245, %vm8261
      %v8278 = vsel %vm8262, %v7462, 0.0
      %v8279 = vsel %vm8263, %v7463, 0.0
      %v8280 = vsel %vm8264, %v7464, 0.0
      %v8281 = vsel %vm8265, %v7465, 0.0
      %v8282 = vsel %vm8266, %v7466, 0.0
      %v8283 = vsel %vm8267, %v7467, 0.0
      %v8284 = vsel %vm8268, %v7468, 0.0
      %v8285 = vsel %vm8269, %v7469, 0.0
      %v8286 = vsel %vm8270, %v7470, 0.0
      %v8287 = vsel %vm8271, %v7471, 0.0
      %v8288 = vsel %vm8272, %v7472, 0.0
      %v8289 = vsel %vm8273, %v7473, 0.0
      %v8290 = vsel %vm8274, %v7474, 0.0
      %v8291 = vsel %vm8275, %v7475, 0.0
      %v8292 = vsel %vm8276, %v7476, 0.0
      %v8293 = vsel %vm8277, %v7477, 0.0
      %v8294 = vmul.u32 %v7414, 16
      %v8295 = vmul.u32 %v7415, 16
      %v8296 = vmul.u32 %v7416, 16
      %v8297 = vmul.u32 %v7417, 16
      %v8298 = vmul.u32 %v7418, 16
      %v8299 = vmul.u32 %v7419, 16
      %v8300 = vmul.u32 %v7420, 16
      %v8301 = vmul.u32 %v7421, 16
      %v8302 = vmul.u32 %v7422, 16
      %v8303 = vmul.u32 %v7423, 16
      %v8304 = vmul.u32 %v7424, 16
      %v8305 = vmul.u32 %v7425, 16
      %v8306 = vmul.u32 %v7426, 16
      %v8307 = vmul.u32 %v7427, 16
      %v8308 = vmul.u32 %v7428, 16
      %v8309 = vmul.u32 %v7429, 16
      %v8310 = vadd.s32 %v8294, %v7366
      %v8311 = vadd.s32 %v8295, %v7367
      %v8312 = vadd.s32 %v8296, %v7368
      %v8313 = vadd.s32 %v8297, %v7369
      %v8314 = vadd.s32 %v8298, %v7370
      %v8315 = vadd.s32 %v8299, %v7371
      %v8316 = vadd.s32 %v8300, %v7372
      %v8317 = vadd.s32 %v8301, %v7373
      %v8318 = vadd.s32 %v8302, %v7374
      %v8319 = vadd.s32 %v8303, %v7375
      %v8320 = vadd.s32 %v8304, %v7376
      %v8321 = vadd.s32 %v8305, %v7377
      %v8322 = vadd.s32 %v8306, %v7378
      %v8323 = vadd.s32 %v8307, %v7379
      %v8324 = vadd.s32 %v8308, %v7380
      %v8325 = vadd.s32 %v8309, %v7381
      %8326 = vset.pattern.permute.xlu0 0
      %8327 = vperm.xlu0 %8326, %v8310
      %v8328 = vpop.permute.xlu0 %8327
      %8329 = vset.pattern.permute.xlu0 0
      %8330 = vperm.xlu0 %8329, %v8311
      %v8331 = vpop.permute.xlu0 %8330
      %8332 = vset.pattern.permute.xlu0 0
      %8333 = vperm.xlu0 %8332, %v8312
      %v8334 = vpop.permute.xlu0 %8333
      %8335 = vset.pattern.permute.xlu0 0
      %8336 = vperm.xlu0 %8335, %v8313
      %v8337 = vpop.permute.xlu0 %8336
      %8338 = vset.pattern.permute.xlu0 0
      %8339 = vperm.xlu0 %8338, %v8314
      %v8340 = vpop.permute.xlu0 %8339
      %8341 = vset.pattern.permute.xlu0 0
      %8342 = vperm.xlu0 %8341, %v8315
      %v8343 = vpop.permute.xlu0 %8342
      %8344 = vset.pattern.permute.xlu0 0
      %8345 = vperm.xlu0 %8344, %v8316
      %v8346 = vpop.permute.xlu0 %8345
      %8347 = vset.pattern.permute.xlu0 0
      %8348 = vperm.xlu0 %8347, %v8317
      %v8349 = vpop.permute.xlu0 %8348
      %8350 = vset.pattern.permute.xlu0 0
      %8351 = vperm.xlu0 %8350, %v8318
      %v8352 = vpop.permute.xlu0 %8351
      %8353 = vset.pattern.permute.xlu0 0
      %8354 = vperm.xlu0 %8353, %v8319
      %v8355 = vpop.permute.xlu0 %8354
      %8356 = vset.pattern.permute.xlu0 0
      %8357 = vperm.xlu0 %8356, %v8320
      %v8358 = vpop.permute.xlu0 %8357
      %8359 = vset.pattern.permute.xlu0 0
      %8360 = vperm.xlu0 %8359, %v8321
      %v8361 = vpop.permute.xlu0 %8360
      %8362 = vset.pattern.permute.xlu0 0
      %8363 = vperm.xlu0 %8362, %v8322
      %v8364 = vpop.permute.xlu0 %8363
      %8365 = vset.pattern.permute.xlu0 0
      %8366 = vperm.xlu0 %8365, %v8323
      %v8367 = vpop.permute.xlu0 %8366
      %8368 = vset.pattern.permute.xlu0 0
      %8369 = vperm.xlu0 %8368, %v8324
      %v8370 = vpop.permute.xlu0 %8369
      %8371 = vset.pattern.permute.xlu0 0
      %8372 = vperm.xlu0 %8371, %v8325
      %v8373 = vpop.permute.xlu0 %8372
      %vm8374 = vcmp.eq.s32.totalorder %v164, %v8328
      %vm8375 = vcmp.eq.s32.totalorder %v165, %v8328
      %vm8376 = vcmp.eq.s32.totalorder %v164, %v8331
      %vm8377 = vcmp.eq.s32.totalorder %v165, %v8331
      %vm8378 = vcmp.eq.s32.totalorder %v164, %v8334
      %vm8379 = vcmp.eq.s32.totalorder %v165, %v8334
      %vm8380 = vcmp.eq.s32.totalorder %v164, %v8337
      %vm8381 = vcmp.eq.s32.totalorder %v165, %v8337
      %vm8382 = vcmp.eq.s32.totalorder %v164, %v8340
      %vm8383 = vcmp.eq.s32.totalorder %v165, %v8340
      %vm8384 = vcmp.eq.s32.totalorder %v164, %v8343
      %vm8385 = vcmp.eq.s32.totalorder %v165, %v8343
      %vm8386 = vcmp.eq.s32.totalorder %v164, %v8346
      %vm8387 = vcmp.eq.s32.totalorder %v165, %v8346
      %vm8388 = vcmp.eq.s32.totalorder %v164, %v8349
      %vm8389 = vcmp.eq.s32.totalorder %v165, %v8349
      %vm8390 = vcmp.eq.s32.totalorder %v164, %v8352
      %vm8391 = vcmp.eq.s32.totalorder %v165, %v8352
      %vm8392 = vcmp.eq.s32.totalorder %v164, %v8355
      %vm8393 = vcmp.eq.s32.totalorder %v165, %v8355
      %vm8394 = vcmp.eq.s32.totalorder %v164, %v8358
      %vm8395 = vcmp.eq.s32.totalorder %v165, %v8358
      %vm8396 = vcmp.eq.s32.totalorder %v164, %v8361
      %vm8397 = vcmp.eq.s32.totalorder %v165, %v8361
      %vm8398 = vcmp.eq.s32.totalorder %v164, %v8364
      %vm8399 = vcmp.eq.s32.totalorder %v165, %v8364
      %vm8400 = vcmp.eq.s32.totalorder %v164, %v8367
      %vm8401 = vcmp.eq.s32.totalorder %v165, %v8367
      %vm8402 = vcmp.eq.s32.totalorder %v164, %v8370
      %vm8403 = vcmp.eq.s32.totalorder %v165, %v8370
      %vm8404 = vcmp.eq.s32.totalorder %v164, %v8373
      %vm8405 = vcmp.eq.s32.totalorder %v165, %v8373
      %8407 = vset.pattern.permute.xlu0 0
      %8408 = vperm.xlu0 %8407, %v8278
      %v8409 = vpop.permute.xlu0 %8408
      %8412 = vset.pattern.permute.xlu0 0
      %8413 = vperm.xlu0 %8412, %v8279
      %v8414 = vpop.permute.xlu0 %8413
      %8417 = vset.pattern.permute.xlu0 0
      %8418 = vperm.xlu0 %8417, %v8280
      %v8419 = vpop.permute.xlu0 %8418
      %8422 = vset.pattern.permute.xlu0 0
      %8423 = vperm.xlu0 %8422, %v8281
      %v8424 = vpop.permute.xlu0 %8423
      %8427 = vset.pattern.permute.xlu0 0
      %8428 = vperm.xlu0 %8427, %v8282
      %v8429 = vpop.permute.xlu0 %8428
      %8432 = vset.pattern.permute.xlu0 0
      %8433 = vperm.xlu0 %8432, %v8283
      %v8434 = vpop.permute.xlu0 %8433
      %8437 = vset.pattern.permute.xlu0 0
      %8438 = vperm.xlu0 %8437, %v8284
      %v8439 = vpop.permute.xlu0 %8438
      %8442 = vset.pattern.permute.xlu0 0
      %8443 = vperm.xlu0 %8442, %v8285
      %v8444 = vpop.permute.xlu0 %8443
      %8447 = vset.pattern.permute.xlu0 0
      %8448 = vperm.xlu0 %8447, %v8286
      %v8449 = vpop.permute.xlu0 %8448
      %8452 = vset.pattern.permute.xlu0 0
      %8453 = vperm.xlu0 %8452, %v8287
      %v8454 = vpop.permute.xlu0 %8453
      %8457 = vset.pattern.permute.xlu0 0
      %8458 = vperm.xlu0 %8457, %v8288
      %v8459 = vpop.permute.xlu0 %8458
      %8462 = vset.pattern.permute.xlu0 0
      %8463 = vperm.xlu0 %8462, %v8289
      %v8464 = vpop.permute.xlu0 %8463
      %8467 = vset.pattern.permute.xlu0 0
      %8468 = vperm.xlu0 %8467, %v8290
      %v8469 = vpop.permute.xlu0 %8468
      %8472 = vset.pattern.permute.xlu0 0
      %8473 = vperm.xlu0 %8472, %v8291
      %v8474 = vpop.permute.xlu0 %8473
      %8477 = vset.pattern.permute.xlu0 0
      %8478 = vperm.xlu0 %8477, %v8292
      %v8479 = vpop.permute.xlu0 %8478
      %8482 = vset.pattern.permute.xlu0 0
      %8483 = vperm.xlu0 %8482, %v8293
      %v8484 = vpop.permute.xlu0 %8483
      %v8486 = vsel %vm8374, %v8409, 0.0
      %v8487 = vsel %vm8375, %v8409, 0.0
      %v8488 = vsel %vm8376, %v8414, 0.0
      %v8489 = vsel %vm8377, %v8414, 0.0
      %v8490 = vsel %vm8378, %v8419, 0.0
      %v8491 = vsel %vm8379, %v8419, 0.0
      %v8492 = vsel %vm8380, %v8424, 0.0
      %v8493 = vsel %vm8381, %v8424, 0.0
      %v8494 = vsel %vm8382, %v8429, 0.0
      %v8495 = vsel %vm8383, %v8429, 0.0
      %v8496 = vsel %vm8384, %v8434, 0.0
      %v8497 = vsel %vm8385, %v8434, 0.0
      %v8498 = vsel %vm8386, %v8439, 0.0
      %v8499 = vsel %vm8387, %v8439, 0.0
      %v8500 = vsel %vm8388, %v8444, 0.0
      %v8501 = vsel %vm8389, %v8444, 0.0
      %v8502 = vsel %vm8390, %v8449, 0.0
      %v8503 = vsel %vm8391, %v8449, 0.0
      %v8504 = vsel %vm8392, %v8454, 0.0
      %v8505 = vsel %vm8393, %v8454, 0.0
      %v8506 = vsel %vm8394, %v8459, 0.0
      %v8507 = vsel %vm8395, %v8459, 0.0
      %v8508 = vsel %vm8396, %v8464, 0.0
      %v8509 = vsel %vm8397, %v8464, 0.0
      %v8510 = vsel %vm8398, %v8469, 0.0
      %v8511 = vsel %vm8399, %v8469, 0.0
      %v8512 = vsel %vm8400, %v8474, 0.0
      %v8513 = vsel %vm8401, %v8474, 0.0
      %v8514 = vsel %vm8402, %v8479, 0.0
      %v8515 = vsel %vm8403, %v8479, 0.0
      %v8516 = vsel %vm8404, %v8484, 0.0
      %v8517 = vsel %vm8405, %v8484, 0.0
      %v8518 = vadd.f32 %v8182, %v8486
      %v8519 = vadd.f32 %v8183, %v8487
      %v8520 = vadd.f32 %v8184, %v8488
      %v8521 = vadd.f32 %v8185, %v8489
      %v8522 = vadd.f32 %v8186, %v8490
      %v8523 = vadd.f32 %v8187, %v8491
      %v8524 = vadd.f32 %v8188, %v8492
      %v8525 = vadd.f32 %v8189, %v8493
      %v8526 = vadd.f32 %v8190, %v8494
      %v8527 = vadd.f32 %v8191, %v8495
      %v8528 = vadd.f32 %v8192, %v8496
      %v8529 = vadd.f32 %v8193, %v8497
      %v8530 = vadd.f32 %v8194, %v8498
      %v8531 = vadd.f32 %v8195, %v8499
      %v8532 = vadd.f32 %v8196, %v8500
      %v8533 = vadd.f32 %v8197, %v8501
      %v8534 = vadd.f32 %v8198, %v8502
      %v8535 = vadd.f32 %v8199, %v8503
      %v8536 = vadd.f32 %v8200, %v8504
      %v8537 = vadd.f32 %v8201, %v8505
      %v8538 = vadd.f32 %v8202, %v8506
      %v8539 = vadd.f32 %v8203, %v8507
      %v8540 = vadd.f32 %v8204, %v8508
      %v8541 = vadd.f32 %v8205, %v8509
      %v8542 = vadd.f32 %v8206, %v8510
      %v8543 = vadd.f32 %v8207, %v8511
      %v8544 = vadd.f32 %v8208, %v8512
      %v8545 = vadd.f32 %v8209, %v8513
      %v8546 = vadd.f32 %v8210, %v8514
      %v8547 = vadd.f32 %v8211, %v8515
      %v8548 = vadd.f32 %v8212, %v8516
      %v8549 = vadd.f32 %v8213, %v8517
      %vm8550 = vmand %vm7910, %vm8214
      %vm8551 = vmand %vm7911, %vm8215
      %vm8552 = vmand %vm7912, %vm8216
      %vm8553 = vmand %vm7913, %vm8217
      %vm8554 = vmand %vm7914, %vm8218
      %vm8555 = vmand %vm7915, %vm8219
      %vm8556 = vmand %vm7916, %vm8220
      %vm8557 = vmand %vm7917, %vm8221
      %vm8558 = vmand %vm7918, %vm8222
      %vm8559 = vmand %vm7919, %vm8223
      %vm8560 = vmand %vm7920, %vm8224
      %vm8561 = vmand %vm7921, %vm8225
      %vm8562 = vmand %vm7922, %vm8226
      %vm8563 = vmand %vm7923, %vm8227
      %vm8564 = vmand %vm7924, %vm8228
      %vm8565 = vmand %vm7925, %vm8229
      %vm8566 = vmand %vm8550, %vm8246
      %vm8567 = vmand %vm8551, %vm8247
      %vm8568 = vmand %vm8552, %vm8248
      %vm8569 = vmand %vm8553, %vm8249
      %vm8570 = vmand %vm8554, %vm8250
      %vm8571 = vmand %vm8555, %vm8251
      %vm8572 = vmand %vm8556, %vm8252
      %vm8573 = vmand %vm8557, %vm8253
      %vm8574 = vmand %vm8558, %vm8254
      %vm8575 = vmand %vm8559, %vm8255
      %vm8576 = vmand %vm8560, %vm8256
      %vm8577 = vmand %vm8561, %vm8257
      %vm8578 = vmand %vm8562, %vm8258
      %vm8579 = vmand %vm8563, %vm8259
      %vm8580 = vmand %vm8564, %vm8260
      %vm8581 = vmand %vm8565, %vm8261
      %v8582 = vsel %vm8566, %v7478, 0.0
      %v8583 = vsel %vm8567, %v7479, 0.0
      %v8584 = vsel %vm8568, %v7480, 0.0
      %v8585 = vsel %vm8569, %v7481, 0.0
      %v8586 = vsel %vm8570, %v7482, 0.0
      %v8587 = vsel %vm8571, %v7483, 0.0
      %v8588 = vsel %vm8572, %v7484, 0.0
      %v8589 = vsel %vm8573, %v7485, 0.0
      %v8590 = vsel %vm8574, %v7486, 0.0
      %v8591 = vsel %vm8575, %v7487, 0.0
      %v8592 = vsel %vm8576, %v7488, 0.0
      %v8593 = vsel %vm8577, %v7489, 0.0
      %v8594 = vsel %vm8578, %v7490, 0.0
      %v8595 = vsel %vm8579, %v7491, 0.0
      %v8596 = vsel %vm8580, %v7492, 0.0
      %v8597 = vsel %vm8581, %v7493, 0.0
      %v8598 = vadd.s32 %v8294, %v7382
      %v8599 = vadd.s32 %v8295, %v7383
      %v8600 = vadd.s32 %v8296, %v7384
      %v8601 = vadd.s32 %v8297, %v7385
      %v8602 = vadd.s32 %v8298, %v7386
      %v8603 = vadd.s32 %v8299, %v7387
      %v8604 = vadd.s32 %v8300, %v7388
      %v8605 = vadd.s32 %v8301, %v7389
      %v8606 = vadd.s32 %v8302, %v7390
      %v8607 = vadd.s32 %v8303, %v7391
      %v8608 = vadd.s32 %v8304, %v7392
      %v8609 = vadd.s32 %v8305, %v7393
      %v8610 = vadd.s32 %v8306, %v7394
      %v8611 = vadd.s32 %v8307, %v7395
      %v8612 = vadd.s32 %v8308, %v7396
      %v8613 = vadd.s32 %v8309, %v7397
      %8614 = vset.pattern.permute.xlu0 0
      %8615 = vperm.xlu0 %8614, %v8598
      %v8616 = vpop.permute.xlu0 %8615
      %8617 = vset.pattern.permute.xlu0 0
      %8618 = vperm.xlu0 %8617, %v8599
      %v8619 = vpop.permute.xlu0 %8618
      %8620 = vset.pattern.permute.xlu0 0
      %8621 = vperm.xlu0 %8620, %v8600
      %v8622 = vpop.permute.xlu0 %8621
      %8623 = vset.pattern.permute.xlu0 0
      %8624 = vperm.xlu0 %8623, %v8601
      %v8625 = vpop.permute.xlu0 %8624
      %8626 = vset.pattern.permute.xlu0 0
      %8627 = vperm.xlu0 %8626, %v8602
      %v8628 = vpop.permute.xlu0 %8627
      %8629 = vset.pattern.permute.xlu0 0
      %8630 = vperm.xlu0 %8629, %v8603
      %v8631 = vpop.permute.xlu0 %8630
      %8632 = vset.pattern.permute.xlu0 0
      %8633 = vperm.xlu0 %8632, %v8604
      %v8634 = vpop.permute.xlu0 %8633
      %8635 = vset.pattern.permute.xlu0 0
      %8636 = vperm.xlu0 %8635, %v8605
      %v8637 = vpop.permute.xlu0 %8636
      %8638 = vset.pattern.permute.xlu0 0
      %8639 = vperm.xlu0 %8638, %v8606
      %v8640 = vpop.permute.xlu0 %8639
      %8641 = vset.pattern.permute.xlu0 0
      %8642 = vperm.xlu0 %8641, %v8607
      %v8643 = vpop.permute.xlu0 %8642
      %8644 = vset.pattern.permute.xlu0 0
      %8645 = vperm.xlu0 %8644, %v8608
      %v8646 = vpop.permute.xlu0 %8645
      %8647 = vset.pattern.permute.xlu0 0
      %8648 = vperm.xlu0 %8647, %v8609
      %v8649 = vpop.permute.xlu0 %8648
      %8650 = vset.pattern.permute.xlu0 0
      %8651 = vperm.xlu0 %8650, %v8610
      %v8652 = vpop.permute.xlu0 %8651
      %8653 = vset.pattern.permute.xlu0 0
      %8654 = vperm.xlu0 %8653, %v8611
      %v8655 = vpop.permute.xlu0 %8654
      %8656 = vset.pattern.permute.xlu0 0
      %8657 = vperm.xlu0 %8656, %v8612
      %v8658 = vpop.permute.xlu0 %8657
      %8659 = vset.pattern.permute.xlu0 0
      %8660 = vperm.xlu0 %8659, %v8613
      %v8661 = vpop.permute.xlu0 %8660
      %vm8662 = vcmp.eq.s32.totalorder %v164, %v8616
      %vm8663 = vcmp.eq.s32.totalorder %v165, %v8616
      %vm8664 = vcmp.eq.s32.totalorder %v164, %v8619
      %vm8665 = vcmp.eq.s32.totalorder %v165, %v8619
      %vm8666 = vcmp.eq.s32.totalorder %v164, %v8622
      %vm8667 = vcmp.eq.s32.totalorder %v165, %v8622
      %vm8668 = vcmp.eq.s32.totalorder %v164, %v8625
      %vm8669 = vcmp.eq.s32.totalorder %v165, %v8625
      %vm8670 = vcmp.eq.s32.totalorder %v164, %v8628
      %vm8671 = vcmp.eq.s32.totalorder %v165, %v8628
      %vm8672 = vcmp.eq.s32.totalorder %v164, %v8631
      %vm8673 = vcmp.eq.s32.totalorder %v165, %v8631
      %vm8674 = vcmp.eq.s32.totalorder %v164, %v8634
      %vm8675 = vcmp.eq.s32.totalorder %v165, %v8634
      %vm8676 = vcmp.eq.s32.totalorder %v164, %v8637
      %vm8677 = vcmp.eq.s32.totalorder %v165, %v8637
      %vm8678 = vcmp.eq.s32.totalorder %v164, %v8640
      %vm8679 = vcmp.eq.s32.totalorder %v165, %v8640
      %vm8680 = vcmp.eq.s32.totalorder %v164, %v8643
      %vm8681 = vcmp.eq.s32.totalorder %v165, %v8643
      %vm8682 = vcmp.eq.s32.totalorder %v164, %v8646
      %vm8683 = vcmp.eq.s32.totalorder %v165, %v8646
      %vm8684 = vcmp.eq.s32.totalorder %v164, %v8649
      %vm8685 = vcmp.eq.s32.totalorder %v165, %v8649
      %vm8686 = vcmp.eq.s32.totalorder %v164, %v8652
      %vm8687 = vcmp.eq.s32.totalorder %v165, %v8652
      %vm8688 = vcmp.eq.s32.totalorder %v164, %v8655
      %vm8689 = vcmp.eq.s32.totalorder %v165, %v8655
      %vm8690 = vcmp.eq.s32.totalorder %v164, %v8658
      %vm8691 = vcmp.eq.s32.totalorder %v165, %v8658
      %vm8692 = vcmp.eq.s32.totalorder %v164, %v8661
      %vm8693 = vcmp.eq.s32.totalorder %v165, %v8661
      %8695 = vset.pattern.permute.xlu0 0
      %8696 = vperm.xlu0 %8695, %v8582
      %v8697 = vpop.permute.xlu0 %8696
      %8700 = vset.pattern.permute.xlu0 0
      %8701 = vperm.xlu0 %8700, %v8583
      %v8702 = vpop.permute.xlu0 %8701
      %8705 = vset.pattern.permute.xlu0 0
      %8706 = vperm.xlu0 %8705, %v8584
      %v8707 = vpop.permute.xlu0 %8706
      %8710 = vset.pattern.permute.xlu0 0
      %8711 = vperm.xlu0 %8710, %v8585
      %v8712 = vpop.permute.xlu0 %8711
      %8715 = vset.pattern.permute.xlu0 0
      %8716 = vperm.xlu0 %8715, %v8586
      %v8717 = vpop.permute.xlu0 %8716
      %8720 = vset.pattern.permute.xlu0 0
      %8721 = vperm.xlu0 %8720, %v8587
      %v8722 = vpop.permute.xlu0 %8721
      %8725 = vset.pattern.permute.xlu0 0
      %8726 = vperm.xlu0 %8725, %v8588
      %v8727 = vpop.permute.xlu0 %8726
      %8730 = vset.pattern.permute.xlu0 0
      %8731 = vperm.xlu0 %8730, %v8589
      %v8732 = vpop.permute.xlu0 %8731
      %8735 = vset.pattern.permute.xlu0 0
      %8736 = vperm.xlu0 %8735, %v8590
      %v8737 = vpop.permute.xlu0 %8736
      %8740 = vset.pattern.permute.xlu0 0
      %8741 = vperm.xlu0 %8740, %v8591
      %v8742 = vpop.permute.xlu0 %8741
      %8745 = vset.pattern.permute.xlu0 0
      %8746 = vperm.xlu0 %8745, %v8592
      %v8747 = vpop.permute.xlu0 %8746
      %8750 = vset.pattern.permute.xlu0 0
      %8751 = vperm.xlu0 %8750, %v8593
      %v8752 = vpop.permute.xlu0 %8751
      %8755 = vset.pattern.permute.xlu0 0
      %8756 = vperm.xlu0 %8755, %v8594
      %v8757 = vpop.permute.xlu0 %8756
      %8760 = vset.pattern.permute.xlu0 0
      %8761 = vperm.xlu0 %8760, %v8595
      %v8762 = vpop.permute.xlu0 %8761
      %8765 = vset.pattern.permute.xlu0 0
      %8766 = vperm.xlu0 %8765, %v8596
      %v8767 = vpop.permute.xlu0 %8766
      %8770 = vset.pattern.permute.xlu0 0
      %8771 = vperm.xlu0 %8770, %v8597
      %v8772 = vpop.permute.xlu0 %8771
      %v8774 = vsel %vm8662, %v8697, 0.0
      %v8775 = vsel %vm8663, %v8697, 0.0
      %v8776 = vsel %vm8664, %v8702, 0.0
      %v8777 = vsel %vm8665, %v8702, 0.0
      %v8778 = vsel %vm8666, %v8707, 0.0
      %v8779 = vsel %vm8667, %v8707, 0.0
      %v8780 = vsel %vm8668, %v8712, 0.0
      %v8781 = vsel %vm8669, %v8712, 0.0
      %v8782 = vsel %vm8670, %v8717, 0.0
      %v8783 = vsel %vm8671, %v8717, 0.0
      %v8784 = vsel %vm8672, %v8722, 0.0
      %v8785 = vsel %vm8673, %v8722, 0.0
      %v8786 = vsel %vm8674, %v8727, 0.0
      %v8787 = vsel %vm8675, %v8727, 0.0
      %v8788 = vsel %vm8676, %v8732, 0.0
      %v8789 = vsel %vm8677, %v8732, 0.0
      %v8790 = vsel %vm8678, %v8737, 0.0
      %v8791 = vsel %vm8679, %v8737, 0.0
      %v8792 = vsel %vm8680, %v8742, 0.0
      %v8793 = vsel %vm8681, %v8742, 0.0
      %v8794 = vsel %vm8682, %v8747, 0.0
      %v8795 = vsel %vm8683, %v8747, 0.0
      %v8796 = vsel %vm8684, %v8752, 0.0
      %v8797 = vsel %vm8685, %v8752, 0.0
      %v8798 = vsel %vm8686, %v8757, 0.0
      %v8799 = vsel %vm8687, %v8757, 0.0
      %v8800 = vsel %vm8688, %v8762, 0.0
      %v8801 = vsel %vm8689, %v8762, 0.0
      %v8802 = vsel %vm8690, %v8767, 0.0
      %v8803 = vsel %vm8691, %v8767, 0.0
      %v8804 = vsel %vm8692, %v8772, 0.0
      %v8805 = vsel %vm8693, %v8772, 0.0
      %v8806 = vadd.f32 %v8518, %v8774
      %v8807 = vadd.f32 %v8519, %v8775
      %v8808 = vadd.f32 %v8520, %v8776
      %v8809 = vadd.f32 %v8521, %v8777
      %v8810 = vadd.f32 %v8522, %v8778
      %v8811 = vadd.f32 %v8523, %v8779
      %v8812 = vadd.f32 %v8524, %v8780
      %v8813 = vadd.f32 %v8525, %v8781
      %v8814 = vadd.f32 %v8526, %v8782
      %v8815 = vadd.f32 %v8527, %v8783
      %v8816 = vadd.f32 %v8528, %v8784
      %v8817 = vadd.f32 %v8529, %v8785
      %v8818 = vadd.f32 %v8530, %v8786
      %v8819 = vadd.f32 %v8531, %v8787
      %v8820 = vadd.f32 %v8532, %v8788
      %v8821 = vadd.f32 %v8533, %v8789
      %v8822 = vadd.f32 %v8534, %v8790
      %v8823 = vadd.f32 %v8535, %v8791
      %v8824 = vadd.f32 %v8536, %v8792
      %v8825 = vadd.f32 %v8537, %v8793
      %v8826 = vadd.f32 %v8538, %v8794
      %v8827 = vadd.f32 %v8539, %v8795
      %v8828 = vadd.f32 %v8540, %v8796
      %v8829 = vadd.f32 %v8541, %v8797
      %v8830 = vadd.f32 %v8542, %v8798
      %v8831 = vadd.f32 %v8543, %v8799
      %v8832 = vadd.f32 %v8544, %v8800
      %v8833 = vadd.f32 %v8545, %v8801
      %v8834 = vadd.f32 %v8546, %v8802
      %v8835 = vadd.f32 %v8547, %v8803
      %v8836 = vadd.f32 %v8548, %v8804
      %v8837 = vadd.f32 %v8549, %v8805
      %s8838 = scalar_lea.vmem %s1, 6
      %v8839 = vld [vmem:[%s8838] ss:$8 sm:$0x3]
      %v8841 = vperm.slane %v8839, 0
      %v8842 = vperm.slane %v8839, 1
      %v8845 = vmul.f32 %v8806, %v8841
      %v8846 = vmul.f32 %v8807, %v8842
      %v8847 = vmul.f32 %v8808, %v8841
      %v8848 = vmul.f32 %v8809, %v8842
      %v8849 = vmul.f32 %v8810, %v8841
      %v8850 = vmul.f32 %v8811, %v8842
      %v8851 = vmul.f32 %v8812, %v8841
      %v8852 = vmul.f32 %v8813, %v8842
      %v8853 = vmul.f32 %v8814, %v8841
      %v8854 = vmul.f32 %v8815, %v8842
      %v8855 = vmul.f32 %v8816, %v8841
      %v8856 = vmul.f32 %v8817, %v8842
      %v8857 = vmul.f32 %v8818, %v8841
      %v8858 = vmul.f32 %v8819, %v8842
      %v8859 = vmul.f32 %v8820, %v8841
      %v8860 = vmul.f32 %v8821, %v8842
      %v8861 = vmul.f32 %v8822, %v8841
      %v8862 = vmul.f32 %v8823, %v8842
      %v8863 = vmul.f32 %v8824, %v8841
      %v8864 = vmul.f32 %v8825, %v8842
      %v8865 = vmul.f32 %v8826, %v8841
      %v8866 = vmul.f32 %v8827, %v8842
      %v8867 = vmul.f32 %v8828, %v8841
      %v8868 = vmul.f32 %v8829, %v8842
      %v8869 = vmul.f32 %v8830, %v8841
      %v8870 = vmul.f32 %v8831, %v8842
      %v8871 = vmul.f32 %v8832, %v8841
      %v8872 = vmul.f32 %v8833, %v8842
      %v8873 = vmul.f32 %v8834, %v8841
      %v8874 = vmul.f32 %v8835, %v8842
      %v8875 = vmul.f32 %v8836, %v8841
      %v8876 = vmul.f32 %v8837, %v8842
      %v8877 = vadd.f32 %v8845, %v8846
      %8878 = vadd.xlane.f32.xlu0 %v8877
      %v8879 = vpop.xlane.xlu0 %8878
      %v8880 = vadd.f32 %v8847, %v8848
      %8881 = vadd.xlane.f32.xlu0 %v8880
      %v8882 = vpop.xlane.xlu0 %8881
      %v8883 = vadd.f32 %v8849, %v8850
      %8884 = vadd.xlane.f32.xlu0 %v8883
      %v8885 = vpop.xlane.xlu0 %8884
      %v8886 = vadd.f32 %v8851, %v8852
      %8887 = vadd.xlane.f32.xlu0 %v8886
      %v8888 = vpop.xlane.xlu0 %8887
      %v8889 = vadd.f32 %v8853, %v8854
      %8890 = vadd.xlane.f32.xlu0 %v8889
      %v8891 = vpop.xlane.xlu0 %8890
      %v8892 = vadd.f32 %v8855, %v8856
      %8893 = vadd.xlane.f32.xlu0 %v8892
      %v8894 = vpop.xlane.xlu0 %8893
      %v8895 = vadd.f32 %v8857, %v8858
      %8896 = vadd.xlane.f32.xlu0 %v8895
      %v8897 = vpop.xlane.xlu0 %8896
      %v8898 = vadd.f32 %v8859, %v8860
      %8899 = vadd.xlane.f32.xlu0 %v8898
      %v8900 = vpop.xlane.xlu0 %8899
      %v8901 = vadd.f32 %v8861, %v8862
      %8902 = vadd.xlane.f32.xlu0 %v8901
      %v8903 = vpop.xlane.xlu0 %8902
      %v8904 = vadd.f32 %v8863, %v8864
      %8905 = vadd.xlane.f32.xlu0 %v8904
      %v8906 = vpop.xlane.xlu0 %8905
      %v8907 = vadd.f32 %v8865, %v8866
      %8908 = vadd.xlane.f32.xlu0 %v8907
      %v8909 = vpop.xlane.xlu0 %8908
      %v8910 = vadd.f32 %v8867, %v8868
      %8911 = vadd.xlane.f32.xlu0 %v8910
      %v8912 = vpop.xlane.xlu0 %8911
      %v8913 = vadd.f32 %v8869, %v8870
      %8914 = vadd.xlane.f32.xlu0 %v8913
      %v8915 = vpop.xlane.xlu0 %8914
      %v8916 = vadd.f32 %v8871, %v8872
      %8917 = vadd.xlane.f32.xlu0 %v8916
      %v8918 = vpop.xlane.xlu0 %8917
      %v8919 = vadd.f32 %v8873, %v8874
      %8920 = vadd.xlane.f32.xlu0 %v8919
      %v8921 = vpop.xlane.xlu0 %8920
      %v8922 = vadd.f32 %v8875, %v8876
      %8923 = vadd.xlane.f32.xlu0 %v8922
      %v8924 = vpop.xlane.xlu0 %8923
      %s8925 = scalar_lea.vmem %s1, 7
      %v8926 = vld [vmem:[%s8925] ss:$8 sm:$0x3]
      %v8928 = vperm.slane %v8926, 0
      %v8929 = vperm.slane %v8926, 1
      %v8932 = vmul.f32 %v8806, %v8928
      %v8933 = vmul.f32 %v8807, %v8929
      %v8934 = vmul.f32 %v8808, %v8928
      %v8935 = vmul.f32 %v8809, %v8929
      %v8936 = vmul.f32 %v8810, %v8928
      %v8937 = vmul.f32 %v8811, %v8929
      %v8938 = vmul.f32 %v8812, %v8928
      %v8939 = vmul.f32 %v8813, %v8929
      %v8940 = vmul.f32 %v8814, %v8928
      %v8941 = vmul.f32 %v8815, %v8929
      %v8942 = vmul.f32 %v8816, %v8928
      %v8943 = vmul.f32 %v8817, %v8929
      %v8944 = vmul.f32 %v8818, %v8928
      %v8945 = vmul.f32 %v8819, %v8929
      %v8946 = vmul.f32 %v8820, %v8928
      %v8947 = vmul.f32 %v8821, %v8929
      %v8948 = vmul.f32 %v8822, %v8928
      %v8949 = vmul.f32 %v8823, %v8929
      %v8950 = vmul.f32 %v8824, %v8928
      %v8951 = vmul.f32 %v8825, %v8929
      %v8952 = vmul.f32 %v8826, %v8928
      %v8953 = vmul.f32 %v8827, %v8929
      %v8954 = vmul.f32 %v8828, %v8928
      %v8955 = vmul.f32 %v8829, %v8929
      %v8956 = vmul.f32 %v8830, %v8928
      %v8957 = vmul.f32 %v8831, %v8929
      %v8958 = vmul.f32 %v8832, %v8928
      %v8959 = vmul.f32 %v8833, %v8929
      %v8960 = vmul.f32 %v8834, %v8928
      %v8961 = vmul.f32 %v8835, %v8929
      %v8962 = vmul.f32 %v8836, %v8928
      %v8963 = vmul.f32 %v8837, %v8929
      %v8964 = vadd.f32 %v8932, %v8933
      %8965 = vadd.xlane.f32.xlu0 %v8964
      %v8966 = vpop.xlane.xlu0 %8965
      %v8967 = vadd.f32 %v8934, %v8935
      %8968 = vadd.xlane.f32.xlu0 %v8967
      %v8969 = vpop.xlane.xlu0 %8968
      %v8970 = vadd.f32 %v8936, %v8937
      %8971 = vadd.xlane.f32.xlu0 %v8970
      %v8972 = vpop.xlane.xlu0 %8971
      %v8973 = vadd.f32 %v8938, %v8939
      %8974 = vadd.xlane.f32.xlu0 %v8973
      %v8975 = vpop.xlane.xlu0 %8974
      %v8976 = vadd.f32 %v8940, %v8941
      %8977 = vadd.xlane.f32.xlu0 %v8976
      %v8978 = vpop.xlane.xlu0 %8977
      %v8979 = vadd.f32 %v8942, %v8943
      %8980 = vadd.xlane.f32.xlu0 %v8979
      %v8981 = vpop.xlane.xlu0 %8980
      %v8982 = vadd.f32 %v8944, %v8945
      %8983 = vadd.xlane.f32.xlu0 %v8982
      %v8984 = vpop.xlane.xlu0 %8983
      %v8985 = vadd.f32 %v8946, %v8947
      %8986 = vadd.xlane.f32.xlu0 %v8985
      %v8987 = vpop.xlane.xlu0 %8986
      %v8988 = vadd.f32 %v8948, %v8949
      %8989 = vadd.xlane.f32.xlu0 %v8988
      %v8990 = vpop.xlane.xlu0 %8989
      %v8991 = vadd.f32 %v8950, %v8951
      %8992 = vadd.xlane.f32.xlu0 %v8991
      %v8993 = vpop.xlane.xlu0 %8992
      %v8994 = vadd.f32 %v8952, %v8953
      %8995 = vadd.xlane.f32.xlu0 %v8994
      %v8996 = vpop.xlane.xlu0 %8995
      %v8997 = vadd.f32 %v8954, %v8955
      %8998 = vadd.xlane.f32.xlu0 %v8997
      %v8999 = vpop.xlane.xlu0 %8998
      %v9000 = vadd.f32 %v8956, %v8957
      %9001 = vadd.xlane.f32.xlu0 %v9000
      %v9002 = vpop.xlane.xlu0 %9001
      %v9003 = vadd.f32 %v8958, %v8959
      %9004 = vadd.xlane.f32.xlu0 %v9003
      %v9005 = vpop.xlane.xlu0 %9004
      %v9006 = vadd.f32 %v8960, %v8961
      %9007 = vadd.xlane.f32.xlu0 %v9006
      %v9008 = vpop.xlane.xlu0 %9007
      %v9009 = vadd.f32 %v8962, %v8963
      %9010 = vadd.xlane.f32.xlu0 %v9009
      %v9011 = vpop.xlane.xlu0 %9010
      %s9012 = scalar_lea.vmem %s1, 16
      %v9013 = vld [vmem:[%s9012] ss:$8 sm:$0x3]
      %v9015 = vperm.slane %v9013, 0
      %v9016 = vperm.slane %v9013, 1
      %v9019 = vmul.f32 %v8806, %v9015
      %v9020 = vmul.f32 %v8807, %v9016
      %v9021 = vmul.f32 %v8808, %v9015
      %v9022 = vmul.f32 %v8809, %v9016
      %v9023 = vmul.f32 %v8810, %v9015
      %v9024 = vmul.f32 %v8811, %v9016
      %v9025 = vmul.f32 %v8812, %v9015
      %v9026 = vmul.f32 %v8813, %v9016
      %v9027 = vmul.f32 %v8814, %v9015
      %v9028 = vmul.f32 %v8815, %v9016
      %v9029 = vmul.f32 %v8816, %v9015
      %v9030 = vmul.f32 %v8817, %v9016
      %v9031 = vmul.f32 %v8818, %v9015
      %v9032 = vmul.f32 %v8819, %v9016
      %v9033 = vmul.f32 %v8820, %v9015
      %v9034 = vmul.f32 %v8821, %v9016
      %v9035 = vmul.f32 %v8822, %v9015
      %v9036 = vmul.f32 %v8823, %v9016
      %v9037 = vmul.f32 %v8824, %v9015
      %v9038 = vmul.f32 %v8825, %v9016
      %v9039 = vmul.f32 %v8826, %v9015
      %v9040 = vmul.f32 %v8827, %v9016
      %v9041 = vmul.f32 %v8828, %v9015
      %v9042 = vmul.f32 %v8829, %v9016
      %v9043 = vmul.f32 %v8830, %v9015
      %v9044 = vmul.f32 %v8831, %v9016
      %v9045 = vmul.f32 %v8832, %v9015
      %v9046 = vmul.f32 %v8833, %v9016
      %v9047 = vmul.f32 %v8834, %v9015
      %v9048 = vmul.f32 %v8835, %v9016
      %v9049 = vmul.f32 %v8836, %v9015
      %v9050 = vmul.f32 %v8837, %v9016
      %v9051 = vadd.f32 %v9019, %v9020
      %9052 = vadd.xlane.f32.xlu0 %v9051
      %v9053 = vpop.xlane.xlu0 %9052
      %v9054 = vadd.f32 %v9021, %v9022
      %9055 = vadd.xlane.f32.xlu0 %v9054
      %v9056 = vpop.xlane.xlu0 %9055
      %v9057 = vadd.f32 %v9023, %v9024
      %9058 = vadd.xlane.f32.xlu0 %v9057
      %v9059 = vpop.xlane.xlu0 %9058
      %v9060 = vadd.f32 %v9025, %v9026
      %9061 = vadd.xlane.f32.xlu0 %v9060
      %v9062 = vpop.xlane.xlu0 %9061
      %v9063 = vadd.f32 %v9027, %v9028
      %9064 = vadd.xlane.f32.xlu0 %v9063
      %v9065 = vpop.xlane.xlu0 %9064
      %v9066 = vadd.f32 %v9029, %v9030
      %9067 = vadd.xlane.f32.xlu0 %v9066
      %v9068 = vpop.xlane.xlu0 %9067
      %v9069 = vadd.f32 %v9031, %v9032
      %9070 = vadd.xlane.f32.xlu0 %v9069
      %v9071 = vpop.xlane.xlu0 %9070
      %v9072 = vadd.f32 %v9033, %v9034
      %9073 = vadd.xlane.f32.xlu0 %v9072
      %v9074 = vpop.xlane.xlu0 %9073
      %v9075 = vadd.f32 %v9035, %v9036
      %9076 = vadd.xlane.f32.xlu0 %v9075
      %v9077 = vpop.xlane.xlu0 %9076
      %v9078 = vadd.f32 %v9037, %v9038
      %9079 = vadd.xlane.f32.xlu0 %v9078
      %v9080 = vpop.xlane.xlu0 %9079
      %v9081 = vadd.f32 %v9039, %v9040
      %9082 = vadd.xlane.f32.xlu0 %v9081
      %v9083 = vpop.xlane.xlu0 %9082
      %v9084 = vadd.f32 %v9041, %v9042
      %9085 = vadd.xlane.f32.xlu0 %v9084
      %v9086 = vpop.xlane.xlu0 %9085
      %v9087 = vadd.f32 %v9043, %v9044
      %9088 = vadd.xlane.f32.xlu0 %v9087
      %v9089 = vpop.xlane.xlu0 %9088
      %v9090 = vadd.f32 %v9045, %v9046
      %9091 = vadd.xlane.f32.xlu0 %v9090
      %v9092 = vpop.xlane.xlu0 %9091
      %v9093 = vadd.f32 %v9047, %v9048
      %9094 = vadd.xlane.f32.xlu0 %v9093
      %v9095 = vpop.xlane.xlu0 %9094
      %v9096 = vadd.f32 %v9049, %v9050
      %9097 = vadd.xlane.f32.xlu0 %v9096
      %v9098 = vpop.xlane.xlu0 %9097
      %vm9099 = vcmp.eq.s32.totalorder %v164, 0
      %v9100 = vsel %vm9099, %v2789, 0.0
      %v9101 = vsel %vm9099, %v2792, 0.0
      %v9102 = vsel %vm9099, %v2795, 0.0
      %v9103 = vsel %vm9099, %v2798, 0.0
      %v9104 = vsel %vm9099, %v2801, 0.0
      %v9105 = vsel %vm9099, %v2804, 0.0
      %v9106 = vsel %vm9099, %v2807, 0.0
      %v9107 = vsel %vm9099, %v2810, 0.0
      %v9108 = vsel %vm9099, %v2813, 0.0
      %v9109 = vsel %vm9099, %v2816, 0.0
      %v9110 = vsel %vm9099, %v2819, 0.0
      %v9111 = vsel %vm9099, %v2822, 0.0
      %v9112 = vsel %vm9099, %v2825, 0.0
      %v9113 = vsel %vm9099, %v2828, 0.0
      %v9114 = vsel %vm9099, %v2831, 0.0
      %v9115 = vsel %vm9099, %v2834, 0.0
      %vm9116 = vcmp.eq.s32.totalorder %v164, 1
      %v9117 = vsel %vm9116, %v2876, %v9100
      %v9118 = vsel %vm9116, %v2879, %v9101
      %v9119 = vsel %vm9116, %v2882, %v9102
      %v9120 = vsel %vm9116, %v2885, %v9103
      %v9121 = vsel %vm9116, %v2888, %v9104
      %v9122 = vsel %vm9116, %v2891, %v9105
      %v9123 = vsel %vm9116, %v2894, %v9106
      %v9124 = vsel %vm9116, %v2897, %v9107
      %v9125 = vsel %vm9116, %v2900, %v9108
      %v9126 = vsel %vm9116, %v2903, %v9109
      %v9127 = vsel %vm9116, %v2906, %v9110
      %v9128 = vsel %vm9116, %v2909, %v9111
      %v9129 = vsel %vm9116, %v2912, %v9112
      %v9130 = vsel %vm9116, %v2915, %v9113
      %v9131 = vsel %vm9116, %v2918, %v9114
      %v9132 = vsel %vm9116, %v2921, %v9115
      %vm9133 = vcmp.eq.s32.totalorder %v164, 2
      %v9134 = vsel %vm9133, %v2963, %v9117
      %v9135 = vsel %vm9133, %v2966, %v9118
      %v9136 = vsel %vm9133, %v2969, %v9119
      %v9137 = vsel %vm9133, %v2972, %v9120
      %v9138 = vsel %vm9133, %v2975, %v9121
      %v9139 = vsel %vm9133, %v2978, %v9122
      %v9140 = vsel %vm9133, %v2981, %v9123
      %v9141 = vsel %vm9133, %v2984, %v9124
      %v9142 = vsel %vm9133, %v2987, %v9125
      %v9143 = vsel %vm9133, %v2990, %v9126
      %v9144 = vsel %vm9133, %v2993, %v9127
      %v9145 = vsel %vm9133, %v2996, %v9128
      %v9146 = vsel %vm9133, %v2999, %v9129
      %v9147 = vsel %vm9133, %v3002, %v9130
      %v9148 = vsel %vm9133, %v3005, %v9131
      %v9149 = vsel %vm9133, %v3008, %v9132
      %vm9150 = vcmp.eq.s32.totalorder %v164, 3
      %v9151 = vsel %vm9150, %v5834, %v9134
      %v9152 = vsel %vm9150, %v5837, %v9135
      %v9153 = vsel %vm9150, %v5840, %v9136
      %v9154 = vsel %vm9150, %v5843, %v9137
      %v9155 = vsel %vm9150, %v5846, %v9138
      %v9156 = vsel %vm9150, %v5849, %v9139
      %v9157 = vsel %vm9150, %v5852, %v9140
      %v9158 = vsel %vm9150, %v5855, %v9141
      %v9159 = vsel %vm9150, %v5858, %v9142
      %v9160 = vsel %vm9150, %v5861, %v9143
      %v9161 = vsel %vm9150, %v5864, %v9144
      %v9162 = vsel %vm9150, %v5867, %v9145
      %v9163 = vsel %vm9150, %v5870, %v9146
      %v9164 = vsel %vm9150, %v5873, %v9147
      %v9165 = vsel %vm9150, %v5876, %v9148
      %v9166 = vsel %vm9150, %v5879, %v9149
      %vm9167 = vcmp.eq.s32.totalorder %v164, 4
      %v9168 = vsel %vm9167, %v5921, %v9151
      %v9169 = vsel %vm9167, %v5924, %v9152
      %v9170 = vsel %vm9167, %v5927, %v9153
      %v9171 = vsel %vm9167, %v5930, %v9154
      %v9172 = vsel %vm9167, %v5933, %v9155
      %v9173 = vsel %vm9167, %v5936, %v9156
      %v9174 = vsel %vm9167, %v5939, %v9157
      %v9175 = vsel %vm9167, %v5942, %v9158
      %v9176 = vsel %vm9167, %v5945, %v9159
      %v9177 = vsel %vm9167, %v5948, %v9160
      %v9178 = vsel %vm9167, %v5951, %v9161
      %v9179 = vsel %vm9167, %v5954, %v9162
      %v9180 = vsel %vm9167, %v5957, %v9163
      %v9181 = vsel %vm9167, %v5960, %v9164
      %v9182 = vsel %vm9167, %v5963, %v9165
      %v9183 = vsel %vm9167, %v5966, %v9166
      %vm9184 = vcmp.eq.s32.totalorder %v164, 5
      %v9185 = vsel %vm9184, %v6008, %v9168
      %v9186 = vsel %vm9184, %v6011, %v9169
      %v9187 = vsel %vm9184, %v6014, %v9170
      %v9188 = vsel %vm9184, %v6017, %v9171
      %v9189 = vsel %vm9184, %v6020, %v9172
      %v9190 = vsel %vm9184, %v6023, %v9173
      %v9191 = vsel %vm9184, %v6026, %v9174
      %v9192 = vsel %vm9184, %v6029, %v9175
      %v9193 = vsel %vm9184, %v6032, %v9176
      %v9194 = vsel %vm9184, %v6035, %v9177
      %v9195 = vsel %vm9184, %v6038, %v9178
      %v9196 = vsel %vm9184, %v6041, %v9179
      %v9197 = vsel %vm9184, %v6044, %v9180
      %v9198 = vsel %vm9184, %v6047, %v9181
      %v9199 = vsel %vm9184, %v6050, %v9182
      %v9200 = vsel %vm9184, %v6053, %v9183
      %vm9201 = vcmp.eq.s32.totalorder %v164, 6
      %v9202 = vsel %vm9201, %v8879, %v9185
      %v9203 = vsel %vm9201, %v8882, %v9186
      %v9204 = vsel %vm9201, %v8885, %v9187
      %v9205 = vsel %vm9201, %v8888, %v9188
      %v9206 = vsel %vm9201, %v8891, %v9189
      %v9207 = vsel %vm9201, %v8894, %v9190
      %v9208 = vsel %vm9201, %v8897, %v9191
      %v9209 = vsel %vm9201, %v8900, %v9192
      %v9210 = vsel %vm9201, %v8903, %v9193
      %v9211 = vsel %vm9201, %v8906, %v9194
      %v9212 = vsel %vm9201, %v8909, %v9195
      %v9213 = vsel %vm9201, %v8912, %v9196
      %v9214 = vsel %vm9201, %v8915, %v9197
      %v9215 = vsel %vm9201, %v8918, %v9198
      %v9216 = vsel %vm9201, %v8921, %v9199
      %v9217 = vsel %vm9201, %v8924, %v9200
      %vm9218 = vcmp.eq.s32.totalorder %v164, 7
      %v9219 = vsel %vm9218, %v8966, %v9202
      %v9220 = vsel %vm9218, %v8969, %v9203
      %v9221 = vsel %vm9218, %v8972, %v9204
      %v9222 = vsel %vm9218, %v8975, %v9205
      %v9223 = vsel %vm9218, %v8978, %v9206
      %v9224 = vsel %vm9218, %v8981, %v9207
      %v9225 = vsel %vm9218, %v8984, %v9208
      %v9226 = vsel %vm9218, %v8987, %v9209
      %v9227 = vsel %vm9218, %v8990, %v9210
      %v9228 = vsel %vm9218, %v8993, %v9211
      %v9229 = vsel %vm9218, %v8996, %v9212
      %v9230 = vsel %vm9218, %v8999, %v9213
      %v9231 = vsel %vm9218, %v9002, %v9214
      %v9232 = vsel %vm9218, %v9005, %v9215
      %v9233 = vsel %vm9218, %v9008, %v9216
      %v9234 = vsel %vm9218, %v9011, %v9217
      %vm9235 = vcmp.eq.s32.totalorder %v164, 8
      %v9236 = vsel %vm9235, %v9053, %v9219
      %v9237 = vsel %vm9235, %v9056, %v9220
      %v9238 = vsel %vm9235, %v9059, %v9221
      %v9239 = vsel %vm9235, %v9062, %v9222
      %v9240 = vsel %vm9235, %v9065, %v9223
      %v9241 = vsel %vm9235, %v9068, %v9224
      %v9242 = vsel %vm9235, %v9071, %v9225
      %v9243 = vsel %vm9235, %v9074, %v9226
      %v9244 = vsel %vm9235, %v9077, %v9227
      %v9245 = vsel %vm9235, %v9080, %v9228
      %v9246 = vsel %vm9235, %v9083, %v9229
      %v9247 = vsel %vm9235, %v9086, %v9230
      %v9248 = vsel %vm9235, %v9089, %v9231
      %v9249 = vsel %vm9235, %v9092, %v9232
      %v9250 = vsel %vm9235, %v9095, %v9233
      %v9251 = vsel %vm9235, %v9098, %v9234
      %vm9252 = vcmp.eq.s32.totalorder %v164, 9
      %9254 = vset.pattern.permute.xlu0 0
      %9255 = vperm.xlu0 %9254, %v941
      %v9256 = vpop.permute.xlu0 %9255
      %9259 = vset.pattern.permute.xlu0 0
      %9260 = vperm.xlu0 %9259, %v942
      %v9261 = vpop.permute.xlu0 %9260
      %9264 = vset.pattern.permute.xlu0 0
      %9265 = vperm.xlu0 %9264, %v943
      %v9266 = vpop.permute.xlu0 %9265
      %9269 = vset.pattern.permute.xlu0 0
      %9270 = vperm.xlu0 %9269, %v944
      %v9271 = vpop.permute.xlu0 %9270
      %9274 = vset.pattern.permute.xlu0 0
      %9275 = vperm.xlu0 %9274, %v945
      %v9276 = vpop.permute.xlu0 %9275
      %9279 = vset.pattern.permute.xlu0 0
      %9280 = vperm.xlu0 %9279, %v946
      %v9281 = vpop.permute.xlu0 %9280
      %9284 = vset.pattern.permute.xlu0 0
      %9285 = vperm.xlu0 %9284, %v947
      %v9286 = vpop.permute.xlu0 %9285
      %9289 = vset.pattern.permute.xlu0 0
      %9290 = vperm.xlu0 %9289, %v948
      %v9291 = vpop.permute.xlu0 %9290
      %9294 = vset.pattern.permute.xlu0 0
      %9295 = vperm.xlu0 %9294, %v949
      %v9296 = vpop.permute.xlu0 %9295
      %9299 = vset.pattern.permute.xlu0 0
      %9300 = vperm.xlu0 %9299, %v950
      %v9301 = vpop.permute.xlu0 %9300
      %9304 = vset.pattern.permute.xlu0 0
      %9305 = vperm.xlu0 %9304, %v951
      %v9306 = vpop.permute.xlu0 %9305
      %9309 = vset.pattern.permute.xlu0 0
      %9310 = vperm.xlu0 %9309, %v952
      %v9311 = vpop.permute.xlu0 %9310
      %9314 = vset.pattern.permute.xlu0 0
      %9315 = vperm.xlu0 %9314, %v953
      %v9316 = vpop.permute.xlu0 %9315
      %9319 = vset.pattern.permute.xlu0 0
      %9320 = vperm.xlu0 %9319, %v954
      %v9321 = vpop.permute.xlu0 %9320
      %9324 = vset.pattern.permute.xlu0 0
      %9325 = vperm.xlu0 %9324, %v955
      %v9326 = vpop.permute.xlu0 %9325
      %9329 = vset.pattern.permute.xlu0 0
      %9330 = vperm.xlu0 %9329, %v956
      %v9331 = vpop.permute.xlu0 %9330
      %v9333 = vsel %vm9252, %v9256, %v9236
      %v9334 = vsel %vm9252, %v9261, %v9237
      %v9335 = vsel %vm9252, %v9266, %v9238
      %v9336 = vsel %vm9252, %v9271, %v9239
      %v9337 = vsel %vm9252, %v9276, %v9240
      %v9338 = vsel %vm9252, %v9281, %v9241
      %v9339 = vsel %vm9252, %v9286, %v9242
      %v9340 = vsel %vm9252, %v9291, %v9243
      %v9341 = vsel %vm9252, %v9296, %v9244
      %v9342 = vsel %vm9252, %v9301, %v9245
      %v9343 = vsel %vm9252, %v9306, %v9246
      %v9344 = vsel %vm9252, %v9311, %v9247
      %v9345 = vsel %vm9252, %v9316, %v9248
      %v9346 = vsel %vm9252, %v9321, %v9249
      %v9347 = vsel %vm9252, %v9326, %v9250
      %v9348 = vsel %vm9252, %v9331, %v9251
      %vm9349 = vcmp.eq.s32.totalorder %v164, 10
      %9351 = vset.pattern.permute.xlu0 0
      %9352 = vperm.xlu0 %9351, %v1037
      %v9353 = vpop.permute.xlu0 %9352
      %9356 = vset.pattern.permute.xlu0 0
      %9357 = vperm.xlu0 %9356, %v1038
      %v9358 = vpop.permute.xlu0 %9357
      %9361 = vset.pattern.permute.xlu0 0
      %9362 = vperm.xlu0 %9361, %v1039
      %v9363 = vpop.permute.xlu0 %9362
      %9366 = vset.pattern.permute.xlu0 0
      %9367 = vperm.xlu0 %9366, %v1040
      %v9368 = vpop.permute.xlu0 %9367
      %9371 = vset.pattern.permute.xlu0 0
      %9372 = vperm.xlu0 %9371, %v1041
      %v9373 = vpop.permute.xlu0 %9372
      %9376 = vset.pattern.permute.xlu0 0
      %9377 = vperm.xlu0 %9376, %v1042
      %v9378 = vpop.permute.xlu0 %9377
      %9381 = vset.pattern.permute.xlu0 0
      %9382 = vperm.xlu0 %9381, %v1043
      %v9383 = vpop.permute.xlu0 %9382
      %9386 = vset.pattern.permute.xlu0 0
      %9387 = vperm.xlu0 %9386, %v1044
      %v9388 = vpop.permute.xlu0 %9387
      %9391 = vset.pattern.permute.xlu0 0
      %9392 = vperm.xlu0 %9391, %v1045
      %v9393 = vpop.permute.xlu0 %9392
      %9396 = vset.pattern.permute.xlu0 0
      %9397 = vperm.xlu0 %9396, %v1046
      %v9398 = vpop.permute.xlu0 %9397
      %9401 = vset.pattern.permute.xlu0 0
      %9402 = vperm.xlu0 %9401, %v1047
      %v9403 = vpop.permute.xlu0 %9402
      %9406 = vset.pattern.permute.xlu0 0
      %9407 = vperm.xlu0 %9406, %v1048
      %v9408 = vpop.permute.xlu0 %9407
      %9411 = vset.pattern.permute.xlu0 0
      %9412 = vperm.xlu0 %9411, %v1049
      %v9413 = vpop.permute.xlu0 %9412
      %9416 = vset.pattern.permute.xlu0 0
      %9417 = vperm.xlu0 %9416, %v1050
      %v9418 = vpop.permute.xlu0 %9417
      %9421 = vset.pattern.permute.xlu0 0
      %9422 = vperm.xlu0 %9421, %v1051
      %v9423 = vpop.permute.xlu0 %9422
      %9426 = vset.pattern.permute.xlu0 0
      %9427 = vperm.xlu0 %9426, %v1052
      %v9428 = vpop.permute.xlu0 %9427
      %v9430 = vsel %vm9349, %v9353, %v9333
      %v9431 = vsel %vm9349, %v9358, %v9334
      %v9432 = vsel %vm9349, %v9363, %v9335
      %v9433 = vsel %vm9349, %v9368, %v9336
      %v9434 = vsel %vm9349, %v9373, %v9337
      %v9435 = vsel %vm9349, %v9378, %v9338
      %v9436 = vsel %vm9349, %v9383, %v9339
      %v9437 = vsel %vm9349, %v9388, %v9340
      %v9438 = vsel %vm9349, %v9393, %v9341
      %v9439 = vsel %vm9349, %v9398, %v9342
      %v9440 = vsel %vm9349, %v9403, %v9343
      %v9441 = vsel %vm9349, %v9408, %v9344
      %v9442 = vsel %vm9349, %v9413, %v9345
      %v9443 = vsel %vm9349, %v9418, %v9346
      %v9444 = vsel %vm9349, %v9423, %v9347
      %v9445 = vsel %vm9349, %v9428, %v9348
      %vm9446 = vcmp.eq.s32.totalorder %v164, 11
      %9448 = vset.pattern.permute.xlu0 0
      %9449 = vperm.xlu0 %9448, %v3985
      %v9450 = vpop.permute.xlu0 %9449
      %9453 = vset.pattern.permute.xlu0 0
      %9454 = vperm.xlu0 %9453, %v3986
      %v9455 = vpop.permute.xlu0 %9454
      %9458 = vset.pattern.permute.xlu0 0
      %9459 = vperm.xlu0 %9458, %v3987
      %v9460 = vpop.permute.xlu0 %9459
      %9463 = vset.pattern.permute.xlu0 0
      %9464 = vperm.xlu0 %9463, %v3988
      %v9465 = vpop.permute.xlu0 %9464
      %9468 = vset.pattern.permute.xlu0 0
      %9469 = vperm.xlu0 %9468, %v3989
      %v9470 = vpop.permute.xlu0 %9469
      %9473 = vset.pattern.permute.xlu0 0
      %9474 = vperm.xlu0 %9473, %v3990
      %v9475 = vpop.permute.xlu0 %9474
      %9478 = vset.pattern.permute.xlu0 0
      %9479 = vperm.xlu0 %9478, %v3991
      %v9480 = vpop.permute.xlu0 %9479
      %9483 = vset.pattern.permute.xlu0 0
      %9484 = vperm.xlu0 %9483, %v3992
      %v9485 = vpop.permute.xlu0 %9484
      %9488 = vset.pattern.permute.xlu0 0
      %9489 = vperm.xlu0 %9488, %v3993
      %v9490 = vpop.permute.xlu0 %9489
      %9493 = vset.pattern.permute.xlu0 0
      %9494 = vperm.xlu0 %9493, %v3994
      %v9495 = vpop.permute.xlu0 %9494
      %9498 = vset.pattern.permute.xlu0 0
      %9499 = vperm.xlu0 %9498, %v3995
      %v9500 = vpop.permute.xlu0 %9499
      %9503 = vset.pattern.permute.xlu0 0
      %9504 = vperm.xlu0 %9503, %v3996
      %v9505 = vpop.permute.xlu0 %9504
      %9508 = vset.pattern.permute.xlu0 0
      %9509 = vperm.xlu0 %9508, %v3997
      %v9510 = vpop.permute.xlu0 %9509
      %9513 = vset.pattern.permute.xlu0 0
      %9514 = vperm.xlu0 %9513, %v3998
      %v9515 = vpop.permute.xlu0 %9514
      %9518 = vset.pattern.permute.xlu0 0
      %9519 = vperm.xlu0 %9518, %v3999
      %v9520 = vpop.permute.xlu0 %9519
      %9523 = vset.pattern.permute.xlu0 0
      %9524 = vperm.xlu0 %9523, %v4000
      %v9525 = vpop.permute.xlu0 %9524
      %v9527 = vsel %vm9446, %v9450, %v9430
      %v9528 = vsel %vm9446, %v9455, %v9431
      %v9529 = vsel %vm9446, %v9460, %v9432
      %v9530 = vsel %vm9446, %v9465, %v9433
      %v9531 = vsel %vm9446, %v9470, %v9434
      %v9532 = vsel %vm9446, %v9475, %v9435
      %v9533 = vsel %vm9446, %v9480, %v9436
      %v9534 = vsel %vm9446, %v9485, %v9437
      %v9535 = vsel %vm9446, %v9490, %v9438
      %v9536 = vsel %vm9446, %v9495, %v9439
      %v9537 = vsel %vm9446, %v9500, %v9440
      %v9538 = vsel %vm9446, %v9505, %v9441
      %v9539 = vsel %vm9446, %v9510, %v9442
      %v9540 = vsel %vm9446, %v9515, %v9443
      %v9541 = vsel %vm9446, %v9520, %v9444
      %v9542 = vsel %vm9446, %v9525, %v9445
      %vm9543 = vcmp.eq.s32.totalorder %v164, 12
      %9545 = vset.pattern.permute.xlu0 0
      %9546 = vperm.xlu0 %9545, %v4081
      %v9547 = vpop.permute.xlu0 %9546
      %9550 = vset.pattern.permute.xlu0 0
      %9551 = vperm.xlu0 %9550, %v4082
      %v9552 = vpop.permute.xlu0 %9551
      %9555 = vset.pattern.permute.xlu0 0
      %9556 = vperm.xlu0 %9555, %v4083
      %v9557 = vpop.permute.xlu0 %9556
      %9560 = vset.pattern.permute.xlu0 0
      %9561 = vperm.xlu0 %9560, %v4084
      %v9562 = vpop.permute.xlu0 %9561
      %9565 = vset.pattern.permute.xlu0 0
      %9566 = vperm.xlu0 %9565, %v4085
      %v9567 = vpop.permute.xlu0 %9566
      %9570 = vset.pattern.permute.xlu0 0
      %9571 = vperm.xlu0 %9570, %v4086
      %v9572 = vpop.permute.xlu0 %9571
      %9575 = vset.pattern.permute.xlu0 0
      %9576 = vperm.xlu0 %9575, %v4087
      %v9577 = vpop.permute.xlu0 %9576
      %9580 = vset.pattern.permute.xlu0 0
      %9581 = vperm.xlu0 %9580, %v4088
      %v9582 = vpop.permute.xlu0 %9581
      %9585 = vset.pattern.permute.xlu0 0
      %9586 = vperm.xlu0 %9585, %v4089
      %v9587 = vpop.permute.xlu0 %9586
      %9590 = vset.pattern.permute.xlu0 0
      %9591 = vperm.xlu0 %9590, %v4090
      %v9592 = vpop.permute.xlu0 %9591
      %9595 = vset.pattern.permute.xlu0 0
      %9596 = vperm.xlu0 %9595, %v4091
      %v9597 = vpop.permute.xlu0 %9596
      %9600 = vset.pattern.permute.xlu0 0
      %9601 = vperm.xlu0 %9600, %v4092
      %v9602 = vpop.permute.xlu0 %9601
      %9605 = vset.pattern.permute.xlu0 0
      %9606 = vperm.xlu0 %9605, %v4093
      %v9607 = vpop.permute.xlu0 %9606
      %9610 = vset.pattern.permute.xlu0 0
      %9611 = vperm.xlu0 %9610, %v4094
      %v9612 = vpop.permute.xlu0 %9611
      %9615 = vset.pattern.permute.xlu0 0
      %9616 = vperm.xlu0 %9615, %v4095
      %v9617 = vpop.permute.xlu0 %9616
      %9620 = vset.pattern.permute.xlu0 0
      %9621 = vperm.xlu0 %9620, %v4096
      %v9622 = vpop.permute.xlu0 %9621
      %v9624 = vsel %vm9543, %v9547, %v9527
      %v9625 = vsel %vm9543, %v9552, %v9528
      %v9626 = vsel %vm9543, %v9557, %v9529
      %v9627 = vsel %vm9543, %v9562, %v9530
      %v9628 = vsel %vm9543, %v9567, %v9531
      %v9629 = vsel %vm9543, %v9572, %v9532
      %v9630 = vsel %vm9543, %v9577, %v9533
      %v9631 = vsel %vm9543, %v9582, %v9534
      %v9632 = vsel %vm9543, %v9587, %v9535
      %v9633 = vsel %vm9543, %v9592, %v9536
      %v9634 = vsel %vm9543, %v9597, %v9537
      %v9635 = vsel %vm9543, %v9602, %v9538
      %v9636 = vsel %vm9543, %v9607, %v9539
      %v9637 = vsel %vm9543, %v9612, %v9540
      %v9638 = vsel %vm9543, %v9617, %v9541
      %v9639 = vsel %vm9543, %v9622, %v9542
      %vm9640 = vcmp.eq.s32.totalorder %v164, 13
      %9642 = vset.pattern.permute.xlu0 0
      %9643 = vperm.xlu0 %9642, %v7030
      %v9644 = vpop.permute.xlu0 %9643
      %9647 = vset.pattern.permute.xlu0 0
      %9648 = vperm.xlu0 %9647, %v7031
      %v9649 = vpop.permute.xlu0 %9648
      %9652 = vset.pattern.permute.xlu0 0
      %9653 = vperm.xlu0 %9652, %v7032
      %v9654 = vpop.permute.xlu0 %9653
      %9657 = vset.pattern.permute.xlu0 0
      %9658 = vperm.xlu0 %9657, %v7033
      %v9659 = vpop.permute.xlu0 %9658
      %9662 = vset.pattern.permute.xlu0 0
      %9663 = vperm.xlu0 %9662, %v7034
      %v9664 = vpop.permute.xlu0 %9663
      %9667 = vset.pattern.permute.xlu0 0
      %9668 = vperm.xlu0 %9667, %v7035
      %v9669 = vpop.permute.xlu0 %9668
      %9672 = vset.pattern.permute.xlu0 0
      %9673 = vperm.xlu0 %9672, %v7036
      %v9674 = vpop.permute.xlu0 %9673
      %9677 = vset.pattern.permute.xlu0 0
      %9678 = vperm.xlu0 %9677, %v7037
      %v9679 = vpop.permute.xlu0 %9678
      %9682 = vset.pattern.permute.xlu0 0
      %9683 = vperm.xlu0 %9682, %v7038
      %v9684 = vpop.permute.xlu0 %9683
      %9687 = vset.pattern.permute.xlu0 0
      %9688 = vperm.xlu0 %9687, %v7039
      %v9689 = vpop.permute.xlu0 %9688
      %9692 = vset.pattern.permute.xlu0 0
      %9693 = vperm.xlu0 %9692, %v7040
      %v9694 = vpop.permute.xlu0 %9693
      %9697 = vset.pattern.permute.xlu0 0
      %9698 = vperm.xlu0 %9697, %v7041
      %v9699 = vpop.permute.xlu0 %9698
      %9702 = vset.pattern.permute.xlu0 0
      %9703 = vperm.xlu0 %9702, %v7042
      %v9704 = vpop.permute.xlu0 %9703
      %9707 = vset.pattern.permute.xlu0 0
      %9708 = vperm.xlu0 %9707, %v7043
      %v9709 = vpop.permute.xlu0 %9708
      %9712 = vset.pattern.permute.xlu0 0
      %9713 = vperm.xlu0 %9712, %v7044
      %v9714 = vpop.permute.xlu0 %9713
      %9717 = vset.pattern.permute.xlu0 0
      %9718 = vperm.xlu0 %9717, %v7045
      %v9719 = vpop.permute.xlu0 %9718
      %v9721 = vsel %vm9640, %v9644, %v9624
      %v9722 = vsel %vm9640, %v9649, %v9625
      %v9723 = vsel %vm9640, %v9654, %v9626
      %v9724 = vsel %vm9640, %v9659, %v9627
      %v9725 = vsel %vm9640, %v9664, %v9628
      %v9726 = vsel %vm9640, %v9669, %v9629
      %v9727 = vsel %vm9640, %v9674, %v9630
      %v9728 = vsel %vm9640, %v9679, %v9631
      %v9729 = vsel %vm9640, %v9684, %v9632
      %v9730 = vsel %vm9640, %v9689, %v9633
      %v9731 = vsel %vm9640, %v9694, %v9634
      %v9732 = vsel %vm9640, %v9699, %v9635
      %v9733 = vsel %vm9640, %v9704, %v9636
      %v9734 = vsel %vm9640, %v9709, %v9637
      %v9735 = vsel %vm9640, %v9714, %v9638
      %v9736 = vsel %vm9640, %v9719, %v9639
      %vm9737 = vcmp.eq.s32.totalorder %v164, 14
      %9739 = vset.pattern.permute.xlu0 0
      %9740 = vperm.xlu0 %9739, %v7126
      %v9741 = vpop.permute.xlu0 %9740
      %9744 = vset.pattern.permute.xlu0 0
      %9745 = vperm.xlu0 %9744, %v7127
      %v9746 = vpop.permute.xlu0 %9745
      %9749 = vset.pattern.permute.xlu0 0
      %9750 = vperm.xlu0 %9749, %v7128
      %v9751 = vpop.permute.xlu0 %9750
      %9754 = vset.pattern.permute.xlu0 0
      %9755 = vperm.xlu0 %9754, %v7129
      %v9756 = vpop.permute.xlu0 %9755
      %9759 = vset.pattern.permute.xlu0 0
      %9760 = vperm.xlu0 %9759, %v7130
      %v9761 = vpop.permute.xlu0 %9760
      %9764 = vset.pattern.permute.xlu0 0
      %9765 = vperm.xlu0 %9764, %v7131
      %v9766 = vpop.permute.xlu0 %9765
      %9769 = vset.pattern.permute.xlu0 0
      %9770 = vperm.xlu0 %9769, %v7132
      %v9771 = vpop.permute.xlu0 %9770
      %9774 = vset.pattern.permute.xlu0 0
      %9775 = vperm.xlu0 %9774, %v7133
      %v9776 = vpop.permute.xlu0 %9775
      %9779 = vset.pattern.permute.xlu0 0
      %9780 = vperm.xlu0 %9779, %v7134
      %v9781 = vpop.permute.xlu0 %9780
      %9784 = vset.pattern.permute.xlu0 0
      %9785 = vperm.xlu0 %9784, %v7135
      %v9786 = vpop.permute.xlu0 %9785
      %9789 = vset.pattern.permute.xlu0 0
      %9790 = vperm.xlu0 %9789, %v7136
      %v9791 = vpop.permute.xlu0 %9790
      %9794 = vset.pattern.permute.xlu0 0
      %9795 = vperm.xlu0 %9794, %v7137
      %v9796 = vpop.permute.xlu0 %9795
      %9799 = vset.pattern.permute.xlu0 0
      %9800 = vperm.xlu0 %9799, %v7138
      %v9801 = vpop.permute.xlu0 %9800
      %9804 = vset.pattern.permute.xlu0 0
      %9805 = vperm.xlu0 %9804, %v7139
      %v9806 = vpop.permute.xlu0 %9805
      %9809 = vset.pattern.permute.xlu0 0
      %9810 = vperm.xlu0 %9809, %v7140
      %v9811 = vpop.permute.xlu0 %9810
      %9814 = vset.pattern.permute.xlu0 0
      %9815 = vperm.xlu0 %9814, %v7141
      %v9816 = vpop.permute.xlu0 %9815
      %v9818 = vsel %vm9737, %v9741, %v9721
      %v9819 = vsel %vm9737, %v9746, %v9722
      %v9820 = vsel %vm9737, %v9751, %v9723
      %v9821 = vsel %vm9737, %v9756, %v9724
      %v9822 = vsel %vm9737, %v9761, %v9725
      %v9823 = vsel %vm9737, %v9766, %v9726
      %v9824 = vsel %vm9737, %v9771, %v9727
      %v9825 = vsel %vm9737, %v9776, %v9728
      %v9826 = vsel %vm9737, %v9781, %v9729
      %v9827 = vsel %vm9737, %v9786, %v9730
      %v9828 = vsel %vm9737, %v9791, %v9731
      %v9829 = vsel %vm9737, %v9796, %v9732
      %v9830 = vsel %vm9737, %v9801, %v9733
      %v9831 = vsel %vm9737, %v9806, %v9734
      %v9832 = vsel %vm9737, %v9811, %v9735
      %v9833 = vsel %vm9737, %v9816, %v9736
      %vm9834 = vcmask 121856
      %9835 = vst.msk [vmem:[%s145] sm:$0xff] %vm9834, %v9818
      %9836 = vst.msk [vmem:[%s145 + $0x8] sm:$0xff] %vm9834, %v9819
      %9837 = vst.msk [vmem:[%s145 + $0x10] sm:$0xff] %vm9834, %v9820
      %9838 = vst.msk [vmem:[%s145 + $0x18] sm:$0xff] %vm9834, %v9821
      %9839 = vst.msk [vmem:[%s145 + $0x20] sm:$0xff] %vm9834, %v9822
      %9840 = vst.msk [vmem:[%s145 + $0x28] sm:$0xff] %vm9834, %v9823
      %9841 = vst.msk [vmem:[%s145 + $0x30] sm:$0xff] %vm9834, %v9824
      %9842 = vst.msk [vmem:[%s145 + $0x38] sm:$0xff] %vm9834, %v9825
      %9843 = vst.msk [vmem:[%s145 + $0x40] sm:$0xff] %vm9834, %v9826
      %9844 = vst.msk [vmem:[%s145 + $0x48] sm:$0xff] %vm9834, %v9827
      %9845 = vst.msk [vmem:[%s145 + $0x50] sm:$0xff] %vm9834, %v9828
      %9846 = vst.msk [vmem:[%s145 + $0x58] sm:$0xff] %vm9834, %v9829
      %9847 = vst.msk [vmem:[%s145 + $0x60] sm:$0xff] %vm9834, %v9830
      %9848 = vst.msk [vmem:[%s145 + $0x68] sm:$0xff] %vm9834, %v9831
      %9849 = vst.msk [vmem:[%s145 + $0x70] sm:$0xff] %vm9834, %v9832
      %9850 = vst.msk [vmem:[%s145 + $0x78] sm:$0xff] %vm9834, %v9833
      %s9851 = smul.u32 16, %s13
      %p9852 = scmp.lt.s32.totalorder %s9851, 31
      %s9853 = scalar_select %p9852, %s9851, 31
      %s9854 = smul.addr %s9853, 8
      %s9855 = scalar_lea.vmem %s2, %s9854
      // Predicated region
      $region29: #{llff_image_planes_forward.1} parent=27 // pred_check
        %p9856 = pneg %p78
      $region30: #{llff_image_planes_forward.1} parent=27 // pred_check_branch
        %9858 = sbr.rel (%p9856) target = $region32
      $region31: #{llff_image_planes_forward.1} parent=27 // pred_region
        %s9859 = smul.u32 16, %s13
      $region32: #{llff_image_planes_forward.1} parent=27 // pred_fallthru
        _
    $region28: #{llff_image_planes_forward.1} parent=5 // pred_fallthru
      _
    %p9860 = scmp.le.s32.totalorder 2, %s8
    // Predicated region
    $region33: #{llff_image_planes_forward.1} parent=5 // pred_check
      %p9861 = pneg %p9860
    $region34: #{llff_image_planes_forward.1} parent=5 // pred_check_branch
      %9863 = sbr.rel (%p9861) target = $region36
    $region35: #{llff_image_planes_forward.1} parent=5 // pred_region
      %s9864 = ssub.s32 %s8, 2
      // Predicated region
      $region37: #{llff_image_planes_forward.1} parent=35 // pred_check
        %p9865 = pneg %p84
      $region38: #{llff_image_planes_forward.1} parent=35 // pred_check_branch
        %9867 = sbr.rel (%p9865) target = $region40
      $region39: #{llff_image_planes_forward.1} parent=35 // pred_region
        %s9868 = smul.u32 16, %s14
        %p9869 = scmp.lt.s32.totalorder %s9868, 31
        %s9870 = scalar_select %p9869, %s9868, 31
        %s9871 = smul.addr %s9870, 8
        %s9872 = scalar_lea.vmem %s2, %s9871
      $region40: #{llff_image_planes_forward.1} parent=35 // pred_fallthru
        _
    $region36: #{llff_image_planes_forward.1} parent=5 // pred_fallthru
      _
  $region6: #{llff_image_planes_forward.1} parent=0 // loop_footer
    %s12 = sadd.s32 1, %s8
  $region7: #{llff_image_planes_forward.1} parent=0 // loop_footer_branch
    %7 = sbr.rel target = $region3
  $region8: #{llff_image_planes_forward.1} parent=0 // loop_exit
    _

</llo_original>
